<compile_context>
chip_gen: v5e
topology: v5e:2x2
jax: 0.10.0
libtpu: 0.0.40
codegen_flags: <defaults>
</compile_context>

<pallas_src>
import jax
import jax.numpy as jnp
from jax import lax
from jax.experimental import pallas as pl
from jax.experimental.pallas import tpu as pltpu

EPS = 1e-5
NEG_SLOPE = 0.2
IN_DIM, H1, H2 = 2048, 1024, 256


def _stable_sigmoid(x):
    # exp only of a non-positive argument -> no overflow for large |x|.
    e = jnp.exp(-jnp.abs(x))
    return jnp.where(x >= 0, 1.0 / (1.0 + e), e / (1.0 + e))


def _lrelu_bn(h, gamma, beta, gtile, b):
    """LeakyReLU(0.2) then per-batch BatchNorm (training mode, folded scale).

    h: (gtile*b, H) f32 fused rows; stats are taken per (gtile)-batch over its
    b rows, i.e. axis=1 of the (gtile, b, H) view.
    """
    feat = h.shape[-1]
    h = jnp.where(h >= 0, h, NEG_SLOPE * h)
    hf = h.reshape(gtile, b, feat)
    mu = jnp.mean(hf, axis=1, keepdims=True)
    d = hf - mu
    var = jnp.mean(d * d, axis=1, keepdims=True)
    out = d * (lax.rsqrt(var + EPS) * gamma) + beta       # scale folded into 1 mul
    return out.reshape(gtile * b, feat)


def discriminator_kernel(
    x_ref,                                   # (Gtile, B, 2048) f32
    w1_ref, b1_ref, g1_ref, be1_ref,         # bf16 / f32 / f32 / f32
    w2_ref, b2_ref, g2_ref, be2_ref,
    w3_ref, b3_ref,                          # (1, 256) f32, (1, 1) f32
    o_ref,                                   # (Gtile*B, 1) f32
):
    gtile, b, _ = x_ref.shape
    rows = gtile * b

    # Fused-row view for the MXU; VPU-cast to bf16 in-kernel (no extra HBM pass
    # for a wrapper-side convert, bf16 MXU throughput, f32 accumulation).
    x = x_ref[...].reshape(rows, IN_DIM).astype(jnp.bfloat16)

    # Layer 1: Linear(2048 -> 1024) + LeakyReLU + per-batch BatchNorm.
    h = jnp.dot(x, w1_ref[...], preferred_element_type=jnp.float32) + b1_ref[...]
    h = _lrelu_bn(h, g1_ref[...], be1_ref[...], gtile, b)             # (rows, 1024)

    # Layer 2: Linear(1024 -> 256) + LeakyReLU + per-batch BatchNorm.
    h = jnp.dot(h.astype(jnp.bfloat16), w2_ref[...],
                preferred_element_type=jnp.float32) + b2_ref[...]
    h = _lrelu_bn(h, g2_ref[...], be2_ref[...], gtile, b)             # (rows, 256)

    # Layer 3: Linear(256 -> 1) as VPU multiply + lane reduce (skip N=1 MXU op).
    logit = jnp.sum(h * w3_ref[...], axis=-1, keepdims=True) + b3_ref[...]
    o_ref[...] = _stable_sigmoid(logit)                               # (rows, 1)


def _choose_gtile(G, B, target_rows=256):
    """Largest divisor of G with Gtile*B <= target_rows; keep >=2 grid steps
    when G > 1 so both v7x TensorCores are fed (v5e/v6e: 1 TC, no-op)."""
    best = 1
    for gt in range(1, G + 1):
        if G % gt:
            continue
        if gt * B > target_rows:
            continue
        if G > 1 and G // gt < 2:
            continue
        best = gt
    return best


@jax.jit
def discriminator_forward_batched(x, params):
    """x: (G, B, 2048) — G independent BatchNorm batches of B rows each."""
    G, B, _ = x.shape
    (w1, b1, g1, be1, w2, b2, g2, be2, w3, b3) = params

    gtile = _choose_gtile(G, B)
    nsteps = G // gtile
    rows = gtile * B

    def resident(a):
        # Constant block index -> DMA'd once, VMEM-resident for all grid steps;
        # single-buffered (pl.Buffered(1)) since the block never changes,
        # saving ~4.5 MiB of VMEM vs. default double-buffering.
        return pl.BlockSpec(a.shape, lambda i, _nd=a.ndim: (0,) * _nd,
                            pipeline_mode=pl.Buffered(1))

    in_specs = (
        [pl.BlockSpec((gtile, B, IN_DIM), lambda i: (i, 0, 0))]
        + [resident(a) for a in (w1, b1, g1, be1, w2, b2, g2, be2, w3, b3)]
    )

    flops = 2 * G * B * (IN_DIM * H1 + H1 * H2 + H2)
    bytes_accessed = (
        x.size * x.dtype.itemsize                       # input, streamed per step
        + w1.size * w1.dtype.itemsize                   # weights DMA'd once
        + w2.size * w2.dtype.itemsize
        + 4 * (b1.size + g1.size + be1.size + b2.size + g2.size + be2.size
               + w3.size + b3.size)
        + 4 * G * B                                     # output
    )

    out = pl.pallas_call(
        discriminator_kernel,
        out_shape=jax.ShapeDtypeStruct((G * B, 1), jnp.float32),
        grid=(nsteps,),
        in_specs=in_specs,
        out_specs=pl.BlockSpec((rows, 1), lambda i: (i, 0)),
        compiler_params=pltpu.CompilerParams(
            dimension_semantics=("parallel",),          # split steps across TCs (v7x)
            vmem_limit_bytes=48 * 1024 * 1024,          # fits v7x's 64 MiB VMEM
        ),
        cost_estimate=pl.CostEstimate(
            flops=flops,
            transcendentals=G * (B + H1 + H2),          # sigmoid exp + BN rsqrt
            bytes_accessed=bytes_accessed,
        ),
    )(x, w1, b1, g1, be1, w2, b2, g2, be2, w3, b3)
    return out.reshape(G, B, 1)


def discriminator_forward(x, params):
    """Single BatchNorm batch x: (B, 2048) -> (B, 1), matching the torch module."""
    return discriminator_forward_batched(x[None], params)[0]


def init_params(key):
    """Deterministic parameter init (shapes from the torch module __init__)."""
    ks = jax.random.split(key, 6)

    def lin(kw, kb, fan_in, fan_out):
        bound = 1.0 / jnp.sqrt(fan_in)
        w = jax.random.uniform(kw, (fan_in, fan_out), jnp.float32, -bound, bound)
        b = jax.random.uniform(kb, (1, fan_out), jnp.float32, -bound, bound)
        return w, b

    w1, b1 = lin(ks[0], ks[1], IN_DIM, H1)
    w2, b2 = lin(ks[2], ks[3], H1, H2)
    w3c, b3 = lin(ks[4], ks[5], H2, 1)
    w3 = w3c.T                                # stored as (1, 256) row vector

    # BatchNorm affine params (gamma=1, beta=0 at init)
    g1, be1 = jnp.ones((1, H1), jnp.float32), jnp.zeros((1, H1), jnp.float32)
    g2, be2 = jnp.ones((1, H2), jnp.float32), jnp.zeros((1, H2), jnp.float32)

    # Heavy matmul weights quantized to bf16 ONCE here (outside the per-call
    # path) so the kernel streams 2 B/elem from HBM with no per-call convert.
    # NOTE: outputs therefore will not bit-match a pure-f32 torch module; BN
    # re-normalization keeps the deviation small (see tolerance in __main__).
    return (w1.astype(jnp.bfloat16), b1, g1, be1,
            w2.astype(jnp.bfloat16), b2, g2, be2, w3, b3)


def reference_forward_batched(x, params):
    """Pure-JAX reference applying the same bf16 matmul quantization."""
    (w1, b1, g1, be1, w2, b2, g2, be2, w3, b3) = params

    def bn(h, g, be):
        mu = jnp.mean(h, axis=1, keepdims=True)
        var = jnp.mean((h - mu) ** 2, axis=1, keepdims=True)
        return (h - mu) * (lax.rsqrt(var + EPS) * g) + be

    h = jnp.dot(x.astype(jnp.bfloat16), w1, preferred_element_type=jnp.float32) + b1
    h = bn(jnp.where(h >= 0, h, NEG_SLOPE * h), g1, be1)
    h = jnp.dot(h.astype(jnp.bfloat16), w2, preferred_element_type=jnp.float32) + b2
    h = bn(jnp.where(h >= 0, h, NEG_SLOPE * h), g2, be2)
    logit = jnp.sum(h * w3, axis=-1, keepdims=True) + b3
    return _stable_sigmoid(logit)


if __name__ == "__main__":
    key = jax.random.PRNGKey(0)
    k_x, k_p = jax.random.split(key)

    G, B = 8, 8   # 8 independent BatchNorm batches of 8 rows -> Gtile=4, 2 grid steps
    x = jax.random.normal(k_x, (G, B, IN_DIM), dtype=jnp.float32)
    params = init_params(k_p)

    out = jax.block_until_ready(discriminator_forward_batched(x, params))
    ref = reference_forward_batched(x, params)

    assert out.shape == (G, B, 1), out.shape
    err = float(jnp.max(jnp.abs(out - ref)))
    assert err < 5e-4, f"max abs diff {err}"
    print("KERNEL_OK")
</pallas_src>

<mosaic_0001>
module attributes {stable_mosaic.version = 11 : i64} {
  func.func @discriminator_kernel(%arg0: i32, %arg1: memref<4x8x2048xf32, #tpu.memory_space<vmem>>, %arg2: memref<2048x1024xbf16, #tpu.memory_space<vmem>>, %arg3: memref<1x1024xf32, #tpu.memory_space<vmem>>, %arg4: memref<1x1024xf32, #tpu.memory_space<vmem>>, %arg5: memref<1x1024xf32, #tpu.memory_space<vmem>>, %arg6: memref<1024x256xbf16, #tpu.memory_space<vmem>>, %arg7: memref<1x256xf32, #tpu.memory_space<vmem>>, %arg8: memref<1x256xf32, #tpu.memory_space<vmem>>, %arg9: memref<1x256xf32, #tpu.memory_space<vmem>>, %arg10: memref<1x256xf32, #tpu.memory_space<vmem>>, %arg11: memref<1x1xf32, #tpu.memory_space<vmem>>, %arg12: memref<32x1xf32, #tpu.memory_space<vmem>>) attributes {dimension_semantics = [#tpu.dimension_semantics<parallel>], iteration_bounds = array<i64: 2>, scalar_prefetch = 0 : i64, scratch_operands = 0 : i64, tpu.core_type = #tpu.core_type<tc>, window_params = [{transform_indices = @transform_0, window_bounds = array<i64: 4, 8, 2048>}, {pipeline_mode = #tpu.pipeline_mode<synchronous>, transform_indices = @transform_1, window_bounds = array<i64: 2048, 1024>}, {pipeline_mode = #tpu.pipeline_mode<synchronous>, transform_indices = @transform_2, window_bounds = array<i64: 1, 1024>}, {pipeline_mode = #tpu.pipeline_mode<synchronous>, transform_indices = @transform_3, window_bounds = array<i64: 1, 1024>}, {pipeline_mode = #tpu.pipeline_mode<synchronous>, transform_indices = @transform_4, window_bounds = array<i64: 1, 1024>}, {pipeline_mode = #tpu.pipeline_mode<synchronous>, transform_indices = @transform_5, window_bounds = array<i64: 1024, 256>}, {pipeline_mode = #tpu.pipeline_mode<synchronous>, transform_indices = @transform_6, window_bounds = array<i64: 1, 256>}, {pipeline_mode = #tpu.pipeline_mode<synchronous>, transform_indices = @transform_7, window_bounds = array<i64: 1, 256>}, {pipeline_mode = #tpu.pipeline_mode<synchronous>, transform_indices = @transform_8, window_bounds = array<i64: 1, 256>}, {pipeline_mode = #tpu.pipeline_mode<synchronous>, transform_indices = @transform_9, window_bounds = array<i64: 1, 256>}, {pipeline_mode = #tpu.pipeline_mode<synchronous>, transform_indices = @transform_10, window_bounds = array<i64: 1, 1>}, {transform_indices = @transform_11, window_bounds = array<i64: 32, 1>}]} {
    %c0 = arith.constant 0 : index
    %c0_0 = arith.constant 0 : index
    %c0_1 = arith.constant 0 : index
    %0 = vector.load %arg1[%c0, %c0_0, %c0_1] : memref<4x8x2048xf32, #tpu.memory_space<vmem>>, vector<4x8x2048xf32>
    %1 = vector.shape_cast %0 : vector<4x8x2048xf32> to vector<32x2048xf32>
    %2 = arith.truncf %1 : vector<32x2048xf32> to vector<32x2048xbf16>
    %c0_2 = arith.constant 0 : index
    %c0_3 = arith.constant 0 : index
    %3 = vector.load %arg2[%c0_2, %c0_3] : memref<2048x1024xbf16, #tpu.memory_space<vmem>>, vector<2048x1024xbf16>
    %cst = arith.constant dense<0.000000e+00> : vector<32x1024xf32>
    %4 = tpu.matmul %2, %3, %cst {dimension_numbers = #tpu.dot_dimension_numbers<[1], [0], [0], [1], [0, 0, 1, 1], [], []>} : vector<32x2048xbf16>, vector<2048x1024xbf16>, vector<32x1024xf32> -> vector<32x1024xf32>
    %c0_4 = arith.constant 0 : index
    %c0_5 = arith.constant 0 : index
    %5 = vector.load %arg3[%c0_4, %c0_5] : memref<1x1024xf32, #tpu.memory_space<vmem>>, vector<1x1024xf32>
    %6 = vector.broadcast %5 : vector<1x1024xf32> to vector<32x1024xf32>
    %7 = arith.addf %4, %6 : vector<32x1024xf32>
    %c0_6 = arith.constant 0 : index
    %c0_7 = arith.constant 0 : index
    %8 = vector.load %arg4[%c0_6, %c0_7] : memref<1x1024xf32, #tpu.memory_space<vmem>>, vector<1x1024xf32>
    %c0_8 = arith.constant 0 : index
    %c0_9 = arith.constant 0 : index
    %9 = vector.load %arg5[%c0_8, %c0_9] : memref<1x1024xf32, #tpu.memory_space<vmem>>, vector<1x1024xf32>
    %cst_10 = arith.constant 0.000000e+00 : f32
    %10 = vector.broadcast %cst_10 : f32 to vector<32x1024xf32>
    %11 = arith.cmpf oge, %7, %10 : vector<32x1024xf32>
    %cst_11 = arith.constant 2.000000e-01 : f32
    %12 = vector.broadcast %cst_11 : f32 to vector<32x1024xf32>
    %13 = arith.mulf %12, %7 : vector<32x1024xf32>
    %14 = arith.select %11, %7, %13 : vector<32x1024xi1>, vector<32x1024xf32>
    %15 = vector.shape_cast %14 : vector<32x1024xf32> to vector<4x8x1024xf32>
    %cst_12 = arith.constant dense<0.000000e+00> : vector<4x1024xf32>
    %16 = vector.multi_reduction <add>, %15, %cst_12 [1] : vector<4x8x1024xf32> to vector<4x1024xf32>
    %17 = vector.shape_cast %16 : vector<4x1024xf32> to vector<4x1x1024xf32>
    %cst_13 = arith.constant 8.000000e+00 : f32
    %18 = vector.broadcast %cst_13 : f32 to vector<4x1x1024xf32>
    %19 = arith.divf %17, %18 : vector<4x1x1024xf32>
    %20 = vector.broadcast %19 : vector<4x1x1024xf32> to vector<4x8x1024xf32>
    %21 = arith.subf %15, %20 : vector<4x8x1024xf32>
    %22 = arith.mulf %21, %21 : vector<4x8x1024xf32>
    %cst_14 = arith.constant dense<0.000000e+00> : vector<4x1024xf32>
    %23 = vector.multi_reduction <add>, %22, %cst_14 [1] : vector<4x8x1024xf32> to vector<4x1024xf32>
    %24 = vector.shape_cast %23 : vector<4x1024xf32> to vector<4x1x1024xf32>
    %cst_15 = arith.constant 8.000000e+00 : f32
    %25 = vector.broadcast %cst_15 : f32 to vector<4x1x1024xf32>
    %26 = arith.divf %24, %25 : vector<4x1x1024xf32>
    %cst_16 = arith.constant 9.99999974E-6 : f32
    %27 = vector.broadcast %cst_16 : f32 to vector<4x1x1024xf32>
    %28 = arith.addf %26, %27 : vector<4x1x1024xf32>
    %29 = math.rsqrt %28 : vector<4x1x1024xf32>
    %30 = vector.shape_cast %8 : vector<1x1024xf32> to vector<1x1x1024xf32>
    %31 = vector.broadcast %30 : vector<1x1x1024xf32> to vector<4x1x1024xf32>
    %32 = arith.mulf %29, %31 : vector<4x1x1024xf32>
    %33 = vector.broadcast %32 : vector<4x1x1024xf32> to vector<4x8x1024xf32>
    %34 = arith.mulf %21, %33 : vector<4x8x1024xf32>
    %35 = vector.shape_cast %9 : vector<1x1024xf32> to vector<1x1x1024xf32>
    %36 = vector.broadcast %35 : vector<1x1x1024xf32> to vector<4x8x1024xf32>
    %37 = arith.addf %34, %36 : vector<4x8x1024xf32>
    %38 = vector.shape_cast %37 : vector<4x8x1024xf32> to vector<32x1024xf32>
    %39 = arith.truncf %38 : vector<32x1024xf32> to vector<32x1024xbf16>
    %c0_17 = arith.constant 0 : index
    %c0_18 = arith.constant 0 : index
    %40 = vector.load %arg6[%c0_17, %c0_18] : memref<1024x256xbf16, #tpu.memory_space<vmem>>, vector<1024x256xbf16>
    %cst_19 = arith.constant dense<0.000000e+00> : vector<32x256xf32>
    %41 = tpu.matmul %39, %40, %cst_19 {dimension_numbers = #tpu.dot_dimension_numbers<[1], [0], [0], [1], [0, 0, 1, 1], [], []>} : vector<32x1024xbf16>, vector<1024x256xbf16>, vector<32x256xf32> -> vector<32x256xf32>
    %c0_20 = arith.constant 0 : index
    %c0_21 = arith.constant 0 : index
    %42 = vector.load %arg7[%c0_20, %c0_21] : memref<1x256xf32, #tpu.memory_space<vmem>>, vector<1x256xf32>
    %43 = vector.broadcast %42 : vector<1x256xf32> to vector<32x256xf32>
    %44 = arith.addf %41, %43 : vector<32x256xf32>
    %c0_22 = arith.constant 0 : index
    %c0_23 = arith.constant 0 : index
    %45 = vector.load %arg8[%c0_22, %c0_23] : memref<1x256xf32, #tpu.memory_space<vmem>>, vector<1x256xf32>
    %c0_24 = arith.constant 0 : index
    %c0_25 = arith.constant 0 : index
    %46 = vector.load %arg9[%c0_24, %c0_25] : memref<1x256xf32, #tpu.memory_space<vmem>>, vector<1x256xf32>
    %cst_26 = arith.constant 0.000000e+00 : f32
    %47 = vector.broadcast %cst_26 : f32 to vector<32x256xf32>
    %48 = arith.cmpf oge, %44, %47 : vector<32x256xf32>
    %cst_27 = arith.constant 2.000000e-01 : f32
    %49 = vector.broadcast %cst_27 : f32 to vector<32x256xf32>
    %50 = arith.mulf %49, %44 : vector<32x256xf32>
    %51 = arith.select %48, %44, %50 : vector<32x256xi1>, vector<32x256xf32>
    %52 = vector.shape_cast %51 : vector<32x256xf32> to vector<4x8x256xf32>
    %cst_28 = arith.constant dense<0.000000e+00> : vector<4x256xf32>
    %53 = vector.multi_reduction <add>, %52, %cst_28 [1] : vector<4x8x256xf32> to vector<4x256xf32>
    %54 = vector.shape_cast %53 : vector<4x256xf32> to vector<4x1x256xf32>
    %cst_29 = arith.constant 8.000000e+00 : f32
    %55 = vector.broadcast %cst_29 : f32 to vector<4x1x256xf32>
    %56 = arith.divf %54, %55 : vector<4x1x256xf32>
    %57 = vector.broadcast %56 : vector<4x1x256xf32> to vector<4x8x256xf32>
    %58 = arith.subf %52, %57 : vector<4x8x256xf32>
    %59 = arith.mulf %58, %58 : vector<4x8x256xf32>
    %cst_30 = arith.constant dense<0.000000e+00> : vector<4x256xf32>
    %60 = vector.multi_reduction <add>, %59, %cst_30 [1] : vector<4x8x256xf32> to vector<4x256xf32>
    %61 = vector.shape_cast %60 : vector<4x256xf32> to vector<4x1x256xf32>
    %cst_31 = arith.constant 8.000000e+00 : f32
    %62 = vector.broadcast %cst_31 : f32 to vector<4x1x256xf32>
    %63 = arith.divf %61, %62 : vector<4x1x256xf32>
    %cst_32 = arith.constant 9.99999974E-6 : f32
    %64 = vector.broadcast %cst_32 : f32 to vector<4x1x256xf32>
    %65 = arith.addf %63, %64 : vector<4x1x256xf32>
    %66 = math.rsqrt %65 : vector<4x1x256xf32>
    %67 = vector.shape_cast %45 : vector<1x256xf32> to vector<1x1x256xf32>
    %68 = vector.broadcast %67 : vector<1x1x256xf32> to vector<4x1x256xf32>
    %69 = arith.mulf %66, %68 : vector<4x1x256xf32>
    %70 = vector.broadcast %69 : vector<4x1x256xf32> to vector<4x8x256xf32>
    %71 = arith.mulf %58, %70 : vector<4x8x256xf32>
    %72 = vector.shape_cast %46 : vector<1x256xf32> to vector<1x1x256xf32>
    %73 = vector.broadcast %72 : vector<1x1x256xf32> to vector<4x8x256xf32>
    %74 = arith.addf %71, %73 : vector<4x8x256xf32>
    %75 = vector.shape_cast %74 : vector<4x8x256xf32> to vector<32x256xf32>
    %c0_33 = arith.constant 0 : index
    %c0_34 = arith.constant 0 : index
    %76 = vector.load %arg10[%c0_33, %c0_34] : memref<1x256xf32, #tpu.memory_space<vmem>>, vector<1x256xf32>
    %77 = vector.broadcast %76 : vector<1x256xf32> to vector<32x256xf32>
    %78 = arith.mulf %75, %77 : vector<32x256xf32>
    %cst_35 = arith.constant dense<0.000000e+00> : vector<32xf32>
    %79 = vector.multi_reduction <add>, %78, %cst_35 [1] : vector<32x256xf32> to vector<32xf32>
    %80 = vector.shape_cast %79 : vector<32xf32> to vector<32x1xf32>
    %c0_36 = arith.constant 0 : index
    %c0_37 = arith.constant 0 : index
    %81 = vector.load %arg11[%c0_36, %c0_37] : memref<1x1xf32, #tpu.memory_space<vmem>>, vector<1x1xf32>
    %82 = vector.broadcast %81 : vector<1x1xf32> to vector<32x1xf32>
    %83 = arith.addf %80, %82 : vector<32x1xf32>
    %84 = math.absf %83 : vector<32x1xf32>
    %cst_38 = arith.constant 0.000000e+00 : f32
    %85 = vector.broadcast %cst_38 : f32 to vector<32x1xf32>
    %86 = arith.subf %85, %84 : vector<32x1xf32>
    %87 = math.exp %86 : vector<32x1xf32>
    %cst_39 = arith.constant 0.000000e+00 : f32
    %88 = vector.broadcast %cst_39 : f32 to vector<32x1xf32>
    %89 = arith.cmpf oge, %83, %88 : vector<32x1xf32>
    %cst_40 = arith.constant 1.000000e+00 : f32
    %90 = vector.broadcast %cst_40 : f32 to vector<32x1xf32>
    %91 = arith.addf %90, %87 : vector<32x1xf32>
    %cst_41 = arith.constant 1.000000e+00 : f32
    %92 = vector.broadcast %cst_41 : f32 to vector<32x1xf32>
    %93 = arith.divf %92, %91 : vector<32x1xf32>
    %cst_42 = arith.constant 1.000000e+00 : f32
    %94 = vector.broadcast %cst_42 : f32 to vector<32x1xf32>
    %95 = arith.addf %94, %87 : vector<32x1xf32>
    %96 = arith.divf %87, %95 : vector<32x1xf32>
    %97 = arith.select %89, %93, %96 : vector<32x1xi1>, vector<32x1xf32>
    %c0_43 = arith.constant 0 : index
    %c0_44 = arith.constant 0 : index
    %98 = vector.load %arg12[%c0_43, %c0_44] : memref<32x1xf32, #tpu.memory_space<vmem>>, vector<32x1xf32>
    tpu.vector_store %arg12[%c0_43, %c0_44], %97 {strides = array<i32>} : memref<32x1xf32, #tpu.memory_space<vmem>>, vector<32x1xf32>,
    return
  }
  func.func @transform_0(%arg0: i32) -> (i32, i32, i32) {
    %c0_i32 = arith.constant 0 : i32
    %c0_i32_0 = arith.constant 0 : i32
    %c0_i32_1 = arith.constant 0 : i32
    return %arg0, %c0_i32, %c0_i32_0 : i32, i32, i32
  }
  func.func @transform_1(%arg0: i32) -> (i32, i32) {
    %c0_i32 = arith.constant 0 : i32
    %c0_i32_0 = arith.constant 0 : i32
    %c0_i32_1 = arith.constant 0 : i32
    return %c0_i32, %c0_i32_0 : i32, i32
  }
  func.func @transform_2(%arg0: i32) -> (i32, i32) {
    %c0_i32 = arith.constant 0 : i32
    %c0_i32_0 = arith.constant 0 : i32
    %c0_i32_1 = arith.constant 0 : i32
    return %c0_i32, %c0_i32_0 : i32, i32
  }
  func.func @transform_3(%arg0: i32) -> (i32, i32) {
    %c0_i32 = arith.constant 0 : i32
    %c0_i32_0 = arith.constant 0 : i32
    %c0_i32_1 = arith.constant 0 : i32
    return %c0_i32, %c0_i32_0 : i32, i32
  }
  func.func @transform_4(%arg0: i32) -> (i32, i32) {
    %c0_i32 = arith.constant 0 : i32
    %c0_i32_0 = arith.constant 0 : i32
    %c0_i32_1 = arith.constant 0 : i32
    return %c0_i32, %c0_i32_0 : i32, i32
  }
  func.func @transform_5(%arg0: i32) -> (i32, i32) {
    %c0_i32 = arith.constant 0 : i32
    %c0_i32_0 = arith.constant 0 : i32
    %c0_i32_1 = arith.constant 0 : i32
    return %c0_i32, %c0_i32_0 : i32, i32
  }
  func.func @transform_6(%arg0: i32) -> (i32, i32) {
    %c0_i32 = arith.constant 0 : i32
    %c0_i32_0 = arith.constant 0 : i32
    %c0_i32_1 = arith.constant 0 : i32
    return %c0_i32, %c0_i32_0 : i32, i32
  }
  func.func @transform_7(%arg0: i32) -> (i32, i32) {
    %c0_i32 = arith.constant 0 : i32
    %c0_i32_0 = arith.constant 0 : i32
    %c0_i32_1 = arith.constant 0 : i32
    return %c0_i32, %c0_i32_0 : i32, i32
  }
  func.func @transform_8(%arg0: i32) -> (i32, i32) {
    %c0_i32 = arith.constant 0 : i32
    %c0_i32_0 = arith.constant 0 : i32
    %c0_i32_1 = arith.constant 0 : i32
    return %c0_i32, %c0_i32_0 : i32, i32
  }
  func.func @transform_9(%arg0: i32) -> (i32, i32) {
    %c0_i32 = arith.constant 0 : i32
    %c0_i32_0 = arith.constant 0 : i32
    %c0_i32_1 = arith.constant 0 : i32
    return %c0_i32, %c0_i32_0 : i32, i32
  }
  func.func @transform_10(%arg0: i32) -> (i32, i32) {
    %c0_i32 = arith.constant 0 : i32
    %c0_i32_0 = arith.constant 0 : i32
    %c0_i32_1 = arith.constant 0 : i32
    return %c0_i32, %c0_i32_0 : i32, i32
  }
  func.func @transform_11(%arg0: i32) -> (i32, i32) {
    %c0_i32 = arith.constant 0 : i32
    %c0_i32_0 = arith.constant 0 : i32
    return %arg0, %c0_i32 : i32, i32
  }
}

</mosaic_0001>

<llo_original>
// kernel: discriminator_forward_batched.1
$region0: #{discriminator_forward_batched.1}
  #allocation0 [shape = 'u32[]', space=smem, size = 0x4, offset = 0x4, fixed_abs, tag = 'smem constant byte address 0x4 - core index']
  #allocation1 [shape = 'u32[72,128]{1,0:T(1,128)}', space=vmem, size = 0x9000, scoped, tag = 'internal scratch']
  #allocation2 [shape = 'f32[1,1]{1,0:T(1,128)S(1)}', space=vmem, size = 0x200, scoped, tag = 'scoped memory for discriminator_forward_batched.1']
  %s0 = inlined_call_operand.hbm [shape: f32[8,8,2048], index: 0, kind: input, shape index: {}]
  %s1 = inlined_call_operand.hbm [shape: bf16[2048,1024], index: 1, kind: input, shape index: {}]
  %s2 = inlined_call_operand.hbm [shape: f32[1,1024], index: 2, kind: input, shape index: {}]
  %s3 = inlined_call_operand.hbm [shape: f32[1,1024], index: 3, kind: input, shape index: {}]
  %s4 = inlined_call_operand.hbm [shape: f32[1,1024], index: 4, kind: input, shape index: {}]
  %s5 = inlined_call_operand.hbm [shape: bf16[1024,256], index: 5, kind: input, shape index: {}]
  %s6 = inlined_call_operand.hbm [shape: f32[1,256], index: 6, kind: input, shape index: {}]
  %s7 = inlined_call_operand.hbm [shape: f32[1,256], index: 7, kind: input, shape index: {}]
  %s8 = inlined_call_operand.hbm [shape: f32[1,256], index: 8, kind: input, shape index: {}]
  %s9 = inlined_call_operand.hbm [shape: f32[1,256], index: 9, kind: input, shape index: {}]
  %s10 = inlined_call_operand.<no memory space> [shape: f32[1,1], index: 10, kind: input, shape index: {}]
  %s11 = inlined_call_operand.vmem [shape: f32[64,1], index: 11, kind: output, shape index: {}]
  %s12 = sld [smem:[#allocation0]]
  $region117: #{discriminator_forward_batched.1} parent=0
    _
  %s14 = ssub.s32 1, %s12
  %s15 = scalar_select 0, %s14, %s12
  %v16 = vstv %s10
  %17 = vst [vmem:[#allocation2] sm:$0x1] %v16
  $region1: #{discriminator_forward_batched.1} parent=0
    #allocation3 [shape = 'u8[524288]{0}', space=vmem, size = 0x80000, scoped, tag = 'input window, operand 0']
    #allocation4 [shape = 's32[2]{0}', space=sflag, size = 0x8, scoped, tag = 'scoped memory for discriminator_forward_batched.1']
    #allocation5 [shape = 'u8[4194304]{0}', space=vmem, size = 0x400000, scoped, tag = 'input window, operand 1, single buffered']
    #allocation6 [shape = 's32[1]{0}', space=sflag, size = 0x4, scoped, tag = 'scoped memory for discriminator_forward_batched.1']
    #allocation7 [shape = 'u8[4096]{0}', space=vmem, size = 0x1000, scoped, tag = 'input window, operand 2, single buffered']
    #allocation8 [shape = 'u8[4096]{0}', space=vmem, size = 0x1000, scoped, tag = 'input window, operand 3, single buffered']
    #allocation9 [shape = 's32[1]{0}', space=sflag, size = 0x4, scoped, tag = 'scoped memory for discriminator_forward_batched.1']
    #allocation10 [shape = 'u8[4096]{0}', space=vmem, size = 0x1000, scoped, tag = 'input window, operand 4, single buffered']
    #allocation11 [shape = 'u8[524288]{0}', space=vmem, size = 0x80000, scoped, tag = 'input window, operand 5, single buffered']
    #allocation12 [shape = 's32[1]{0}', space=sflag, size = 0x4, scoped, tag = 'scoped memory for discriminator_forward_batched.1']
    #allocation13 [shape = 'u8[1024]{0}', space=vmem, size = 0x400, scoped, tag = 'input window, operand 6, single buffered']
    #allocation14 [shape = 'u8[1024]{0}', space=vmem, size = 0x400, scoped, tag = 'input window, operand 7, single buffered']
    #allocation15 [shape = 's32[1]{0}', space=sflag, size = 0x4, scoped, tag = 'scoped memory for discriminator_forward_batched.1']
    #allocation16 [shape = 'u8[1024]{0}', space=vmem, size = 0x400, scoped, tag = 'input window, operand 8, single buffered']
    #allocation17 [shape = 'u8[1024]{0}', space=vmem, size = 0x400, scoped, tag = 'input window, operand 9, single buffered']
    #allocation18 [shape = 's32[1]{0}', space=sflag, size = 0x4, scoped, tag = 'scoped memory for discriminator_forward_batched.1']
    %18 = vsyncpa [#allocation4], 0
    %s19 = scalar_lea.sflag [#allocation4], 1
    %20 = vsyncpa %s19, 0
    %21 = vsyncpa [#allocation6], 0
    %22 = vsyncpa [#allocation9], 0
    %23 = vsyncpa [#allocation12], 0
    %24 = vsyncpa [#allocation15], 0
    %25 = vsyncpa [#allocation18], 0
    loop: start=0, step=1, limit=4
    $region2: #{discriminator_forward_batched.1} parent=1 // loop_pre_header
      _
    $region3: #{discriminator_forward_batched.1} parent=1 // loop_header
      %s27 = sphi 0, %s31
      %p28 = scmp.ge.s32.totalorder %s27, 4
      %s37 = sphi 0, %s39
      %s40 = sphi 0, %s37
      %s41 = sphi 0, %s40
      %s57 = sphi 0, %s41
      %s61 = sphi 0, %s61
      %s63 = sphi 0, %s61
      %s64 = sphi 0, %s63
      %s78 = sphi 0, %s64
      %s82 = sphi 0, %s82
      %s84 = sphi 0, %s82
      %s85 = sphi 0, %s84
      %s99 = sphi 0, %s85
      %s103 = sphi 0, %s103
      %s105 = sphi 0, %s103
      %s106 = sphi 0, %s105
      %s120 = sphi 0, %s106
      %s124 = sphi 0, %s124
      %s126 = sphi 0, %s124
      %s127 = sphi 0, %s126
      %s141 = sphi 0, %s127
      %s145 = sphi 0, %s145
      %s147 = sphi 0, %s145
      %s148 = sphi 0, %s147
      %s162 = sphi 0, %s148
      %s166 = sphi 0, %s166
      %s168 = sphi 0, %s166
      %s169 = sphi 0, %s168
      %s183 = sphi 0, %s169
      %s187 = sphi 0, %s187
      %s189 = sphi 0, %s187
      %s190 = sphi 0, %s189
      %s204 = sphi 0, %s190
      %s208 = sphi 0, %s208
      %s210 = sphi 0, %s208
      %s211 = sphi 0, %s210
      %s225 = sphi 0, %s211
      %s229 = sphi 0, %s229
      %s231 = sphi 0, %s229
      %s232 = sphi 0, %s231
      %s246 = sphi 0, %s232
      %s250 = sphi 0, %s250
      %s252 = sphi 0, %s250
      %s253 = sphi 0, %s252
      %s267 = sphi 0, %s253
      %s273 = sphi 0, %s275
      %s276 = sphi 0, %s273
      %s277 = sphi 0, %s276
      %s293 = sphi 0, %s277
    $region4: #{discriminator_forward_batched.1} parent=1 // loop_header_branch
      %30 = sbr.rel (%p28) target = $region8
    $region5: #{discriminator_forward_batched.1} parent=1 // loop_body
      %s32 = ssub.s32 %s27, 1
      %s33 = ssub.s32 %s27, 2
      %s34 = sadd.s32 %s27, 1
      %s35 = ssub.s32 %s27, %s34
      %p36 = scmp.eq.s32.totalorder %s35, 0
      %s38 = sadd.s32 %s37, 1
      %s39 = scalar_select %p36, %s37, %s38
      %p42 = pneg %p36
      %p43 = scmp.eq.s32.totalorder %s27, 1
      %p44 = por %p42, %p43
      %p45 = scmp.ne.s32.totalorder %s37, %s40
      %p46 = scmp.eq.s32.totalorder %s27, 0
      %p47 = por %p45, %p46
      %p48 = scmp.ne.s32.totalorder %s37, %s40
      %p49 = scmp.eq.s32.totalorder %s32, 1
      %p50 = por %p48, %p49
      %p51 = scmp.ne.s32.totalorder %s40, %s41
      %p52 = scmp.eq.s32.totalorder %s32, 0
      %p53 = por %p51, %p52
      %p54 = scmp.ne.s32.totalorder %s40, %s41
      %p55 = scmp.eq.s32.totalorder %s33, 1
      %p56 = por %p54, %p55
      %p58 = scmp.ne.s32.totalorder %s41, %s57
      %p59 = scmp.eq.s32.totalorder %s33, 0
      %p60 = por %p58, %p59
      %s62 = sadd.s32 %s61, 1
      %p65 = scmp.eq.s32.totalorder %s27, 1
      %p66 = scmp.ne.s32.totalorder %s61, %s63
      %p67 = scmp.eq.s32.totalorder %s27, 0
      %p68 = por %p66, %p67
      %p69 = scmp.ne.s32.totalorder %s61, %s63
      %p70 = scmp.eq.s32.totalorder %s32, 1
      %p71 = por %p69, %p70
      %p72 = scmp.ne.s32.totalorder %s63, %s64
      %p73 = scmp.eq.s32.totalorder %s32, 0
      %p74 = por %p72, %p73
      %p75 = scmp.ne.s32.totalorder %s63, %s64
      %p76 = scmp.eq.s32.totalorder %s33, 1
      %p77 = por %p75, %p76
      %p79 = scmp.ne.s32.totalorder %s64, %s78
      %p80 = scmp.eq.s32.totalorder %s33, 0
      %p81 = por %p79, %p80
      %s83 = sadd.s32 %s82, 1
      %p86 = scmp.eq.s32.totalorder %s27, 1
      %p87 = scmp.ne.s32.totalorder %s82, %s84
      %p88 = scmp.eq.s32.totalorder %s27, 0
      %p89 = por %p87, %p88
      %p90 = scmp.ne.s32.totalorder %s82, %s84
      %p91 = scmp.eq.s32.totalorder %s32, 1
      %p92 = por %p90, %p91
      %p93 = scmp.ne.s32.totalorder %s84, %s85
      %p94 = scmp.eq.s32.totalorder %s32, 0
      %p95 = por %p93, %p94
      %p96 = scmp.ne.s32.totalorder %s84, %s85
      %p97 = scmp.eq.s32.totalorder %s33, 1
      %p98 = por %p96, %p97
      %p100 = scmp.ne.s32.totalorder %s85, %s99
      %p101 = scmp.eq.s32.totalorder %s33, 0
      %p102 = por %p100, %p101
      %s104 = sadd.s32 %s103, 1
      %p107 = scmp.eq.s32.totalorder %s27, 1
      %p108 = scmp.ne.s32.totalorder %s103, %s105
      %p109 = scmp.eq.s32.totalorder %s27, 0
      %p110 = por %p108, %p109
      %p111 = scmp.ne.s32.totalorder %s103, %s105
      %p112 = scmp.eq.s32.totalorder %s32, 1
      %p113 = por %p111, %p112
      %p114 = scmp.ne.s32.totalorder %s105, %s106
      %p115 = scmp.eq.s32.totalorder %s32, 0
      %p116 = por %p114, %p115
      %p117 = scmp.ne.s32.totalorder %s105, %s106
      %p118 = scmp.eq.s32.totalorder %s33, 1
      %p119 = por %p117, %p118
      %p121 = scmp.ne.s32.totalorder %s106, %s120
      %p122 = scmp.eq.s32.totalorder %s33, 0
      %p123 = por %p121, %p122
      %s125 = sadd.s32 %s124, 1
      %p128 = scmp.eq.s32.totalorder %s27, 1
      %p129 = scmp.ne.s32.totalorder %s124, %s126
      %p130 = scmp.eq.s32.totalorder %s27, 0
      %p131 = por %p129, %p130
      %p132 = scmp.ne.s32.totalorder %s124, %s126
      %p133 = scmp.eq.s32.totalorder %s32, 1
      %p134 = por %p132, %p133
      %p135 = scmp.ne.s32.totalorder %s126, %s127
      %p136 = scmp.eq.s32.totalorder %s32, 0
      %p137 = por %p135, %p136
      %p138 = scmp.ne.s32.totalorder %s126, %s127
      %p139 = scmp.eq.s32.totalorder %s33, 1
      %p140 = por %p138, %p139
      %p142 = scmp.ne.s32.totalorder %s127, %s141
      %p143 = scmp.eq.s32.totalorder %s33, 0
      %p144 = por %p142, %p143
      %s146 = sadd.s32 %s145, 1
      %p149 = scmp.eq.s32.totalorder %s27, 1
      %p150 = scmp.ne.s32.totalorder %s145, %s147
      %p151 = scmp.eq.s32.totalorder %s27, 0
      %p152 = por %p150, %p151
      %p153 = scmp.ne.s32.totalorder %s145, %s147
      %p154 = scmp.eq.s32.totalorder %s32, 1
      %p155 = por %p153, %p154
      %p156 = scmp.ne.s32.totalorder %s147, %s148
      %p157 = scmp.eq.s32.totalorder %s32, 0
      %p158 = por %p156, %p157
      %p159 = scmp.ne.s32.totalorder %s147, %s148
      %p160 = scmp.eq.s32.totalorder %s33, 1
      %p161 = por %p159, %p160
      %p163 = scmp.ne.s32.totalorder %s148, %s162
      %p164 = scmp.eq.s32.totalorder %s33, 0
      %p165 = por %p163, %p164
      %s167 = sadd.s32 %s166, 1
      %p170 = scmp.eq.s32.totalorder %s27, 1
      %p171 = scmp.ne.s32.totalorder %s166, %s168
      %p172 = scmp.eq.s32.totalorder %s27, 0
      %p173 = por %p171, %p172
      %p174 = scmp.ne.s32.totalorder %s166, %s168
      %p175 = scmp.eq.s32.totalorder %s32, 1
      %p176 = por %p174, %p175
      %p177 = scmp.ne.s32.totalorder %s168, %s169
      %p178 = scmp.eq.s32.totalorder %s32, 0
      %p179 = por %p177, %p178
      %p180 = scmp.ne.s32.totalorder %s168, %s169
      %p181 = scmp.eq.s32.totalorder %s33, 1
      %p182 = por %p180, %p181
      %p184 = scmp.ne.s32.totalorder %s169, %s183
      %p185 = scmp.eq.s32.totalorder %s33, 0
      %p186 = por %p184, %p185
      %s188 = sadd.s32 %s187, 1
      %p191 = scmp.eq.s32.totalorder %s27, 1
      %p192 = scmp.ne.s32.totalorder %s187, %s189
      %p193 = scmp.eq.s32.totalorder %s27, 0
      %p194 = por %p192, %p193
      %p195 = scmp.ne.s32.totalorder %s187, %s189
      %p196 = scmp.eq.s32.totalorder %s32, 1
      %p197 = por %p195, %p196
      %p198 = scmp.ne.s32.totalorder %s189, %s190
      %p199 = scmp.eq.s32.totalorder %s32, 0
      %p200 = por %p198, %p199
      %p201 = scmp.ne.s32.totalorder %s189, %s190
      %p202 = scmp.eq.s32.totalorder %s33, 1
      %p203 = por %p201, %p202
      %p205 = scmp.ne.s32.totalorder %s190, %s204
      %p206 = scmp.eq.s32.totalorder %s33, 0
      %p207 = por %p205, %p206
      %s209 = sadd.s32 %s208, 1
      %p212 = scmp.eq.s32.totalorder %s27, 1
      %p213 = scmp.ne.s32.totalorder %s208, %s210
      %p214 = scmp.eq.s32.totalorder %s27, 0
      %p215 = por %p213, %p214
      %p216 = scmp.ne.s32.totalorder %s208, %s210
      %p217 = scmp.eq.s32.totalorder %s32, 1
      %p218 = por %p216, %p217
      %p219 = scmp.ne.s32.totalorder %s210, %s211
      %p220 = scmp.eq.s32.totalorder %s32, 0
      %p221 = por %p219, %p220
      %p222 = scmp.ne.s32.totalorder %s210, %s211
      %p223 = scmp.eq.s32.totalorder %s33, 1
      %p224 = por %p222, %p223
      %p226 = scmp.ne.s32.totalorder %s211, %s225
      %p227 = scmp.eq.s32.totalorder %s33, 0
      %p228 = por %p226, %p227
      %s230 = sadd.s32 %s229, 1
      %p233 = scmp.eq.s32.totalorder %s27, 1
      %p234 = scmp.ne.s32.totalorder %s229, %s231
      %p235 = scmp.eq.s32.totalorder %s27, 0
      %p236 = por %p234, %p235
      %p237 = scmp.ne.s32.totalorder %s229, %s231
      %p238 = scmp.eq.s32.totalorder %s32, 1
      %p239 = por %p237, %p238
      %p240 = scmp.ne.s32.totalorder %s231, %s232
      %p241 = scmp.eq.s32.totalorder %s32, 0
      %p242 = por %p240, %p241
      %p243 = scmp.ne.s32.totalorder %s231, %s232
      %p244 = scmp.eq.s32.totalorder %s33, 1
      %p245 = por %p243, %p244
      %p247 = scmp.ne.s32.totalorder %s232, %s246
      %p248 = scmp.eq.s32.totalorder %s33, 0
      %p249 = por %p247, %p248
      %s251 = sadd.s32 %s250, 1
      %p254 = scmp.eq.s32.totalorder %s27, 1
      %p255 = scmp.ne.s32.totalorder %s250, %s252
      %p256 = scmp.eq.s32.totalorder %s27, 0
      %p257 = por %p255, %p256
      %p258 = scmp.ne.s32.totalorder %s250, %s252
      %p259 = scmp.eq.s32.totalorder %s32, 1
      %p260 = por %p258, %p259
      %p261 = scmp.ne.s32.totalorder %s252, %s253
      %p262 = scmp.eq.s32.totalorder %s32, 0
      %p263 = por %p261, %p262
      %p264 = scmp.ne.s32.totalorder %s252, %s253
      %p265 = scmp.eq.s32.totalorder %s33, 1
      %p266 = por %p264, %p265
      %p268 = scmp.ne.s32.totalorder %s253, %s267
      %p269 = scmp.eq.s32.totalorder %s33, 0
      %p270 = por %p268, %p269
      %s271 = ssub.s32 %s27, %s34
      %p272 = scmp.eq.s32.totalorder %s271, 0
      %s274 = sadd.s32 %s273, 1
      %s275 = scalar_select %p272, %s273, %s274
      %p278 = pneg %p272
      %p279 = scmp.eq.s32.totalorder %s27, 1
      %p280 = por %p278, %p279
      %p281 = scmp.ne.s32.totalorder %s273, %s276
      %p282 = scmp.eq.s32.totalorder %s27, 0
      %p283 = por %p281, %p282
      %p284 = scmp.ne.s32.totalorder %s273, %s276
      %p285 = scmp.eq.s32.totalorder %s32, 1
      %p286 = por %p284, %p285
      %p287 = scmp.ne.s32.totalorder %s276, %s277
      %p288 = scmp.eq.s32.totalorder %s32, 0
      %p289 = por %p287, %p288
      %p290 = scmp.ne.s32.totalorder %s276, %s277
      %p291 = scmp.eq.s32.totalorder %s33, 1
      %p292 = por %p290, %p291
      %p294 = scmp.ne.s32.totalorder %s277, %s293
      %p295 = scmp.eq.s32.totalorder %s33, 0
      %p296 = por %p294, %p295
      %p297 = scmp.le.s32.totalorder 1, %s27
      %p298 = scmp.lt.s32.totalorder %s27, 3
      %p299 = pnand %p297, %p298
      %p300 = pneg %p299
      // Predicated region
      $region9: #{discriminator_forward_batched.1} parent=5 // pred_check
        _
      $region10: #{discriminator_forward_batched.1} parent=5 // pred_check_branch
        %302 = sbr.rel (%p299) target = $region12
      $region11: #{discriminator_forward_batched.1} parent=5 // pred_region
        %s303 = ssub.s32 %s27, 1
        // Predicated region
        $region13: #{discriminator_forward_batched.1} parent=11 // pred_check
          %p304 = pneg %p74
        $region14: #{discriminator_forward_batched.1} parent=11 // pred_check_branch
          %306 = sbr.rel (%p304) target = $region16
        $region15: #{discriminator_forward_batched.1} parent=11 // pred_region
          %308 = vsyncadd [#allocation6], 0
          %s309 = sshll.u32 %s1, 4
          %s310 = int_to_ptr.hbm [resolvable:$true] %s309
          %s311 = sshll.u32 [#allocation5], 4
          %s312 = int_to_ptr.vmem [resolvable:$true] %s311
          %317 = dma.hbm_to_vmem [thread:$0]  %s310, 131072, %s312, [#allocation6], 512, 512, 32
        $region16: #{discriminator_forward_batched.1} parent=11 // pred_fallthru
          _
        // Predicated region
        $region17: #{discriminator_forward_batched.1} parent=11 // pred_check
          %p318 = pneg %p95
        $region18: #{discriminator_forward_batched.1} parent=11 // pred_check_branch
          %320 = sbr.rel (%p318) target = $region20
        $region19: #{discriminator_forward_batched.1} parent=11 // pred_region
          %322 = vsyncadd [#allocation6], 0
          %s324 = sshll.u32 %s2, 4
          %s325 = int_to_ptr.hbm [resolvable:$true] %s324
          %s326 = sshll.u32 [#allocation7], 4
          %s327 = int_to_ptr.vmem [resolvable:$true] %s326
          %329 = dma.hbm_to_vmem [thread:$0]  %s325, 128, %s327, [#allocation6]
        $region20: #{discriminator_forward_batched.1} parent=11 // pred_fallthru
          _
        // Predicated region
        $region21: #{discriminator_forward_batched.1} parent=11 // pred_check
          %p330 = pneg %p116
        $region22: #{discriminator_forward_batched.1} parent=11 // pred_check_branch
          %332 = sbr.rel (%p330) target = $region24
        $region23: #{discriminator_forward_batched.1} parent=11 // pred_region
          %334 = vsyncadd [#allocation9], 0
          %s336 = sshll.u32 %s3, 4
          %s337 = int_to_ptr.hbm [resolvable:$true] %s336
          %s338 = sshll.u32 [#allocation8], 4
          %s339 = int_to_ptr.vmem [resolvable:$true] %s338
          %341 = dma.hbm_to_vmem [thread:$0]  %s337, 128, %s339, [#allocation9]
        $region24: #{discriminator_forward_batched.1} parent=11 // pred_fallthru
          _
        // Predicated region
        $region25: #{discriminator_forward_batched.1} parent=11 // pred_check
          %p342 = pneg %p137
        $region26: #{discriminator_forward_batched.1} parent=11 // pred_check_branch
          %344 = sbr.rel (%p342) target = $region28
        $region27: #{discriminator_forward_batched.1} parent=11 // pred_region
          %346 = vsyncadd [#allocation9], 0
          %s348 = sshll.u32 %s4, 4
          %s349 = int_to_ptr.hbm [resolvable:$true] %s348
          %s350 = sshll.u32 [#allocation10], 4
          %s351 = int_to_ptr.vmem [resolvable:$true] %s350
          %353 = dma.hbm_to_vmem [thread:$0]  %s349, 128, %s351, [#allocation9]
        $region28: #{discriminator_forward_batched.1} parent=11 // pred_fallthru
          _
        // Predicated region
        $region29: #{discriminator_forward_batched.1} parent=11 // pred_check
          %p354 = pneg %p158
        $region30: #{discriminator_forward_batched.1} parent=11 // pred_check_branch
          %356 = sbr.rel (%p354) target = $region32
        $region31: #{discriminator_forward_batched.1} parent=11 // pred_region
          %358 = vsyncadd [#allocation12], 0
          %s359 = sshll.u32 %s5, 4
          %s360 = int_to_ptr.hbm [resolvable:$true] %s359
          %s361 = sshll.u32 [#allocation11], 4
          %s362 = int_to_ptr.vmem [resolvable:$true] %s361
          %367 = dma.hbm_to_vmem [thread:$0]  %s360, 16384, %s362, [#allocation12], 128, 128, 8
        $region32: #{discriminator_forward_batched.1} parent=11 // pred_fallthru
          _
        // Predicated region
        $region33: #{discriminator_forward_batched.1} parent=11 // pred_check
          %p368 = pneg %p179
        $region34: #{discriminator_forward_batched.1} parent=11 // pred_check_branch
          %370 = sbr.rel (%p368) target = $region36
        $region35: #{discriminator_forward_batched.1} parent=11 // pred_region
          %372 = vsyncadd [#allocation12], 0
          %s374 = sshll.u32 %s6, 4
          %s375 = int_to_ptr.hbm [resolvable:$true] %s374
          %s376 = sshll.u32 [#allocation13], 4
          %s377 = int_to_ptr.vmem [resolvable:$true] %s376
          %379 = dma.hbm_to_vmem [thread:$0]  %s375, 32, %s377, [#allocation12]
        $region36: #{discriminator_forward_batched.1} parent=11 // pred_fallthru
          _
        // Predicated region
        $region37: #{discriminator_forward_batched.1} parent=11 // pred_check
          %p380 = pneg %p200
        $region38: #{discriminator_forward_batched.1} parent=11 // pred_check_branch
          %382 = sbr.rel (%p380) target = $region40
        $region39: #{discriminator_forward_batched.1} parent=11 // pred_region
          %384 = vsyncadd [#allocation15], 0
          %s386 = sshll.u32 %s7, 4
          %s387 = int_to_ptr.hbm [resolvable:$true] %s386
          %s388 = sshll.u32 [#allocation14], 4
          %s389 = int_to_ptr.vmem [resolvable:$true] %s388
          %391 = dma.hbm_to_vmem [thread:$0]  %s387, 32, %s389, [#allocation15]
        $region40: #{discriminator_forward_batched.1} parent=11 // pred_fallthru
          _
        // Predicated region
        $region41: #{discriminator_forward_batched.1} parent=11 // pred_check
          %p392 = pneg %p221
        $region42: #{discriminator_forward_batched.1} parent=11 // pred_check_branch
          %394 = sbr.rel (%p392) target = $region44
        $region43: #{discriminator_forward_batched.1} parent=11 // pred_region
          %396 = vsyncadd [#allocation15], 0
          %s398 = sshll.u32 %s8, 4
          %s399 = int_to_ptr.hbm [resolvable:$true] %s398
          %s400 = sshll.u32 [#allocation16], 4
          %s401 = int_to_ptr.vmem [resolvable:$true] %s400
          %403 = dma.hbm_to_vmem [thread:$0]  %s399, 32, %s401, [#allocation15]
        $region44: #{discriminator_forward_batched.1} parent=11 // pred_fallthru
          _
        // Predicated region
        $region45: #{discriminator_forward_batched.1} parent=11 // pred_check
          %p404 = pneg %p242
        $region46: #{discriminator_forward_batched.1} parent=11 // pred_check_branch
          %406 = sbr.rel (%p404) target = $region48
        $region47: #{discriminator_forward_batched.1} parent=11 // pred_region
          %408 = vsyncadd [#allocation18], 0
          %s410 = sshll.u32 %s9, 4
          %s411 = int_to_ptr.hbm [resolvable:$true] %s410
          %s412 = sshll.u32 [#allocation17], 4
          %s413 = int_to_ptr.vmem [resolvable:$true] %s412
          %415 = dma.hbm_to_vmem [thread:$0]  %s411, 32, %s413, [#allocation18]
        $region48: #{discriminator_forward_batched.1} parent=11 // pred_fallthru
          _
        // Predicated region
        $region49: #{discriminator_forward_batched.1} parent=11 // pred_check
          %p416 = pneg %p263
        $region50: #{discriminator_forward_batched.1} parent=11 // pred_check_branch
          %418 = sbr.rel (%p416) target = $region52
        $region51: #{discriminator_forward_batched.1} parent=11 // pred_region
          _
        $region52: #{discriminator_forward_batched.1} parent=11 // pred_fallthru
          _
      $region12: #{discriminator_forward_batched.1} parent=5 // pred_fallthru
        _
      %p419 = scmp.lt.s32.totalorder %s27, 2
      // Predicated region
      $region53: #{discriminator_forward_batched.1} parent=5 // pred_check
        %p420 = pneg %p419
      $region54: #{discriminator_forward_batched.1} parent=5 // pred_check_branch
        %422 = sbr.rel (%p420) target = $region56
      $region55: #{discriminator_forward_batched.1} parent=5 // pred_region
        // Predicated region
        $region57: #{discriminator_forward_batched.1} parent=55 // pred_check
          %p423 = pneg %p47
        $region58: #{discriminator_forward_batched.1} parent=55 // pred_check_branch
          %425 = sbr.rel (%p423) target = $region60
        $region59: #{discriminator_forward_batched.1} parent=55 // pred_region
          %s426 = sand.u32 %s37, 1
          %s427 = scalar_lea.sflag [#allocation4], %s426
          %s428 = sand.u32 %s37, 1
          %s429 = smul.addr %s428, 512
          %s430 = scalar_lea.vmem [#allocation3], %s429
          %s431 = smul.u32 4, %s27
          %433 = vsyncadd %s427, 0
          %s434 = smul.addr %s431, 16
          %s435 = smul.addr %s434, 8
          %s436 = scalar_lea.hbm %s0, %s435
          %s437 = sshll.u32 %s436, 4
          %s438 = int_to_ptr.hbm [resolvable:$true] %s437
          %s439 = sshll.u32 %s430, 4
          %s440 = int_to_ptr.vmem [resolvable:$true] %s439
          %445 = dma.hbm_to_vmem [thread:$0]  %s438, 8192, %s440, %s427, 2048, 2048, 128
        $region60: #{discriminator_forward_batched.1} parent=55 // pred_fallthru
          _
      $region56: #{discriminator_forward_batched.1} parent=5 // pred_fallthru
        _
      %p446 = scmp.le.s32.totalorder 1, %s27
      %p447 = scmp.lt.s32.totalorder %s27, 3
      %p448 = pnand %p446, %p447
      %p449 = pneg %p448
      // Predicated region
      $region61: #{discriminator_forward_batched.1} parent=5 // pred_check
        _
      $region62: #{discriminator_forward_batched.1} parent=5 // pred_check_branch
        %451 = sbr.rel (%p448) target = $region64
      $region63: #{discriminator_forward_batched.1} parent=5 // pred_region
        %s452 = ssub.s32 %s27, 1
        %s453 = sand.u32 %s40, 1
        %s454 = scalar_lea.sflag [#allocation4], %s453
        %s455 = sand.u32 %s40, 1
        %s456 = smul.addr %s455, 512
        %s457 = scalar_lea.vmem [#allocation3], %s456
        // Predicated region
        $region65: #{discriminator_forward_batched.1} parent=63 // pred_check
          %p458 = pneg %p53
        $region66: #{discriminator_forward_batched.1} parent=63 // pred_check_branch
          %460 = sbr.rel (%p458) target = $region68
        $region67: #{discriminator_forward_batched.1} parent=63 // pred_region
          %462 = dma.done %s454, 8192
        $region68: #{discriminator_forward_batched.1} parent=63 // pred_fallthru
          _
        // Predicated region
        $region69: #{discriminator_forward_batched.1} parent=63 // pred_check
          %p463 = pneg %p74
        $region70: #{discriminator_forward_batched.1} parent=63 // pred_check_branch
          %465 = sbr.rel (%p463) target = $region72
        $region71: #{discriminator_forward_batched.1} parent=63 // pred_region
          %467 = dma.done [#allocation6], 131072
        $region72: #{discriminator_forward_batched.1} parent=63 // pred_fallthru
          _
        // Predicated region
        $region73: #{discriminator_forward_batched.1} parent=63 // pred_check
          %p468 = pneg %p95
        $region74: #{discriminator_forward_batched.1} parent=63 // pred_check_branch
          %470 = sbr.rel (%p468) target = $region76
        $region75: #{discriminator_forward_batched.1} parent=63 // pred_region
          %472 = dma.done [#allocation6], 128
        $region76: #{discriminator_forward_batched.1} parent=63 // pred_fallthru
          _
        // Predicated region
        $region77: #{discriminator_forward_batched.1} parent=63 // pred_check
          %p473 = pneg %p116
        $region78: #{discriminator_forward_batched.1} parent=63 // pred_check_branch
          %475 = sbr.rel (%p473) target = $region80
        $region79: #{discriminator_forward_batched.1} parent=63 // pred_region
          %477 = dma.done [#allocation9], 128
        $region80: #{discriminator_forward_batched.1} parent=63 // pred_fallthru
          _
        // Predicated region
        $region81: #{discriminator_forward_batched.1} parent=63 // pred_check
          %p478 = pneg %p137
        $region82: #{discriminator_forward_batched.1} parent=63 // pred_check_branch
          %480 = sbr.rel (%p478) target = $region84
        $region83: #{discriminator_forward_batched.1} parent=63 // pred_region
          %482 = dma.done [#allocation9], 128
        $region84: #{discriminator_forward_batched.1} parent=63 // pred_fallthru
          _
        // Predicated region
        $region85: #{discriminator_forward_batched.1} parent=63 // pred_check
          %p483 = pneg %p158
        $region86: #{discriminator_forward_batched.1} parent=63 // pred_check_branch
          %485 = sbr.rel (%p483) target = $region88
        $region87: #{discriminator_forward_batched.1} parent=63 // pred_region
          %487 = dma.done [#allocation12], 16384
        $region88: #{discriminator_forward_batched.1} parent=63 // pred_fallthru
          _
        // Predicated region
        $region89: #{discriminator_forward_batched.1} parent=63 // pred_check
          %p488 = pneg %p179
        $region90: #{discriminator_forward_batched.1} parent=63 // pred_check_branch
          %490 = sbr.rel (%p488) target = $region92
        $region91: #{discriminator_forward_batched.1} parent=63 // pred_region
          %492 = dma.done [#allocation12], 32
        $region92: #{discriminator_forward_batched.1} parent=63 // pred_fallthru
          _
        // Predicated region
        $region93: #{discriminator_forward_batched.1} parent=63 // pred_check
          %p493 = pneg %p200
        $region94: #{discriminator_forward_batched.1} parent=63 // pred_check_branch
          %495 = sbr.rel (%p493) target = $region96
        $region95: #{discriminator_forward_batched.1} parent=63 // pred_region
          %497 = dma.done [#allocation15], 32
        $region96: #{discriminator_forward_batched.1} parent=63 // pred_fallthru
          _
        // Predicated region
        $region97: #{discriminator_forward_batched.1} parent=63 // pred_check
          %p498 = pneg %p221
        $region98: #{discriminator_forward_batched.1} parent=63 // pred_check_branch
          %500 = sbr.rel (%p498) target = $region100
        $region99: #{discriminator_forward_batched.1} parent=63 // pred_region
          %502 = dma.done [#allocation15], 32
        $region100: #{discriminator_forward_batched.1} parent=63 // pred_fallthru
          _
        // Predicated region
        $region101: #{discriminator_forward_batched.1} parent=63 // pred_check
          %p503 = pneg %p242
        $region102: #{discriminator_forward_batched.1} parent=63 // pred_check_branch
          %505 = sbr.rel (%p503) target = $region104
        $region103: #{discriminator_forward_batched.1} parent=63 // pred_region
          %507 = dma.done [#allocation18], 32
        $region104: #{discriminator_forward_batched.1} parent=63 // pred_fallthru
          _
        %s508 = sand.u32 %s40, 1
        %s509 = scalar_lea.sflag [#allocation4], %s508
        %s510 = sand.u32 %s40, 1
        %s511 = smul.addr %s510, 512
        %s512 = scalar_lea.vmem [#allocation3], %s511
        %p513 = pneg %p53
        %p514 = pneg %p50
        %p515 = pneg %p74
        %p516 = pneg %p71
        %p517 = pneg %p95
        %p518 = pneg %p92
        %p519 = pneg %p116
        %p520 = pneg %p113
        %p521 = pneg %p137
        %p522 = pneg %p134
        %p523 = pneg %p158
        %p524 = pneg %p155
        %p525 = pneg %p179
        %p526 = pneg %p176
        %p527 = pneg %p200
        %p528 = pneg %p197
        %p529 = pneg %p221
        %p530 = pneg %p218
        %p531 = pneg %p242
        %p532 = pneg %p239
        %p533 = pneg %p263
        %p534 = pneg %p260
        %p535 = pneg %p289
        %p536 = pneg %p286
        %s537 = smul.u32 4, %s32
        %p538 = scmp.lt.s32.totalorder %s537, 7
        %s539 = scalar_select %p538, %s537, 7
        %s540 = smul.addr %s539, 8
        %s541 = scalar_lea.vmem %s11, %s540
        %s542 = smul.u32 4, %s32
        %s543 = smul.u32 4, %s32
        %p544 = scmp.lt.s32.totalorder %s543, 7
        %s545 = scalar_select %p544, %s543, 7
        %s546 = smul.addr %s545, 8
        %s547 = scalar_lea.vmem %s11, %s546
        %s548 = smul.u32 4, %s32
        %v549 = vld [vmem:[%s457] sm:$0xff]
        %v550 = vld [vmem:[%s457 + $0x8] sm:$0xff]
        %v551 = vld [vmem:[%s457 + $0x10] sm:$0xff]
        %v552 = vld [vmem:[%s457 + $0x18] sm:$0xff]
        %v553 = vld [vmem:[%s457 + $0x20] sm:$0xff]
        %v554 = vld [vmem:[%s457 + $0x28] sm:$0xff]
        %v555 = vld [vmem:[%s457 + $0x30] sm:$0xff]
        %v556 = vld [vmem:[%s457 + $0x38] sm:$0xff]
        %v557 = vld [vmem:[%s457 + $0x40] sm:$0xff]
        %v558 = vld [vmem:[%s457 + $0x48] sm:$0xff]
        %v559 = vld [vmem:[%s457 + $0x50] sm:$0xff]
        %v560 = vld [vmem:[%s457 + $0x58] sm:$0xff]
        %v561 = vld [vmem:[%s457 + $0x60] sm:$0xff]
        %v562 = vld [vmem:[%s457 + $0x68] sm:$0xff]
        %v563 = vld [vmem:[%s457 + $0x70] sm:$0xff]
        %v564 = vld [vmem:[%s457 + $0x78] sm:$0xff]
        %v565 = vld [vmem:[%s457 + $0x80] sm:$0xff]
        %v566 = vld [vmem:[%s457 + $0x88] sm:$0xff]
        %v567 = vld [vmem:[%s457 + $0x90] sm:$0xff]
        %v568 = vld [vmem:[%s457 + $0x98] sm:$0xff]
        %v569 = vld [vmem:[%s457 + $0xa0] sm:$0xff]
        %v570 = vld [vmem:[%s457 + $0xa8] sm:$0xff]
        %v571 = vld [vmem:[%s457 + $0xb0] sm:$0xff]
        %v572 = vld [vmem:[%s457 + $0xb8] sm:$0xff]
        %v573 = vld [vmem:[%s457 + $0xc0] sm:$0xff]
        %v574 = vld [vmem:[%s457 + $0xc8] sm:$0xff]
        %v575 = vld [vmem:[%s457 + $0xd0] sm:$0xff]
        %v576 = vld [vmem:[%s457 + $0xd8] sm:$0xff]
        %v577 = vld [vmem:[%s457 + $0xe0] sm:$0xff]
        %v578 = vld [vmem:[%s457 + $0xe8] sm:$0xff]
        %v579 = vld [vmem:[%s457 + $0xf0] sm:$0xff]
        %v580 = vld [vmem:[%s457 + $0xf8] sm:$0xff]
        %v581 = vld [vmem:[%s457 + $0x100] sm:$0xff]
        %v582 = vld [vmem:[%s457 + $0x108] sm:$0xff]
        %v583 = vld [vmem:[%s457 + $0x110] sm:$0xff]
        %v584 = vld [vmem:[%s457 + $0x118] sm:$0xff]
        %v585 = vld [vmem:[%s457 + $0x120] sm:$0xff]
        %v586 = vld [vmem:[%s457 + $0x128] sm:$0xff]
        %v587 = vld [vmem:[%s457 + $0x130] sm:$0xff]
        %v588 = vld [vmem:[%s457 + $0x138] sm:$0xff]
        %v589 = vld [vmem:[%s457 + $0x140] sm:$0xff]
        %v590 = vld [vmem:[%s457 + $0x148] sm:$0xff]
        %v591 = vld [vmem:[%s457 + $0x150] sm:$0xff]
        %v592 = vld [vmem:[%s457 + $0x158] sm:$0xff]
        %v593 = vld [vmem:[%s457 + $0x160] sm:$0xff]
        %v594 = vld [vmem:[%s457 + $0x168] sm:$0xff]
        %v595 = vld [vmem:[%s457 + $0x170] sm:$0xff]
        %v596 = vld [vmem:[%s457 + $0x178] sm:$0xff]
        %v597 = vld [vmem:[%s457 + $0x180] sm:$0xff]
        %v598 = vld [vmem:[%s457 + $0x188] sm:$0xff]
        %v599 = vld [vmem:[%s457 + $0x190] sm:$0xff]
        %v600 = vld [vmem:[%s457 + $0x198] sm:$0xff]
        %v601 = vld [vmem:[%s457 + $0x1a0] sm:$0xff]
        %v602 = vld [vmem:[%s457 + $0x1a8] sm:$0xff]
        %v603 = vld [vmem:[%s457 + $0x1b0] sm:$0xff]
        %v604 = vld [vmem:[%s457 + $0x1b8] sm:$0xff]
        %v605 = vld [vmem:[%s457 + $0x1c0] sm:$0xff]
        %v606 = vld [vmem:[%s457 + $0x1c8] sm:$0xff]
        %v607 = vld [vmem:[%s457 + $0x1d0] sm:$0xff]
        %v608 = vld [vmem:[%s457 + $0x1d8] sm:$0xff]
        %v609 = vld [vmem:[%s457 + $0x1e0] sm:$0xff]
        %v610 = vld [vmem:[%s457 + $0x1e8] sm:$0xff]
        %v611 = vld [vmem:[%s457 + $0x1f0] sm:$0xff]
        %v612 = vld [vmem:[%s457 + $0x1f8] sm:$0xff]
        %v613 = vpack.c.bf16 %v565, %v549
        %v614 = vpack.c.bf16 %v566, %v550
        %v615 = vpack.c.bf16 %v567, %v551
        %v616 = vpack.c.bf16 %v568, %v552
        %v617 = vpack.c.bf16 %v569, %v553
        %v618 = vpack.c.bf16 %v570, %v554
        %v619 = vpack.c.bf16 %v571, %v555
        %v620 = vpack.c.bf16 %v572, %v556
        %v621 = vpack.c.bf16 %v573, %v557
        %v622 = vpack.c.bf16 %v574, %v558
        %v623 = vpack.c.bf16 %v575, %v559
        %v624 = vpack.c.bf16 %v576, %v560
        %v625 = vpack.c.bf16 %v577, %v561
        %v626 = vpack.c.bf16 %v578, %v562
        %v627 = vpack.c.bf16 %v579, %v563
        %v628 = vpack.c.bf16 %v580, %v564
        %v629 = vpack.c.bf16 %v597, %v581
        %v630 = vpack.c.bf16 %v598, %v582
        %v631 = vpack.c.bf16 %v599, %v583
        %v632 = vpack.c.bf16 %v600, %v584
        %v633 = vpack.c.bf16 %v601, %v585
        %v634 = vpack.c.bf16 %v602, %v586
        %v635 = vpack.c.bf16 %v603, %v587
        %v636 = vpack.c.bf16 %v604, %v588
        %v637 = vpack.c.bf16 %v605, %v589
        %v638 = vpack.c.bf16 %v606, %v590
        %v639 = vpack.c.bf16 %v607, %v591
        %v640 = vpack.c.bf16 %v608, %v592
        %v641 = vpack.c.bf16 %v609, %v593
        %v642 = vpack.c.bf16 %v610, %v594
        %v643 = vpack.c.bf16 %v611, %v595
        %v644 = vpack.c.bf16 %v612, %v596
        %v645 = vld [vmem:[#allocation5] sm:$0xff]
        %v646 = vld [vmem:[#allocation5 + $0x8] sm:$0xff]
        %v647 = vld [vmem:[#allocation5 + $0x10] sm:$0xff]
        %v648 = vld [vmem:[#allocation5 + $0x18] sm:$0xff]
        %v649 = vld [vmem:[#allocation5 + $0x20] sm:$0xff]
        %v650 = vld [vmem:[#allocation5 + $0x28] sm:$0xff]
        %v651 = vld [vmem:[#allocation5 + $0x30] sm:$0xff]
        %v652 = vld [vmem:[#allocation5 + $0x38] sm:$0xff]
        %v653 = vld [vmem:[#allocation5 + $0x40] sm:$0xff]
        %v654 = vld [vmem:[#allocation5 + $0x48] sm:$0xff]
        %v655 = vld [vmem:[#allocation5 + $0x50] sm:$0xff]
        %v656 = vld [vmem:[#allocation5 + $0x58] sm:$0xff]
        %v657 = vld [vmem:[#allocation5 + $0x60] sm:$0xff]
        %v658 = vld [vmem:[#allocation5 + $0x68] sm:$0xff]
        %v659 = vld [vmem:[#allocation5 + $0x70] sm:$0xff]
        %v660 = vld [vmem:[#allocation5 + $0x78] sm:$0xff]
        %v661 = vld [vmem:[#allocation5 + $0x80] sm:$0xff]
        %v662 = vld [vmem:[#allocation5 + $0x88] sm:$0xff]
        %v663 = vld [vmem:[#allocation5 + $0x90] sm:$0xff]
        %v664 = vld [vmem:[#allocation5 + $0x98] sm:$0xff]
        %v665 = vld [vmem:[#allocation5 + $0xa0] sm:$0xff]
        %v666 = vld [vmem:[#allocation5 + $0xa8] sm:$0xff]
        %v667 = vld [vmem:[#allocation5 + $0xb0] sm:$0xff]
        %v668 = vld [vmem:[#allocation5 + $0xb8] sm:$0xff]
        %v669 = vld [vmem:[#allocation5 + $0xc0] sm:$0xff]
        %v670 = vld [vmem:[#allocation5 + $0xc8] sm:$0xff]
        %v671 = vld [vmem:[#allocation5 + $0xd0] sm:$0xff]
        %v672 = vld [vmem:[#allocation5 + $0xd8] sm:$0xff]
        %v673 = vld [vmem:[#allocation5 + $0xe0] sm:$0xff]
        %v674 = vld [vmem:[#allocation5 + $0xe8] sm:$0xff]
        %v675 = vld [vmem:[#allocation5 + $0xf0] sm:$0xff]
        %v676 = vld [vmem:[#allocation5 + $0xf8] sm:$0xff]
        %v677 = vld [vmem:[#allocation5 + $0x100] sm:$0xff]
        %v678 = vld [vmem:[#allocation5 + $0x108] sm:$0xff]
        %v679 = vld [vmem:[#allocation5 + $0x110] sm:$0xff]
        %v680 = vld [vmem:[#allocation5 + $0x118] sm:$0xff]
        %v681 = vld [vmem:[#allocation5 + $0x120] sm:$0xff]
        %v682 = vld [vmem:[#allocation5 + $0x128] sm:$0xff]
        %v683 = vld [vmem:[#allocation5 + $0x130] sm:$0xff]
        %v684 = vld [vmem:[#allocation5 + $0x138] sm:$0xff]
        %v685 = vld [vmem:[#allocation5 + $0x140] sm:$0xff]
        %v686 = vld [vmem:[#allocation5 + $0x148] sm:$0xff]
        %v687 = vld [vmem:[#allocation5 + $0x150] sm:$0xff]
        %v688 = vld [vmem:[#allocation5 + $0x158] sm:$0xff]
        %v689 = vld [vmem:[#allocation5 + $0x160] sm:$0xff]
        %v690 = vld [vmem:[#allocation5 + $0x168] sm:$0xff]
        %v691 = vld [vmem:[#allocation5 + $0x170] sm:$0xff]
        %v692 = vld [vmem:[#allocation5 + $0x178] sm:$0xff]
        %v693 = vld [vmem:[#allocation5 + $0x180] sm:$0xff]
        %v694 = vld [vmem:[#allocation5 + $0x188] sm:$0xff]
        %v695 = vld [vmem:[#allocation5 + $0x190] sm:$0xff]
        %v696 = vld [vmem:[#allocation5 + $0x198] sm:$0xff]
        %v697 = vld [vmem:[#allocation5 + $0x1a0] sm:$0xff]
        %v698 = vld [vmem:[#allocation5 + $0x1a8] sm:$0xff]
        %v699 = vld [vmem:[#allocation5 + $0x1b0] sm:$0xff]
        %v700 = vld [vmem:[#allocation5 + $0x1b8] sm:$0xff]
        %v701 = vld [vmem:[#allocation5 + $0x1c0] sm:$0xff]
        %v702 = vld [vmem:[#allocation5 + $0x1c8] sm:$0xff]
        %v703 = vld [vmem:[#allocation5 + $0x1d0] sm:$0xff]
        %v704 = vld [vmem:[#allocation5 + $0x1d8] sm:$0xff]
        %v705 = vld [vmem:[#allocation5 + $0x1e0] sm:$0xff]
        %v706 = vld [vmem:[#allocation5 + $0x1e8] sm:$0xff]
        %v707 = vld [vmem:[#allocation5 + $0x1f0] sm:$0xff]
        %v708 = vld [vmem:[#allocation5 + $0x1f8] sm:$0xff]
        %v709 = vld [vmem:[#allocation5 + $0x200] sm:$0xff]
        %v710 = vld [vmem:[#allocation5 + $0x208] sm:$0xff]
        %v711 = vld [vmem:[#allocation5 + $0x210] sm:$0xff]
        %v712 = vld [vmem:[#allocation5 + $0x218] sm:$0xff]
        %v713 = vld [vmem:[#allocation5 + $0x220] sm:$0xff]
        %v714 = vld [vmem:[#allocation5 + $0x228] sm:$0xff]
        %v715 = vld [vmem:[#allocation5 + $0x230] sm:$0xff]
        %v716 = vld [vmem:[#allocation5 + $0x238] sm:$0xff]
        %v717 = vld [vmem:[#allocation5 + $0x240] sm:$0xff]
        %v718 = vld [vmem:[#allocation5 + $0x248] sm:$0xff]
        %v719 = vld [vmem:[#allocation5 + $0x250] sm:$0xff]
        %v720 = vld [vmem:[#allocation5 + $0x258] sm:$0xff]
        %v721 = vld [vmem:[#allocation5 + $0x260] sm:$0xff]
        %v722 = vld [vmem:[#allocation5 + $0x268] sm:$0xff]
        %v723 = vld [vmem:[#allocation5 + $0x270] sm:$0xff]
        %v724 = vld [vmem:[#allocation5 + $0x278] sm:$0xff]
        %v725 = vld [vmem:[#allocation5 + $0x280] sm:$0xff]
        %v726 = vld [vmem:[#allocation5 + $0x288] sm:$0xff]
        %v727 = vld [vmem:[#allocation5 + $0x290] sm:$0xff]
        %v728 = vld [vmem:[#allocation5 + $0x298] sm:$0xff]
        %v729 = vld [vmem:[#allocation5 + $0x2a0] sm:$0xff]
        %v730 = vld [vmem:[#allocation5 + $0x2a8] sm:$0xff]
        %v731 = vld [vmem:[#allocation5 + $0x2b0] sm:$0xff]
        %v732 = vld [vmem:[#allocation5 + $0x2b8] sm:$0xff]
        %v733 = vld [vmem:[#allocation5 + $0x2c0] sm:$0xff]
        %v734 = vld [vmem:[#allocation5 + $0x2c8] sm:$0xff]
        %v735 = vld [vmem:[#allocation5 + $0x2d0] sm:$0xff]
        %v736 = vld [vmem:[#allocation5 + $0x2d8] sm:$0xff]
        %v737 = vld [vmem:[#allocation5 + $0x2e0] sm:$0xff]
        %v738 = vld [vmem:[#allocation5 + $0x2e8] sm:$0xff]
        %v739 = vld [vmem:[#allocation5 + $0x2f0] sm:$0xff]
        %v740 = vld [vmem:[#allocation5 + $0x2f8] sm:$0xff]
        %v741 = vld [vmem:[#allocation5 + $0x300] sm:$0xff]
        %v742 = vld [vmem:[#allocation5 + $0x308] sm:$0xff]
        %v743 = vld [vmem:[#allocation5 + $0x310] sm:$0xff]
        %v744 = vld [vmem:[#allocation5 + $0x318] sm:$0xff]
        %v745 = vld [vmem:[#allocation5 + $0x320] sm:$0xff]
        %v746 = vld [vmem:[#allocation5 + $0x328] sm:$0xff]
        %v747 = vld [vmem:[#allocation5 + $0x330] sm:$0xff]
        %v748 = vld [vmem:[#allocation5 + $0x338] sm:$0xff]
        %v749 = vld [vmem:[#allocation5 + $0x340] sm:$0xff]
        %v750 = vld [vmem:[#allocation5 + $0x348] sm:$0xff]
        %v751 = vld [vmem:[#allocation5 + $0x350] sm:$0xff]
        %v752 = vld [vmem:[#allocation5 + $0x358] sm:$0xff]
        %v753 = vld [vmem:[#allocation5 + $0x360] sm:$0xff]
        %v754 = vld [vmem:[#allocation5 + $0x368] sm:$0xff]
        %v755 = vld [vmem:[#allocation5 + $0x370] sm:$0xff]
        %v756 = vld [vmem:[#allocation5 + $0x378] sm:$0xff]
        %v757 = vld [vmem:[#allocation5 + $0x380] sm:$0xff]
        %v758 = vld [vmem:[#allocation5 + $0x388] sm:$0xff]
        %v759 = vld [vmem:[#allocation5 + $0x390] sm:$0xff]
        %v760 = vld [vmem:[#allocation5 + $0x398] sm:$0xff]
        %v761 = vld [vmem:[#allocation5 + $0x3a0] sm:$0xff]
        %v762 = vld [vmem:[#allocation5 + $0x3a8] sm:$0xff]
        %v763 = vld [vmem:[#allocation5 + $0x3b0] sm:$0xff]
        %v764 = vld [vmem:[#allocation5 + $0x3b8] sm:$0xff]
        %v765 = vld [vmem:[#allocation5 + $0x3c0] sm:$0xff]
        %v766 = vld [vmem:[#allocation5 + $0x3c8] sm:$0xff]
        %v767 = vld [vmem:[#allocation5 + $0x3d0] sm:$0xff]
        %v768 = vld [vmem:[#allocation5 + $0x3d8] sm:$0xff]
        %v769 = vld [vmem:[#allocation5 + $0x3e0] sm:$0xff]
        %v770 = vld [vmem:[#allocation5 + $0x3e8] sm:$0xff]
        %v771 = vld [vmem:[#allocation5 + $0x3f0] sm:$0xff]
        %v772 = vld [vmem:[#allocation5 + $0x3f8] sm:$0xff]
        %v773 = vld [vmem:[#allocation5 + $0x400] sm:$0xff]
        %v774 = vld [vmem:[#allocation5 + $0x408] sm:$0xff]
        %v775 = vld [vmem:[#allocation5 + $0x410] sm:$0xff]
        %v776 = vld [vmem:[#allocation5 + $0x418] sm:$0xff]
        %v777 = vld [vmem:[#allocation5 + $0x420] sm:$0xff]
        %v778 = vld [vmem:[#allocation5 + $0x428] sm:$0xff]
        %v779 = vld [vmem:[#allocation5 + $0x430] sm:$0xff]
        %v780 = vld [vmem:[#allocation5 + $0x438] sm:$0xff]
        %v781 = vld [vmem:[#allocation5 + $0x440] sm:$0xff]
        %v782 = vld [vmem:[#allocation5 + $0x448] sm:$0xff]
        %v783 = vld [vmem:[#allocation5 + $0x450] sm:$0xff]
        %v784 = vld [vmem:[#allocation5 + $0x458] sm:$0xff]
        %v785 = vld [vmem:[#allocation5 + $0x460] sm:$0xff]
        %v786 = vld [vmem:[#allocation5 + $0x468] sm:$0xff]
        %v787 = vld [vmem:[#allocation5 + $0x470] sm:$0xff]
        %v788 = vld [vmem:[#allocation5 + $0x478] sm:$0xff]
        %v789 = vld [vmem:[#allocation5 + $0x480] sm:$0xff]
        %v790 = vld [vmem:[#allocation5 + $0x488] sm:$0xff]
        %v791 = vld [vmem:[#allocation5 + $0x490] sm:$0xff]
        %v792 = vld [vmem:[#allocation5 + $0x498] sm:$0xff]
        %v793 = vld [vmem:[#allocation5 + $0x4a0] sm:$0xff]
        %v794 = vld [vmem:[#allocation5 + $0x4a8] sm:$0xff]
        %v795 = vld [vmem:[#allocation5 + $0x4b0] sm:$0xff]
        %v796 = vld [vmem:[#allocation5 + $0x4b8] sm:$0xff]
        %v797 = vld [vmem:[#allocation5 + $0x4c0] sm:$0xff]
        %v798 = vld [vmem:[#allocation5 + $0x4c8] sm:$0xff]
        %v799 = vld [vmem:[#allocation5 + $0x4d0] sm:$0xff]
        %v800 = vld [vmem:[#allocation5 + $0x4d8] sm:$0xff]
        %v801 = vld [vmem:[#allocation5 + $0x4e0] sm:$0xff]
        %v802 = vld [vmem:[#allocation5 + $0x4e8] sm:$0xff]
        %v803 = vld [vmem:[#allocation5 + $0x4f0] sm:$0xff]
        %v804 = vld [vmem:[#allocation5 + $0x4f8] sm:$0xff]
        %v805 = vld [vmem:[#allocation5 + $0x500] sm:$0xff]
        %v806 = vld [vmem:[#allocation5 + $0x508] sm:$0xff]
        %v807 = vld [vmem:[#allocation5 + $0x510] sm:$0xff]
        %v808 = vld [vmem:[#allocation5 + $0x518] sm:$0xff]
        %v809 = vld [vmem:[#allocation5 + $0x520] sm:$0xff]
        %v810 = vld [vmem:[#allocation5 + $0x528] sm:$0xff]
        %v811 = vld [vmem:[#allocation5 + $0x530] sm:$0xff]
        %v812 = vld [vmem:[#allocation5 + $0x538] sm:$0xff]
        %v813 = vld [vmem:[#allocation5 + $0x540] sm:$0xff]
        %v814 = vld [vmem:[#allocation5 + $0x548] sm:$0xff]
        %v815 = vld [vmem:[#allocation5 + $0x550] sm:$0xff]
        %v816 = vld [vmem:[#allocation5 + $0x558] sm:$0xff]
        %v817 = vld [vmem:[#allocation5 + $0x560] sm:$0xff]
        %v818 = vld [vmem:[#allocation5 + $0x568] sm:$0xff]
        %v819 = vld [vmem:[#allocation5 + $0x570] sm:$0xff]
        %v820 = vld [vmem:[#allocation5 + $0x578] sm:$0xff]
        %v821 = vld [vmem:[#allocation5 + $0x580] sm:$0xff]
        %v822 = vld [vmem:[#allocation5 + $0x588] sm:$0xff]
        %v823 = vld [vmem:[#allocation5 + $0x590] sm:$0xff]
        %v824 = vld [vmem:[#allocation5 + $0x598] sm:$0xff]
        %v825 = vld [vmem:[#allocation5 + $0x5a0] sm:$0xff]
        %v826 = vld [vmem:[#allocation5 + $0x5a8] sm:$0xff]
        %v827 = vld [vmem:[#allocation5 + $0x5b0] sm:$0xff]
        %v828 = vld [vmem:[#allocation5 + $0x5b8] sm:$0xff]
        %v829 = vld [vmem:[#allocation5 + $0x5c0] sm:$0xff]
        %v830 = vld [vmem:[#allocation5 + $0x5c8] sm:$0xff]
        %v831 = vld [vmem:[#allocation5 + $0x5d0] sm:$0xff]
        %v832 = vld [vmem:[#allocation5 + $0x5d8] sm:$0xff]
        %v833 = vld [vmem:[#allocation5 + $0x5e0] sm:$0xff]
        %v834 = vld [vmem:[#allocation5 + $0x5e8] sm:$0xff]
        %v835 = vld [vmem:[#allocation5 + $0x5f0] sm:$0xff]
        %v836 = vld [vmem:[#allocation5 + $0x5f8] sm:$0xff]
        %v837 = vld [vmem:[#allocation5 + $0x600] sm:$0xff]
        %v838 = vld [vmem:[#allocation5 + $0x608] sm:$0xff]
        %v839 = vld [vmem:[#allocation5 + $0x610] sm:$0xff]
        %v840 = vld [vmem:[#allocation5 + $0x618] sm:$0xff]
        %v841 = vld [vmem:[#allocation5 + $0x620] sm:$0xff]
        %v842 = vld [vmem:[#allocation5 + $0x628] sm:$0xff]
        %v843 = vld [vmem:[#allocation5 + $0x630] sm:$0xff]
        %v844 = vld [vmem:[#allocation5 + $0x638] sm:$0xff]
        %v845 = vld [vmem:[#allocation5 + $0x640] sm:$0xff]
        %v846 = vld [vmem:[#allocation5 + $0x648] sm:$0xff]
        %v847 = vld [vmem:[#allocation5 + $0x650] sm:$0xff]
        %v848 = vld [vmem:[#allocation5 + $0x658] sm:$0xff]
        %v849 = vld [vmem:[#allocation5 + $0x660] sm:$0xff]
        %v850 = vld [vmem:[#allocation5 + $0x668] sm:$0xff]
        %v851 = vld [vmem:[#allocation5 + $0x670] sm:$0xff]
        %v852 = vld [vmem:[#allocation5 + $0x678] sm:$0xff]
        %v853 = vld [vmem:[#allocation5 + $0x680] sm:$0xff]
        %v854 = vld [vmem:[#allocation5 + $0x688] sm:$0xff]
        %v855 = vld [vmem:[#allocation5 + $0x690] sm:$0xff]
        %v856 = vld [vmem:[#allocation5 + $0x698] sm:$0xff]
        %v857 = vld [vmem:[#allocation5 + $0x6a0] sm:$0xff]
        %v858 = vld [vmem:[#allocation5 + $0x6a8] sm:$0xff]
        %v859 = vld [vmem:[#allocation5 + $0x6b0] sm:$0xff]
        %v860 = vld [vmem:[#allocation5 + $0x6b8] sm:$0xff]
        %v861 = vld [vmem:[#allocation5 + $0x6c0] sm:$0xff]
        %v862 = vld [vmem:[#allocation5 + $0x6c8] sm:$0xff]
        %v863 = vld [vmem:[#allocation5 + $0x6d0] sm:$0xff]
        %v864 = vld [vmem:[#allocation5 + $0x6d8] sm:$0xff]
        %v865 = vld [vmem:[#allocation5 + $0x6e0] sm:$0xff]
        %v866 = vld [vmem:[#allocation5 + $0x6e8] sm:$0xff]
        %v867 = vld [vmem:[#allocation5 + $0x6f0] sm:$0xff]
        %v868 = vld [vmem:[#allocation5 + $0x6f8] sm:$0xff]
        %v869 = vld [vmem:[#allocation5 + $0x700] sm:$0xff]
        %v870 = vld [vmem:[#allocation5 + $0x708] sm:$0xff]
        %v871 = vld [vmem:[#allocation5 + $0x710] sm:$0xff]
        %v872 = vld [vmem:[#allocation5 + $0x718] sm:$0xff]
        %v873 = vld [vmem:[#allocation5 + $0x720] sm:$0xff]
        %v874 = vld [vmem:[#allocation5 + $0x728] sm:$0xff]
        %v875 = vld [vmem:[#allocation5 + $0x730] sm:$0xff]
        %v876 = vld [vmem:[#allocation5 + $0x738] sm:$0xff]
        %v877 = vld [vmem:[#allocation5 + $0x740] sm:$0xff]
        %v878 = vld [vmem:[#allocation5 + $0x748] sm:$0xff]
        %v879 = vld [vmem:[#allocation5 + $0x750] sm:$0xff]
        %v880 = vld [vmem:[#allocation5 + $0x758] sm:$0xff]
        %v881 = vld [vmem:[#allocation5 + $0x760] sm:$0xff]
        %v882 = vld [vmem:[#allocation5 + $0x768] sm:$0xff]
        %v883 = vld [vmem:[#allocation5 + $0x770] sm:$0xff]
        %v884 = vld [vmem:[#allocation5 + $0x778] sm:$0xff]
        %v885 = vld [vmem:[#allocation5 + $0x780] sm:$0xff]
        %v886 = vld [vmem:[#allocation5 + $0x788] sm:$0xff]
        %v887 = vld [vmem:[#allocation5 + $0x790] sm:$0xff]
        %v888 = vld [vmem:[#allocation5 + $0x798] sm:$0xff]
        %v889 = vld [vmem:[#allocation5 + $0x7a0] sm:$0xff]
        %v890 = vld [vmem:[#allocation5 + $0x7a8] sm:$0xff]
        %v891 = vld [vmem:[#allocation5 + $0x7b0] sm:$0xff]
        %v892 = vld [vmem:[#allocation5 + $0x7b8] sm:$0xff]
        %v893 = vld [vmem:[#allocation5 + $0x7c0] sm:$0xff]
        %v894 = vld [vmem:[#allocation5 + $0x7c8] sm:$0xff]
        %v895 = vld [vmem:[#allocation5 + $0x7d0] sm:$0xff]
        %v896 = vld [vmem:[#allocation5 + $0x7d8] sm:$0xff]
        %v897 = vld [vmem:[#allocation5 + $0x7e0] sm:$0xff]
        %v898 = vld [vmem:[#allocation5 + $0x7e8] sm:$0xff]
        %v899 = vld [vmem:[#allocation5 + $0x7f0] sm:$0xff]
        %v900 = vld [vmem:[#allocation5 + $0x7f8] sm:$0xff]
        %v901 = vld [vmem:[#allocation5 + $0x800] sm:$0xff]
        %v902 = vld [vmem:[#allocation5 + $0x808] sm:$0xff]
        %v903 = vld [vmem:[#allocation5 + $0x810] sm:$0xff]
        %v904 = vld [vmem:[#allocation5 + $0x818] sm:$0xff]
        %v905 = vld [vmem:[#allocation5 + $0x820] sm:$0xff]
        %v906 = vld [vmem:[#allocation5 + $0x828] sm:$0xff]
        %v907 = vld [vmem:[#allocation5 + $0x830] sm:$0xff]
        %v908 = vld [vmem:[#allocation5 + $0x838] sm:$0xff]
        %v909 = vld [vmem:[#allocation5 + $0x840] sm:$0xff]
        %v910 = vld [vmem:[#allocation5 + $0x848] sm:$0xff]
        %v911 = vld [vmem:[#allocation5 + $0x850] sm:$0xff]
        %v912 = vld [vmem:[#allocation5 + $0x858] sm:$0xff]
        %v913 = vld [vmem:[#allocation5 + $0x860] sm:$0xff]
        %v914 = vld [vmem:[#allocation5 + $0x868] sm:$0xff]
        %v915 = vld [vmem:[#allocation5 + $0x870] sm:$0xff]
        %v916 = vld [vmem:[#allocation5 + $0x878] sm:$0xff]
        %v917 = vld [vmem:[#allocation5 + $0x880] sm:$0xff]
        %v918 = vld [vmem:[#allocation5 + $0x888] sm:$0xff]
        %v919 = vld [vmem:[#allocation5 + $0x890] sm:$0xff]
        %v920 = vld [vmem:[#allocation5 + $0x898] sm:$0xff]
        %v921 = vld [vmem:[#allocation5 + $0x8a0] sm:$0xff]
        %v922 = vld [vmem:[#allocation5 + $0x8a8] sm:$0xff]
        %v923 = vld [vmem:[#allocation5 + $0x8b0] sm:$0xff]
        %v924 = vld [vmem:[#allocation5 + $0x8b8] sm:$0xff]
        %v925 = vld [vmem:[#allocation5 + $0x8c0] sm:$0xff]
        %v926 = vld [vmem:[#allocation5 + $0x8c8] sm:$0xff]
        %v927 = vld [vmem:[#allocation5 + $0x8d0] sm:$0xff]
        %v928 = vld [vmem:[#allocation5 + $0x8d8] sm:$0xff]
        %v929 = vld [vmem:[#allocation5 + $0x8e0] sm:$0xff]
        %v930 = vld [vmem:[#allocation5 + $0x8e8] sm:$0xff]
        %v931 = vld [vmem:[#allocation5 + $0x8f0] sm:$0xff]
        %v932 = vld [vmem:[#allocation5 + $0x8f8] sm:$0xff]
        %v933 = vld [vmem:[#allocation5 + $0x900] sm:$0xff]
        %v934 = vld [vmem:[#allocation5 + $0x908] sm:$0xff]
        %v935 = vld [vmem:[#allocation5 + $0x910] sm:$0xff]
        %v936 = vld [vmem:[#allocation5 + $0x918] sm:$0xff]
        %v937 = vld [vmem:[#allocation5 + $0x920] sm:$0xff]
        %v938 = vld [vmem:[#allocation5 + $0x928] sm:$0xff]
        %v939 = vld [vmem:[#allocation5 + $0x930] sm:$0xff]
        %v940 = vld [vmem:[#allocation5 + $0x938] sm:$0xff]
        %v941 = vld [vmem:[#allocation5 + $0x940] sm:$0xff]
        %v942 = vld [vmem:[#allocation5 + $0x948] sm:$0xff]
        %v943 = vld [vmem:[#allocation5 + $0x950] sm:$0xff]
        %v944 = vld [vmem:[#allocation5 + $0x958] sm:$0xff]
        %v945 = vld [vmem:[#allocation5 + $0x960] sm:$0xff]
        %v946 = vld [vmem:[#allocation5 + $0x968] sm:$0xff]
        %v947 = vld [vmem:[#allocation5 + $0x970] sm:$0xff]
        %v948 = vld [vmem:[#allocation5 + $0x978] sm:$0xff]
        %v949 = vld [vmem:[#allocation5 + $0x980] sm:$0xff]
        %v950 = vld [vmem:[#allocation5 + $0x988] sm:$0xff]
        %v951 = vld [vmem:[#allocation5 + $0x990] sm:$0xff]
        %v952 = vld [vmem:[#allocation5 + $0x998] sm:$0xff]
        %v953 = vld [vmem:[#allocation5 + $0x9a0] sm:$0xff]
        %v954 = vld [vmem:[#allocation5 + $0x9a8] sm:$0xff]
        %v955 = vld [vmem:[#allocation5 + $0x9b0] sm:$0xff]
        %v956 = vld [vmem:[#allocation5 + $0x9b8] sm:$0xff]
        %v957 = vld [vmem:[#allocation5 + $0x9c0] sm:$0xff]
        %v958 = vld [vmem:[#allocation5 + $0x9c8] sm:$0xff]
        %v959 = vld [vmem:[#allocation5 + $0x9d0] sm:$0xff]
        %v960 = vld [vmem:[#allocation5 + $0x9d8] sm:$0xff]
        %v961 = vld [vmem:[#allocation5 + $0x9e0] sm:$0xff]
        %v962 = vld [vmem:[#allocation5 + $0x9e8] sm:$0xff]
        %v963 = vld [vmem:[#allocation5 + $0x9f0] sm:$0xff]
        %v964 = vld [vmem:[#allocation5 + $0x9f8] sm:$0xff]
        %v965 = vld [vmem:[#allocation5 + $0xa00] sm:$0xff]
        %v966 = vld [vmem:[#allocation5 + $0xa08] sm:$0xff]
        %v967 = vld [vmem:[#allocation5 + $0xa10] sm:$0xff]
        %v968 = vld [vmem:[#allocation5 + $0xa18] sm:$0xff]
        %v969 = vld [vmem:[#allocation5 + $0xa20] sm:$0xff]
        %v970 = vld [vmem:[#allocation5 + $0xa28] sm:$0xff]
        %v971 = vld [vmem:[#allocation5 + $0xa30] sm:$0xff]
        %v972 = vld [vmem:[#allocation5 + $0xa38] sm:$0xff]
        %v973 = vld [vmem:[#allocation5 + $0xa40] sm:$0xff]
        %v974 = vld [vmem:[#allocation5 + $0xa48] sm:$0xff]
        %v975 = vld [vmem:[#allocation5 + $0xa50] sm:$0xff]
        %v976 = vld [vmem:[#allocation5 + $0xa58] sm:$0xff]
        %v977 = vld [vmem:[#allocation5 + $0xa60] sm:$0xff]
        %v978 = vld [vmem:[#allocation5 + $0xa68] sm:$0xff]
        %v979 = vld [vmem:[#allocation5 + $0xa70] sm:$0xff]
        %v980 = vld [vmem:[#allocation5 + $0xa78] sm:$0xff]
        %v981 = vld [vmem:[#allocation5 + $0xa80] sm:$0xff]
        %v982 = vld [vmem:[#allocation5 + $0xa88] sm:$0xff]
        %v983 = vld [vmem:[#allocation5 + $0xa90] sm:$0xff]
        %v984 = vld [vmem:[#allocation5 + $0xa98] sm:$0xff]
        %v985 = vld [vmem:[#allocation5 + $0xaa0] sm:$0xff]
        %v986 = vld [vmem:[#allocation5 + $0xaa8] sm:$0xff]
        %v987 = vld [vmem:[#allocation5 + $0xab0] sm:$0xff]
        %v988 = vld [vmem:[#allocation5 + $0xab8] sm:$0xff]
        %v989 = vld [vmem:[#allocation5 + $0xac0] sm:$0xff]
        %v990 = vld [vmem:[#allocation5 + $0xac8] sm:$0xff]
        %v991 = vld [vmem:[#allocation5 + $0xad0] sm:$0xff]
        %v992 = vld [vmem:[#allocation5 + $0xad8] sm:$0xff]
        %v993 = vld [vmem:[#allocation5 + $0xae0] sm:$0xff]
        %v994 = vld [vmem:[#allocation5 + $0xae8] sm:$0xff]
        %v995 = vld [vmem:[#allocation5 + $0xaf0] sm:$0xff]
        %v996 = vld [vmem:[#allocation5 + $0xaf8] sm:$0xff]
        %v997 = vld [vmem:[#allocation5 + $0xb00] sm:$0xff]
        %v998 = vld [vmem:[#allocation5 + $0xb08] sm:$0xff]
        %v999 = vld [vmem:[#allocation5 + $0xb10] sm:$0xff]
        %v1000 = vld [vmem:[#allocation5 + $0xb18] sm:$0xff]
        %v1001 = vld [vmem:[#allocation5 + $0xb20] sm:$0xff]
        %v1002 = vld [vmem:[#allocation5 + $0xb28] sm:$0xff]
        %v1003 = vld [vmem:[#allocation5 + $0xb30] sm:$0xff]
        %v1004 = vld [vmem:[#allocation5 + $0xb38] sm:$0xff]
        %v1005 = vld [vmem:[#allocation5 + $0xb40] sm:$0xff]
        %v1006 = vld [vmem:[#allocation5 + $0xb48] sm:$0xff]
        %v1007 = vld [vmem:[#allocation5 + $0xb50] sm:$0xff]
        %v1008 = vld [vmem:[#allocation5 + $0xb58] sm:$0xff]
        %v1009 = vld [vmem:[#allocation5 + $0xb60] sm:$0xff]
        %v1010 = vld [vmem:[#allocation5 + $0xb68] sm:$0xff]
        %v1011 = vld [vmem:[#allocation5 + $0xb70] sm:$0xff]
        %v1012 = vld [vmem:[#allocation5 + $0xb78] sm:$0xff]
        %v1013 = vld [vmem:[#allocation5 + $0xb80] sm:$0xff]
        %v1014 = vld [vmem:[#allocation5 + $0xb88] sm:$0xff]
        %v1015 = vld [vmem:[#allocation5 + $0xb90] sm:$0xff]
        %v1016 = vld [vmem:[#allocation5 + $0xb98] sm:$0xff]
        %v1017 = vld [vmem:[#allocation5 + $0xba0] sm:$0xff]
        %v1018 = vld [vmem:[#allocation5 + $0xba8] sm:$0xff]
        %v1019 = vld [vmem:[#allocation5 + $0xbb0] sm:$0xff]
        %v1020 = vld [vmem:[#allocation5 + $0xbb8] sm:$0xff]
        %v1021 = vld [vmem:[#allocation5 + $0xbc0] sm:$0xff]
        %v1022 = vld [vmem:[#allocation5 + $0xbc8] sm:$0xff]
        %v1023 = vld [vmem:[#allocation5 + $0xbd0] sm:$0xff]
        %v1024 = vld [vmem:[#allocation5 + $0xbd8] sm:$0xff]
        %v1025 = vld [vmem:[#allocation5 + $0xbe0] sm:$0xff]
        %v1026 = vld [vmem:[#allocation5 + $0xbe8] sm:$0xff]
        %v1027 = vld [vmem:[#allocation5 + $0xbf0] sm:$0xff]
        %v1028 = vld [vmem:[#allocation5 + $0xbf8] sm:$0xff]
        %v1029 = vld [vmem:[#allocation5 + $0xc00] sm:$0xff]
        %v1030 = vld [vmem:[#allocation5 + $0xc08] sm:$0xff]
        %v1031 = vld [vmem:[#allocation5 + $0xc10] sm:$0xff]
        %v1032 = vld [vmem:[#allocation5 + $0xc18] sm:$0xff]
        %v1033 = vld [vmem:[#allocation5 + $0xc20] sm:$0xff]
        %v1034 = vld [vmem:[#allocation5 + $0xc28] sm:$0xff]
        %v1035 = vld [vmem:[#allocation5 + $0xc30] sm:$0xff]
        %v1036 = vld [vmem:[#allocation5 + $0xc38] sm:$0xff]
        %v1037 = vld [vmem:[#allocation5 + $0xc40] sm:$0xff]
        %v1038 = vld [vmem:[#allocation5 + $0xc48] sm:$0xff]
        %v1039 = vld [vmem:[#allocation5 + $0xc50] sm:$0xff]
        %v1040 = vld [vmem:[#allocation5 + $0xc58] sm:$0xff]
        %v1041 = vld [vmem:[#allocation5 + $0xc60] sm:$0xff]
        %v1042 = vld [vmem:[#allocation5 + $0xc68] sm:$0xff]
        %v1043 = vld [vmem:[#allocation5 + $0xc70] sm:$0xff]
        %v1044 = vld [vmem:[#allocation5 + $0xc78] sm:$0xff]
        %v1045 = vld [vmem:[#allocation5 + $0xc80] sm:$0xff]
        %v1046 = vld [vmem:[#allocation5 + $0xc88] sm:$0xff]
        %v1047 = vld [vmem:[#allocation5 + $0xc90] sm:$0xff]
        %v1048 = vld [vmem:[#allocation5 + $0xc98] sm:$0xff]
        %v1049 = vld [vmem:[#allocation5 + $0xca0] sm:$0xff]
        %v1050 = vld [vmem:[#allocation5 + $0xca8] sm:$0xff]
        %v1051 = vld [vmem:[#allocation5 + $0xcb0] sm:$0xff]
        %v1052 = vld [vmem:[#allocation5 + $0xcb8] sm:$0xff]
        %v1053 = vld [vmem:[#allocation5 + $0xcc0] sm:$0xff]
        %v1054 = vld [vmem:[#allocation5 + $0xcc8] sm:$0xff]
        %v1055 = vld [vmem:[#allocation5 + $0xcd0] sm:$0xff]
        %v1056 = vld [vmem:[#allocation5 + $0xcd8] sm:$0xff]
        %v1057 = vld [vmem:[#allocation5 + $0xce0] sm:$0xff]
        %v1058 = vld [vmem:[#allocation5 + $0xce8] sm:$0xff]
        %v1059 = vld [vmem:[#allocation5 + $0xcf0] sm:$0xff]
        %v1060 = vld [vmem:[#allocation5 + $0xcf8] sm:$0xff]
        %v1061 = vld [vmem:[#allocation5 + $0xd00] sm:$0xff]
        %v1062 = vld [vmem:[#allocation5 + $0xd08] sm:$0xff]
        %v1063 = vld [vmem:[#allocation5 + $0xd10] sm:$0xff]
        %v1064 = vld [vmem:[#allocation5 + $0xd18] sm:$0xff]
        %v1065 = vld [vmem:[#allocation5 + $0xd20] sm:$0xff]
        %v1066 = vld [vmem:[#allocation5 + $0xd28] sm:$0xff]
        %v1067 = vld [vmem:[#allocation5 + $0xd30] sm:$0xff]
        %v1068 = vld [vmem:[#allocation5 + $0xd38] sm:$0xff]
        %v1069 = vld [vmem:[#allocation5 + $0xd40] sm:$0xff]
        %v1070 = vld [vmem:[#allocation5 + $0xd48] sm:$0xff]
        %v1071 = vld [vmem:[#allocation5 + $0xd50] sm:$0xff]
        %v1072 = vld [vmem:[#allocation5 + $0xd58] sm:$0xff]
        %v1073 = vld [vmem:[#allocation5 + $0xd60] sm:$0xff]
        %v1074 = vld [vmem:[#allocation5 + $0xd68] sm:$0xff]
        %v1075 = vld [vmem:[#allocation5 + $0xd70] sm:$0xff]
        %v1076 = vld [vmem:[#allocation5 + $0xd78] sm:$0xff]
        %v1077 = vld [vmem:[#allocation5 + $0xd80] sm:$0xff]
        %v1078 = vld [vmem:[#allocation5 + $0xd88] sm:$0xff]
        %v1079 = vld [vmem:[#allocation5 + $0xd90] sm:$0xff]
        %v1080 = vld [vmem:[#allocation5 + $0xd98] sm:$0xff]
        %v1081 = vld [vmem:[#allocation5 + $0xda0] sm:$0xff]
        %v1082 = vld [vmem:[#allocation5 + $0xda8] sm:$0xff]
        %v1083 = vld [vmem:[#allocation5 + $0xdb0] sm:$0xff]
        %v1084 = vld [vmem:[#allocation5 + $0xdb8] sm:$0xff]
        %v1085 = vld [vmem:[#allocation5 + $0xdc0] sm:$0xff]
        %v1086 = vld [vmem:[#allocation5 + $0xdc8] sm:$0xff]
        %v1087 = vld [vmem:[#allocation5 + $0xdd0] sm:$0xff]
        %v1088 = vld [vmem:[#allocation5 + $0xdd8] sm:$0xff]
        %v1089 = vld [vmem:[#allocation5 + $0xde0] sm:$0xff]
        %v1090 = vld [vmem:[#allocation5 + $0xde8] sm:$0xff]
        %v1091 = vld [vmem:[#allocation5 + $0xdf0] sm:$0xff]
        %v1092 = vld [vmem:[#allocation5 + $0xdf8] sm:$0xff]
        %v1093 = vld [vmem:[#allocation5 + $0xe00] sm:$0xff]
        %v1094 = vld [vmem:[#allocation5 + $0xe08] sm:$0xff]
        %v1095 = vld [vmem:[#allocation5 + $0xe10] sm:$0xff]
        %v1096 = vld [vmem:[#allocation5 + $0xe18] sm:$0xff]
        %v1097 = vld [vmem:[#allocation5 + $0xe20] sm:$0xff]
        %v1098 = vld [vmem:[#allocation5 + $0xe28] sm:$0xff]
        %v1099 = vld [vmem:[#allocation5 + $0xe30] sm:$0xff]
        %v1100 = vld [vmem:[#allocation5 + $0xe38] sm:$0xff]
        %v1101 = vld [vmem:[#allocation5 + $0xe40] sm:$0xff]
        %v1102 = vld [vmem:[#allocation5 + $0xe48] sm:$0xff]
        %v1103 = vld [vmem:[#allocation5 + $0xe50] sm:$0xff]
        %v1104 = vld [vmem:[#allocation5 + $0xe58] sm:$0xff]
        %v1105 = vld [vmem:[#allocation5 + $0xe60] sm:$0xff]
        %v1106 = vld [vmem:[#allocation5 + $0xe68] sm:$0xff]
        %v1107 = vld [vmem:[#allocation5 + $0xe70] sm:$0xff]
        %v1108 = vld [vmem:[#allocation5 + $0xe78] sm:$0xff]
        %v1109 = vld [vmem:[#allocation5 + $0xe80] sm:$0xff]
        %v1110 = vld [vmem:[#allocation5 + $0xe88] sm:$0xff]
        %v1111 = vld [vmem:[#allocation5 + $0xe90] sm:$0xff]
        %v1112 = vld [vmem:[#allocation5 + $0xe98] sm:$0xff]
        %v1113 = vld [vmem:[#allocation5 + $0xea0] sm:$0xff]
        %v1114 = vld [vmem:[#allocation5 + $0xea8] sm:$0xff]
        %v1115 = vld [vmem:[#allocation5 + $0xeb0] sm:$0xff]
        %v1116 = vld [vmem:[#allocation5 + $0xeb8] sm:$0xff]
        %v1117 = vld [vmem:[#allocation5 + $0xec0] sm:$0xff]
        %v1118 = vld [vmem:[#allocation5 + $0xec8] sm:$0xff]
        %v1119 = vld [vmem:[#allocation5 + $0xed0] sm:$0xff]
        %v1120 = vld [vmem:[#allocation5 + $0xed8] sm:$0xff]
        %v1121 = vld [vmem:[#allocation5 + $0xee0] sm:$0xff]
        %v1122 = vld [vmem:[#allocation5 + $0xee8] sm:$0xff]
        %v1123 = vld [vmem:[#allocation5 + $0xef0] sm:$0xff]
        %v1124 = vld [vmem:[#allocation5 + $0xef8] sm:$0xff]
        %v1125 = vld [vmem:[#allocation5 + $0xf00] sm:$0xff]
        %v1126 = vld [vmem:[#allocation5 + $0xf08] sm:$0xff]
        %v1127 = vld [vmem:[#allocation5 + $0xf10] sm:$0xff]
        %v1128 = vld [vmem:[#allocation5 + $0xf18] sm:$0xff]
        %v1129 = vld [vmem:[#allocation5 + $0xf20] sm:$0xff]
        %v1130 = vld [vmem:[#allocation5 + $0xf28] sm:$0xff]
        %v1131 = vld [vmem:[#allocation5 + $0xf30] sm:$0xff]
        %v1132 = vld [vmem:[#allocation5 + $0xf38] sm:$0xff]
        %v1133 = vld [vmem:[#allocation5 + $0xf40] sm:$0xff]
        %v1134 = vld [vmem:[#allocation5 + $0xf48] sm:$0xff]
        %v1135 = vld [vmem:[#allocation5 + $0xf50] sm:$0xff]
        %v1136 = vld [vmem:[#allocation5 + $0xf58] sm:$0xff]
        %v1137 = vld [vmem:[#allocation5 + $0xf60] sm:$0xff]
        %v1138 = vld [vmem:[#allocation5 + $0xf68] sm:$0xff]
        %v1139 = vld [vmem:[#allocation5 + $0xf70] sm:$0xff]
        %v1140 = vld [vmem:[#allocation5 + $0xf78] sm:$0xff]
        %v1141 = vld [vmem:[#allocation5 + $0xf80] sm:$0xff]
        %v1142 = vld [vmem:[#allocation5 + $0xf88] sm:$0xff]
        %v1143 = vld [vmem:[#allocation5 + $0xf90] sm:$0xff]
        %v1144 = vld [vmem:[#allocation5 + $0xf98] sm:$0xff]
        %v1145 = vld [vmem:[#allocation5 + $0xfa0] sm:$0xff]
        %v1146 = vld [vmem:[#allocation5 + $0xfa8] sm:$0xff]
        %v1147 = vld [vmem:[#allocation5 + $0xfb0] sm:$0xff]
        %v1148 = vld [vmem:[#allocation5 + $0xfb8] sm:$0xff]
        %v1149 = vld [vmem:[#allocation5 + $0xfc0] sm:$0xff]
        %v1150 = vld [vmem:[#allocation5 + $0xfc8] sm:$0xff]
        %v1151 = vld [vmem:[#allocation5 + $0xfd0] sm:$0xff]
        %v1152 = vld [vmem:[#allocation5 + $0xfd8] sm:$0xff]
        %v1153 = vld [vmem:[#allocation5 + $0xfe0] sm:$0xff]
        %v1154 = vld [vmem:[#allocation5 + $0xfe8] sm:$0xff]
        %v1155 = vld [vmem:[#allocation5 + $0xff0] sm:$0xff]
        %v1156 = vld [vmem:[#allocation5 + $0xff8] sm:$0xff]
        %v1157 = vld [vmem:[#allocation5 + $0x1000] sm:$0xff]
        %v1158 = vld [vmem:[#allocation5 + $0x1008] sm:$0xff]
        %v1159 = vld [vmem:[#allocation5 + $0x1010] sm:$0xff]
        %v1160 = vld [vmem:[#allocation5 + $0x1018] sm:$0xff]
        %v1161 = vld [vmem:[#allocation5 + $0x1020] sm:$0xff]
        %v1162 = vld [vmem:[#allocation5 + $0x1028] sm:$0xff]
        %v1163 = vld [vmem:[#allocation5 + $0x1030] sm:$0xff]
        %v1164 = vld [vmem:[#allocation5 + $0x1038] sm:$0xff]
        %v1165 = vld [vmem:[#allocation5 + $0x1040] sm:$0xff]
        %v1166 = vld [vmem:[#allocation5 + $0x1048] sm:$0xff]
        %v1167 = vld [vmem:[#allocation5 + $0x1050] sm:$0xff]
        %v1168 = vld [vmem:[#allocation5 + $0x1058] sm:$0xff]
        %v1169 = vld [vmem:[#allocation5 + $0x1060] sm:$0xff]
        %v1170 = vld [vmem:[#allocation5 + $0x1068] sm:$0xff]
        %v1171 = vld [vmem:[#allocation5 + $0x1070] sm:$0xff]
        %v1172 = vld [vmem:[#allocation5 + $0x1078] sm:$0xff]
        %v1173 = vld [vmem:[#allocation5 + $0x1080] sm:$0xff]
        %v1174 = vld [vmem:[#allocation5 + $0x1088] sm:$0xff]
        %v1175 = vld [vmem:[#allocation5 + $0x1090] sm:$0xff]
        %v1176 = vld [vmem:[#allocation5 + $0x1098] sm:$0xff]
        %v1177 = vld [vmem:[#allocation5 + $0x10a0] sm:$0xff]
        %v1178 = vld [vmem:[#allocation5 + $0x10a8] sm:$0xff]
        %v1179 = vld [vmem:[#allocation5 + $0x10b0] sm:$0xff]
        %v1180 = vld [vmem:[#allocation5 + $0x10b8] sm:$0xff]
        %v1181 = vld [vmem:[#allocation5 + $0x10c0] sm:$0xff]
        %v1182 = vld [vmem:[#allocation5 + $0x10c8] sm:$0xff]
        %v1183 = vld [vmem:[#allocation5 + $0x10d0] sm:$0xff]
        %v1184 = vld [vmem:[#allocation5 + $0x10d8] sm:$0xff]
        %v1185 = vld [vmem:[#allocation5 + $0x10e0] sm:$0xff]
        %v1186 = vld [vmem:[#allocation5 + $0x10e8] sm:$0xff]
        %v1187 = vld [vmem:[#allocation5 + $0x10f0] sm:$0xff]
        %v1188 = vld [vmem:[#allocation5 + $0x10f8] sm:$0xff]
        %v1189 = vld [vmem:[#allocation5 + $0x1100] sm:$0xff]
        %v1190 = vld [vmem:[#allocation5 + $0x1108] sm:$0xff]
        %v1191 = vld [vmem:[#allocation5 + $0x1110] sm:$0xff]
        %v1192 = vld [vmem:[#allocation5 + $0x1118] sm:$0xff]
        %v1193 = vld [vmem:[#allocation5 + $0x1120] sm:$0xff]
        %v1194 = vld [vmem:[#allocation5 + $0x1128] sm:$0xff]
        %v1195 = vld [vmem:[#allocation5 + $0x1130] sm:$0xff]
        %v1196 = vld [vmem:[#allocation5 + $0x1138] sm:$0xff]
        %v1197 = vld [vmem:[#allocation5 + $0x1140] sm:$0xff]
        %v1198 = vld [vmem:[#allocation5 + $0x1148] sm:$0xff]
        %v1199 = vld [vmem:[#allocation5 + $0x1150] sm:$0xff]
        %v1200 = vld [vmem:[#allocation5 + $0x1158] sm:$0xff]
        %v1201 = vld [vmem:[#allocation5 + $0x1160] sm:$0xff]
        %v1202 = vld [vmem:[#allocation5 + $0x1168] sm:$0xff]
        %v1203 = vld [vmem:[#allocation5 + $0x1170] sm:$0xff]
        %v1204 = vld [vmem:[#allocation5 + $0x1178] sm:$0xff]
        %v1205 = vld [vmem:[#allocation5 + $0x1180] sm:$0xff]
        %v1206 = vld [vmem:[#allocation5 + $0x1188] sm:$0xff]
        %v1207 = vld [vmem:[#allocation5 + $0x1190] sm:$0xff]
        %v1208 = vld [vmem:[#allocation5 + $0x1198] sm:$0xff]
        %v1209 = vld [vmem:[#allocation5 + $0x11a0] sm:$0xff]
        %v1210 = vld [vmem:[#allocation5 + $0x11a8] sm:$0xff]
        %v1211 = vld [vmem:[#allocation5 + $0x11b0] sm:$0xff]
        %v1212 = vld [vmem:[#allocation5 + $0x11b8] sm:$0xff]
        %v1213 = vld [vmem:[#allocation5 + $0x11c0] sm:$0xff]
        %v1214 = vld [vmem:[#allocation5 + $0x11c8] sm:$0xff]
        %v1215 = vld [vmem:[#allocation5 + $0x11d0] sm:$0xff]
        %v1216 = vld [vmem:[#allocation5 + $0x11d8] sm:$0xff]
        %v1217 = vld [vmem:[#allocation5 + $0x11e0] sm:$0xff]
        %v1218 = vld [vmem:[#allocation5 + $0x11e8] sm:$0xff]
        %v1219 = vld [vmem:[#allocation5 + $0x11f0] sm:$0xff]
        %v1220 = vld [vmem:[#allocation5 + $0x11f8] sm:$0xff]
        %v1221 = vld [vmem:[#allocation5 + $0x1200] sm:$0xff]
        %v1222 = vld [vmem:[#allocation5 + $0x1208] sm:$0xff]
        %v1223 = vld [vmem:[#allocation5 + $0x1210] sm:$0xff]
        %v1224 = vld [vmem:[#allocation5 + $0x1218] sm:$0xff]
        %v1225 = vld [vmem:[#allocation5 + $0x1220] sm:$0xff]
        %v1226 = vld [vmem:[#allocation5 + $0x1228] sm:$0xff]
        %v1227 = vld [vmem:[#allocation5 + $0x1230] sm:$0xff]
        %v1228 = vld [vmem:[#allocation5 + $0x1238] sm:$0xff]
        %v1229 = vld [vmem:[#allocation5 + $0x1240] sm:$0xff]
        %v1230 = vld [vmem:[#allocation5 + $0x1248] sm:$0xff]
        %v1231 = vld [vmem:[#allocation5 + $0x1250] sm:$0xff]
        %v1232 = vld [vmem:[#allocation5 + $0x1258] sm:$0xff]
        %v1233 = vld [vmem:[#allocation5 + $0x1260] sm:$0xff]
        %v1234 = vld [vmem:[#allocation5 + $0x1268] sm:$0xff]
        %v1235 = vld [vmem:[#allocation5 + $0x1270] sm:$0xff]
        %v1236 = vld [vmem:[#allocation5 + $0x1278] sm:$0xff]
        %v1237 = vld [vmem:[#allocation5 + $0x1280] sm:$0xff]
        %v1238 = vld [vmem:[#allocation5 + $0x1288] sm:$0xff]
        %v1239 = vld [vmem:[#allocation5 + $0x1290] sm:$0xff]
        %v1240 = vld [vmem:[#allocation5 + $0x1298] sm:$0xff]
        %v1241 = vld [vmem:[#allocation5 + $0x12a0] sm:$0xff]
        %v1242 = vld [vmem:[#allocation5 + $0x12a8] sm:$0xff]
        %v1243 = vld [vmem:[#allocation5 + $0x12b0] sm:$0xff]
        %v1244 = vld [vmem:[#allocation5 + $0x12b8] sm:$0xff]
        %v1245 = vld [vmem:[#allocation5 + $0x12c0] sm:$0xff]
        %v1246 = vld [vmem:[#allocation5 + $0x12c8] sm:$0xff]
        %v1247 = vld [vmem:[#allocation5 + $0x12d0] sm:$0xff]
        %v1248 = vld [vmem:[#allocation5 + $0x12d8] sm:$0xff]
        %v1249 = vld [vmem:[#allocation5 + $0x12e0] sm:$0xff]
        %v1250 = vld [vmem:[#allocation5 + $0x12e8] sm:$0xff]
        %v1251 = vld [vmem:[#allocation5 + $0x12f0] sm:$0xff]
        %v1252 = vld [vmem:[#allocation5 + $0x12f8] sm:$0xff]
        %v1253 = vld [vmem:[#allocation5 + $0x1300] sm:$0xff]
        %v1254 = vld [vmem:[#allocation5 + $0x1308] sm:$0xff]
        %v1255 = vld [vmem:[#allocation5 + $0x1310] sm:$0xff]
        %v1256 = vld [vmem:[#allocation5 + $0x1318] sm:$0xff]
        %v1257 = vld [vmem:[#allocation5 + $0x1320] sm:$0xff]
        %v1258 = vld [vmem:[#allocation5 + $0x1328] sm:$0xff]
        %v1259 = vld [vmem:[#allocation5 + $0x1330] sm:$0xff]
        %v1260 = vld [vmem:[#allocation5 + $0x1338] sm:$0xff]
        %v1261 = vld [vmem:[#allocation5 + $0x1340] sm:$0xff]
        %v1262 = vld [vmem:[#allocation5 + $0x1348] sm:$0xff]
        %v1263 = vld [vmem:[#allocation5 + $0x1350] sm:$0xff]
        %v1264 = vld [vmem:[#allocation5 + $0x1358] sm:$0xff]
        %v1265 = vld [vmem:[#allocation5 + $0x1360] sm:$0xff]
        %v1266 = vld [vmem:[#allocation5 + $0x1368] sm:$0xff]
        %v1267 = vld [vmem:[#allocation5 + $0x1370] sm:$0xff]
        %v1268 = vld [vmem:[#allocation5 + $0x1378] sm:$0xff]
        %v1269 = vld [vmem:[#allocation5 + $0x1380] sm:$0xff]
        %v1270 = vld [vmem:[#allocation5 + $0x1388] sm:$0xff]
        %v1271 = vld [vmem:[#allocation5 + $0x1390] sm:$0xff]
        %v1272 = vld [vmem:[#allocation5 + $0x1398] sm:$0xff]
        %v1273 = vld [vmem:[#allocation5 + $0x13a0] sm:$0xff]
        %v1274 = vld [vmem:[#allocation5 + $0x13a8] sm:$0xff]
        %v1275 = vld [vmem:[#allocation5 + $0x13b0] sm:$0xff]
        %v1276 = vld [vmem:[#allocation5 + $0x13b8] sm:$0xff]
        %v1277 = vld [vmem:[#allocation5 + $0x13c0] sm:$0xff]
        %v1278 = vld [vmem:[#allocation5 + $0x13c8] sm:$0xff]
        %v1279 = vld [vmem:[#allocation5 + $0x13d0] sm:$0xff]
        %v1280 = vld [vmem:[#allocation5 + $0x13d8] sm:$0xff]
        %v1281 = vld [vmem:[#allocation5 + $0x13e0] sm:$0xff]
        %v1282 = vld [vmem:[#allocation5 + $0x13e8] sm:$0xff]
        %v1283 = vld [vmem:[#allocation5 + $0x13f0] sm:$0xff]
        %v1284 = vld [vmem:[#allocation5 + $0x13f8] sm:$0xff]
        %v1285 = vld [vmem:[#allocation5 + $0x1400] sm:$0xff]
        %v1286 = vld [vmem:[#allocation5 + $0x1408] sm:$0xff]
        %v1287 = vld [vmem:[#allocation5 + $0x1410] sm:$0xff]
        %v1288 = vld [vmem:[#allocation5 + $0x1418] sm:$0xff]
        %v1289 = vld [vmem:[#allocation5 + $0x1420] sm:$0xff]
        %v1290 = vld [vmem:[#allocation5 + $0x1428] sm:$0xff]
        %v1291 = vld [vmem:[#allocation5 + $0x1430] sm:$0xff]
        %v1292 = vld [vmem:[#allocation5 + $0x1438] sm:$0xff]
        %v1293 = vld [vmem:[#allocation5 + $0x1440] sm:$0xff]
        %v1294 = vld [vmem:[#allocation5 + $0x1448] sm:$0xff]
        %v1295 = vld [vmem:[#allocation5 + $0x1450] sm:$0xff]
        %v1296 = vld [vmem:[#allocation5 + $0x1458] sm:$0xff]
        %v1297 = vld [vmem:[#allocation5 + $0x1460] sm:$0xff]
        %v1298 = vld [vmem:[#allocation5 + $0x1468] sm:$0xff]
        %v1299 = vld [vmem:[#allocation5 + $0x1470] sm:$0xff]
        %v1300 = vld [vmem:[#allocation5 + $0x1478] sm:$0xff]
        %v1301 = vld [vmem:[#allocation5 + $0x1480] sm:$0xff]
        %v1302 = vld [vmem:[#allocation5 + $0x1488] sm:$0xff]
        %v1303 = vld [vmem:[#allocation5 + $0x1490] sm:$0xff]
        %v1304 = vld [vmem:[#allocation5 + $0x1498] sm:$0xff]
        %v1305 = vld [vmem:[#allocation5 + $0x14a0] sm:$0xff]
        %v1306 = vld [vmem:[#allocation5 + $0x14a8] sm:$0xff]
        %v1307 = vld [vmem:[#allocation5 + $0x14b0] sm:$0xff]
        %v1308 = vld [vmem:[#allocation5 + $0x14b8] sm:$0xff]
        %v1309 = vld [vmem:[#allocation5 + $0x14c0] sm:$0xff]
        %v1310 = vld [vmem:[#allocation5 + $0x14c8] sm:$0xff]
        %v1311 = vld [vmem:[#allocation5 + $0x14d0] sm:$0xff]
        %v1312 = vld [vmem:[#allocation5 + $0x14d8] sm:$0xff]
        %v1313 = vld [vmem:[#allocation5 + $0x14e0] sm:$0xff]
        %v1314 = vld [vmem:[#allocation5 + $0x14e8] sm:$0xff]
        %v1315 = vld [vmem:[#allocation5 + $0x14f0] sm:$0xff]
        %v1316 = vld [vmem:[#allocation5 + $0x14f8] sm:$0xff]
        %v1317 = vld [vmem:[#allocation5 + $0x1500] sm:$0xff]
        %v1318 = vld [vmem:[#allocation5 + $0x1508] sm:$0xff]
        %v1319 = vld [vmem:[#allocation5 + $0x1510] sm:$0xff]
        %v1320 = vld [vmem:[#allocation5 + $0x1518] sm:$0xff]
        %v1321 = vld [vmem:[#allocation5 + $0x1520] sm:$0xff]
        %v1322 = vld [vmem:[#allocation5 + $0x1528] sm:$0xff]
        %v1323 = vld [vmem:[#allocation5 + $0x1530] sm:$0xff]
        %v1324 = vld [vmem:[#allocation5 + $0x1538] sm:$0xff]
        %v1325 = vld [vmem:[#allocation5 + $0x1540] sm:$0xff]
        %v1326 = vld [vmem:[#allocation5 + $0x1548] sm:$0xff]
        %v1327 = vld [vmem:[#allocation5 + $0x1550] sm:$0xff]
        %v1328 = vld [vmem:[#allocation5 + $0x1558] sm:$0xff]
        %v1329 = vld [vmem:[#allocation5 + $0x1560] sm:$0xff]
        %v1330 = vld [vmem:[#allocation5 + $0x1568] sm:$0xff]
        %v1331 = vld [vmem:[#allocation5 + $0x1570] sm:$0xff]
        %v1332 = vld [vmem:[#allocation5 + $0x1578] sm:$0xff]
        %v1333 = vld [vmem:[#allocation5 + $0x1580] sm:$0xff]
        %v1334 = vld [vmem:[#allocation5 + $0x1588] sm:$0xff]
        %v1335 = vld [vmem:[#allocation5 + $0x1590] sm:$0xff]
        %v1336 = vld [vmem:[#allocation5 + $0x1598] sm:$0xff]
        %v1337 = vld [vmem:[#allocation5 + $0x15a0] sm:$0xff]
        %v1338 = vld [vmem:[#allocation5 + $0x15a8] sm:$0xff]
        %v1339 = vld [vmem:[#allocation5 + $0x15b0] sm:$0xff]
        %v1340 = vld [vmem:[#allocation5 + $0x15b8] sm:$0xff]
        %v1341 = vld [vmem:[#allocation5 + $0x15c0] sm:$0xff]
        %v1342 = vld [vmem:[#allocation5 + $0x15c8] sm:$0xff]
        %v1343 = vld [vmem:[#allocation5 + $0x15d0] sm:$0xff]
        %v1344 = vld [vmem:[#allocation5 + $0x15d8] sm:$0xff]
        %v1345 = vld [vmem:[#allocation5 + $0x15e0] sm:$0xff]
        %v1346 = vld [vmem:[#allocation5 + $0x15e8] sm:$0xff]
        %v1347 = vld [vmem:[#allocation5 + $0x15f0] sm:$0xff]
        %v1348 = vld [vmem:[#allocation5 + $0x15f8] sm:$0xff]
        %v1349 = vld [vmem:[#allocation5 + $0x1600] sm:$0xff]
        %v1350 = vld [vmem:[#allocation5 + $0x1608] sm:$0xff]
        %v1351 = vld [vmem:[#allocation5 + $0x1610] sm:$0xff]
        %v1352 = vld [vmem:[#allocation5 + $0x1618] sm:$0xff]
        %v1353 = vld [vmem:[#allocation5 + $0x1620] sm:$0xff]
        %v1354 = vld [vmem:[#allocation5 + $0x1628] sm:$0xff]
        %v1355 = vld [vmem:[#allocation5 + $0x1630] sm:$0xff]
        %v1356 = vld [vmem:[#allocation5 + $0x1638] sm:$0xff]
        %v1357 = vld [vmem:[#allocation5 + $0x1640] sm:$0xff]
        %v1358 = vld [vmem:[#allocation5 + $0x1648] sm:$0xff]
        %v1359 = vld [vmem:[#allocation5 + $0x1650] sm:$0xff]
        %v1360 = vld [vmem:[#allocation5 + $0x1658] sm:$0xff]
        %v1361 = vld [vmem:[#allocation5 + $0x1660] sm:$0xff]
        %v1362 = vld [vmem:[#allocation5 + $0x1668] sm:$0xff]
        %v1363 = vld [vmem:[#allocation5 + $0x1670] sm:$0xff]
        %v1364 = vld [vmem:[#allocation5 + $0x1678] sm:$0xff]
        %v1365 = vld [vmem:[#allocation5 + $0x1680] sm:$0xff]
        %v1366 = vld [vmem:[#allocation5 + $0x1688] sm:$0xff]
        %v1367 = vld [vmem:[#allocation5 + $0x1690] sm:$0xff]
        %v1368 = vld [vmem:[#allocation5 + $0x1698] sm:$0xff]
        %v1369 = vld [vmem:[#allocation5 + $0x16a0] sm:$0xff]
        %v1370 = vld [vmem:[#allocation5 + $0x16a8] sm:$0xff]
        %v1371 = vld [vmem:[#allocation5 + $0x16b0] sm:$0xff]
        %v1372 = vld [vmem:[#allocation5 + $0x16b8] sm:$0xff]
        %v1373 = vld [vmem:[#allocation5 + $0x16c0] sm:$0xff]
        %v1374 = vld [vmem:[#allocation5 + $0x16c8] sm:$0xff]
        %v1375 = vld [vmem:[#allocation5 + $0x16d0] sm:$0xff]
        %v1376 = vld [vmem:[#allocation5 + $0x16d8] sm:$0xff]
        %v1377 = vld [vmem:[#allocation5 + $0x16e0] sm:$0xff]
        %v1378 = vld [vmem:[#allocation5 + $0x16e8] sm:$0xff]
        %v1379 = vld [vmem:[#allocation5 + $0x16f0] sm:$0xff]
        %v1380 = vld [vmem:[#allocation5 + $0x16f8] sm:$0xff]
        %v1381 = vld [vmem:[#allocation5 + $0x1700] sm:$0xff]
        %v1382 = vld [vmem:[#allocation5 + $0x1708] sm:$0xff]
        %v1383 = vld [vmem:[#allocation5 + $0x1710] sm:$0xff]
        %v1384 = vld [vmem:[#allocation5 + $0x1718] sm:$0xff]
        %v1385 = vld [vmem:[#allocation5 + $0x1720] sm:$0xff]
        %v1386 = vld [vmem:[#allocation5 + $0x1728] sm:$0xff]
        %v1387 = vld [vmem:[#allocation5 + $0x1730] sm:$0xff]
        %v1388 = vld [vmem:[#allocation5 + $0x1738] sm:$0xff]
        %v1389 = vld [vmem:[#allocation5 + $0x1740] sm:$0xff]
        %v1390 = vld [vmem:[#allocation5 + $0x1748] sm:$0xff]
        %v1391 = vld [vmem:[#allocation5 + $0x1750] sm:$0xff]
        %v1392 = vld [vmem:[#allocation5 + $0x1758] sm:$0xff]
        %v1393 = vld [vmem:[#allocation5 + $0x1760] sm:$0xff]
        %v1394 = vld [vmem:[#allocation5 + $0x1768] sm:$0xff]
        %v1395 = vld [vmem:[#allocation5 + $0x1770] sm:$0xff]
        %v1396 = vld [vmem:[#allocation5 + $0x1778] sm:$0xff]
        %v1397 = vld [vmem:[#allocation5 + $0x1780] sm:$0xff]
        %v1398 = vld [vmem:[#allocation5 + $0x1788] sm:$0xff]
        %v1399 = vld [vmem:[#allocation5 + $0x1790] sm:$0xff]
        %v1400 = vld [vmem:[#allocation5 + $0x1798] sm:$0xff]
        %v1401 = vld [vmem:[#allocation5 + $0x17a0] sm:$0xff]
        %v1402 = vld [vmem:[#allocation5 + $0x17a8] sm:$0xff]
        %v1403 = vld [vmem:[#allocation5 + $0x17b0] sm:$0xff]
        %v1404 = vld [vmem:[#allocation5 + $0x17b8] sm:$0xff]
        %v1405 = vld [vmem:[#allocation5 + $0x17c0] sm:$0xff]
        %v1406 = vld [vmem:[#allocation5 + $0x17c8] sm:$0xff]
        %v1407 = vld [vmem:[#allocation5 + $0x17d0] sm:$0xff]
        %v1408 = vld [vmem:[#allocation5 + $0x17d8] sm:$0xff]
        %v1409 = vld [vmem:[#allocation5 + $0x17e0] sm:$0xff]
        %v1410 = vld [vmem:[#allocation5 + $0x17e8] sm:$0xff]
        %v1411 = vld [vmem:[#allocation5 + $0x17f0] sm:$0xff]
        %v1412 = vld [vmem:[#allocation5 + $0x17f8] sm:$0xff]
        %v1413 = vld [vmem:[#allocation5 + $0x1800] sm:$0xff]
        %v1414 = vld [vmem:[#allocation5 + $0x1808] sm:$0xff]
        %v1415 = vld [vmem:[#allocation5 + $0x1810] sm:$0xff]
        %v1416 = vld [vmem:[#allocation5 + $0x1818] sm:$0xff]
        %v1417 = vld [vmem:[#allocation5 + $0x1820] sm:$0xff]
        %v1418 = vld [vmem:[#allocation5 + $0x1828] sm:$0xff]
        %v1419 = vld [vmem:[#allocation5 + $0x1830] sm:$0xff]
        %v1420 = vld [vmem:[#allocation5 + $0x1838] sm:$0xff]
        %v1421 = vld [vmem:[#allocation5 + $0x1840] sm:$0xff]
        %v1422 = vld [vmem:[#allocation5 + $0x1848] sm:$0xff]
        %v1423 = vld [vmem:[#allocation5 + $0x1850] sm:$0xff]
        %v1424 = vld [vmem:[#allocation5 + $0x1858] sm:$0xff]
        %v1425 = vld [vmem:[#allocation5 + $0x1860] sm:$0xff]
        %v1426 = vld [vmem:[#allocation5 + $0x1868] sm:$0xff]
        %v1427 = vld [vmem:[#allocation5 + $0x1870] sm:$0xff]
        %v1428 = vld [vmem:[#allocation5 + $0x1878] sm:$0xff]
        %v1429 = vld [vmem:[#allocation5 + $0x1880] sm:$0xff]
        %v1430 = vld [vmem:[#allocation5 + $0x1888] sm:$0xff]
        %v1431 = vld [vmem:[#allocation5 + $0x1890] sm:$0xff]
        %v1432 = vld [vmem:[#allocation5 + $0x1898] sm:$0xff]
        %v1433 = vld [vmem:[#allocation5 + $0x18a0] sm:$0xff]
        %v1434 = vld [vmem:[#allocation5 + $0x18a8] sm:$0xff]
        %v1435 = vld [vmem:[#allocation5 + $0x18b0] sm:$0xff]
        %v1436 = vld [vmem:[#allocation5 + $0x18b8] sm:$0xff]
        %v1437 = vld [vmem:[#allocation5 + $0x18c0] sm:$0xff]
        %v1438 = vld [vmem:[#allocation5 + $0x18c8] sm:$0xff]
        %v1439 = vld [vmem:[#allocation5 + $0x18d0] sm:$0xff]
        %v1440 = vld [vmem:[#allocation5 + $0x18d8] sm:$0xff]
        %v1441 = vld [vmem:[#allocation5 + $0x18e0] sm:$0xff]
        %v1442 = vld [vmem:[#allocation5 + $0x18e8] sm:$0xff]
        %v1443 = vld [vmem:[#allocation5 + $0x18f0] sm:$0xff]
        %v1444 = vld [vmem:[#allocation5 + $0x18f8] sm:$0xff]
        %v1445 = vld [vmem:[#allocation5 + $0x1900] sm:$0xff]
        %v1446 = vld [vmem:[#allocation5 + $0x1908] sm:$0xff]
        %v1447 = vld [vmem:[#allocation5 + $0x1910] sm:$0xff]
        %v1448 = vld [vmem:[#allocation5 + $0x1918] sm:$0xff]
        %v1449 = vld [vmem:[#allocation5 + $0x1920] sm:$0xff]
        %v1450 = vld [vmem:[#allocation5 + $0x1928] sm:$0xff]
        %v1451 = vld [vmem:[#allocation5 + $0x1930] sm:$0xff]
        %v1452 = vld [vmem:[#allocation5 + $0x1938] sm:$0xff]
        %v1453 = vld [vmem:[#allocation5 + $0x1940] sm:$0xff]
        %v1454 = vld [vmem:[#allocation5 + $0x1948] sm:$0xff]
        %v1455 = vld [vmem:[#allocation5 + $0x1950] sm:$0xff]
        %v1456 = vld [vmem:[#allocation5 + $0x1958] sm:$0xff]
        %v1457 = vld [vmem:[#allocation5 + $0x1960] sm:$0xff]
        %v1458 = vld [vmem:[#allocation5 + $0x1968] sm:$0xff]
        %v1459 = vld [vmem:[#allocation5 + $0x1970] sm:$0xff]
        %v1460 = vld [vmem:[#allocation5 + $0x1978] sm:$0xff]
        %v1461 = vld [vmem:[#allocation5 + $0x1980] sm:$0xff]
        %v1462 = vld [vmem:[#allocation5 + $0x1988] sm:$0xff]
        %v1463 = vld [vmem:[#allocation5 + $0x1990] sm:$0xff]
        %v1464 = vld [vmem:[#allocation5 + $0x1998] sm:$0xff]
        %v1465 = vld [vmem:[#allocation5 + $0x19a0] sm:$0xff]
        %v1466 = vld [vmem:[#allocation5 + $0x19a8] sm:$0xff]
        %v1467 = vld [vmem:[#allocation5 + $0x19b0] sm:$0xff]
        %v1468 = vld [vmem:[#allocation5 + $0x19b8] sm:$0xff]
        %v1469 = vld [vmem:[#allocation5 + $0x19c0] sm:$0xff]
        %v1470 = vld [vmem:[#allocation5 + $0x19c8] sm:$0xff]
        %v1471 = vld [vmem:[#allocation5 + $0x19d0] sm:$0xff]
        %v1472 = vld [vmem:[#allocation5 + $0x19d8] sm:$0xff]
        %v1473 = vld [vmem:[#allocation5 + $0x19e0] sm:$0xff]
        %v1474 = vld [vmem:[#allocation5 + $0x19e8] sm:$0xff]
        %v1475 = vld [vmem:[#allocation5 + $0x19f0] sm:$0xff]
        %v1476 = vld [vmem:[#allocation5 + $0x19f8] sm:$0xff]
        %v1477 = vld [vmem:[#allocation5 + $0x1a00] sm:$0xff]
        %v1478 = vld [vmem:[#allocation5 + $0x1a08] sm:$0xff]
        %v1479 = vld [vmem:[#allocation5 + $0x1a10] sm:$0xff]
        %v1480 = vld [vmem:[#allocation5 + $0x1a18] sm:$0xff]
        %v1481 = vld [vmem:[#allocation5 + $0x1a20] sm:$0xff]
        %v1482 = vld [vmem:[#allocation5 + $0x1a28] sm:$0xff]
        %v1483 = vld [vmem:[#allocation5 + $0x1a30] sm:$0xff]
        %v1484 = vld [vmem:[#allocation5 + $0x1a38] sm:$0xff]
        %v1485 = vld [vmem:[#allocation5 + $0x1a40] sm:$0xff]
        %v1486 = vld [vmem:[#allocation5 + $0x1a48] sm:$0xff]
        %v1487 = vld [vmem:[#allocation5 + $0x1a50] sm:$0xff]
        %v1488 = vld [vmem:[#allocation5 + $0x1a58] sm:$0xff]
        %v1489 = vld [vmem:[#allocation5 + $0x1a60] sm:$0xff]
        %v1490 = vld [vmem:[#allocation5 + $0x1a68] sm:$0xff]
        %v1491 = vld [vmem:[#allocation5 + $0x1a70] sm:$0xff]
        %v1492 = vld [vmem:[#allocation5 + $0x1a78] sm:$0xff]
        %v1493 = vld [vmem:[#allocation5 + $0x1a80] sm:$0xff]
        %v1494 = vld [vmem:[#allocation5 + $0x1a88] sm:$0xff]
        %v1495 = vld [vmem:[#allocation5 + $0x1a90] sm:$0xff]
        %v1496 = vld [vmem:[#allocation5 + $0x1a98] sm:$0xff]
        %v1497 = vld [vmem:[#allocation5 + $0x1aa0] sm:$0xff]
        %v1498 = vld [vmem:[#allocation5 + $0x1aa8] sm:$0xff]
        %v1499 = vld [vmem:[#allocation5 + $0x1ab0] sm:$0xff]
        %v1500 = vld [vmem:[#allocation5 + $0x1ab8] sm:$0xff]
        %v1501 = vld [vmem:[#allocation5 + $0x1ac0] sm:$0xff]
        %v1502 = vld [vmem:[#allocation5 + $0x1ac8] sm:$0xff]
        %v1503 = vld [vmem:[#allocation5 + $0x1ad0] sm:$0xff]
        %v1504 = vld [vmem:[#allocation5 + $0x1ad8] sm:$0xff]
        %v1505 = vld [vmem:[#allocation5 + $0x1ae0] sm:$0xff]
        %v1506 = vld [vmem:[#allocation5 + $0x1ae8] sm:$0xff]
        %v1507 = vld [vmem:[#allocation5 + $0x1af0] sm:$0xff]
        %v1508 = vld [vmem:[#allocation5 + $0x1af8] sm:$0xff]
        %v1509 = vld [vmem:[#allocation5 + $0x1b00] sm:$0xff]
        %v1510 = vld [vmem:[#allocation5 + $0x1b08] sm:$0xff]
        %v1511 = vld [vmem:[#allocation5 + $0x1b10] sm:$0xff]
        %v1512 = vld [vmem:[#allocation5 + $0x1b18] sm:$0xff]
        %v1513 = vld [vmem:[#allocation5 + $0x1b20] sm:$0xff]
        %v1514 = vld [vmem:[#allocation5 + $0x1b28] sm:$0xff]
        %v1515 = vld [vmem:[#allocation5 + $0x1b30] sm:$0xff]
        %v1516 = vld [vmem:[#allocation5 + $0x1b38] sm:$0xff]
        %v1517 = vld [vmem:[#allocation5 + $0x1b40] sm:$0xff]
        %v1518 = vld [vmem:[#allocation5 + $0x1b48] sm:$0xff]
        %v1519 = vld [vmem:[#allocation5 + $0x1b50] sm:$0xff]
        %v1520 = vld [vmem:[#allocation5 + $0x1b58] sm:$0xff]
        %v1521 = vld [vmem:[#allocation5 + $0x1b60] sm:$0xff]
        %v1522 = vld [vmem:[#allocation5 + $0x1b68] sm:$0xff]
        %v1523 = vld [vmem:[#allocation5 + $0x1b70] sm:$0xff]
        %v1524 = vld [vmem:[#allocation5 + $0x1b78] sm:$0xff]
        %v1525 = vld [vmem:[#allocation5 + $0x1b80] sm:$0xff]
        %v1526 = vld [vmem:[#allocation5 + $0x1b88] sm:$0xff]
        %v1527 = vld [vmem:[#allocation5 + $0x1b90] sm:$0xff]
        %v1528 = vld [vmem:[#allocation5 + $0x1b98] sm:$0xff]
        %v1529 = vld [vmem:[#allocation5 + $0x1ba0] sm:$0xff]
        %v1530 = vld [vmem:[#allocation5 + $0x1ba8] sm:$0xff]
        %v1531 = vld [vmem:[#allocation5 + $0x1bb0] sm:$0xff]
        %v1532 = vld [vmem:[#allocation5 + $0x1bb8] sm:$0xff]
        %v1533 = vld [vmem:[#allocation5 + $0x1bc0] sm:$0xff]
        %v1534 = vld [vmem:[#allocation5 + $0x1bc8] sm:$0xff]
        %v1535 = vld [vmem:[#allocation5 + $0x1bd0] sm:$0xff]
        %v1536 = vld [vmem:[#allocation5 + $0x1bd8] sm:$0xff]
        %v1537 = vld [vmem:[#allocation5 + $0x1be0] sm:$0xff]
        %v1538 = vld [vmem:[#allocation5 + $0x1be8] sm:$0xff]
        %v1539 = vld [vmem:[#allocation5 + $0x1bf0] sm:$0xff]
        %v1540 = vld [vmem:[#allocation5 + $0x1bf8] sm:$0xff]
        %v1541 = vld [vmem:[#allocation5 + $0x1c00] sm:$0xff]
        %v1542 = vld [vmem:[#allocation5 + $0x1c08] sm:$0xff]
        %v1543 = vld [vmem:[#allocation5 + $0x1c10] sm:$0xff]
        %v1544 = vld [vmem:[#allocation5 + $0x1c18] sm:$0xff]
        %v1545 = vld [vmem:[#allocation5 + $0x1c20] sm:$0xff]
        %v1546 = vld [vmem:[#allocation5 + $0x1c28] sm:$0xff]
        %v1547 = vld [vmem:[#allocation5 + $0x1c30] sm:$0xff]
        %v1548 = vld [vmem:[#allocation5 + $0x1c38] sm:$0xff]
        %v1549 = vld [vmem:[#allocation5 + $0x1c40] sm:$0xff]
        %v1550 = vld [vmem:[#allocation5 + $0x1c48] sm:$0xff]
        %v1551 = vld [vmem:[#allocation5 + $0x1c50] sm:$0xff]
        %v1552 = vld [vmem:[#allocation5 + $0x1c58] sm:$0xff]
        %v1553 = vld [vmem:[#allocation5 + $0x1c60] sm:$0xff]
        %v1554 = vld [vmem:[#allocation5 + $0x1c68] sm:$0xff]
        %v1555 = vld [vmem:[#allocation5 + $0x1c70] sm:$0xff]
        %v1556 = vld [vmem:[#allocation5 + $0x1c78] sm:$0xff]
        %v1557 = vld [vmem:[#allocation5 + $0x1c80] sm:$0xff]
        %v1558 = vld [vmem:[#allocation5 + $0x1c88] sm:$0xff]
        %v1559 = vld [vmem:[#allocation5 + $0x1c90] sm:$0xff]
        %v1560 = vld [vmem:[#allocation5 + $0x1c98] sm:$0xff]
        %v1561 = vld [vmem:[#allocation5 + $0x1ca0] sm:$0xff]
        %v1562 = vld [vmem:[#allocation5 + $0x1ca8] sm:$0xff]
        %v1563 = vld [vmem:[#allocation5 + $0x1cb0] sm:$0xff]
        %v1564 = vld [vmem:[#allocation5 + $0x1cb8] sm:$0xff]
        %v1565 = vld [vmem:[#allocation5 + $0x1cc0] sm:$0xff]
        %v1566 = vld [vmem:[#allocation5 + $0x1cc8] sm:$0xff]
        %v1567 = vld [vmem:[#allocation5 + $0x1cd0] sm:$0xff]
        %v1568 = vld [vmem:[#allocation5 + $0x1cd8] sm:$0xff]
        %v1569 = vld [vmem:[#allocation5 + $0x1ce0] sm:$0xff]
        %v1570 = vld [vmem:[#allocation5 + $0x1ce8] sm:$0xff]
        %v1571 = vld [vmem:[#allocation5 + $0x1cf0] sm:$0xff]
        %v1572 = vld [vmem:[#allocation5 + $0x1cf8] sm:$0xff]
        %v1573 = vld [vmem:[#allocation5 + $0x1d00] sm:$0xff]
        %v1574 = vld [vmem:[#allocation5 + $0x1d08] sm:$0xff]
        %v1575 = vld [vmem:[#allocation5 + $0x1d10] sm:$0xff]
        %v1576 = vld [vmem:[#allocation5 + $0x1d18] sm:$0xff]
        %v1577 = vld [vmem:[#allocation5 + $0x1d20] sm:$0xff]
        %v1578 = vld [vmem:[#allocation5 + $0x1d28] sm:$0xff]
        %v1579 = vld [vmem:[#allocation5 + $0x1d30] sm:$0xff]
        %v1580 = vld [vmem:[#allocation5 + $0x1d38] sm:$0xff]
        %v1581 = vld [vmem:[#allocation5 + $0x1d40] sm:$0xff]
        %v1582 = vld [vmem:[#allocation5 + $0x1d48] sm:$0xff]
        %v1583 = vld [vmem:[#allocation5 + $0x1d50] sm:$0xff]
        %v1584 = vld [vmem:[#allocation5 + $0x1d58] sm:$0xff]
        %v1585 = vld [vmem:[#allocation5 + $0x1d60] sm:$0xff]
        %v1586 = vld [vmem:[#allocation5 + $0x1d68] sm:$0xff]
        %v1587 = vld [vmem:[#allocation5 + $0x1d70] sm:$0xff]
        %v1588 = vld [vmem:[#allocation5 + $0x1d78] sm:$0xff]
        %v1589 = vld [vmem:[#allocation5 + $0x1d80] sm:$0xff]
        %v1590 = vld [vmem:[#allocation5 + $0x1d88] sm:$0xff]
        %v1591 = vld [vmem:[#allocation5 + $0x1d90] sm:$0xff]
        %v1592 = vld [vmem:[#allocation5 + $0x1d98] sm:$0xff]
        %v1593 = vld [vmem:[#allocation5 + $0x1da0] sm:$0xff]
        %v1594 = vld [vmem:[#allocation5 + $0x1da8] sm:$0xff]
        %v1595 = vld [vmem:[#allocation5 + $0x1db0] sm:$0xff]
        %v1596 = vld [vmem:[#allocation5 + $0x1db8] sm:$0xff]
        %v1597 = vld [vmem:[#allocation5 + $0x1dc0] sm:$0xff]
        %v1598 = vld [vmem:[#allocation5 + $0x1dc8] sm:$0xff]
        %v1599 = vld [vmem:[#allocation5 + $0x1dd0] sm:$0xff]
        %v1600 = vld [vmem:[#allocation5 + $0x1dd8] sm:$0xff]
        %v1601 = vld [vmem:[#allocation5 + $0x1de0] sm:$0xff]
        %v1602 = vld [vmem:[#allocation5 + $0x1de8] sm:$0xff]
        %v1603 = vld [vmem:[#allocation5 + $0x1df0] sm:$0xff]
        %v1604 = vld [vmem:[#allocation5 + $0x1df8] sm:$0xff]
        %v1605 = vld [vmem:[#allocation5 + $0x1e00] sm:$0xff]
        %v1606 = vld [vmem:[#allocation5 + $0x1e08] sm:$0xff]
        %v1607 = vld [vmem:[#allocation5 + $0x1e10] sm:$0xff]
        %v1608 = vld [vmem:[#allocation5 + $0x1e18] sm:$0xff]
        %v1609 = vld [vmem:[#allocation5 + $0x1e20] sm:$0xff]
        %v1610 = vld [vmem:[#allocation5 + $0x1e28] sm:$0xff]
        %v1611 = vld [vmem:[#allocation5 + $0x1e30] sm:$0xff]
        %v1612 = vld [vmem:[#allocation5 + $0x1e38] sm:$0xff]
        %v1613 = vld [vmem:[#allocation5 + $0x1e40] sm:$0xff]
        %v1614 = vld [vmem:[#allocation5 + $0x1e48] sm:$0xff]
        %v1615 = vld [vmem:[#allocation5 + $0x1e50] sm:$0xff]
        %v1616 = vld [vmem:[#allocation5 + $0x1e58] sm:$0xff]
        %v1617 = vld [vmem:[#allocation5 + $0x1e60] sm:$0xff]
        %v1618 = vld [vmem:[#allocation5 + $0x1e68] sm:$0xff]
        %v1619 = vld [vmem:[#allocation5 + $0x1e70] sm:$0xff]
        %v1620 = vld [vmem:[#allocation5 + $0x1e78] sm:$0xff]
        %v1621 = vld [vmem:[#allocation5 + $0x1e80] sm:$0xff]
        %v1622 = vld [vmem:[#allocation5 + $0x1e88] sm:$0xff]
        %v1623 = vld [vmem:[#allocation5 + $0x1e90] sm:$0xff]
        %v1624 = vld [vmem:[#allocation5 + $0x1e98] sm:$0xff]
        %v1625 = vld [vmem:[#allocation5 + $0x1ea0] sm:$0xff]
        %v1626 = vld [vmem:[#allocation5 + $0x1ea8] sm:$0xff]
        %v1627 = vld [vmem:[#allocation5 + $0x1eb0] sm:$0xff]
        %v1628 = vld [vmem:[#allocation5 + $0x1eb8] sm:$0xff]
        %v1629 = vld [vmem:[#allocation5 + $0x1ec0] sm:$0xff]
        %v1630 = vld [vmem:[#allocation5 + $0x1ec8] sm:$0xff]
        %v1631 = vld [vmem:[#allocation5 + $0x1ed0] sm:$0xff]
        %v1632 = vld [vmem:[#allocation5 + $0x1ed8] sm:$0xff]
        %v1633 = vld [vmem:[#allocation5 + $0x1ee0] sm:$0xff]
        %v1634 = vld [vmem:[#allocation5 + $0x1ee8] sm:$0xff]
        %v1635 = vld [vmem:[#allocation5 + $0x1ef0] sm:$0xff]
        %v1636 = vld [vmem:[#allocation5 + $0x1ef8] sm:$0xff]
        %v1637 = vld [vmem:[#allocation5 + $0x1f00] sm:$0xff]
        %v1638 = vld [vmem:[#allocation5 + $0x1f08] sm:$0xff]
        %v1639 = vld [vmem:[#allocation5 + $0x1f10] sm:$0xff]
        %v1640 = vld [vmem:[#allocation5 + $0x1f18] sm:$0xff]
        %v1641 = vld [vmem:[#allocation5 + $0x1f20] sm:$0xff]
        %v1642 = vld [vmem:[#allocation5 + $0x1f28] sm:$0xff]
        %v1643 = vld [vmem:[#allocation5 + $0x1f30] sm:$0xff]
        %v1644 = vld [vmem:[#allocation5 + $0x1f38] sm:$0xff]
        %v1645 = vld [vmem:[#allocation5 + $0x1f40] sm:$0xff]
        %v1646 = vld [vmem:[#allocation5 + $0x1f48] sm:$0xff]
        %v1647 = vld [vmem:[#allocation5 + $0x1f50] sm:$0xff]
        %v1648 = vld [vmem:[#allocation5 + $0x1f58] sm:$0xff]
        %v1649 = vld [vmem:[#allocation5 + $0x1f60] sm:$0xff]
        %v1650 = vld [vmem:[#allocation5 + $0x1f68] sm:$0xff]
        %v1651 = vld [vmem:[#allocation5 + $0x1f70] sm:$0xff]
        %v1652 = vld [vmem:[#allocation5 + $0x1f78] sm:$0xff]
        %v1653 = vld [vmem:[#allocation5 + $0x1f80] sm:$0xff]
        %v1654 = vld [vmem:[#allocation5 + $0x1f88] sm:$0xff]
        %v1655 = vld [vmem:[#allocation5 + $0x1f90] sm:$0xff]
        %v1656 = vld [vmem:[#allocation5 + $0x1f98] sm:$0xff]
        %v1657 = vld [vmem:[#allocation5 + $0x1fa0] sm:$0xff]
        %v1658 = vld [vmem:[#allocation5 + $0x1fa8] sm:$0xff]
        %v1659 = vld [vmem:[#allocation5 + $0x1fb0] sm:$0xff]
        %v1660 = vld [vmem:[#allocation5 + $0x1fb8] sm:$0xff]
        %v1661 = vld [vmem:[#allocation5 + $0x1fc0] sm:$0xff]
        %v1662 = vld [vmem:[#allocation5 + $0x1fc8] sm:$0xff]
        %v1663 = vld [vmem:[#allocation5 + $0x1fd0] sm:$0xff]
        %v1664 = vld [vmem:[#allocation5 + $0x1fd8] sm:$0xff]
        %v1665 = vld [vmem:[#allocation5 + $0x1fe0] sm:$0xff]
        %v1666 = vld [vmem:[#allocation5 + $0x1fe8] sm:$0xff]
        %v1667 = vld [vmem:[#allocation5 + $0x1ff0] sm:$0xff]
        %v1668 = vld [vmem:[#allocation5 + $0x1ff8] sm:$0xff]
        %v1669 = vld [vmem:[#allocation7] sm:$0xff]
        %v1671 = vperm.slane %v1669, 0
        %v1672 = vperm.slane %v1669, 1
        %v1673 = vperm.slane %v1669, 2
        %v1674 = vperm.slane %v1669, 3
        %v1675 = vperm.slane %v1669, 4
        %v1676 = vperm.slane %v1669, 5
        %v1677 = vperm.slane %v1669, 6
        %v1678 = vperm.slane %v1669, 7
        %v2711 = vunpack.c.l.b16 %v645
        %v2712 = vunpack.c.h.b16 %v645
        %v2713 = vunpack.c.l.b16 %v646
        %v2714 = vunpack.c.h.b16 %v646
        %v2715 = vunpack.c.l.b16 %v647
        %v2716 = vunpack.c.h.b16 %v647
        %v2717 = vunpack.c.l.b16 %v648
        %v2718 = vunpack.c.h.b16 %v648
        %v2719 = vunpack.c.l.b16 %v649
        %v2720 = vunpack.c.h.b16 %v649
        %v2721 = vunpack.c.l.b16 %v650
        %v2722 = vunpack.c.h.b16 %v650
        %v2723 = vunpack.c.l.b16 %v651
        %v2724 = vunpack.c.h.b16 %v651
        %v2725 = vunpack.c.l.b16 %v652
        %v2726 = vunpack.c.h.b16 %v652
        %v2727 = vunpack.c.l.b16 %v653
        %v2728 = vunpack.c.h.b16 %v653
        %v2729 = vunpack.c.l.b16 %v654
        %v2730 = vunpack.c.h.b16 %v654
        %v2731 = vunpack.c.l.b16 %v655
        %v2732 = vunpack.c.h.b16 %v655
        %v2733 = vunpack.c.l.b16 %v656
        %v2734 = vunpack.c.h.b16 %v656
        %v2735 = vunpack.c.l.b16 %v657
        %v2736 = vunpack.c.h.b16 %v657
        %v2737 = vunpack.c.l.b16 %v658
        %v2738 = vunpack.c.h.b16 %v658
        %v2739 = vunpack.c.l.b16 %v659
        %v2740 = vunpack.c.h.b16 %v659
        %v2741 = vunpack.c.l.b16 %v660
        %v2742 = vunpack.c.h.b16 %v660
        %v2743 = vunpack.c.l.b16 %v661
        %v2744 = vunpack.c.h.b16 %v661
        %v2745 = vunpack.c.l.b16 %v662
        %v2746 = vunpack.c.h.b16 %v662
        %v2747 = vunpack.c.l.b16 %v663
        %v2748 = vunpack.c.h.b16 %v663
        %v2749 = vunpack.c.l.b16 %v664
        %v2750 = vunpack.c.h.b16 %v664
        %v2751 = vunpack.c.l.b16 %v665
        %v2752 = vunpack.c.h.b16 %v665
        %v2753 = vunpack.c.l.b16 %v666
        %v2754 = vunpack.c.h.b16 %v666
        %v2755 = vunpack.c.l.b16 %v667
        %v2756 = vunpack.c.h.b16 %v667
        %v2757 = vunpack.c.l.b16 %v668
        %v2758 = vunpack.c.h.b16 %v668
        %v2759 = vunpack.c.l.b16 %v669
        %v2760 = vunpack.c.h.b16 %v669
        %v2761 = vunpack.c.l.b16 %v670
        %v2762 = vunpack.c.h.b16 %v670
        %v2763 = vunpack.c.l.b16 %v671
        %v2764 = vunpack.c.h.b16 %v671
        %v2765 = vunpack.c.l.b16 %v672
        %v2766 = vunpack.c.h.b16 %v672
        %v2767 = vunpack.c.l.b16 %v673
        %v2768 = vunpack.c.h.b16 %v673
        %v2769 = vunpack.c.l.b16 %v674
        %v2770 = vunpack.c.h.b16 %v674
        %v2771 = vunpack.c.l.b16 %v675
        %v2772 = vunpack.c.h.b16 %v675
        %v2773 = vunpack.c.l.b16 %v676
        %v2774 = vunpack.c.h.b16 %v676
        %v2775 = vunpack.c.l.b16 %v677
        %v2776 = vunpack.c.h.b16 %v677
        %v2777 = vunpack.c.l.b16 %v678
        %v2778 = vunpack.c.h.b16 %v678
        %v2779 = vunpack.c.l.b16 %v679
        %v2780 = vunpack.c.h.b16 %v679
        %v2781 = vunpack.c.l.b16 %v680
        %v2782 = vunpack.c.h.b16 %v680
        %v2783 = vunpack.c.l.b16 %v681
        %v2784 = vunpack.c.h.b16 %v681
        %v2785 = vunpack.c.l.b16 %v682
        %v2786 = vunpack.c.h.b16 %v682
        %v2787 = vunpack.c.l.b16 %v683
        %v2788 = vunpack.c.h.b16 %v683
        %v2789 = vunpack.c.l.b16 %v684
        %v2790 = vunpack.c.h.b16 %v684
        %v2791 = vunpack.c.l.b16 %v685
        %v2792 = vunpack.c.h.b16 %v685
        %v2793 = vunpack.c.l.b16 %v686
        %v2794 = vunpack.c.h.b16 %v686
        %v2795 = vunpack.c.l.b16 %v687
        %v2796 = vunpack.c.h.b16 %v687
        %v2797 = vunpack.c.l.b16 %v688
        %v2798 = vunpack.c.h.b16 %v688
        %v2799 = vunpack.c.l.b16 %v689
        %v2800 = vunpack.c.h.b16 %v689
        %v2801 = vunpack.c.l.b16 %v690
        %v2802 = vunpack.c.h.b16 %v690
        %v2803 = vunpack.c.l.b16 %v691
        %v2804 = vunpack.c.h.b16 %v691
        %v2805 = vunpack.c.l.b16 %v692
        %v2806 = vunpack.c.h.b16 %v692
        %v2807 = vunpack.c.l.b16 %v693
        %v2808 = vunpack.c.h.b16 %v693
        %v2809 = vunpack.c.l.b16 %v694
        %v2810 = vunpack.c.h.b16 %v694
        %v2811 = vunpack.c.l.b16 %v695
        %v2812 = vunpack.c.h.b16 %v695
        %v2813 = vunpack.c.l.b16 %v696
        %v2814 = vunpack.c.h.b16 %v696
        %v2815 = vunpack.c.l.b16 %v697
        %v2816 = vunpack.c.h.b16 %v697
        %v2817 = vunpack.c.l.b16 %v698
        %v2818 = vunpack.c.h.b16 %v698
        %v2819 = vunpack.c.l.b16 %v699
        %v2820 = vunpack.c.h.b16 %v699
        %v2821 = vunpack.c.l.b16 %v700
        %v2822 = vunpack.c.h.b16 %v700
        %v2823 = vunpack.c.l.b16 %v701
        %v2824 = vunpack.c.h.b16 %v701
        %v2825 = vunpack.c.l.b16 %v702
        %v2826 = vunpack.c.h.b16 %v702
        %v2827 = vunpack.c.l.b16 %v703
        %v2828 = vunpack.c.h.b16 %v703
        %v2829 = vunpack.c.l.b16 %v704
        %v2830 = vunpack.c.h.b16 %v704
        %v2831 = vunpack.c.l.b16 %v705
        %v2832 = vunpack.c.h.b16 %v705
        %v2833 = vunpack.c.l.b16 %v706
        %v2834 = vunpack.c.h.b16 %v706
        %v2835 = vunpack.c.l.b16 %v707
        %v2836 = vunpack.c.h.b16 %v707
        %v2837 = vunpack.c.l.b16 %v708
        %v2838 = vunpack.c.h.b16 %v708
        %v2839 = vunpack.c.l.b16 %v709
        %v2840 = vunpack.c.h.b16 %v709
        %v2841 = vunpack.c.l.b16 %v710
        %v2842 = vunpack.c.h.b16 %v710
        %v2843 = vunpack.c.l.b16 %v711
        %v2844 = vunpack.c.h.b16 %v711
        %v2845 = vunpack.c.l.b16 %v712
        %v2846 = vunpack.c.h.b16 %v712
        %v2847 = vunpack.c.l.b16 %v713
        %v2848 = vunpack.c.h.b16 %v713
        %v2849 = vunpack.c.l.b16 %v714
        %v2850 = vunpack.c.h.b16 %v714
        %v2851 = vunpack.c.l.b16 %v715
        %v2852 = vunpack.c.h.b16 %v715
        %v2853 = vunpack.c.l.b16 %v716
        %v2854 = vunpack.c.h.b16 %v716
        %v2855 = vunpack.c.l.b16 %v717
        %v2856 = vunpack.c.h.b16 %v717
        %v2857 = vunpack.c.l.b16 %v718
        %v2858 = vunpack.c.h.b16 %v718
        %v2859 = vunpack.c.l.b16 %v719
        %v2860 = vunpack.c.h.b16 %v719
        %v2861 = vunpack.c.l.b16 %v720
        %v2862 = vunpack.c.h.b16 %v720
        %v2863 = vunpack.c.l.b16 %v721
        %v2864 = vunpack.c.h.b16 %v721
        %v2865 = vunpack.c.l.b16 %v722
        %v2866 = vunpack.c.h.b16 %v722
        %v2867 = vunpack.c.l.b16 %v723
        %v2868 = vunpack.c.h.b16 %v723
        %v2869 = vunpack.c.l.b16 %v724
        %v2870 = vunpack.c.h.b16 %v724
        %v2871 = vunpack.c.l.b16 %v725
        %v2872 = vunpack.c.h.b16 %v725
        %v2873 = vunpack.c.l.b16 %v726
        %v2874 = vunpack.c.h.b16 %v726
        %v2875 = vunpack.c.l.b16 %v727
        %v2876 = vunpack.c.h.b16 %v727
        %v2877 = vunpack.c.l.b16 %v728
        %v2878 = vunpack.c.h.b16 %v728
        %v2879 = vunpack.c.l.b16 %v729
        %v2880 = vunpack.c.h.b16 %v729
        %v2881 = vunpack.c.l.b16 %v730
        %v2882 = vunpack.c.h.b16 %v730
        %v2883 = vunpack.c.l.b16 %v731
        %v2884 = vunpack.c.h.b16 %v731
        %v2885 = vunpack.c.l.b16 %v732
        %v2886 = vunpack.c.h.b16 %v732
        %v2887 = vunpack.c.l.b16 %v733
        %v2888 = vunpack.c.h.b16 %v733
        %v2889 = vunpack.c.l.b16 %v734
        %v2890 = vunpack.c.h.b16 %v734
        %v2891 = vunpack.c.l.b16 %v735
        %v2892 = vunpack.c.h.b16 %v735
        %v2893 = vunpack.c.l.b16 %v736
        %v2894 = vunpack.c.h.b16 %v736
        %v2895 = vunpack.c.l.b16 %v737
        %v2896 = vunpack.c.h.b16 %v737
        %v2897 = vunpack.c.l.b16 %v738
        %v2898 = vunpack.c.h.b16 %v738
        %v2899 = vunpack.c.l.b16 %v739
        %v2900 = vunpack.c.h.b16 %v739
        %v2901 = vunpack.c.l.b16 %v740
        %v2902 = vunpack.c.h.b16 %v740
        %v2903 = vunpack.c.l.b16 %v741
        %v2904 = vunpack.c.h.b16 %v741
        %v2905 = vunpack.c.l.b16 %v742
        %v2906 = vunpack.c.h.b16 %v742
        %v2907 = vunpack.c.l.b16 %v743
        %v2908 = vunpack.c.h.b16 %v743
        %v2909 = vunpack.c.l.b16 %v744
        %v2910 = vunpack.c.h.b16 %v744
        %v2911 = vunpack.c.l.b16 %v745
        %v2912 = vunpack.c.h.b16 %v745
        %v2913 = vunpack.c.l.b16 %v746
        %v2914 = vunpack.c.h.b16 %v746
        %v2915 = vunpack.c.l.b16 %v747
        %v2916 = vunpack.c.h.b16 %v747
        %v2917 = vunpack.c.l.b16 %v748
        %v2918 = vunpack.c.h.b16 %v748
        %v2919 = vunpack.c.l.b16 %v749
        %v2920 = vunpack.c.h.b16 %v749
        %v2921 = vunpack.c.l.b16 %v750
        %v2922 = vunpack.c.h.b16 %v750
        %v2923 = vunpack.c.l.b16 %v751
        %v2924 = vunpack.c.h.b16 %v751
        %v2925 = vunpack.c.l.b16 %v752
        %v2926 = vunpack.c.h.b16 %v752
        %v2927 = vunpack.c.l.b16 %v753
        %v2928 = vunpack.c.h.b16 %v753
        %v2929 = vunpack.c.l.b16 %v754
        %v2930 = vunpack.c.h.b16 %v754
        %v2931 = vunpack.c.l.b16 %v755
        %v2932 = vunpack.c.h.b16 %v755
        %v2933 = vunpack.c.l.b16 %v756
        %v2934 = vunpack.c.h.b16 %v756
        %v2935 = vunpack.c.l.b16 %v757
        %v2936 = vunpack.c.h.b16 %v757
        %v2937 = vunpack.c.l.b16 %v758
        %v2938 = vunpack.c.h.b16 %v758
        %v2939 = vunpack.c.l.b16 %v759
        %v2940 = vunpack.c.h.b16 %v759
        %v2941 = vunpack.c.l.b16 %v760
        %v2942 = vunpack.c.h.b16 %v760
        %v2943 = vunpack.c.l.b16 %v761
        %v2944 = vunpack.c.h.b16 %v761
        %v2945 = vunpack.c.l.b16 %v762
        %v2946 = vunpack.c.h.b16 %v762
        %v2947 = vunpack.c.l.b16 %v763
        %v2948 = vunpack.c.h.b16 %v763
        %v2949 = vunpack.c.l.b16 %v764
        %v2950 = vunpack.c.h.b16 %v764
        %v2951 = vunpack.c.l.b16 %v765
        %v2952 = vunpack.c.h.b16 %v765
        %v2953 = vunpack.c.l.b16 %v766
        %v2954 = vunpack.c.h.b16 %v766
        %v2955 = vunpack.c.l.b16 %v767
        %v2956 = vunpack.c.h.b16 %v767
        %v2957 = vunpack.c.l.b16 %v768
        %v2958 = vunpack.c.h.b16 %v768
        %v2959 = vunpack.c.l.b16 %v769
        %v2960 = vunpack.c.h.b16 %v769
        %v2961 = vunpack.c.l.b16 %v770
        %v2962 = vunpack.c.h.b16 %v770
        %v2963 = vunpack.c.l.b16 %v771
        %v2964 = vunpack.c.h.b16 %v771
        %v2965 = vunpack.c.l.b16 %v772
        %v2966 = vunpack.c.h.b16 %v772
        %v2967 = vunpack.c.l.b16 %v773
        %v2968 = vunpack.c.h.b16 %v773
        %v2969 = vunpack.c.l.b16 %v774
        %v2970 = vunpack.c.h.b16 %v774
        %v2971 = vunpack.c.l.b16 %v775
        %v2972 = vunpack.c.h.b16 %v775
        %v2973 = vunpack.c.l.b16 %v776
        %v2974 = vunpack.c.h.b16 %v776
        %v2975 = vunpack.c.l.b16 %v777
        %v2976 = vunpack.c.h.b16 %v777
        %v2977 = vunpack.c.l.b16 %v778
        %v2978 = vunpack.c.h.b16 %v778
        %v2979 = vunpack.c.l.b16 %v779
        %v2980 = vunpack.c.h.b16 %v779
        %v2981 = vunpack.c.l.b16 %v780
        %v2982 = vunpack.c.h.b16 %v780
        %v2983 = vunpack.c.l.b16 %v781
        %v2984 = vunpack.c.h.b16 %v781
        %v2985 = vunpack.c.l.b16 %v782
        %v2986 = vunpack.c.h.b16 %v782
        %v2987 = vunpack.c.l.b16 %v783
        %v2988 = vunpack.c.h.b16 %v783
        %v2989 = vunpack.c.l.b16 %v784
        %v2990 = vunpack.c.h.b16 %v784
        %v2991 = vunpack.c.l.b16 %v785
        %v2992 = vunpack.c.h.b16 %v785
        %v2993 = vunpack.c.l.b16 %v786
        %v2994 = vunpack.c.h.b16 %v786
        %v2995 = vunpack.c.l.b16 %v787
        %v2996 = vunpack.c.h.b16 %v787
        %v2997 = vunpack.c.l.b16 %v788
        %v2998 = vunpack.c.h.b16 %v788
        %v2999 = vunpack.c.l.b16 %v789
        %v3000 = vunpack.c.h.b16 %v789
        %v3001 = vunpack.c.l.b16 %v790
        %v3002 = vunpack.c.h.b16 %v790
        %v3003 = vunpack.c.l.b16 %v791
        %v3004 = vunpack.c.h.b16 %v791
        %v3005 = vunpack.c.l.b16 %v792
        %v3006 = vunpack.c.h.b16 %v792
        %v3007 = vunpack.c.l.b16 %v793
        %v3008 = vunpack.c.h.b16 %v793
        %v3009 = vunpack.c.l.b16 %v794
        %v3010 = vunpack.c.h.b16 %v794
        %v3011 = vunpack.c.l.b16 %v795
        %v3012 = vunpack.c.h.b16 %v795
        %v3013 = vunpack.c.l.b16 %v796
        %v3014 = vunpack.c.h.b16 %v796
        %v3015 = vunpack.c.l.b16 %v797
        %v3016 = vunpack.c.h.b16 %v797
        %v3017 = vunpack.c.l.b16 %v798
        %v3018 = vunpack.c.h.b16 %v798
        %v3019 = vunpack.c.l.b16 %v799
        %v3020 = vunpack.c.h.b16 %v799
        %v3021 = vunpack.c.l.b16 %v800
        %v3022 = vunpack.c.h.b16 %v800
        %v3023 = vunpack.c.l.b16 %v801
        %v3024 = vunpack.c.h.b16 %v801
        %v3025 = vunpack.c.l.b16 %v802
        %v3026 = vunpack.c.h.b16 %v802
        %v3027 = vunpack.c.l.b16 %v803
        %v3028 = vunpack.c.h.b16 %v803
        %v3029 = vunpack.c.l.b16 %v804
        %v3030 = vunpack.c.h.b16 %v804
        %v3031 = vunpack.c.l.b16 %v805
        %v3032 = vunpack.c.h.b16 %v805
        %v3033 = vunpack.c.l.b16 %v806
        %v3034 = vunpack.c.h.b16 %v806
        %v3035 = vunpack.c.l.b16 %v807
        %v3036 = vunpack.c.h.b16 %v807
        %v3037 = vunpack.c.l.b16 %v808
        %v3038 = vunpack.c.h.b16 %v808
        %v3039 = vunpack.c.l.b16 %v809
        %v3040 = vunpack.c.h.b16 %v809
        %v3041 = vunpack.c.l.b16 %v810
        %v3042 = vunpack.c.h.b16 %v810
        %v3043 = vunpack.c.l.b16 %v811
        %v3044 = vunpack.c.h.b16 %v811
        %v3045 = vunpack.c.l.b16 %v812
        %v3046 = vunpack.c.h.b16 %v812
        %v3047 = vunpack.c.l.b16 %v813
        %v3048 = vunpack.c.h.b16 %v813
        %v3049 = vunpack.c.l.b16 %v814
        %v3050 = vunpack.c.h.b16 %v814
        %v3051 = vunpack.c.l.b16 %v815
        %v3052 = vunpack.c.h.b16 %v815
        %v3053 = vunpack.c.l.b16 %v816
        %v3054 = vunpack.c.h.b16 %v816
        %v3055 = vunpack.c.l.b16 %v817
        %v3056 = vunpack.c.h.b16 %v817
        %v3057 = vunpack.c.l.b16 %v818
        %v3058 = vunpack.c.h.b16 %v818
        %v3059 = vunpack.c.l.b16 %v819
        %v3060 = vunpack.c.h.b16 %v819
        %v3061 = vunpack.c.l.b16 %v820
        %v3062 = vunpack.c.h.b16 %v820
        %v3063 = vunpack.c.l.b16 %v821
        %v3064 = vunpack.c.h.b16 %v821
        %v3065 = vunpack.c.l.b16 %v822
        %v3066 = vunpack.c.h.b16 %v822
        %v3067 = vunpack.c.l.b16 %v823
        %v3068 = vunpack.c.h.b16 %v823
        %v3069 = vunpack.c.l.b16 %v824
        %v3070 = vunpack.c.h.b16 %v824
        %v3071 = vunpack.c.l.b16 %v825
        %v3072 = vunpack.c.h.b16 %v825
        %v3073 = vunpack.c.l.b16 %v826
        %v3074 = vunpack.c.h.b16 %v826
        %v3075 = vunpack.c.l.b16 %v827
        %v3076 = vunpack.c.h.b16 %v827
        %v3077 = vunpack.c.l.b16 %v828
        %v3078 = vunpack.c.h.b16 %v828
        %v3079 = vunpack.c.l.b16 %v829
        %v3080 = vunpack.c.h.b16 %v829
        %v3081 = vunpack.c.l.b16 %v830
        %v3082 = vunpack.c.h.b16 %v830
        %v3083 = vunpack.c.l.b16 %v831
        %v3084 = vunpack.c.h.b16 %v831
        %v3085 = vunpack.c.l.b16 %v832
        %v3086 = vunpack.c.h.b16 %v832
        %v3087 = vunpack.c.l.b16 %v833
        %v3088 = vunpack.c.h.b16 %v833
        %v3089 = vunpack.c.l.b16 %v834
        %v3090 = vunpack.c.h.b16 %v834
        %v3091 = vunpack.c.l.b16 %v835
        %v3092 = vunpack.c.h.b16 %v835
        %v3093 = vunpack.c.l.b16 %v836
        %v3094 = vunpack.c.h.b16 %v836
        %v3095 = vunpack.c.l.b16 %v837
        %v3096 = vunpack.c.h.b16 %v837
        %v3097 = vunpack.c.l.b16 %v838
        %v3098 = vunpack.c.h.b16 %v838
        %v3099 = vunpack.c.l.b16 %v839
        %v3100 = vunpack.c.h.b16 %v839
        %v3101 = vunpack.c.l.b16 %v840
        %v3102 = vunpack.c.h.b16 %v840
        %v3103 = vunpack.c.l.b16 %v841
        %v3104 = vunpack.c.h.b16 %v841
        %v3105 = vunpack.c.l.b16 %v842
        %v3106 = vunpack.c.h.b16 %v842
        %v3107 = vunpack.c.l.b16 %v843
        %v3108 = vunpack.c.h.b16 %v843
        %v3109 = vunpack.c.l.b16 %v844
        %v3110 = vunpack.c.h.b16 %v844
        %v3111 = vunpack.c.l.b16 %v845
        %v3112 = vunpack.c.h.b16 %v845
        %v3113 = vunpack.c.l.b16 %v846
        %v3114 = vunpack.c.h.b16 %v846
        %v3115 = vunpack.c.l.b16 %v847
        %v3116 = vunpack.c.h.b16 %v847
        %v3117 = vunpack.c.l.b16 %v848
        %v3118 = vunpack.c.h.b16 %v848
        %v3119 = vunpack.c.l.b16 %v849
        %v3120 = vunpack.c.h.b16 %v849
        %v3121 = vunpack.c.l.b16 %v850
        %v3122 = vunpack.c.h.b16 %v850
        %v3123 = vunpack.c.l.b16 %v851
        %v3124 = vunpack.c.h.b16 %v851
        %v3125 = vunpack.c.l.b16 %v852
        %v3126 = vunpack.c.h.b16 %v852
        %v3127 = vunpack.c.l.b16 %v853
        %v3128 = vunpack.c.h.b16 %v853
        %v3129 = vunpack.c.l.b16 %v854
        %v3130 = vunpack.c.h.b16 %v854
        %v3131 = vunpack.c.l.b16 %v855
        %v3132 = vunpack.c.h.b16 %v855
        %v3133 = vunpack.c.l.b16 %v856
        %v3134 = vunpack.c.h.b16 %v856
        %v3135 = vunpack.c.l.b16 %v857
        %v3136 = vunpack.c.h.b16 %v857
        %v3137 = vunpack.c.l.b16 %v858
        %v3138 = vunpack.c.h.b16 %v858
        %v3139 = vunpack.c.l.b16 %v859
        %v3140 = vunpack.c.h.b16 %v859
        %v3141 = vunpack.c.l.b16 %v860
        %v3142 = vunpack.c.h.b16 %v860
        %v3143 = vunpack.c.l.b16 %v861
        %v3144 = vunpack.c.h.b16 %v861
        %v3145 = vunpack.c.l.b16 %v862
        %v3146 = vunpack.c.h.b16 %v862
        %v3147 = vunpack.c.l.b16 %v863
        %v3148 = vunpack.c.h.b16 %v863
        %v3149 = vunpack.c.l.b16 %v864
        %v3150 = vunpack.c.h.b16 %v864
        %v3151 = vunpack.c.l.b16 %v865
        %v3152 = vunpack.c.h.b16 %v865
        %v3153 = vunpack.c.l.b16 %v866
        %v3154 = vunpack.c.h.b16 %v866
        %v3155 = vunpack.c.l.b16 %v867
        %v3156 = vunpack.c.h.b16 %v867
        %v3157 = vunpack.c.l.b16 %v868
        %v3158 = vunpack.c.h.b16 %v868
        %v3159 = vunpack.c.l.b16 %v869
        %v3160 = vunpack.c.h.b16 %v869
        %v3161 = vunpack.c.l.b16 %v870
        %v3162 = vunpack.c.h.b16 %v870
        %v3163 = vunpack.c.l.b16 %v871
        %v3164 = vunpack.c.h.b16 %v871
        %v3165 = vunpack.c.l.b16 %v872
        %v3166 = vunpack.c.h.b16 %v872
        %v3167 = vunpack.c.l.b16 %v873
        %v3168 = vunpack.c.h.b16 %v873
        %v3169 = vunpack.c.l.b16 %v874
        %v3170 = vunpack.c.h.b16 %v874
        %v3171 = vunpack.c.l.b16 %v875
        %v3172 = vunpack.c.h.b16 %v875
        %v3173 = vunpack.c.l.b16 %v876
        %v3174 = vunpack.c.h.b16 %v876
        %v3175 = vunpack.c.l.b16 %v877
        %v3176 = vunpack.c.h.b16 %v877
        %v3177 = vunpack.c.l.b16 %v878
        %v3178 = vunpack.c.h.b16 %v878
        %v3179 = vunpack.c.l.b16 %v879
        %v3180 = vunpack.c.h.b16 %v879
        %v3181 = vunpack.c.l.b16 %v880
        %v3182 = vunpack.c.h.b16 %v880
        %v3183 = vunpack.c.l.b16 %v881
        %v3184 = vunpack.c.h.b16 %v881
        %v3185 = vunpack.c.l.b16 %v882
        %v3186 = vunpack.c.h.b16 %v882
        %v3187 = vunpack.c.l.b16 %v883
        %v3188 = vunpack.c.h.b16 %v883
        %v3189 = vunpack.c.l.b16 %v884
        %v3190 = vunpack.c.h.b16 %v884
        %v3191 = vunpack.c.l.b16 %v885
        %v3192 = vunpack.c.h.b16 %v885
        %v3193 = vunpack.c.l.b16 %v886
        %v3194 = vunpack.c.h.b16 %v886
        %v3195 = vunpack.c.l.b16 %v887
        %v3196 = vunpack.c.h.b16 %v887
        %v3197 = vunpack.c.l.b16 %v888
        %v3198 = vunpack.c.h.b16 %v888
        %v3199 = vunpack.c.l.b16 %v889
        %v3200 = vunpack.c.h.b16 %v889
        %v3201 = vunpack.c.l.b16 %v890
        %v3202 = vunpack.c.h.b16 %v890
        %v3203 = vunpack.c.l.b16 %v891
        %v3204 = vunpack.c.h.b16 %v891
        %v3205 = vunpack.c.l.b16 %v892
        %v3206 = vunpack.c.h.b16 %v892
        %v3207 = vunpack.c.l.b16 %v893
        %v3208 = vunpack.c.h.b16 %v893
        %v3209 = vunpack.c.l.b16 %v894
        %v3210 = vunpack.c.h.b16 %v894
        %v3211 = vunpack.c.l.b16 %v895
        %v3212 = vunpack.c.h.b16 %v895
        %v3213 = vunpack.c.l.b16 %v896
        %v3214 = vunpack.c.h.b16 %v896
        %v3215 = vunpack.c.l.b16 %v897
        %v3216 = vunpack.c.h.b16 %v897
        %v3217 = vunpack.c.l.b16 %v898
        %v3218 = vunpack.c.h.b16 %v898
        %v3219 = vunpack.c.l.b16 %v899
        %v3220 = vunpack.c.h.b16 %v899
        %v3221 = vunpack.c.l.b16 %v900
        %v3222 = vunpack.c.h.b16 %v900
        %v3223 = vunpack.c.l.b16 %v901
        %v3224 = vunpack.c.h.b16 %v901
        %v3225 = vunpack.c.l.b16 %v902
        %v3226 = vunpack.c.h.b16 %v902
        %v3227 = vunpack.c.l.b16 %v903
        %v3228 = vunpack.c.h.b16 %v903
        %v3229 = vunpack.c.l.b16 %v904
        %v3230 = vunpack.c.h.b16 %v904
        %v3231 = vunpack.c.l.b16 %v905
        %v3232 = vunpack.c.h.b16 %v905
        %v3233 = vunpack.c.l.b16 %v906
        %v3234 = vunpack.c.h.b16 %v906
        %v3235 = vunpack.c.l.b16 %v907
        %v3236 = vunpack.c.h.b16 %v907
        %v3237 = vunpack.c.l.b16 %v908
        %v3238 = vunpack.c.h.b16 %v908
        %v3239 = vunpack.c.l.b16 %v909
        %v3240 = vunpack.c.h.b16 %v909
        %v3241 = vunpack.c.l.b16 %v910
        %v3242 = vunpack.c.h.b16 %v910
        %v3243 = vunpack.c.l.b16 %v911
        %v3244 = vunpack.c.h.b16 %v911
        %v3245 = vunpack.c.l.b16 %v912
        %v3246 = vunpack.c.h.b16 %v912
        %v3247 = vunpack.c.l.b16 %v913
        %v3248 = vunpack.c.h.b16 %v913
        %v3249 = vunpack.c.l.b16 %v914
        %v3250 = vunpack.c.h.b16 %v914
        %v3251 = vunpack.c.l.b16 %v915
        %v3252 = vunpack.c.h.b16 %v915
        %v3253 = vunpack.c.l.b16 %v916
        %v3254 = vunpack.c.h.b16 %v916
        %v3255 = vunpack.c.l.b16 %v917
        %v3256 = vunpack.c.h.b16 %v917
        %v3257 = vunpack.c.l.b16 %v918
        %v3258 = vunpack.c.h.b16 %v918
        %v3259 = vunpack.c.l.b16 %v919
        %v3260 = vunpack.c.h.b16 %v919
        %v3261 = vunpack.c.l.b16 %v920
        %v3262 = vunpack.c.h.b16 %v920
        %v3263 = vunpack.c.l.b16 %v921
        %v3264 = vunpack.c.h.b16 %v921
        %v3265 = vunpack.c.l.b16 %v922
        %v3266 = vunpack.c.h.b16 %v922
        %v3267 = vunpack.c.l.b16 %v923
        %v3268 = vunpack.c.h.b16 %v923
        %v3269 = vunpack.c.l.b16 %v924
        %v3270 = vunpack.c.h.b16 %v924
        %v3271 = vunpack.c.l.b16 %v925
        %v3272 = vunpack.c.h.b16 %v925
        %v3273 = vunpack.c.l.b16 %v926
        %v3274 = vunpack.c.h.b16 %v926
        %v3275 = vunpack.c.l.b16 %v927
        %v3276 = vunpack.c.h.b16 %v927
        %v3277 = vunpack.c.l.b16 %v928
        %v3278 = vunpack.c.h.b16 %v928
        %v3279 = vunpack.c.l.b16 %v929
        %v3280 = vunpack.c.h.b16 %v929
        %v3281 = vunpack.c.l.b16 %v930
        %v3282 = vunpack.c.h.b16 %v930
        %v3283 = vunpack.c.l.b16 %v931
        %v3284 = vunpack.c.h.b16 %v931
        %v3285 = vunpack.c.l.b16 %v932
        %v3286 = vunpack.c.h.b16 %v932
        %v3287 = vunpack.c.l.b16 %v933
        %v3288 = vunpack.c.h.b16 %v933
        %v3289 = vunpack.c.l.b16 %v934
        %v3290 = vunpack.c.h.b16 %v934
        %v3291 = vunpack.c.l.b16 %v935
        %v3292 = vunpack.c.h.b16 %v935
        %v3293 = vunpack.c.l.b16 %v936
        %v3294 = vunpack.c.h.b16 %v936
        %v3295 = vunpack.c.l.b16 %v937
        %v3296 = vunpack.c.h.b16 %v937
        %v3297 = vunpack.c.l.b16 %v938
        %v3298 = vunpack.c.h.b16 %v938
        %v3299 = vunpack.c.l.b16 %v939
        %v3300 = vunpack.c.h.b16 %v939
        %v3301 = vunpack.c.l.b16 %v940
        %v3302 = vunpack.c.h.b16 %v940
        %v3303 = vunpack.c.l.b16 %v941
        %v3304 = vunpack.c.h.b16 %v941
        %v3305 = vunpack.c.l.b16 %v942
        %v3306 = vunpack.c.h.b16 %v942
        %v3307 = vunpack.c.l.b16 %v943
        %v3308 = vunpack.c.h.b16 %v943
        %v3309 = vunpack.c.l.b16 %v944
        %v3310 = vunpack.c.h.b16 %v944
        %v3311 = vunpack.c.l.b16 %v945
        %v3312 = vunpack.c.h.b16 %v945
        %v3313 = vunpack.c.l.b16 %v946
        %v3314 = vunpack.c.h.b16 %v946
        %v3315 = vunpack.c.l.b16 %v947
        %v3316 = vunpack.c.h.b16 %v947
        %v3317 = vunpack.c.l.b16 %v948
        %v3318 = vunpack.c.h.b16 %v948
        %v3319 = vunpack.c.l.b16 %v949
        %v3320 = vunpack.c.h.b16 %v949
        %v3321 = vunpack.c.l.b16 %v950
        %v3322 = vunpack.c.h.b16 %v950
        %v3323 = vunpack.c.l.b16 %v951
        %v3324 = vunpack.c.h.b16 %v951
        %v3325 = vunpack.c.l.b16 %v952
        %v3326 = vunpack.c.h.b16 %v952
        %v3327 = vunpack.c.l.b16 %v953
        %v3328 = vunpack.c.h.b16 %v953
        %v3329 = vunpack.c.l.b16 %v954
        %v3330 = vunpack.c.h.b16 %v954
        %v3331 = vunpack.c.l.b16 %v955
        %v3332 = vunpack.c.h.b16 %v955
        %v3333 = vunpack.c.l.b16 %v956
        %v3334 = vunpack.c.h.b16 %v956
        %v3335 = vunpack.c.l.b16 %v957
        %v3336 = vunpack.c.h.b16 %v957
        %v3337 = vunpack.c.l.b16 %v958
        %v3338 = vunpack.c.h.b16 %v958
        %v3339 = vunpack.c.l.b16 %v959
        %v3340 = vunpack.c.h.b16 %v959
        %v3341 = vunpack.c.l.b16 %v960
        %v3342 = vunpack.c.h.b16 %v960
        %v3343 = vunpack.c.l.b16 %v961
        %v3344 = vunpack.c.h.b16 %v961
        %v3345 = vunpack.c.l.b16 %v962
        %v3346 = vunpack.c.h.b16 %v962
        %v3347 = vunpack.c.l.b16 %v963
        %v3348 = vunpack.c.h.b16 %v963
        %v3349 = vunpack.c.l.b16 %v964
        %v3350 = vunpack.c.h.b16 %v964
        %v3351 = vunpack.c.l.b16 %v965
        %v3352 = vunpack.c.h.b16 %v965
        %v3353 = vunpack.c.l.b16 %v966
        %v3354 = vunpack.c.h.b16 %v966
        %v3355 = vunpack.c.l.b16 %v967
        %v3356 = vunpack.c.h.b16 %v967
        %v3357 = vunpack.c.l.b16 %v968
        %v3358 = vunpack.c.h.b16 %v968
        %v3359 = vunpack.c.l.b16 %v969
        %v3360 = vunpack.c.h.b16 %v969
        %v3361 = vunpack.c.l.b16 %v970
        %v3362 = vunpack.c.h.b16 %v970
        %v3363 = vunpack.c.l.b16 %v971
        %v3364 = vunpack.c.h.b16 %v971
        %v3365 = vunpack.c.l.b16 %v972
        %v3366 = vunpack.c.h.b16 %v972
        %v3367 = vunpack.c.l.b16 %v973
        %v3368 = vunpack.c.h.b16 %v973
        %v3369 = vunpack.c.l.b16 %v974
        %v3370 = vunpack.c.h.b16 %v974
        %v3371 = vunpack.c.l.b16 %v975
        %v3372 = vunpack.c.h.b16 %v975
        %v3373 = vunpack.c.l.b16 %v976
        %v3374 = vunpack.c.h.b16 %v976
        %v3375 = vunpack.c.l.b16 %v977
        %v3376 = vunpack.c.h.b16 %v977
        %v3377 = vunpack.c.l.b16 %v978
        %v3378 = vunpack.c.h.b16 %v978
        %v3379 = vunpack.c.l.b16 %v979
        %v3380 = vunpack.c.h.b16 %v979
        %v3381 = vunpack.c.l.b16 %v980
        %v3382 = vunpack.c.h.b16 %v980
        %v3383 = vunpack.c.l.b16 %v981
        %v3384 = vunpack.c.h.b16 %v981
        %v3385 = vunpack.c.l.b16 %v982
        %v3386 = vunpack.c.h.b16 %v982
        %v3387 = vunpack.c.l.b16 %v983
        %v3388 = vunpack.c.h.b16 %v983
        %v3389 = vunpack.c.l.b16 %v984
        %v3390 = vunpack.c.h.b16 %v984
        %v3391 = vunpack.c.l.b16 %v985
        %v3392 = vunpack.c.h.b16 %v985
        %v3393 = vunpack.c.l.b16 %v986
        %v3394 = vunpack.c.h.b16 %v986
        %v3395 = vunpack.c.l.b16 %v987
        %v3396 = vunpack.c.h.b16 %v987
        %v3397 = vunpack.c.l.b16 %v988
        %v3398 = vunpack.c.h.b16 %v988
        %v3399 = vunpack.c.l.b16 %v989
        %v3400 = vunpack.c.h.b16 %v989
        %v3401 = vunpack.c.l.b16 %v990
        %v3402 = vunpack.c.h.b16 %v990
        %v3403 = vunpack.c.l.b16 %v991
        %v3404 = vunpack.c.h.b16 %v991
        %v3405 = vunpack.c.l.b16 %v992
        %v3406 = vunpack.c.h.b16 %v992
        %v3407 = vunpack.c.l.b16 %v993
        %v3408 = vunpack.c.h.b16 %v993
        %v3409 = vunpack.c.l.b16 %v994
        %v3410 = vunpack.c.h.b16 %v994
        %v3411 = vunpack.c.l.b16 %v995
        %v3412 = vunpack.c.h.b16 %v995
        %v3413 = vunpack.c.l.b16 %v996
        %v3414 = vunpack.c.h.b16 %v996
        %v3415 = vunpack.c.l.b16 %v997
        %v3416 = vunpack.c.h.b16 %v997
        %v3417 = vunpack.c.l.b16 %v998
        %v3418 = vunpack.c.h.b16 %v998
        %v3419 = vunpack.c.l.b16 %v999
        %v3420 = vunpack.c.h.b16 %v999
        %v3421 = vunpack.c.l.b16 %v1000
        %v3422 = vunpack.c.h.b16 %v1000
        %v3423 = vunpack.c.l.b16 %v1001
        %v3424 = vunpack.c.h.b16 %v1001
        %v3425 = vunpack.c.l.b16 %v1002
        %v3426 = vunpack.c.h.b16 %v1002
        %v3427 = vunpack.c.l.b16 %v1003
        %v3428 = vunpack.c.h.b16 %v1003
        %v3429 = vunpack.c.l.b16 %v1004
        %v3430 = vunpack.c.h.b16 %v1004
        %v3431 = vunpack.c.l.b16 %v1005
        %v3432 = vunpack.c.h.b16 %v1005
        %v3433 = vunpack.c.l.b16 %v1006
        %v3434 = vunpack.c.h.b16 %v1006
        %v3435 = vunpack.c.l.b16 %v1007
        %v3436 = vunpack.c.h.b16 %v1007
        %v3437 = vunpack.c.l.b16 %v1008
        %v3438 = vunpack.c.h.b16 %v1008
        %v3439 = vunpack.c.l.b16 %v1009
        %v3440 = vunpack.c.h.b16 %v1009
        %v3441 = vunpack.c.l.b16 %v1010
        %v3442 = vunpack.c.h.b16 %v1010
        %v3443 = vunpack.c.l.b16 %v1011
        %v3444 = vunpack.c.h.b16 %v1011
        %v3445 = vunpack.c.l.b16 %v1012
        %v3446 = vunpack.c.h.b16 %v1012
        %v3447 = vunpack.c.l.b16 %v1013
        %v3448 = vunpack.c.h.b16 %v1013
        %v3449 = vunpack.c.l.b16 %v1014
        %v3450 = vunpack.c.h.b16 %v1014
        %v3451 = vunpack.c.l.b16 %v1015
        %v3452 = vunpack.c.h.b16 %v1015
        %v3453 = vunpack.c.l.b16 %v1016
        %v3454 = vunpack.c.h.b16 %v1016
        %v3455 = vunpack.c.l.b16 %v1017
        %v3456 = vunpack.c.h.b16 %v1017
        %v3457 = vunpack.c.l.b16 %v1018
        %v3458 = vunpack.c.h.b16 %v1018
        %v3459 = vunpack.c.l.b16 %v1019
        %v3460 = vunpack.c.h.b16 %v1019
        %v3461 = vunpack.c.l.b16 %v1020
        %v3462 = vunpack.c.h.b16 %v1020
        %v3463 = vunpack.c.l.b16 %v1021
        %v3464 = vunpack.c.h.b16 %v1021
        %v3465 = vunpack.c.l.b16 %v1022
        %v3466 = vunpack.c.h.b16 %v1022
        %v3467 = vunpack.c.l.b16 %v1023
        %v3468 = vunpack.c.h.b16 %v1023
        %v3469 = vunpack.c.l.b16 %v1024
        %v3470 = vunpack.c.h.b16 %v1024
        %v3471 = vunpack.c.l.b16 %v1025
        %v3472 = vunpack.c.h.b16 %v1025
        %v3473 = vunpack.c.l.b16 %v1026
        %v3474 = vunpack.c.h.b16 %v1026
        %v3475 = vunpack.c.l.b16 %v1027
        %v3476 = vunpack.c.h.b16 %v1027
        %v3477 = vunpack.c.l.b16 %v1028
        %v3478 = vunpack.c.h.b16 %v1028
        %v3479 = vunpack.c.l.b16 %v1029
        %v3480 = vunpack.c.h.b16 %v1029
        %v3481 = vunpack.c.l.b16 %v1030
        %v3482 = vunpack.c.h.b16 %v1030
        %v3483 = vunpack.c.l.b16 %v1031
        %v3484 = vunpack.c.h.b16 %v1031
        %v3485 = vunpack.c.l.b16 %v1032
        %v3486 = vunpack.c.h.b16 %v1032
        %v3487 = vunpack.c.l.b16 %v1033
        %v3488 = vunpack.c.h.b16 %v1033
        %v3489 = vunpack.c.l.b16 %v1034
        %v3490 = vunpack.c.h.b16 %v1034
        %v3491 = vunpack.c.l.b16 %v1035
        %v3492 = vunpack.c.h.b16 %v1035
        %v3493 = vunpack.c.l.b16 %v1036
        %v3494 = vunpack.c.h.b16 %v1036
        %v3495 = vunpack.c.l.b16 %v1037
        %v3496 = vunpack.c.h.b16 %v1037
        %v3497 = vunpack.c.l.b16 %v1038
        %v3498 = vunpack.c.h.b16 %v1038
        %v3499 = vunpack.c.l.b16 %v1039
        %v3500 = vunpack.c.h.b16 %v1039
        %v3501 = vunpack.c.l.b16 %v1040
        %v3502 = vunpack.c.h.b16 %v1040
        %v3503 = vunpack.c.l.b16 %v1041
        %v3504 = vunpack.c.h.b16 %v1041
        %v3505 = vunpack.c.l.b16 %v1042
        %v3506 = vunpack.c.h.b16 %v1042
        %v3507 = vunpack.c.l.b16 %v1043
        %v3508 = vunpack.c.h.b16 %v1043
        %v3509 = vunpack.c.l.b16 %v1044
        %v3510 = vunpack.c.h.b16 %v1044
        %v3511 = vunpack.c.l.b16 %v1045
        %v3512 = vunpack.c.h.b16 %v1045
        %v3513 = vunpack.c.l.b16 %v1046
        %v3514 = vunpack.c.h.b16 %v1046
        %v3515 = vunpack.c.l.b16 %v1047
        %v3516 = vunpack.c.h.b16 %v1047
        %v3517 = vunpack.c.l.b16 %v1048
        %v3518 = vunpack.c.h.b16 %v1048
        %v3519 = vunpack.c.l.b16 %v1049
        %v3520 = vunpack.c.h.b16 %v1049
        %v3521 = vunpack.c.l.b16 %v1050
        %v3522 = vunpack.c.h.b16 %v1050
        %v3523 = vunpack.c.l.b16 %v1051
        %v3524 = vunpack.c.h.b16 %v1051
        %v3525 = vunpack.c.l.b16 %v1052
        %v3526 = vunpack.c.h.b16 %v1052
        %v3527 = vunpack.c.l.b16 %v1053
        %v3528 = vunpack.c.h.b16 %v1053
        %v3529 = vunpack.c.l.b16 %v1054
        %v3530 = vunpack.c.h.b16 %v1054
        %v3531 = vunpack.c.l.b16 %v1055
        %v3532 = vunpack.c.h.b16 %v1055
        %v3533 = vunpack.c.l.b16 %v1056
        %v3534 = vunpack.c.h.b16 %v1056
        %v3535 = vunpack.c.l.b16 %v1057
        %v3536 = vunpack.c.h.b16 %v1057
        %v3537 = vunpack.c.l.b16 %v1058
        %v3538 = vunpack.c.h.b16 %v1058
        %v3539 = vunpack.c.l.b16 %v1059
        %v3540 = vunpack.c.h.b16 %v1059
        %v3541 = vunpack.c.l.b16 %v1060
        %v3542 = vunpack.c.h.b16 %v1060
        %v3543 = vunpack.c.l.b16 %v1061
        %v3544 = vunpack.c.h.b16 %v1061
        %v3545 = vunpack.c.l.b16 %v1062
        %v3546 = vunpack.c.h.b16 %v1062
        %v3547 = vunpack.c.l.b16 %v1063
        %v3548 = vunpack.c.h.b16 %v1063
        %v3549 = vunpack.c.l.b16 %v1064
        %v3550 = vunpack.c.h.b16 %v1064
        %v3551 = vunpack.c.l.b16 %v1065
        %v3552 = vunpack.c.h.b16 %v1065
        %v3553 = vunpack.c.l.b16 %v1066
        %v3554 = vunpack.c.h.b16 %v1066
        %v3555 = vunpack.c.l.b16 %v1067
        %v3556 = vunpack.c.h.b16 %v1067
        %v3557 = vunpack.c.l.b16 %v1068
        %v3558 = vunpack.c.h.b16 %v1068
        %v3559 = vunpack.c.l.b16 %v1069
        %v3560 = vunpack.c.h.b16 %v1069
        %v3561 = vunpack.c.l.b16 %v1070
        %v3562 = vunpack.c.h.b16 %v1070
        %v3563 = vunpack.c.l.b16 %v1071
        %v3564 = vunpack.c.h.b16 %v1071
        %v3565 = vunpack.c.l.b16 %v1072
        %v3566 = vunpack.c.h.b16 %v1072
        %v3567 = vunpack.c.l.b16 %v1073
        %v3568 = vunpack.c.h.b16 %v1073
        %v3569 = vunpack.c.l.b16 %v1074
        %v3570 = vunpack.c.h.b16 %v1074
        %v3571 = vunpack.c.l.b16 %v1075
        %v3572 = vunpack.c.h.b16 %v1075
        %v3573 = vunpack.c.l.b16 %v1076
        %v3574 = vunpack.c.h.b16 %v1076
        %v3575 = vunpack.c.l.b16 %v1077
        %v3576 = vunpack.c.h.b16 %v1077
        %v3577 = vunpack.c.l.b16 %v1078
        %v3578 = vunpack.c.h.b16 %v1078
        %v3579 = vunpack.c.l.b16 %v1079
        %v3580 = vunpack.c.h.b16 %v1079
        %v3581 = vunpack.c.l.b16 %v1080
        %v3582 = vunpack.c.h.b16 %v1080
        %v3583 = vunpack.c.l.b16 %v1081
        %v3584 = vunpack.c.h.b16 %v1081
        %v3585 = vunpack.c.l.b16 %v1082
        %v3586 = vunpack.c.h.b16 %v1082
        %v3587 = vunpack.c.l.b16 %v1083
        %v3588 = vunpack.c.h.b16 %v1083
        %v3589 = vunpack.c.l.b16 %v1084
        %v3590 = vunpack.c.h.b16 %v1084
        %v3591 = vunpack.c.l.b16 %v1085
        %v3592 = vunpack.c.h.b16 %v1085
        %v3593 = vunpack.c.l.b16 %v1086
        %v3594 = vunpack.c.h.b16 %v1086
        %v3595 = vunpack.c.l.b16 %v1087
        %v3596 = vunpack.c.h.b16 %v1087
        %v3597 = vunpack.c.l.b16 %v1088
        %v3598 = vunpack.c.h.b16 %v1088
        %v3599 = vunpack.c.l.b16 %v1089
        %v3600 = vunpack.c.h.b16 %v1089
        %v3601 = vunpack.c.l.b16 %v1090
        %v3602 = vunpack.c.h.b16 %v1090
        %v3603 = vunpack.c.l.b16 %v1091
        %v3604 = vunpack.c.h.b16 %v1091
        %v3605 = vunpack.c.l.b16 %v1092
        %v3606 = vunpack.c.h.b16 %v1092
        %v3607 = vunpack.c.l.b16 %v1093
        %v3608 = vunpack.c.h.b16 %v1093
        %v3609 = vunpack.c.l.b16 %v1094
        %v3610 = vunpack.c.h.b16 %v1094
        %v3611 = vunpack.c.l.b16 %v1095
        %v3612 = vunpack.c.h.b16 %v1095
        %v3613 = vunpack.c.l.b16 %v1096
        %v3614 = vunpack.c.h.b16 %v1096
        %v3615 = vunpack.c.l.b16 %v1097
        %v3616 = vunpack.c.h.b16 %v1097
        %v3617 = vunpack.c.l.b16 %v1098
        %v3618 = vunpack.c.h.b16 %v1098
        %v3619 = vunpack.c.l.b16 %v1099
        %v3620 = vunpack.c.h.b16 %v1099
        %v3621 = vunpack.c.l.b16 %v1100
        %v3622 = vunpack.c.h.b16 %v1100
        %v3623 = vunpack.c.l.b16 %v1101
        %v3624 = vunpack.c.h.b16 %v1101
        %v3625 = vunpack.c.l.b16 %v1102
        %v3626 = vunpack.c.h.b16 %v1102
        %v3627 = vunpack.c.l.b16 %v1103
        %v3628 = vunpack.c.h.b16 %v1103
        %v3629 = vunpack.c.l.b16 %v1104
        %v3630 = vunpack.c.h.b16 %v1104
        %v3631 = vunpack.c.l.b16 %v1105
        %v3632 = vunpack.c.h.b16 %v1105
        %v3633 = vunpack.c.l.b16 %v1106
        %v3634 = vunpack.c.h.b16 %v1106
        %v3635 = vunpack.c.l.b16 %v1107
        %v3636 = vunpack.c.h.b16 %v1107
        %v3637 = vunpack.c.l.b16 %v1108
        %v3638 = vunpack.c.h.b16 %v1108
        %v3639 = vunpack.c.l.b16 %v1109
        %v3640 = vunpack.c.h.b16 %v1109
        %v3641 = vunpack.c.l.b16 %v1110
        %v3642 = vunpack.c.h.b16 %v1110
        %v3643 = vunpack.c.l.b16 %v1111
        %v3644 = vunpack.c.h.b16 %v1111
        %v3645 = vunpack.c.l.b16 %v1112
        %v3646 = vunpack.c.h.b16 %v1112
        %v3647 = vunpack.c.l.b16 %v1113
        %v3648 = vunpack.c.h.b16 %v1113
        %v3649 = vunpack.c.l.b16 %v1114
        %v3650 = vunpack.c.h.b16 %v1114
        %v3651 = vunpack.c.l.b16 %v1115
        %v3652 = vunpack.c.h.b16 %v1115
        %v3653 = vunpack.c.l.b16 %v1116
        %v3654 = vunpack.c.h.b16 %v1116
        %v3655 = vunpack.c.l.b16 %v1117
        %v3656 = vunpack.c.h.b16 %v1117
        %v3657 = vunpack.c.l.b16 %v1118
        %v3658 = vunpack.c.h.b16 %v1118
        %v3659 = vunpack.c.l.b16 %v1119
        %v3660 = vunpack.c.h.b16 %v1119
        %v3661 = vunpack.c.l.b16 %v1120
        %v3662 = vunpack.c.h.b16 %v1120
        %v3663 = vunpack.c.l.b16 %v1121
        %v3664 = vunpack.c.h.b16 %v1121
        %v3665 = vunpack.c.l.b16 %v1122
        %v3666 = vunpack.c.h.b16 %v1122
        %v3667 = vunpack.c.l.b16 %v1123
        %v3668 = vunpack.c.h.b16 %v1123
        %v3669 = vunpack.c.l.b16 %v1124
        %v3670 = vunpack.c.h.b16 %v1124
        %v3671 = vunpack.c.l.b16 %v1125
        %v3672 = vunpack.c.h.b16 %v1125
        %v3673 = vunpack.c.l.b16 %v1126
        %v3674 = vunpack.c.h.b16 %v1126
        %v3675 = vunpack.c.l.b16 %v1127
        %v3676 = vunpack.c.h.b16 %v1127
        %v3677 = vunpack.c.l.b16 %v1128
        %v3678 = vunpack.c.h.b16 %v1128
        %v3679 = vunpack.c.l.b16 %v1129
        %v3680 = vunpack.c.h.b16 %v1129
        %v3681 = vunpack.c.l.b16 %v1130
        %v3682 = vunpack.c.h.b16 %v1130
        %v3683 = vunpack.c.l.b16 %v1131
        %v3684 = vunpack.c.h.b16 %v1131
        %v3685 = vunpack.c.l.b16 %v1132
        %v3686 = vunpack.c.h.b16 %v1132
        %v3687 = vunpack.c.l.b16 %v1133
        %v3688 = vunpack.c.h.b16 %v1133
        %v3689 = vunpack.c.l.b16 %v1134
        %v3690 = vunpack.c.h.b16 %v1134
        %v3691 = vunpack.c.l.b16 %v1135
        %v3692 = vunpack.c.h.b16 %v1135
        %v3693 = vunpack.c.l.b16 %v1136
        %v3694 = vunpack.c.h.b16 %v1136
        %v3695 = vunpack.c.l.b16 %v1137
        %v3696 = vunpack.c.h.b16 %v1137
        %v3697 = vunpack.c.l.b16 %v1138
        %v3698 = vunpack.c.h.b16 %v1138
        %v3699 = vunpack.c.l.b16 %v1139
        %v3700 = vunpack.c.h.b16 %v1139
        %v3701 = vunpack.c.l.b16 %v1140
        %v3702 = vunpack.c.h.b16 %v1140
        %v3703 = vunpack.c.l.b16 %v1141
        %v3704 = vunpack.c.h.b16 %v1141
        %v3705 = vunpack.c.l.b16 %v1142
        %v3706 = vunpack.c.h.b16 %v1142
        %v3707 = vunpack.c.l.b16 %v1143
        %v3708 = vunpack.c.h.b16 %v1143
        %v3709 = vunpack.c.l.b16 %v1144
        %v3710 = vunpack.c.h.b16 %v1144
        %v3711 = vunpack.c.l.b16 %v1145
        %v3712 = vunpack.c.h.b16 %v1145
        %v3713 = vunpack.c.l.b16 %v1146
        %v3714 = vunpack.c.h.b16 %v1146
        %v3715 = vunpack.c.l.b16 %v1147
        %v3716 = vunpack.c.h.b16 %v1147
        %v3717 = vunpack.c.l.b16 %v1148
        %v3718 = vunpack.c.h.b16 %v1148
        %v3719 = vunpack.c.l.b16 %v1149
        %v3720 = vunpack.c.h.b16 %v1149
        %v3721 = vunpack.c.l.b16 %v1150
        %v3722 = vunpack.c.h.b16 %v1150
        %v3723 = vunpack.c.l.b16 %v1151
        %v3724 = vunpack.c.h.b16 %v1151
        %v3725 = vunpack.c.l.b16 %v1152
        %v3726 = vunpack.c.h.b16 %v1152
        %v3727 = vunpack.c.l.b16 %v1153
        %v3728 = vunpack.c.h.b16 %v1153
        %v3729 = vunpack.c.l.b16 %v1154
        %v3730 = vunpack.c.h.b16 %v1154
        %v3731 = vunpack.c.l.b16 %v1155
        %v3732 = vunpack.c.h.b16 %v1155
        %v3733 = vunpack.c.l.b16 %v1156
        %v3734 = vunpack.c.h.b16 %v1156
        %v3735 = vunpack.c.l.b16 %v1157
        %v3736 = vunpack.c.h.b16 %v1157
        %v3737 = vunpack.c.l.b16 %v1158
        %v3738 = vunpack.c.h.b16 %v1158
        %v3739 = vunpack.c.l.b16 %v1159
        %v3740 = vunpack.c.h.b16 %v1159
        %v3741 = vunpack.c.l.b16 %v1160
        %v3742 = vunpack.c.h.b16 %v1160
        %v3743 = vunpack.c.l.b16 %v1161
        %v3744 = vunpack.c.h.b16 %v1161
        %v3745 = vunpack.c.l.b16 %v1162
        %v3746 = vunpack.c.h.b16 %v1162
        %v3747 = vunpack.c.l.b16 %v1163
        %v3748 = vunpack.c.h.b16 %v1163
        %v3749 = vunpack.c.l.b16 %v1164
        %v3750 = vunpack.c.h.b16 %v1164
        %v3751 = vunpack.c.l.b16 %v1165
        %v3752 = vunpack.c.h.b16 %v1165
        %v3753 = vunpack.c.l.b16 %v1166
        %v3754 = vunpack.c.h.b16 %v1166
        %v3755 = vunpack.c.l.b16 %v1167
        %v3756 = vunpack.c.h.b16 %v1167
        %v3757 = vunpack.c.l.b16 %v1168
        %v3758 = vunpack.c.h.b16 %v1168
        %v3759 = vunpack.c.l.b16 %v1169
        %v3760 = vunpack.c.h.b16 %v1169
        %v3761 = vunpack.c.l.b16 %v1170
        %v3762 = vunpack.c.h.b16 %v1170
        %v3763 = vunpack.c.l.b16 %v1171
        %v3764 = vunpack.c.h.b16 %v1171
        %v3765 = vunpack.c.l.b16 %v1172
        %v3766 = vunpack.c.h.b16 %v1172
        %v3767 = vunpack.c.l.b16 %v1173
        %v3768 = vunpack.c.h.b16 %v1173
        %v3769 = vunpack.c.l.b16 %v1174
        %v3770 = vunpack.c.h.b16 %v1174
        %v3771 = vunpack.c.l.b16 %v1175
        %v3772 = vunpack.c.h.b16 %v1175
        %v3773 = vunpack.c.l.b16 %v1176
        %v3774 = vunpack.c.h.b16 %v1176
        %v3775 = vunpack.c.l.b16 %v1177
        %v3776 = vunpack.c.h.b16 %v1177
        %v3777 = vunpack.c.l.b16 %v1178
        %v3778 = vunpack.c.h.b16 %v1178
        %v3779 = vunpack.c.l.b16 %v1179
        %v3780 = vunpack.c.h.b16 %v1179
        %v3781 = vunpack.c.l.b16 %v1180
        %v3782 = vunpack.c.h.b16 %v1180
        %v3783 = vunpack.c.l.b16 %v1181
        %v3784 = vunpack.c.h.b16 %v1181
        %v3785 = vunpack.c.l.b16 %v1182
        %v3786 = vunpack.c.h.b16 %v1182
        %v3787 = vunpack.c.l.b16 %v1183
        %v3788 = vunpack.c.h.b16 %v1183
        %v3789 = vunpack.c.l.b16 %v1184
        %v3790 = vunpack.c.h.b16 %v1184
        %v3791 = vunpack.c.l.b16 %v1185
        %v3792 = vunpack.c.h.b16 %v1185
        %v3793 = vunpack.c.l.b16 %v1186
        %v3794 = vunpack.c.h.b16 %v1186
        %v3795 = vunpack.c.l.b16 %v1187
        %v3796 = vunpack.c.h.b16 %v1187
        %v3797 = vunpack.c.l.b16 %v1188
        %v3798 = vunpack.c.h.b16 %v1188
        %v3799 = vunpack.c.l.b16 %v1189
        %v3800 = vunpack.c.h.b16 %v1189
        %v3801 = vunpack.c.l.b16 %v1190
        %v3802 = vunpack.c.h.b16 %v1190
        %v3803 = vunpack.c.l.b16 %v1191
        %v3804 = vunpack.c.h.b16 %v1191
        %v3805 = vunpack.c.l.b16 %v1192
        %v3806 = vunpack.c.h.b16 %v1192
        %v3807 = vunpack.c.l.b16 %v1193
        %v3808 = vunpack.c.h.b16 %v1193
        %v3809 = vunpack.c.l.b16 %v1194
        %v3810 = vunpack.c.h.b16 %v1194
        %v3811 = vunpack.c.l.b16 %v1195
        %v3812 = vunpack.c.h.b16 %v1195
        %v3813 = vunpack.c.l.b16 %v1196
        %v3814 = vunpack.c.h.b16 %v1196
        %v3815 = vunpack.c.l.b16 %v1197
        %v3816 = vunpack.c.h.b16 %v1197
        %v3817 = vunpack.c.l.b16 %v1198
        %v3818 = vunpack.c.h.b16 %v1198
        %v3819 = vunpack.c.l.b16 %v1199
        %v3820 = vunpack.c.h.b16 %v1199
        %v3821 = vunpack.c.l.b16 %v1200
        %v3822 = vunpack.c.h.b16 %v1200
        %v3823 = vunpack.c.l.b16 %v1201
        %v3824 = vunpack.c.h.b16 %v1201
        %v3825 = vunpack.c.l.b16 %v1202
        %v3826 = vunpack.c.h.b16 %v1202
        %v3827 = vunpack.c.l.b16 %v1203
        %v3828 = vunpack.c.h.b16 %v1203
        %v3829 = vunpack.c.l.b16 %v1204
        %v3830 = vunpack.c.h.b16 %v1204
        %v3831 = vunpack.c.l.b16 %v1205
        %v3832 = vunpack.c.h.b16 %v1205
        %v3833 = vunpack.c.l.b16 %v1206
        %v3834 = vunpack.c.h.b16 %v1206
        %v3835 = vunpack.c.l.b16 %v1207
        %v3836 = vunpack.c.h.b16 %v1207
        %v3837 = vunpack.c.l.b16 %v1208
        %v3838 = vunpack.c.h.b16 %v1208
        %v3839 = vunpack.c.l.b16 %v1209
        %v3840 = vunpack.c.h.b16 %v1209
        %v3841 = vunpack.c.l.b16 %v1210
        %v3842 = vunpack.c.h.b16 %v1210
        %v3843 = vunpack.c.l.b16 %v1211
        %v3844 = vunpack.c.h.b16 %v1211
        %v3845 = vunpack.c.l.b16 %v1212
        %v3846 = vunpack.c.h.b16 %v1212
        %v3847 = vunpack.c.l.b16 %v1213
        %v3848 = vunpack.c.h.b16 %v1213
        %v3849 = vunpack.c.l.b16 %v1214
        %v3850 = vunpack.c.h.b16 %v1214
        %v3851 = vunpack.c.l.b16 %v1215
        %v3852 = vunpack.c.h.b16 %v1215
        %v3853 = vunpack.c.l.b16 %v1216
        %v3854 = vunpack.c.h.b16 %v1216
        %v3855 = vunpack.c.l.b16 %v1217
        %v3856 = vunpack.c.h.b16 %v1217
        %v3857 = vunpack.c.l.b16 %v1218
        %v3858 = vunpack.c.h.b16 %v1218
        %v3859 = vunpack.c.l.b16 %v1219
        %v3860 = vunpack.c.h.b16 %v1219
        %v3861 = vunpack.c.l.b16 %v1220
        %v3862 = vunpack.c.h.b16 %v1220
        %v3863 = vunpack.c.l.b16 %v1221
        %v3864 = vunpack.c.h.b16 %v1221
        %v3865 = vunpack.c.l.b16 %v1222
        %v3866 = vunpack.c.h.b16 %v1222
        %v3867 = vunpack.c.l.b16 %v1223
        %v3868 = vunpack.c.h.b16 %v1223
        %v3869 = vunpack.c.l.b16 %v1224
        %v3870 = vunpack.c.h.b16 %v1224
        %v3871 = vunpack.c.l.b16 %v1225
        %v3872 = vunpack.c.h.b16 %v1225
        %v3873 = vunpack.c.l.b16 %v1226
        %v3874 = vunpack.c.h.b16 %v1226
        %v3875 = vunpack.c.l.b16 %v1227
        %v3876 = vunpack.c.h.b16 %v1227
        %v3877 = vunpack.c.l.b16 %v1228
        %v3878 = vunpack.c.h.b16 %v1228
        %v3879 = vunpack.c.l.b16 %v1229
        %v3880 = vunpack.c.h.b16 %v1229
        %v3881 = vunpack.c.l.b16 %v1230
        %v3882 = vunpack.c.h.b16 %v1230
        %v3883 = vunpack.c.l.b16 %v1231
        %v3884 = vunpack.c.h.b16 %v1231
        %v3885 = vunpack.c.l.b16 %v1232
        %v3886 = vunpack.c.h.b16 %v1232
        %v3887 = vunpack.c.l.b16 %v1233
        %v3888 = vunpack.c.h.b16 %v1233
        %v3889 = vunpack.c.l.b16 %v1234
        %v3890 = vunpack.c.h.b16 %v1234
        %v3891 = vunpack.c.l.b16 %v1235
        %v3892 = vunpack.c.h.b16 %v1235
        %v3893 = vunpack.c.l.b16 %v1236
        %v3894 = vunpack.c.h.b16 %v1236
        %v3895 = vunpack.c.l.b16 %v1237
        %v3896 = vunpack.c.h.b16 %v1237
        %v3897 = vunpack.c.l.b16 %v1238
        %v3898 = vunpack.c.h.b16 %v1238
        %v3899 = vunpack.c.l.b16 %v1239
        %v3900 = vunpack.c.h.b16 %v1239
        %v3901 = vunpack.c.l.b16 %v1240
        %v3902 = vunpack.c.h.b16 %v1240
        %v3903 = vunpack.c.l.b16 %v1241
        %v3904 = vunpack.c.h.b16 %v1241
        %v3905 = vunpack.c.l.b16 %v1242
        %v3906 = vunpack.c.h.b16 %v1242
        %v3907 = vunpack.c.l.b16 %v1243
        %v3908 = vunpack.c.h.b16 %v1243
        %v3909 = vunpack.c.l.b16 %v1244
        %v3910 = vunpack.c.h.b16 %v1244
        %v3911 = vunpack.c.l.b16 %v1245
        %v3912 = vunpack.c.h.b16 %v1245
        %v3913 = vunpack.c.l.b16 %v1246
        %v3914 = vunpack.c.h.b16 %v1246
        %v3915 = vunpack.c.l.b16 %v1247
        %v3916 = vunpack.c.h.b16 %v1247
        %v3917 = vunpack.c.l.b16 %v1248
        %v3918 = vunpack.c.h.b16 %v1248
        %v3919 = vunpack.c.l.b16 %v1249
        %v3920 = vunpack.c.h.b16 %v1249
        %v3921 = vunpack.c.l.b16 %v1250
        %v3922 = vunpack.c.h.b16 %v1250
        %v3923 = vunpack.c.l.b16 %v1251
        %v3924 = vunpack.c.h.b16 %v1251
        %v3925 = vunpack.c.l.b16 %v1252
        %v3926 = vunpack.c.h.b16 %v1252
        %v3927 = vunpack.c.l.b16 %v1253
        %v3928 = vunpack.c.h.b16 %v1253
        %v3929 = vunpack.c.l.b16 %v1254
        %v3930 = vunpack.c.h.b16 %v1254
        %v3931 = vunpack.c.l.b16 %v1255
        %v3932 = vunpack.c.h.b16 %v1255
        %v3933 = vunpack.c.l.b16 %v1256
        %v3934 = vunpack.c.h.b16 %v1256
        %v3935 = vunpack.c.l.b16 %v1257
        %v3936 = vunpack.c.h.b16 %v1257
        %v3937 = vunpack.c.l.b16 %v1258
        %v3938 = vunpack.c.h.b16 %v1258
        %v3939 = vunpack.c.l.b16 %v1259
        %v3940 = vunpack.c.h.b16 %v1259
        %v3941 = vunpack.c.l.b16 %v1260
        %v3942 = vunpack.c.h.b16 %v1260
        %v3943 = vunpack.c.l.b16 %v1261
        %v3944 = vunpack.c.h.b16 %v1261
        %v3945 = vunpack.c.l.b16 %v1262
        %v3946 = vunpack.c.h.b16 %v1262
        %v3947 = vunpack.c.l.b16 %v1263
        %v3948 = vunpack.c.h.b16 %v1263
        %v3949 = vunpack.c.l.b16 %v1264
        %v3950 = vunpack.c.h.b16 %v1264
        %v3951 = vunpack.c.l.b16 %v1265
        %v3952 = vunpack.c.h.b16 %v1265
        %v3953 = vunpack.c.l.b16 %v1266
        %v3954 = vunpack.c.h.b16 %v1266
        %v3955 = vunpack.c.l.b16 %v1267
        %v3956 = vunpack.c.h.b16 %v1267
        %v3957 = vunpack.c.l.b16 %v1268
        %v3958 = vunpack.c.h.b16 %v1268
        %v3959 = vunpack.c.l.b16 %v1269
        %v3960 = vunpack.c.h.b16 %v1269
        %v3961 = vunpack.c.l.b16 %v1270
        %v3962 = vunpack.c.h.b16 %v1270
        %v3963 = vunpack.c.l.b16 %v1271
        %v3964 = vunpack.c.h.b16 %v1271
        %v3965 = vunpack.c.l.b16 %v1272
        %v3966 = vunpack.c.h.b16 %v1272
        %v3967 = vunpack.c.l.b16 %v1273
        %v3968 = vunpack.c.h.b16 %v1273
        %v3969 = vunpack.c.l.b16 %v1274
        %v3970 = vunpack.c.h.b16 %v1274
        %v3971 = vunpack.c.l.b16 %v1275
        %v3972 = vunpack.c.h.b16 %v1275
        %v3973 = vunpack.c.l.b16 %v1276
        %v3974 = vunpack.c.h.b16 %v1276
        %v3975 = vunpack.c.l.b16 %v1277
        %v3976 = vunpack.c.h.b16 %v1277
        %v3977 = vunpack.c.l.b16 %v1278
        %v3978 = vunpack.c.h.b16 %v1278
        %v3979 = vunpack.c.l.b16 %v1279
        %v3980 = vunpack.c.h.b16 %v1279
        %v3981 = vunpack.c.l.b16 %v1280
        %v3982 = vunpack.c.h.b16 %v1280
        %v3983 = vunpack.c.l.b16 %v1281
        %v3984 = vunpack.c.h.b16 %v1281
        %v3985 = vunpack.c.l.b16 %v1282
        %v3986 = vunpack.c.h.b16 %v1282
        %v3987 = vunpack.c.l.b16 %v1283
        %v3988 = vunpack.c.h.b16 %v1283
        %v3989 = vunpack.c.l.b16 %v1284
        %v3990 = vunpack.c.h.b16 %v1284
        %v3991 = vunpack.c.l.b16 %v1285
        %v3992 = vunpack.c.h.b16 %v1285
        %v3993 = vunpack.c.l.b16 %v1286
        %v3994 = vunpack.c.h.b16 %v1286
        %v3995 = vunpack.c.l.b16 %v1287
        %v3996 = vunpack.c.h.b16 %v1287
        %v3997 = vunpack.c.l.b16 %v1288
        %v3998 = vunpack.c.h.b16 %v1288
        %v3999 = vunpack.c.l.b16 %v1289
        %v4000 = vunpack.c.h.b16 %v1289
        %v4001 = vunpack.c.l.b16 %v1290
        %v4002 = vunpack.c.h.b16 %v1290
        %v4003 = vunpack.c.l.b16 %v1291
        %v4004 = vunpack.c.h.b16 %v1291
        %v4005 = vunpack.c.l.b16 %v1292
        %v4006 = vunpack.c.h.b16 %v1292
        %v4007 = vunpack.c.l.b16 %v1293
        %v4008 = vunpack.c.h.b16 %v1293
        %v4009 = vunpack.c.l.b16 %v1294
        %v4010 = vunpack.c.h.b16 %v1294
        %v4011 = vunpack.c.l.b16 %v1295
        %v4012 = vunpack.c.h.b16 %v1295
        %v4013 = vunpack.c.l.b16 %v1296
        %v4014 = vunpack.c.h.b16 %v1296
        %v4015 = vunpack.c.l.b16 %v1297
        %v4016 = vunpack.c.h.b16 %v1297
        %v4017 = vunpack.c.l.b16 %v1298
        %v4018 = vunpack.c.h.b16 %v1298
        %v4019 = vunpack.c.l.b16 %v1299
        %v4020 = vunpack.c.h.b16 %v1299
        %v4021 = vunpack.c.l.b16 %v1300
        %v4022 = vunpack.c.h.b16 %v1300
        %v4023 = vunpack.c.l.b16 %v1301
        %v4024 = vunpack.c.h.b16 %v1301
        %v4025 = vunpack.c.l.b16 %v1302
        %v4026 = vunpack.c.h.b16 %v1302
        %v4027 = vunpack.c.l.b16 %v1303
        %v4028 = vunpack.c.h.b16 %v1303
        %v4029 = vunpack.c.l.b16 %v1304
        %v4030 = vunpack.c.h.b16 %v1304
        %v4031 = vunpack.c.l.b16 %v1305
        %v4032 = vunpack.c.h.b16 %v1305
        %v4033 = vunpack.c.l.b16 %v1306
        %v4034 = vunpack.c.h.b16 %v1306
        %v4035 = vunpack.c.l.b16 %v1307
        %v4036 = vunpack.c.h.b16 %v1307
        %v4037 = vunpack.c.l.b16 %v1308
        %v4038 = vunpack.c.h.b16 %v1308
        %v4039 = vunpack.c.l.b16 %v1309
        %v4040 = vunpack.c.h.b16 %v1309
        %v4041 = vunpack.c.l.b16 %v1310
        %v4042 = vunpack.c.h.b16 %v1310
        %v4043 = vunpack.c.l.b16 %v1311
        %v4044 = vunpack.c.h.b16 %v1311
        %v4045 = vunpack.c.l.b16 %v1312
        %v4046 = vunpack.c.h.b16 %v1312
        %v4047 = vunpack.c.l.b16 %v1313
        %v4048 = vunpack.c.h.b16 %v1313
        %v4049 = vunpack.c.l.b16 %v1314
        %v4050 = vunpack.c.h.b16 %v1314
        %v4051 = vunpack.c.l.b16 %v1315
        %v4052 = vunpack.c.h.b16 %v1315
        %v4053 = vunpack.c.l.b16 %v1316
        %v4054 = vunpack.c.h.b16 %v1316
        %v4055 = vunpack.c.l.b16 %v1317
        %v4056 = vunpack.c.h.b16 %v1317
        %v4057 = vunpack.c.l.b16 %v1318
        %v4058 = vunpack.c.h.b16 %v1318
        %v4059 = vunpack.c.l.b16 %v1319
        %v4060 = vunpack.c.h.b16 %v1319
        %v4061 = vunpack.c.l.b16 %v1320
        %v4062 = vunpack.c.h.b16 %v1320
        %v4063 = vunpack.c.l.b16 %v1321
        %v4064 = vunpack.c.h.b16 %v1321
        %v4065 = vunpack.c.l.b16 %v1322
        %v4066 = vunpack.c.h.b16 %v1322
        %v4067 = vunpack.c.l.b16 %v1323
        %v4068 = vunpack.c.h.b16 %v1323
        %v4069 = vunpack.c.l.b16 %v1324
        %v4070 = vunpack.c.h.b16 %v1324
        %v4071 = vunpack.c.l.b16 %v1325
        %v4072 = vunpack.c.h.b16 %v1325
        %v4073 = vunpack.c.l.b16 %v1326
        %v4074 = vunpack.c.h.b16 %v1326
        %v4075 = vunpack.c.l.b16 %v1327
        %v4076 = vunpack.c.h.b16 %v1327
        %v4077 = vunpack.c.l.b16 %v1328
        %v4078 = vunpack.c.h.b16 %v1328
        %v4079 = vunpack.c.l.b16 %v1329
        %v4080 = vunpack.c.h.b16 %v1329
        %v4081 = vunpack.c.l.b16 %v1330
        %v4082 = vunpack.c.h.b16 %v1330
        %v4083 = vunpack.c.l.b16 %v1331
        %v4084 = vunpack.c.h.b16 %v1331
        %v4085 = vunpack.c.l.b16 %v1332
        %v4086 = vunpack.c.h.b16 %v1332
        %v4087 = vunpack.c.l.b16 %v1333
        %v4088 = vunpack.c.h.b16 %v1333
        %v4089 = vunpack.c.l.b16 %v1334
        %v4090 = vunpack.c.h.b16 %v1334
        %v4091 = vunpack.c.l.b16 %v1335
        %v4092 = vunpack.c.h.b16 %v1335
        %v4093 = vunpack.c.l.b16 %v1336
        %v4094 = vunpack.c.h.b16 %v1336
        %v4095 = vunpack.c.l.b16 %v1337
        %v4096 = vunpack.c.h.b16 %v1337
        %v4097 = vunpack.c.l.b16 %v1338
        %v4098 = vunpack.c.h.b16 %v1338
        %v4099 = vunpack.c.l.b16 %v1339
        %v4100 = vunpack.c.h.b16 %v1339
        %v4101 = vunpack.c.l.b16 %v1340
        %v4102 = vunpack.c.h.b16 %v1340
        %v4103 = vunpack.c.l.b16 %v1341
        %v4104 = vunpack.c.h.b16 %v1341
        %v4105 = vunpack.c.l.b16 %v1342
        %v4106 = vunpack.c.h.b16 %v1342
        %v4107 = vunpack.c.l.b16 %v1343
        %v4108 = vunpack.c.h.b16 %v1343
        %v4109 = vunpack.c.l.b16 %v1344
        %v4110 = vunpack.c.h.b16 %v1344
        %v4111 = vunpack.c.l.b16 %v1345
        %v4112 = vunpack.c.h.b16 %v1345
        %v4113 = vunpack.c.l.b16 %v1346
        %v4114 = vunpack.c.h.b16 %v1346
        %v4115 = vunpack.c.l.b16 %v1347
        %v4116 = vunpack.c.h.b16 %v1347
        %v4117 = vunpack.c.l.b16 %v1348
        %v4118 = vunpack.c.h.b16 %v1348
        %v4119 = vunpack.c.l.b16 %v1349
        %v4120 = vunpack.c.h.b16 %v1349
        %v4121 = vunpack.c.l.b16 %v1350
        %v4122 = vunpack.c.h.b16 %v1350
        %v4123 = vunpack.c.l.b16 %v1351
        %v4124 = vunpack.c.h.b16 %v1351
        %v4125 = vunpack.c.l.b16 %v1352
        %v4126 = vunpack.c.h.b16 %v1352
        %v4127 = vunpack.c.l.b16 %v1353
        %v4128 = vunpack.c.h.b16 %v1353
        %v4129 = vunpack.c.l.b16 %v1354
        %v4130 = vunpack.c.h.b16 %v1354
        %v4131 = vunpack.c.l.b16 %v1355
        %v4132 = vunpack.c.h.b16 %v1355
        %v4133 = vunpack.c.l.b16 %v1356
        %v4134 = vunpack.c.h.b16 %v1356
        %v4135 = vunpack.c.l.b16 %v1357
        %v4136 = vunpack.c.h.b16 %v1357
        %v4137 = vunpack.c.l.b16 %v1358
        %v4138 = vunpack.c.h.b16 %v1358
        %v4139 = vunpack.c.l.b16 %v1359
        %v4140 = vunpack.c.h.b16 %v1359
        %v4141 = vunpack.c.l.b16 %v1360
        %v4142 = vunpack.c.h.b16 %v1360
        %v4143 = vunpack.c.l.b16 %v1361
        %v4144 = vunpack.c.h.b16 %v1361
        %v4145 = vunpack.c.l.b16 %v1362
        %v4146 = vunpack.c.h.b16 %v1362
        %v4147 = vunpack.c.l.b16 %v1363
        %v4148 = vunpack.c.h.b16 %v1363
        %v4149 = vunpack.c.l.b16 %v1364
        %v4150 = vunpack.c.h.b16 %v1364
        %v4151 = vunpack.c.l.b16 %v1365
        %v4152 = vunpack.c.h.b16 %v1365
        %v4153 = vunpack.c.l.b16 %v1366
        %v4154 = vunpack.c.h.b16 %v1366
        %v4155 = vunpack.c.l.b16 %v1367
        %v4156 = vunpack.c.h.b16 %v1367
        %v4157 = vunpack.c.l.b16 %v1368
        %v4158 = vunpack.c.h.b16 %v1368
        %v4159 = vunpack.c.l.b16 %v1369
        %v4160 = vunpack.c.h.b16 %v1369
        %v4161 = vunpack.c.l.b16 %v1370
        %v4162 = vunpack.c.h.b16 %v1370
        %v4163 = vunpack.c.l.b16 %v1371
        %v4164 = vunpack.c.h.b16 %v1371
        %v4165 = vunpack.c.l.b16 %v1372
        %v4166 = vunpack.c.h.b16 %v1372
        %v4167 = vunpack.c.l.b16 %v1373
        %v4168 = vunpack.c.h.b16 %v1373
        %v4169 = vunpack.c.l.b16 %v1374
        %v4170 = vunpack.c.h.b16 %v1374
        %v4171 = vunpack.c.l.b16 %v1375
        %v4172 = vunpack.c.h.b16 %v1375
        %v4173 = vunpack.c.l.b16 %v1376
        %v4174 = vunpack.c.h.b16 %v1376
        %v4175 = vunpack.c.l.b16 %v1377
        %v4176 = vunpack.c.h.b16 %v1377
        %v4177 = vunpack.c.l.b16 %v1378
        %v4178 = vunpack.c.h.b16 %v1378
        %v4179 = vunpack.c.l.b16 %v1379
        %v4180 = vunpack.c.h.b16 %v1379
        %v4181 = vunpack.c.l.b16 %v1380
        %v4182 = vunpack.c.h.b16 %v1380
        %v4183 = vunpack.c.l.b16 %v1381
        %v4184 = vunpack.c.h.b16 %v1381
        %v4185 = vunpack.c.l.b16 %v1382
        %v4186 = vunpack.c.h.b16 %v1382
        %v4187 = vunpack.c.l.b16 %v1383
        %v4188 = vunpack.c.h.b16 %v1383
        %v4189 = vunpack.c.l.b16 %v1384
        %v4190 = vunpack.c.h.b16 %v1384
        %v4191 = vunpack.c.l.b16 %v1385
        %v4192 = vunpack.c.h.b16 %v1385
        %v4193 = vunpack.c.l.b16 %v1386
        %v4194 = vunpack.c.h.b16 %v1386
        %v4195 = vunpack.c.l.b16 %v1387
        %v4196 = vunpack.c.h.b16 %v1387
        %v4197 = vunpack.c.l.b16 %v1388
        %v4198 = vunpack.c.h.b16 %v1388
        %v4199 = vunpack.c.l.b16 %v1389
        %v4200 = vunpack.c.h.b16 %v1389
        %v4201 = vunpack.c.l.b16 %v1390
        %v4202 = vunpack.c.h.b16 %v1390
        %v4203 = vunpack.c.l.b16 %v1391
        %v4204 = vunpack.c.h.b16 %v1391
        %v4205 = vunpack.c.l.b16 %v1392
        %v4206 = vunpack.c.h.b16 %v1392
        %v4207 = vunpack.c.l.b16 %v1393
        %v4208 = vunpack.c.h.b16 %v1393
        %v4209 = vunpack.c.l.b16 %v1394
        %v4210 = vunpack.c.h.b16 %v1394
        %v4211 = vunpack.c.l.b16 %v1395
        %v4212 = vunpack.c.h.b16 %v1395
        %v4213 = vunpack.c.l.b16 %v1396
        %v4214 = vunpack.c.h.b16 %v1396
        %v4215 = vunpack.c.l.b16 %v1397
        %v4216 = vunpack.c.h.b16 %v1397
        %v4217 = vunpack.c.l.b16 %v1398
        %v4218 = vunpack.c.h.b16 %v1398
        %v4219 = vunpack.c.l.b16 %v1399
        %v4220 = vunpack.c.h.b16 %v1399
        %v4221 = vunpack.c.l.b16 %v1400
        %v4222 = vunpack.c.h.b16 %v1400
        %v4223 = vunpack.c.l.b16 %v1401
        %v4224 = vunpack.c.h.b16 %v1401
        %v4225 = vunpack.c.l.b16 %v1402
        %v4226 = vunpack.c.h.b16 %v1402
        %v4227 = vunpack.c.l.b16 %v1403
        %v4228 = vunpack.c.h.b16 %v1403
        %v4229 = vunpack.c.l.b16 %v1404
        %v4230 = vunpack.c.h.b16 %v1404
        %v4231 = vunpack.c.l.b16 %v1405
        %v4232 = vunpack.c.h.b16 %v1405
        %v4233 = vunpack.c.l.b16 %v1406
        %v4234 = vunpack.c.h.b16 %v1406
        %v4235 = vunpack.c.l.b16 %v1407
        %v4236 = vunpack.c.h.b16 %v1407
        %v4237 = vunpack.c.l.b16 %v1408
        %v4238 = vunpack.c.h.b16 %v1408
        %v4239 = vunpack.c.l.b16 %v1409
        %v4240 = vunpack.c.h.b16 %v1409
        %v4241 = vunpack.c.l.b16 %v1410
        %v4242 = vunpack.c.h.b16 %v1410
        %v4243 = vunpack.c.l.b16 %v1411
        %v4244 = vunpack.c.h.b16 %v1411
        %v4245 = vunpack.c.l.b16 %v1412
        %v4246 = vunpack.c.h.b16 %v1412
        %v4247 = vunpack.c.l.b16 %v1413
        %v4248 = vunpack.c.h.b16 %v1413
        %v4249 = vunpack.c.l.b16 %v1414
        %v4250 = vunpack.c.h.b16 %v1414
        %v4251 = vunpack.c.l.b16 %v1415
        %v4252 = vunpack.c.h.b16 %v1415
        %v4253 = vunpack.c.l.b16 %v1416
        %v4254 = vunpack.c.h.b16 %v1416
        %v4255 = vunpack.c.l.b16 %v1417
        %v4256 = vunpack.c.h.b16 %v1417
        %v4257 = vunpack.c.l.b16 %v1418
        %v4258 = vunpack.c.h.b16 %v1418
        %v4259 = vunpack.c.l.b16 %v1419
        %v4260 = vunpack.c.h.b16 %v1419
        %v4261 = vunpack.c.l.b16 %v1420
        %v4262 = vunpack.c.h.b16 %v1420
        %v4263 = vunpack.c.l.b16 %v1421
        %v4264 = vunpack.c.h.b16 %v1421
        %v4265 = vunpack.c.l.b16 %v1422
        %v4266 = vunpack.c.h.b16 %v1422
        %v4267 = vunpack.c.l.b16 %v1423
        %v4268 = vunpack.c.h.b16 %v1423
        %v4269 = vunpack.c.l.b16 %v1424
        %v4270 = vunpack.c.h.b16 %v1424
        %v4271 = vunpack.c.l.b16 %v1425
        %v4272 = vunpack.c.h.b16 %v1425
        %v4273 = vunpack.c.l.b16 %v1426
        %v4274 = vunpack.c.h.b16 %v1426
        %v4275 = vunpack.c.l.b16 %v1427
        %v4276 = vunpack.c.h.b16 %v1427
        %v4277 = vunpack.c.l.b16 %v1428
        %v4278 = vunpack.c.h.b16 %v1428
        %v4279 = vunpack.c.l.b16 %v1429
        %v4280 = vunpack.c.h.b16 %v1429
        %v4281 = vunpack.c.l.b16 %v1430
        %v4282 = vunpack.c.h.b16 %v1430
        %v4283 = vunpack.c.l.b16 %v1431
        %v4284 = vunpack.c.h.b16 %v1431
        %v4285 = vunpack.c.l.b16 %v1432
        %v4286 = vunpack.c.h.b16 %v1432
        %v4287 = vunpack.c.l.b16 %v1433
        %v4288 = vunpack.c.h.b16 %v1433
        %v4289 = vunpack.c.l.b16 %v1434
        %v4290 = vunpack.c.h.b16 %v1434
        %v4291 = vunpack.c.l.b16 %v1435
        %v4292 = vunpack.c.h.b16 %v1435
        %v4293 = vunpack.c.l.b16 %v1436
        %v4294 = vunpack.c.h.b16 %v1436
        %v4295 = vunpack.c.l.b16 %v1437
        %v4296 = vunpack.c.h.b16 %v1437
        %v4297 = vunpack.c.l.b16 %v1438
        %v4298 = vunpack.c.h.b16 %v1438
        %v4299 = vunpack.c.l.b16 %v1439
        %v4300 = vunpack.c.h.b16 %v1439
        %v4301 = vunpack.c.l.b16 %v1440
        %v4302 = vunpack.c.h.b16 %v1440
        %v4303 = vunpack.c.l.b16 %v1441
        %v4304 = vunpack.c.h.b16 %v1441
        %v4305 = vunpack.c.l.b16 %v1442
        %v4306 = vunpack.c.h.b16 %v1442
        %v4307 = vunpack.c.l.b16 %v1443
        %v4308 = vunpack.c.h.b16 %v1443
        %v4309 = vunpack.c.l.b16 %v1444
        %v4310 = vunpack.c.h.b16 %v1444
        %v4311 = vunpack.c.l.b16 %v1445
        %v4312 = vunpack.c.h.b16 %v1445
        %v4313 = vunpack.c.l.b16 %v1446
        %v4314 = vunpack.c.h.b16 %v1446
        %v4315 = vunpack.c.l.b16 %v1447
        %v4316 = vunpack.c.h.b16 %v1447
        %v4317 = vunpack.c.l.b16 %v1448
        %v4318 = vunpack.c.h.b16 %v1448
        %v4319 = vunpack.c.l.b16 %v1449
        %v4320 = vunpack.c.h.b16 %v1449
        %v4321 = vunpack.c.l.b16 %v1450
        %v4322 = vunpack.c.h.b16 %v1450
        %v4323 = vunpack.c.l.b16 %v1451
        %v4324 = vunpack.c.h.b16 %v1451
        %v4325 = vunpack.c.l.b16 %v1452
        %v4326 = vunpack.c.h.b16 %v1452
        %v4327 = vunpack.c.l.b16 %v1453
        %v4328 = vunpack.c.h.b16 %v1453
        %v4329 = vunpack.c.l.b16 %v1454
        %v4330 = vunpack.c.h.b16 %v1454
        %v4331 = vunpack.c.l.b16 %v1455
        %v4332 = vunpack.c.h.b16 %v1455
        %v4333 = vunpack.c.l.b16 %v1456
        %v4334 = vunpack.c.h.b16 %v1456
        %v4335 = vunpack.c.l.b16 %v1457
        %v4336 = vunpack.c.h.b16 %v1457
        %v4337 = vunpack.c.l.b16 %v1458
        %v4338 = vunpack.c.h.b16 %v1458
        %v4339 = vunpack.c.l.b16 %v1459
        %v4340 = vunpack.c.h.b16 %v1459
        %v4341 = vunpack.c.l.b16 %v1460
        %v4342 = vunpack.c.h.b16 %v1460
        %v4343 = vunpack.c.l.b16 %v1461
        %v4344 = vunpack.c.h.b16 %v1461
        %v4345 = vunpack.c.l.b16 %v1462
        %v4346 = vunpack.c.h.b16 %v1462
        %v4347 = vunpack.c.l.b16 %v1463
        %v4348 = vunpack.c.h.b16 %v1463
        %v4349 = vunpack.c.l.b16 %v1464
        %v4350 = vunpack.c.h.b16 %v1464
        %v4351 = vunpack.c.l.b16 %v1465
        %v4352 = vunpack.c.h.b16 %v1465
        %v4353 = vunpack.c.l.b16 %v1466
        %v4354 = vunpack.c.h.b16 %v1466
        %v4355 = vunpack.c.l.b16 %v1467
        %v4356 = vunpack.c.h.b16 %v1467
        %v4357 = vunpack.c.l.b16 %v1468
        %v4358 = vunpack.c.h.b16 %v1468
        %v4359 = vunpack.c.l.b16 %v1469
        %v4360 = vunpack.c.h.b16 %v1469
        %v4361 = vunpack.c.l.b16 %v1470
        %v4362 = vunpack.c.h.b16 %v1470
        %v4363 = vunpack.c.l.b16 %v1471
        %v4364 = vunpack.c.h.b16 %v1471
        %v4365 = vunpack.c.l.b16 %v1472
        %v4366 = vunpack.c.h.b16 %v1472
        %v4367 = vunpack.c.l.b16 %v1473
        %v4368 = vunpack.c.h.b16 %v1473
        %v4369 = vunpack.c.l.b16 %v1474
        %v4370 = vunpack.c.h.b16 %v1474
        %v4371 = vunpack.c.l.b16 %v1475
        %v4372 = vunpack.c.h.b16 %v1475
        %v4373 = vunpack.c.l.b16 %v1476
        %v4374 = vunpack.c.h.b16 %v1476
        %v4375 = vunpack.c.l.b16 %v1477
        %v4376 = vunpack.c.h.b16 %v1477
        %v4377 = vunpack.c.l.b16 %v1478
        %v4378 = vunpack.c.h.b16 %v1478
        %v4379 = vunpack.c.l.b16 %v1479
        %v4380 = vunpack.c.h.b16 %v1479
        %v4381 = vunpack.c.l.b16 %v1480
        %v4382 = vunpack.c.h.b16 %v1480
        %v4383 = vunpack.c.l.b16 %v1481
        %v4384 = vunpack.c.h.b16 %v1481
        %v4385 = vunpack.c.l.b16 %v1482
        %v4386 = vunpack.c.h.b16 %v1482
        %v4387 = vunpack.c.l.b16 %v1483
        %v4388 = vunpack.c.h.b16 %v1483
        %v4389 = vunpack.c.l.b16 %v1484
        %v4390 = vunpack.c.h.b16 %v1484
        %v4391 = vunpack.c.l.b16 %v1485
        %v4392 = vunpack.c.h.b16 %v1485
        %v4393 = vunpack.c.l.b16 %v1486
        %v4394 = vunpack.c.h.b16 %v1486
        %v4395 = vunpack.c.l.b16 %v1487
        %v4396 = vunpack.c.h.b16 %v1487
        %v4397 = vunpack.c.l.b16 %v1488
        %v4398 = vunpack.c.h.b16 %v1488
        %v4399 = vunpack.c.l.b16 %v1489
        %v4400 = vunpack.c.h.b16 %v1489
        %v4401 = vunpack.c.l.b16 %v1490
        %v4402 = vunpack.c.h.b16 %v1490
        %v4403 = vunpack.c.l.b16 %v1491
        %v4404 = vunpack.c.h.b16 %v1491
        %v4405 = vunpack.c.l.b16 %v1492
        %v4406 = vunpack.c.h.b16 %v1492
        %v4407 = vunpack.c.l.b16 %v1493
        %v4408 = vunpack.c.h.b16 %v1493
        %v4409 = vunpack.c.l.b16 %v1494
        %v4410 = vunpack.c.h.b16 %v1494
        %v4411 = vunpack.c.l.b16 %v1495
        %v4412 = vunpack.c.h.b16 %v1495
        %v4413 = vunpack.c.l.b16 %v1496
        %v4414 = vunpack.c.h.b16 %v1496
        %v4415 = vunpack.c.l.b16 %v1497
        %v4416 = vunpack.c.h.b16 %v1497
        %v4417 = vunpack.c.l.b16 %v1498
        %v4418 = vunpack.c.h.b16 %v1498
        %v4419 = vunpack.c.l.b16 %v1499
        %v4420 = vunpack.c.h.b16 %v1499
        %v4421 = vunpack.c.l.b16 %v1500
        %v4422 = vunpack.c.h.b16 %v1500
        %v4423 = vunpack.c.l.b16 %v1501
        %v4424 = vunpack.c.h.b16 %v1501
        %v4425 = vunpack.c.l.b16 %v1502
        %v4426 = vunpack.c.h.b16 %v1502
        %v4427 = vunpack.c.l.b16 %v1503
        %v4428 = vunpack.c.h.b16 %v1503
        %v4429 = vunpack.c.l.b16 %v1504
        %v4430 = vunpack.c.h.b16 %v1504
        %v4431 = vunpack.c.l.b16 %v1505
        %v4432 = vunpack.c.h.b16 %v1505
        %v4433 = vunpack.c.l.b16 %v1506
        %v4434 = vunpack.c.h.b16 %v1506
        %v4435 = vunpack.c.l.b16 %v1507
        %v4436 = vunpack.c.h.b16 %v1507
        %v4437 = vunpack.c.l.b16 %v1508
        %v4438 = vunpack.c.h.b16 %v1508
        %v4439 = vunpack.c.l.b16 %v1509
        %v4440 = vunpack.c.h.b16 %v1509
        %v4441 = vunpack.c.l.b16 %v1510
        %v4442 = vunpack.c.h.b16 %v1510
        %v4443 = vunpack.c.l.b16 %v1511
        %v4444 = vunpack.c.h.b16 %v1511
        %v4445 = vunpack.c.l.b16 %v1512
        %v4446 = vunpack.c.h.b16 %v1512
        %v4447 = vunpack.c.l.b16 %v1513
        %v4448 = vunpack.c.h.b16 %v1513
        %v4449 = vunpack.c.l.b16 %v1514
        %v4450 = vunpack.c.h.b16 %v1514
        %v4451 = vunpack.c.l.b16 %v1515
        %v4452 = vunpack.c.h.b16 %v1515
        %v4453 = vunpack.c.l.b16 %v1516
        %v4454 = vunpack.c.h.b16 %v1516
        %v4455 = vunpack.c.l.b16 %v1517
        %v4456 = vunpack.c.h.b16 %v1517
        %v4457 = vunpack.c.l.b16 %v1518
        %v4458 = vunpack.c.h.b16 %v1518
        %v4459 = vunpack.c.l.b16 %v1519
        %v4460 = vunpack.c.h.b16 %v1519
        %v4461 = vunpack.c.l.b16 %v1520
        %v4462 = vunpack.c.h.b16 %v1520
        %v4463 = vunpack.c.l.b16 %v1521
        %v4464 = vunpack.c.h.b16 %v1521
        %v4465 = vunpack.c.l.b16 %v1522
        %v4466 = vunpack.c.h.b16 %v1522
        %v4467 = vunpack.c.l.b16 %v1523
        %v4468 = vunpack.c.h.b16 %v1523
        %v4469 = vunpack.c.l.b16 %v1524
        %v4470 = vunpack.c.h.b16 %v1524
        %v4471 = vunpack.c.l.b16 %v1525
        %v4472 = vunpack.c.h.b16 %v1525
        %v4473 = vunpack.c.l.b16 %v1526
        %v4474 = vunpack.c.h.b16 %v1526
        %v4475 = vunpack.c.l.b16 %v1527
        %v4476 = vunpack.c.h.b16 %v1527
        %v4477 = vunpack.c.l.b16 %v1528
        %v4478 = vunpack.c.h.b16 %v1528
        %v4479 = vunpack.c.l.b16 %v1529
        %v4480 = vunpack.c.h.b16 %v1529
        %v4481 = vunpack.c.l.b16 %v1530
        %v4482 = vunpack.c.h.b16 %v1530
        %v4483 = vunpack.c.l.b16 %v1531
        %v4484 = vunpack.c.h.b16 %v1531
        %v4485 = vunpack.c.l.b16 %v1532
        %v4486 = vunpack.c.h.b16 %v1532
        %v4487 = vunpack.c.l.b16 %v1533
        %v4488 = vunpack.c.h.b16 %v1533
        %v4489 = vunpack.c.l.b16 %v1534
        %v4490 = vunpack.c.h.b16 %v1534
        %v4491 = vunpack.c.l.b16 %v1535
        %v4492 = vunpack.c.h.b16 %v1535
        %v4493 = vunpack.c.l.b16 %v1536
        %v4494 = vunpack.c.h.b16 %v1536
        %v4495 = vunpack.c.l.b16 %v1537
        %v4496 = vunpack.c.h.b16 %v1537
        %v4497 = vunpack.c.l.b16 %v1538
        %v4498 = vunpack.c.h.b16 %v1538
        %v4499 = vunpack.c.l.b16 %v1539
        %v4500 = vunpack.c.h.b16 %v1539
        %v4501 = vunpack.c.l.b16 %v1540
        %v4502 = vunpack.c.h.b16 %v1540
        %v4503 = vunpack.c.l.b16 %v1541
        %v4504 = vunpack.c.h.b16 %v1541
        %v4505 = vunpack.c.l.b16 %v1542
        %v4506 = vunpack.c.h.b16 %v1542
        %v4507 = vunpack.c.l.b16 %v1543
        %v4508 = vunpack.c.h.b16 %v1543
        %v4509 = vunpack.c.l.b16 %v1544
        %v4510 = vunpack.c.h.b16 %v1544
        %v4511 = vunpack.c.l.b16 %v1545
        %v4512 = vunpack.c.h.b16 %v1545
        %v4513 = vunpack.c.l.b16 %v1546
        %v4514 = vunpack.c.h.b16 %v1546
        %v4515 = vunpack.c.l.b16 %v1547
        %v4516 = vunpack.c.h.b16 %v1547
        %v4517 = vunpack.c.l.b16 %v1548
        %v4518 = vunpack.c.h.b16 %v1548
        %v4519 = vunpack.c.l.b16 %v1549
        %v4520 = vunpack.c.h.b16 %v1549
        %v4521 = vunpack.c.l.b16 %v1550
        %v4522 = vunpack.c.h.b16 %v1550
        %v4523 = vunpack.c.l.b16 %v1551
        %v4524 = vunpack.c.h.b16 %v1551
        %v4525 = vunpack.c.l.b16 %v1552
        %v4526 = vunpack.c.h.b16 %v1552
        %v4527 = vunpack.c.l.b16 %v1553
        %v4528 = vunpack.c.h.b16 %v1553
        %v4529 = vunpack.c.l.b16 %v1554
        %v4530 = vunpack.c.h.b16 %v1554
        %v4531 = vunpack.c.l.b16 %v1555
        %v4532 = vunpack.c.h.b16 %v1555
        %v4533 = vunpack.c.l.b16 %v1556
        %v4534 = vunpack.c.h.b16 %v1556
        %v4535 = vunpack.c.l.b16 %v1557
        %v4536 = vunpack.c.h.b16 %v1557
        %v4537 = vunpack.c.l.b16 %v1558
        %v4538 = vunpack.c.h.b16 %v1558
        %v4539 = vunpack.c.l.b16 %v1559
        %v4540 = vunpack.c.h.b16 %v1559
        %v4541 = vunpack.c.l.b16 %v1560
        %v4542 = vunpack.c.h.b16 %v1560
        %v4543 = vunpack.c.l.b16 %v1561
        %v4544 = vunpack.c.h.b16 %v1561
        %v4545 = vunpack.c.l.b16 %v1562
        %v4546 = vunpack.c.h.b16 %v1562
        %v4547 = vunpack.c.l.b16 %v1563
        %v4548 = vunpack.c.h.b16 %v1563
        %v4549 = vunpack.c.l.b16 %v1564
        %v4550 = vunpack.c.h.b16 %v1564
        %v4551 = vunpack.c.l.b16 %v1565
        %v4552 = vunpack.c.h.b16 %v1565
        %v4553 = vunpack.c.l.b16 %v1566
        %v4554 = vunpack.c.h.b16 %v1566
        %v4555 = vunpack.c.l.b16 %v1567
        %v4556 = vunpack.c.h.b16 %v1567
        %v4557 = vunpack.c.l.b16 %v1568
        %v4558 = vunpack.c.h.b16 %v1568
        %v4559 = vunpack.c.l.b16 %v1569
        %v4560 = vunpack.c.h.b16 %v1569
        %v4561 = vunpack.c.l.b16 %v1570
        %v4562 = vunpack.c.h.b16 %v1570
        %v4563 = vunpack.c.l.b16 %v1571
        %v4564 = vunpack.c.h.b16 %v1571
        %v4565 = vunpack.c.l.b16 %v1572
        %v4566 = vunpack.c.h.b16 %v1572
        %v4567 = vunpack.c.l.b16 %v1573
        %v4568 = vunpack.c.h.b16 %v1573
        %v4569 = vunpack.c.l.b16 %v1574
        %v4570 = vunpack.c.h.b16 %v1574
        %v4571 = vunpack.c.l.b16 %v1575
        %v4572 = vunpack.c.h.b16 %v1575
        %v4573 = vunpack.c.l.b16 %v1576
        %v4574 = vunpack.c.h.b16 %v1576
        %v4575 = vunpack.c.l.b16 %v1577
        %v4576 = vunpack.c.h.b16 %v1577
        %v4577 = vunpack.c.l.b16 %v1578
        %v4578 = vunpack.c.h.b16 %v1578
        %v4579 = vunpack.c.l.b16 %v1579
        %v4580 = vunpack.c.h.b16 %v1579
        %v4581 = vunpack.c.l.b16 %v1580
        %v4582 = vunpack.c.h.b16 %v1580
        %v4583 = vunpack.c.l.b16 %v1581
        %v4584 = vunpack.c.h.b16 %v1581
        %v4585 = vunpack.c.l.b16 %v1582
        %v4586 = vunpack.c.h.b16 %v1582
        %v4587 = vunpack.c.l.b16 %v1583
        %v4588 = vunpack.c.h.b16 %v1583
        %v4589 = vunpack.c.l.b16 %v1584
        %v4590 = vunpack.c.h.b16 %v1584
        %v4591 = vunpack.c.l.b16 %v1585
        %v4592 = vunpack.c.h.b16 %v1585
        %v4593 = vunpack.c.l.b16 %v1586
        %v4594 = vunpack.c.h.b16 %v1586
        %v4595 = vunpack.c.l.b16 %v1587
        %v4596 = vunpack.c.h.b16 %v1587
        %v4597 = vunpack.c.l.b16 %v1588
        %v4598 = vunpack.c.h.b16 %v1588
        %v4599 = vunpack.c.l.b16 %v1589
        %v4600 = vunpack.c.h.b16 %v1589
        %v4601 = vunpack.c.l.b16 %v1590
        %v4602 = vunpack.c.h.b16 %v1590
        %v4603 = vunpack.c.l.b16 %v1591
        %v4604 = vunpack.c.h.b16 %v1591
        %v4605 = vunpack.c.l.b16 %v1592
        %v4606 = vunpack.c.h.b16 %v1592
        %v4607 = vunpack.c.l.b16 %v1593
        %v4608 = vunpack.c.h.b16 %v1593
        %v4609 = vunpack.c.l.b16 %v1594
        %v4610 = vunpack.c.h.b16 %v1594
        %v4611 = vunpack.c.l.b16 %v1595
        %v4612 = vunpack.c.h.b16 %v1595
        %v4613 = vunpack.c.l.b16 %v1596
        %v4614 = vunpack.c.h.b16 %v1596
        %v4615 = vunpack.c.l.b16 %v1597
        %v4616 = vunpack.c.h.b16 %v1597
        %v4617 = vunpack.c.l.b16 %v1598
        %v4618 = vunpack.c.h.b16 %v1598
        %v4619 = vunpack.c.l.b16 %v1599
        %v4620 = vunpack.c.h.b16 %v1599
        %v4621 = vunpack.c.l.b16 %v1600
        %v4622 = vunpack.c.h.b16 %v1600
        %v4623 = vunpack.c.l.b16 %v1601
        %v4624 = vunpack.c.h.b16 %v1601
        %v4625 = vunpack.c.l.b16 %v1602
        %v4626 = vunpack.c.h.b16 %v1602
        %v4627 = vunpack.c.l.b16 %v1603
        %v4628 = vunpack.c.h.b16 %v1603
        %v4629 = vunpack.c.l.b16 %v1604
        %v4630 = vunpack.c.h.b16 %v1604
        %v4631 = vunpack.c.l.b16 %v1605
        %v4632 = vunpack.c.h.b16 %v1605
        %v4633 = vunpack.c.l.b16 %v1606
        %v4634 = vunpack.c.h.b16 %v1606
        %v4635 = vunpack.c.l.b16 %v1607
        %v4636 = vunpack.c.h.b16 %v1607
        %v4637 = vunpack.c.l.b16 %v1608
        %v4638 = vunpack.c.h.b16 %v1608
        %v4639 = vunpack.c.l.b16 %v1609
        %v4640 = vunpack.c.h.b16 %v1609
        %v4641 = vunpack.c.l.b16 %v1610
        %v4642 = vunpack.c.h.b16 %v1610
        %v4643 = vunpack.c.l.b16 %v1611
        %v4644 = vunpack.c.h.b16 %v1611
        %v4645 = vunpack.c.l.b16 %v1612
        %v4646 = vunpack.c.h.b16 %v1612
        %v4647 = vunpack.c.l.b16 %v1613
        %v4648 = vunpack.c.h.b16 %v1613
        %v4649 = vunpack.c.l.b16 %v1614
        %v4650 = vunpack.c.h.b16 %v1614
        %v4651 = vunpack.c.l.b16 %v1615
        %v4652 = vunpack.c.h.b16 %v1615
        %v4653 = vunpack.c.l.b16 %v1616
        %v4654 = vunpack.c.h.b16 %v1616
        %v4655 = vunpack.c.l.b16 %v1617
        %v4656 = vunpack.c.h.b16 %v1617
        %v4657 = vunpack.c.l.b16 %v1618
        %v4658 = vunpack.c.h.b16 %v1618
        %v4659 = vunpack.c.l.b16 %v1619
        %v4660 = vunpack.c.h.b16 %v1619
        %v4661 = vunpack.c.l.b16 %v1620
        %v4662 = vunpack.c.h.b16 %v1620
        %v4663 = vunpack.c.l.b16 %v1621
        %v4664 = vunpack.c.h.b16 %v1621
        %v4665 = vunpack.c.l.b16 %v1622
        %v4666 = vunpack.c.h.b16 %v1622
        %v4667 = vunpack.c.l.b16 %v1623
        %v4668 = vunpack.c.h.b16 %v1623
        %v4669 = vunpack.c.l.b16 %v1624
        %v4670 = vunpack.c.h.b16 %v1624
        %v4671 = vunpack.c.l.b16 %v1625
        %v4672 = vunpack.c.h.b16 %v1625
        %v4673 = vunpack.c.l.b16 %v1626
        %v4674 = vunpack.c.h.b16 %v1626
        %v4675 = vunpack.c.l.b16 %v1627
        %v4676 = vunpack.c.h.b16 %v1627
        %v4677 = vunpack.c.l.b16 %v1628
        %v4678 = vunpack.c.h.b16 %v1628
        %v4679 = vunpack.c.l.b16 %v1629
        %v4680 = vunpack.c.h.b16 %v1629
        %v4681 = vunpack.c.l.b16 %v1630
        %v4682 = vunpack.c.h.b16 %v1630
        %v4683 = vunpack.c.l.b16 %v1631
        %v4684 = vunpack.c.h.b16 %v1631
        %v4685 = vunpack.c.l.b16 %v1632
        %v4686 = vunpack.c.h.b16 %v1632
        %v4687 = vunpack.c.l.b16 %v1633
        %v4688 = vunpack.c.h.b16 %v1633
        %v4689 = vunpack.c.l.b16 %v1634
        %v4690 = vunpack.c.h.b16 %v1634
        %v4691 = vunpack.c.l.b16 %v1635
        %v4692 = vunpack.c.h.b16 %v1635
        %v4693 = vunpack.c.l.b16 %v1636
        %v4694 = vunpack.c.h.b16 %v1636
        %v4695 = vunpack.c.l.b16 %v1637
        %v4696 = vunpack.c.h.b16 %v1637
        %v4697 = vunpack.c.l.b16 %v1638
        %v4698 = vunpack.c.h.b16 %v1638
        %v4699 = vunpack.c.l.b16 %v1639
        %v4700 = vunpack.c.h.b16 %v1639
        %v4701 = vunpack.c.l.b16 %v1640
        %v4702 = vunpack.c.h.b16 %v1640
        %v4703 = vunpack.c.l.b16 %v1641
        %v4704 = vunpack.c.h.b16 %v1641
        %v4705 = vunpack.c.l.b16 %v1642
        %v4706 = vunpack.c.h.b16 %v1642
        %v4707 = vunpack.c.l.b16 %v1643
        %v4708 = vunpack.c.h.b16 %v1643
        %v4709 = vunpack.c.l.b16 %v1644
        %v4710 = vunpack.c.h.b16 %v1644
        %v4711 = vunpack.c.l.b16 %v1645
        %v4712 = vunpack.c.h.b16 %v1645
        %v4713 = vunpack.c.l.b16 %v1646
        %v4714 = vunpack.c.h.b16 %v1646
        %v4715 = vunpack.c.l.b16 %v1647
        %v4716 = vunpack.c.h.b16 %v1647
        %v4717 = vunpack.c.l.b16 %v1648
        %v4718 = vunpack.c.h.b16 %v1648
        %v4719 = vunpack.c.l.b16 %v1649
        %v4720 = vunpack.c.h.b16 %v1649
        %v4721 = vunpack.c.l.b16 %v1650
        %v4722 = vunpack.c.h.b16 %v1650
        %v4723 = vunpack.c.l.b16 %v1651
        %v4724 = vunpack.c.h.b16 %v1651
        %v4725 = vunpack.c.l.b16 %v1652
        %v4726 = vunpack.c.h.b16 %v1652
        %v4727 = vunpack.c.l.b16 %v1653
        %v4728 = vunpack.c.h.b16 %v1653
        %v4729 = vunpack.c.l.b16 %v1654
        %v4730 = vunpack.c.h.b16 %v1654
        %v4731 = vunpack.c.l.b16 %v1655
        %v4732 = vunpack.c.h.b16 %v1655
        %v4733 = vunpack.c.l.b16 %v1656
        %v4734 = vunpack.c.h.b16 %v1656
        %v4735 = vunpack.c.l.b16 %v1657
        %v4736 = vunpack.c.h.b16 %v1657
        %v4737 = vunpack.c.l.b16 %v1658
        %v4738 = vunpack.c.h.b16 %v1658
        %v4739 = vunpack.c.l.b16 %v1659
        %v4740 = vunpack.c.h.b16 %v1659
        %v4741 = vunpack.c.l.b16 %v1660
        %v4742 = vunpack.c.h.b16 %v1660
        %v4743 = vunpack.c.l.b16 %v1661
        %v4744 = vunpack.c.h.b16 %v1661
        %v4745 = vunpack.c.l.b16 %v1662
        %v4746 = vunpack.c.h.b16 %v1662
        %v4747 = vunpack.c.l.b16 %v1663
        %v4748 = vunpack.c.h.b16 %v1663
        %v4749 = vunpack.c.l.b16 %v1664
        %v4750 = vunpack.c.h.b16 %v1664
        %v4751 = vunpack.c.l.b16 %v1665
        %v4752 = vunpack.c.h.b16 %v1665
        %v4753 = vunpack.c.l.b16 %v1666
        %v4754 = vunpack.c.h.b16 %v1666
        %v4755 = vunpack.c.l.b16 %v1667
        %v4756 = vunpack.c.h.b16 %v1667
        %v4757 = vunpack.c.l.b16 %v1668
        %v4758 = vunpack.c.h.b16 %v1668
        %v4759 = vpack.c.b16 %v2719, %v2711
        %v4760 = vpack.c.b16 %v2720, %v2712
        %v4761 = vpack.c.b16 %v2721, %v2713
        %v4762 = vpack.c.b16 %v2722, %v2714
        %v4763 = vpack.c.b16 %v2723, %v2715
        %v4764 = vpack.c.b16 %v2724, %v2716
        %v4765 = vpack.c.b16 %v2725, %v2717
        %v4766 = vpack.c.b16 %v2726, %v2718
        %v4767 = vpack.c.b16 %v2735, %v2727
        %v4768 = vpack.c.b16 %v2736, %v2728
        %v4769 = vpack.c.b16 %v2737, %v2729
        %v4770 = vpack.c.b16 %v2738, %v2730
        %v4771 = vpack.c.b16 %v2739, %v2731
        %v4772 = vpack.c.b16 %v2740, %v2732
        %v4773 = vpack.c.b16 %v2741, %v2733
        %v4774 = vpack.c.b16 %v2742, %v2734
        %v4775 = vpack.c.b16 %v2751, %v2743
        %v4776 = vpack.c.b16 %v2752, %v2744
        %v4777 = vpack.c.b16 %v2753, %v2745
        %v4778 = vpack.c.b16 %v2754, %v2746
        %v4779 = vpack.c.b16 %v2755, %v2747
        %v4780 = vpack.c.b16 %v2756, %v2748
        %v4781 = vpack.c.b16 %v2757, %v2749
        %v4782 = vpack.c.b16 %v2758, %v2750
        %v4783 = vpack.c.b16 %v2767, %v2759
        %v4784 = vpack.c.b16 %v2768, %v2760
        %v4785 = vpack.c.b16 %v2769, %v2761
        %v4786 = vpack.c.b16 %v2770, %v2762
        %v4787 = vpack.c.b16 %v2771, %v2763
        %v4788 = vpack.c.b16 %v2772, %v2764
        %v4789 = vpack.c.b16 %v2773, %v2765
        %v4790 = vpack.c.b16 %v2774, %v2766
        %v4791 = vpack.c.b16 %v2783, %v2775
        %v4792 = vpack.c.b16 %v2784, %v2776
        %v4793 = vpack.c.b16 %v2785, %v2777
        %v4794 = vpack.c.b16 %v2786, %v2778
        %v4795 = vpack.c.b16 %v2787, %v2779
        %v4796 = vpack.c.b16 %v2788, %v2780
        %v4797 = vpack.c.b16 %v2789, %v2781
        %v4798 = vpack.c.b16 %v2790, %v2782
        %v4799 = vpack.c.b16 %v2799, %v2791
        %v4800 = vpack.c.b16 %v2800, %v2792
        %v4801 = vpack.c.b16 %v2801, %v2793
        %v4802 = vpack.c.b16 %v2802, %v2794
        %v4803 = vpack.c.b16 %v2803, %v2795
        %v4804 = vpack.c.b16 %v2804, %v2796
        %v4805 = vpack.c.b16 %v2805, %v2797
        %v4806 = vpack.c.b16 %v2806, %v2798
        %v4807 = vpack.c.b16 %v2815, %v2807
        %v4808 = vpack.c.b16 %v2816, %v2808
        %v4809 = vpack.c.b16 %v2817, %v2809
        %v4810 = vpack.c.b16 %v2818, %v2810
        %v4811 = vpack.c.b16 %v2819, %v2811
        %v4812 = vpack.c.b16 %v2820, %v2812
        %v4813 = vpack.c.b16 %v2821, %v2813
        %v4814 = vpack.c.b16 %v2822, %v2814
        %v4815 = vpack.c.b16 %v2831, %v2823
        %v4816 = vpack.c.b16 %v2832, %v2824
        %v4817 = vpack.c.b16 %v2833, %v2825
        %v4818 = vpack.c.b16 %v2834, %v2826
        %v4819 = vpack.c.b16 %v2835, %v2827
        %v4820 = vpack.c.b16 %v2836, %v2828
        %v4821 = vpack.c.b16 %v2837, %v2829
        %v4822 = vpack.c.b16 %v2838, %v2830
        %v4823 = vpack.c.b16 %v2847, %v2839
        %v4824 = vpack.c.b16 %v2848, %v2840
        %v4825 = vpack.c.b16 %v2849, %v2841
        %v4826 = vpack.c.b16 %v2850, %v2842
        %v4827 = vpack.c.b16 %v2851, %v2843
        %v4828 = vpack.c.b16 %v2852, %v2844
        %v4829 = vpack.c.b16 %v2853, %v2845
        %v4830 = vpack.c.b16 %v2854, %v2846
        %v4831 = vpack.c.b16 %v2863, %v2855
        %v4832 = vpack.c.b16 %v2864, %v2856
        %v4833 = vpack.c.b16 %v2865, %v2857
        %v4834 = vpack.c.b16 %v2866, %v2858
        %v4835 = vpack.c.b16 %v2867, %v2859
        %v4836 = vpack.c.b16 %v2868, %v2860
        %v4837 = vpack.c.b16 %v2869, %v2861
        %v4838 = vpack.c.b16 %v2870, %v2862
        %v4839 = vpack.c.b16 %v2879, %v2871
        %v4840 = vpack.c.b16 %v2880, %v2872
        %v4841 = vpack.c.b16 %v2881, %v2873
        %v4842 = vpack.c.b16 %v2882, %v2874
        %v4843 = vpack.c.b16 %v2883, %v2875
        %v4844 = vpack.c.b16 %v2884, %v2876
        %v4845 = vpack.c.b16 %v2885, %v2877
        %v4846 = vpack.c.b16 %v2886, %v2878
        %v4847 = vpack.c.b16 %v2895, %v2887
        %v4848 = vpack.c.b16 %v2896, %v2888
        %v4849 = vpack.c.b16 %v2897, %v2889
        %v4850 = vpack.c.b16 %v2898, %v2890
        %v4851 = vpack.c.b16 %v2899, %v2891
        %v4852 = vpack.c.b16 %v2900, %v2892
        %v4853 = vpack.c.b16 %v2901, %v2893
        %v4854 = vpack.c.b16 %v2902, %v2894
        %v4855 = vpack.c.b16 %v2911, %v2903
        %v4856 = vpack.c.b16 %v2912, %v2904
        %v4857 = vpack.c.b16 %v2913, %v2905
        %v4858 = vpack.c.b16 %v2914, %v2906
        %v4859 = vpack.c.b16 %v2915, %v2907
        %v4860 = vpack.c.b16 %v2916, %v2908
        %v4861 = vpack.c.b16 %v2917, %v2909
        %v4862 = vpack.c.b16 %v2918, %v2910
        %v4863 = vpack.c.b16 %v2927, %v2919
        %v4864 = vpack.c.b16 %v2928, %v2920
        %v4865 = vpack.c.b16 %v2929, %v2921
        %v4866 = vpack.c.b16 %v2930, %v2922
        %v4867 = vpack.c.b16 %v2931, %v2923
        %v4868 = vpack.c.b16 %v2932, %v2924
        %v4869 = vpack.c.b16 %v2933, %v2925
        %v4870 = vpack.c.b16 %v2934, %v2926
        %v4871 = vpack.c.b16 %v2943, %v2935
        %v4872 = vpack.c.b16 %v2944, %v2936
        %v4873 = vpack.c.b16 %v2945, %v2937
        %v4874 = vpack.c.b16 %v2946, %v2938
        %v4875 = vpack.c.b16 %v2947, %v2939
        %v4876 = vpack.c.b16 %v2948, %v2940
        %v4877 = vpack.c.b16 %v2949, %v2941
        %v4878 = vpack.c.b16 %v2950, %v2942
        %v4879 = vpack.c.b16 %v2959, %v2951
        %v4880 = vpack.c.b16 %v2960, %v2952
        %v4881 = vpack.c.b16 %v2961, %v2953
        %v4882 = vpack.c.b16 %v2962, %v2954
        %v4883 = vpack.c.b16 %v2963, %v2955
        %v4884 = vpack.c.b16 %v2964, %v2956
        %v4885 = vpack.c.b16 %v2965, %v2957
        %v4886 = vpack.c.b16 %v2966, %v2958
        %v4887 = vpack.c.b16 %v2975, %v2967
        %v4888 = vpack.c.b16 %v2976, %v2968
        %v4889 = vpack.c.b16 %v2977, %v2969
        %v4890 = vpack.c.b16 %v2978, %v2970
        %v4891 = vpack.c.b16 %v2979, %v2971
        %v4892 = vpack.c.b16 %v2980, %v2972
        %v4893 = vpack.c.b16 %v2981, %v2973
        %v4894 = vpack.c.b16 %v2982, %v2974
        %v4895 = vpack.c.b16 %v2991, %v2983
        %v4896 = vpack.c.b16 %v2992, %v2984
        %v4897 = vpack.c.b16 %v2993, %v2985
        %v4898 = vpack.c.b16 %v2994, %v2986
        %v4899 = vpack.c.b16 %v2995, %v2987
        %v4900 = vpack.c.b16 %v2996, %v2988
        %v4901 = vpack.c.b16 %v2997, %v2989
        %v4902 = vpack.c.b16 %v2998, %v2990
        %v4903 = vpack.c.b16 %v3007, %v2999
        %v4904 = vpack.c.b16 %v3008, %v3000
        %v4905 = vpack.c.b16 %v3009, %v3001
        %v4906 = vpack.c.b16 %v3010, %v3002
        %v4907 = vpack.c.b16 %v3011, %v3003
        %v4908 = vpack.c.b16 %v3012, %v3004
        %v4909 = vpack.c.b16 %v3013, %v3005
        %v4910 = vpack.c.b16 %v3014, %v3006
        %v4911 = vpack.c.b16 %v3023, %v3015
        %v4912 = vpack.c.b16 %v3024, %v3016
        %v4913 = vpack.c.b16 %v3025, %v3017
        %v4914 = vpack.c.b16 %v3026, %v3018
        %v4915 = vpack.c.b16 %v3027, %v3019
        %v4916 = vpack.c.b16 %v3028, %v3020
        %v4917 = vpack.c.b16 %v3029, %v3021
        %v4918 = vpack.c.b16 %v3030, %v3022
        %v4919 = vpack.c.b16 %v3039, %v3031
        %v4920 = vpack.c.b16 %v3040, %v3032
        %v4921 = vpack.c.b16 %v3041, %v3033
        %v4922 = vpack.c.b16 %v3042, %v3034
        %v4923 = vpack.c.b16 %v3043, %v3035
        %v4924 = vpack.c.b16 %v3044, %v3036
        %v4925 = vpack.c.b16 %v3045, %v3037
        %v4926 = vpack.c.b16 %v3046, %v3038
        %v4927 = vpack.c.b16 %v3055, %v3047
        %v4928 = vpack.c.b16 %v3056, %v3048
        %v4929 = vpack.c.b16 %v3057, %v3049
        %v4930 = vpack.c.b16 %v3058, %v3050
        %v4931 = vpack.c.b16 %v3059, %v3051
        %v4932 = vpack.c.b16 %v3060, %v3052
        %v4933 = vpack.c.b16 %v3061, %v3053
        %v4934 = vpack.c.b16 %v3062, %v3054
        %v4935 = vpack.c.b16 %v3071, %v3063
        %v4936 = vpack.c.b16 %v3072, %v3064
        %v4937 = vpack.c.b16 %v3073, %v3065
        %v4938 = vpack.c.b16 %v3074, %v3066
        %v4939 = vpack.c.b16 %v3075, %v3067
        %v4940 = vpack.c.b16 %v3076, %v3068
        %v4941 = vpack.c.b16 %v3077, %v3069
        %v4942 = vpack.c.b16 %v3078, %v3070
        %v4943 = vpack.c.b16 %v3087, %v3079
        %v4944 = vpack.c.b16 %v3088, %v3080
        %v4945 = vpack.c.b16 %v3089, %v3081
        %v4946 = vpack.c.b16 %v3090, %v3082
        %v4947 = vpack.c.b16 %v3091, %v3083
        %v4948 = vpack.c.b16 %v3092, %v3084
        %v4949 = vpack.c.b16 %v3093, %v3085
        %v4950 = vpack.c.b16 %v3094, %v3086
        %v4951 = vpack.c.b16 %v3103, %v3095
        %v4952 = vpack.c.b16 %v3104, %v3096
        %v4953 = vpack.c.b16 %v3105, %v3097
        %v4954 = vpack.c.b16 %v3106, %v3098
        %v4955 = vpack.c.b16 %v3107, %v3099
        %v4956 = vpack.c.b16 %v3108, %v3100
        %v4957 = vpack.c.b16 %v3109, %v3101
        %v4958 = vpack.c.b16 %v3110, %v3102
        %v4959 = vpack.c.b16 %v3119, %v3111
        %v4960 = vpack.c.b16 %v3120, %v3112
        %v4961 = vpack.c.b16 %v3121, %v3113
        %v4962 = vpack.c.b16 %v3122, %v3114
        %v4963 = vpack.c.b16 %v3123, %v3115
        %v4964 = vpack.c.b16 %v3124, %v3116
        %v4965 = vpack.c.b16 %v3125, %v3117
        %v4966 = vpack.c.b16 %v3126, %v3118
        %v4967 = vpack.c.b16 %v3135, %v3127
        %v4968 = vpack.c.b16 %v3136, %v3128
        %v4969 = vpack.c.b16 %v3137, %v3129
        %v4970 = vpack.c.b16 %v3138, %v3130
        %v4971 = vpack.c.b16 %v3139, %v3131
        %v4972 = vpack.c.b16 %v3140, %v3132
        %v4973 = vpack.c.b16 %v3141, %v3133
        %v4974 = vpack.c.b16 %v3142, %v3134
        %v4975 = vpack.c.b16 %v3151, %v3143
        %v4976 = vpack.c.b16 %v3152, %v3144
        %v4977 = vpack.c.b16 %v3153, %v3145
        %v4978 = vpack.c.b16 %v3154, %v3146
        %v4979 = vpack.c.b16 %v3155, %v3147
        %v4980 = vpack.c.b16 %v3156, %v3148
        %v4981 = vpack.c.b16 %v3157, %v3149
        %v4982 = vpack.c.b16 %v3158, %v3150
        %v4983 = vpack.c.b16 %v3167, %v3159
        %v4984 = vpack.c.b16 %v3168, %v3160
        %v4985 = vpack.c.b16 %v3169, %v3161
        %v4986 = vpack.c.b16 %v3170, %v3162
        %v4987 = vpack.c.b16 %v3171, %v3163
        %v4988 = vpack.c.b16 %v3172, %v3164
        %v4989 = vpack.c.b16 %v3173, %v3165
        %v4990 = vpack.c.b16 %v3174, %v3166
        %v4991 = vpack.c.b16 %v3183, %v3175
        %v4992 = vpack.c.b16 %v3184, %v3176
        %v4993 = vpack.c.b16 %v3185, %v3177
        %v4994 = vpack.c.b16 %v3186, %v3178
        %v4995 = vpack.c.b16 %v3187, %v3179
        %v4996 = vpack.c.b16 %v3188, %v3180
        %v4997 = vpack.c.b16 %v3189, %v3181
        %v4998 = vpack.c.b16 %v3190, %v3182
        %v4999 = vpack.c.b16 %v3199, %v3191
        %v5000 = vpack.c.b16 %v3200, %v3192
        %v5001 = vpack.c.b16 %v3201, %v3193
        %v5002 = vpack.c.b16 %v3202, %v3194
        %v5003 = vpack.c.b16 %v3203, %v3195
        %v5004 = vpack.c.b16 %v3204, %v3196
        %v5005 = vpack.c.b16 %v3205, %v3197
        %v5006 = vpack.c.b16 %v3206, %v3198
        %v5007 = vpack.c.b16 %v3215, %v3207
        %v5008 = vpack.c.b16 %v3216, %v3208
        %v5009 = vpack.c.b16 %v3217, %v3209
        %v5010 = vpack.c.b16 %v3218, %v3210
        %v5011 = vpack.c.b16 %v3219, %v3211
        %v5012 = vpack.c.b16 %v3220, %v3212
        %v5013 = vpack.c.b16 %v3221, %v3213
        %v5014 = vpack.c.b16 %v3222, %v3214
        %v5015 = vpack.c.b16 %v3231, %v3223
        %v5016 = vpack.c.b16 %v3232, %v3224
        %v5017 = vpack.c.b16 %v3233, %v3225
        %v5018 = vpack.c.b16 %v3234, %v3226
        %v5019 = vpack.c.b16 %v3235, %v3227
        %v5020 = vpack.c.b16 %v3236, %v3228
        %v5021 = vpack.c.b16 %v3237, %v3229
        %v5022 = vpack.c.b16 %v3238, %v3230
        %v5023 = vpack.c.b16 %v3247, %v3239
        %v5024 = vpack.c.b16 %v3248, %v3240
        %v5025 = vpack.c.b16 %v3249, %v3241
        %v5026 = vpack.c.b16 %v3250, %v3242
        %v5027 = vpack.c.b16 %v3251, %v3243
        %v5028 = vpack.c.b16 %v3252, %v3244
        %v5029 = vpack.c.b16 %v3253, %v3245
        %v5030 = vpack.c.b16 %v3254, %v3246
        %v5031 = vpack.c.b16 %v3263, %v3255
        %v5032 = vpack.c.b16 %v3264, %v3256
        %v5033 = vpack.c.b16 %v3265, %v3257
        %v5034 = vpack.c.b16 %v3266, %v3258
        %v5035 = vpack.c.b16 %v3267, %v3259
        %v5036 = vpack.c.b16 %v3268, %v3260
        %v5037 = vpack.c.b16 %v3269, %v3261
        %v5038 = vpack.c.b16 %v3270, %v3262
        %v5039 = vpack.c.b16 %v3279, %v3271
        %v5040 = vpack.c.b16 %v3280, %v3272
        %v5041 = vpack.c.b16 %v3281, %v3273
        %v5042 = vpack.c.b16 %v3282, %v3274
        %v5043 = vpack.c.b16 %v3283, %v3275
        %v5044 = vpack.c.b16 %v3284, %v3276
        %v5045 = vpack.c.b16 %v3285, %v3277
        %v5046 = vpack.c.b16 %v3286, %v3278
        %v5047 = vpack.c.b16 %v3295, %v3287
        %v5048 = vpack.c.b16 %v3296, %v3288
        %v5049 = vpack.c.b16 %v3297, %v3289
        %v5050 = vpack.c.b16 %v3298, %v3290
        %v5051 = vpack.c.b16 %v3299, %v3291
        %v5052 = vpack.c.b16 %v3300, %v3292
        %v5053 = vpack.c.b16 %v3301, %v3293
        %v5054 = vpack.c.b16 %v3302, %v3294
        %v5055 = vpack.c.b16 %v3311, %v3303
        %v5056 = vpack.c.b16 %v3312, %v3304
        %v5057 = vpack.c.b16 %v3313, %v3305
        %v5058 = vpack.c.b16 %v3314, %v3306
        %v5059 = vpack.c.b16 %v3315, %v3307
        %v5060 = vpack.c.b16 %v3316, %v3308
        %v5061 = vpack.c.b16 %v3317, %v3309
        %v5062 = vpack.c.b16 %v3318, %v3310
        %v5063 = vpack.c.b16 %v3327, %v3319
        %v5064 = vpack.c.b16 %v3328, %v3320
        %v5065 = vpack.c.b16 %v3329, %v3321
        %v5066 = vpack.c.b16 %v3330, %v3322
        %v5067 = vpack.c.b16 %v3331, %v3323
        %v5068 = vpack.c.b16 %v3332, %v3324
        %v5069 = vpack.c.b16 %v3333, %v3325
        %v5070 = vpack.c.b16 %v3334, %v3326
        %v5071 = vpack.c.b16 %v3343, %v3335
        %v5072 = vpack.c.b16 %v3344, %v3336
        %v5073 = vpack.c.b16 %v3345, %v3337
        %v5074 = vpack.c.b16 %v3346, %v3338
        %v5075 = vpack.c.b16 %v3347, %v3339
        %v5076 = vpack.c.b16 %v3348, %v3340
        %v5077 = vpack.c.b16 %v3349, %v3341
        %v5078 = vpack.c.b16 %v3350, %v3342
        %v5079 = vpack.c.b16 %v3359, %v3351
        %v5080 = vpack.c.b16 %v3360, %v3352
        %v5081 = vpack.c.b16 %v3361, %v3353
        %v5082 = vpack.c.b16 %v3362, %v3354
        %v5083 = vpack.c.b16 %v3363, %v3355
        %v5084 = vpack.c.b16 %v3364, %v3356
        %v5085 = vpack.c.b16 %v3365, %v3357
        %v5086 = vpack.c.b16 %v3366, %v3358
        %v5087 = vpack.c.b16 %v3375, %v3367
        %v5088 = vpack.c.b16 %v3376, %v3368
        %v5089 = vpack.c.b16 %v3377, %v3369
        %v5090 = vpack.c.b16 %v3378, %v3370
        %v5091 = vpack.c.b16 %v3379, %v3371
        %v5092 = vpack.c.b16 %v3380, %v3372
        %v5093 = vpack.c.b16 %v3381, %v3373
        %v5094 = vpack.c.b16 %v3382, %v3374
        %v5095 = vpack.c.b16 %v3391, %v3383
        %v5096 = vpack.c.b16 %v3392, %v3384
        %v5097 = vpack.c.b16 %v3393, %v3385
        %v5098 = vpack.c.b16 %v3394, %v3386
        %v5099 = vpack.c.b16 %v3395, %v3387
        %v5100 = vpack.c.b16 %v3396, %v3388
        %v5101 = vpack.c.b16 %v3397, %v3389
        %v5102 = vpack.c.b16 %v3398, %v3390
        %v5103 = vpack.c.b16 %v3407, %v3399
        %v5104 = vpack.c.b16 %v3408, %v3400
        %v5105 = vpack.c.b16 %v3409, %v3401
        %v5106 = vpack.c.b16 %v3410, %v3402
        %v5107 = vpack.c.b16 %v3411, %v3403
        %v5108 = vpack.c.b16 %v3412, %v3404
        %v5109 = vpack.c.b16 %v3413, %v3405
        %v5110 = vpack.c.b16 %v3414, %v3406
        %v5111 = vpack.c.b16 %v3423, %v3415
        %v5112 = vpack.c.b16 %v3424, %v3416
        %v5113 = vpack.c.b16 %v3425, %v3417
        %v5114 = vpack.c.b16 %v3426, %v3418
        %v5115 = vpack.c.b16 %v3427, %v3419
        %v5116 = vpack.c.b16 %v3428, %v3420
        %v5117 = vpack.c.b16 %v3429, %v3421
        %v5118 = vpack.c.b16 %v3430, %v3422
        %v5119 = vpack.c.b16 %v3439, %v3431
        %v5120 = vpack.c.b16 %v3440, %v3432
        %v5121 = vpack.c.b16 %v3441, %v3433
        %v5122 = vpack.c.b16 %v3442, %v3434
        %v5123 = vpack.c.b16 %v3443, %v3435
        %v5124 = vpack.c.b16 %v3444, %v3436
        %v5125 = vpack.c.b16 %v3445, %v3437
        %v5126 = vpack.c.b16 %v3446, %v3438
        %v5127 = vpack.c.b16 %v3455, %v3447
        %v5128 = vpack.c.b16 %v3456, %v3448
        %v5129 = vpack.c.b16 %v3457, %v3449
        %v5130 = vpack.c.b16 %v3458, %v3450
        %v5131 = vpack.c.b16 %v3459, %v3451
        %v5132 = vpack.c.b16 %v3460, %v3452
        %v5133 = vpack.c.b16 %v3461, %v3453
        %v5134 = vpack.c.b16 %v3462, %v3454
        %v5135 = vpack.c.b16 %v3471, %v3463
        %v5136 = vpack.c.b16 %v3472, %v3464
        %v5137 = vpack.c.b16 %v3473, %v3465
        %v5138 = vpack.c.b16 %v3474, %v3466
        %v5139 = vpack.c.b16 %v3475, %v3467
        %v5140 = vpack.c.b16 %v3476, %v3468
        %v5141 = vpack.c.b16 %v3477, %v3469
        %v5142 = vpack.c.b16 %v3478, %v3470
        %v5143 = vpack.c.b16 %v3487, %v3479
        %v5144 = vpack.c.b16 %v3488, %v3480
        %v5145 = vpack.c.b16 %v3489, %v3481
        %v5146 = vpack.c.b16 %v3490, %v3482
        %v5147 = vpack.c.b16 %v3491, %v3483
        %v5148 = vpack.c.b16 %v3492, %v3484
        %v5149 = vpack.c.b16 %v3493, %v3485
        %v5150 = vpack.c.b16 %v3494, %v3486
        %v5151 = vpack.c.b16 %v3503, %v3495
        %v5152 = vpack.c.b16 %v3504, %v3496
        %v5153 = vpack.c.b16 %v3505, %v3497
        %v5154 = vpack.c.b16 %v3506, %v3498
        %v5155 = vpack.c.b16 %v3507, %v3499
        %v5156 = vpack.c.b16 %v3508, %v3500
        %v5157 = vpack.c.b16 %v3509, %v3501
        %v5158 = vpack.c.b16 %v3510, %v3502
        %v5159 = vpack.c.b16 %v3519, %v3511
        %v5160 = vpack.c.b16 %v3520, %v3512
        %v5161 = vpack.c.b16 %v3521, %v3513
        %v5162 = vpack.c.b16 %v3522, %v3514
        %v5163 = vpack.c.b16 %v3523, %v3515
        %v5164 = vpack.c.b16 %v3524, %v3516
        %v5165 = vpack.c.b16 %v3525, %v3517
        %v5166 = vpack.c.b16 %v3526, %v3518
        %v5167 = vpack.c.b16 %v3535, %v3527
        %v5168 = vpack.c.b16 %v3536, %v3528
        %v5169 = vpack.c.b16 %v3537, %v3529
        %v5170 = vpack.c.b16 %v3538, %v3530
        %v5171 = vpack.c.b16 %v3539, %v3531
        %v5172 = vpack.c.b16 %v3540, %v3532
        %v5173 = vpack.c.b16 %v3541, %v3533
        %v5174 = vpack.c.b16 %v3542, %v3534
        %v5175 = vpack.c.b16 %v3551, %v3543
        %v5176 = vpack.c.b16 %v3552, %v3544
        %v5177 = vpack.c.b16 %v3553, %v3545
        %v5178 = vpack.c.b16 %v3554, %v3546
        %v5179 = vpack.c.b16 %v3555, %v3547
        %v5180 = vpack.c.b16 %v3556, %v3548
        %v5181 = vpack.c.b16 %v3557, %v3549
        %v5182 = vpack.c.b16 %v3558, %v3550
        %v5183 = vpack.c.b16 %v3567, %v3559
        %v5184 = vpack.c.b16 %v3568, %v3560
        %v5185 = vpack.c.b16 %v3569, %v3561
        %v5186 = vpack.c.b16 %v3570, %v3562
        %v5187 = vpack.c.b16 %v3571, %v3563
        %v5188 = vpack.c.b16 %v3572, %v3564
        %v5189 = vpack.c.b16 %v3573, %v3565
        %v5190 = vpack.c.b16 %v3574, %v3566
        %v5191 = vpack.c.b16 %v3583, %v3575
        %v5192 = vpack.c.b16 %v3584, %v3576
        %v5193 = vpack.c.b16 %v3585, %v3577
        %v5194 = vpack.c.b16 %v3586, %v3578
        %v5195 = vpack.c.b16 %v3587, %v3579
        %v5196 = vpack.c.b16 %v3588, %v3580
        %v5197 = vpack.c.b16 %v3589, %v3581
        %v5198 = vpack.c.b16 %v3590, %v3582
        %v5199 = vpack.c.b16 %v3599, %v3591
        %v5200 = vpack.c.b16 %v3600, %v3592
        %v5201 = vpack.c.b16 %v3601, %v3593
        %v5202 = vpack.c.b16 %v3602, %v3594
        %v5203 = vpack.c.b16 %v3603, %v3595
        %v5204 = vpack.c.b16 %v3604, %v3596
        %v5205 = vpack.c.b16 %v3605, %v3597
        %v5206 = vpack.c.b16 %v3606, %v3598
        %v5207 = vpack.c.b16 %v3615, %v3607
        %v5208 = vpack.c.b16 %v3616, %v3608
        %v5209 = vpack.c.b16 %v3617, %v3609
        %v5210 = vpack.c.b16 %v3618, %v3610
        %v5211 = vpack.c.b16 %v3619, %v3611
        %v5212 = vpack.c.b16 %v3620, %v3612
        %v5213 = vpack.c.b16 %v3621, %v3613
        %v5214 = vpack.c.b16 %v3622, %v3614
        %v5215 = vpack.c.b16 %v3631, %v3623
        %v5216 = vpack.c.b16 %v3632, %v3624
        %v5217 = vpack.c.b16 %v3633, %v3625
        %v5218 = vpack.c.b16 %v3634, %v3626
        %v5219 = vpack.c.b16 %v3635, %v3627
        %v5220 = vpack.c.b16 %v3636, %v3628
        %v5221 = vpack.c.b16 %v3637, %v3629
        %v5222 = vpack.c.b16 %v3638, %v3630
        %v5223 = vpack.c.b16 %v3647, %v3639
        %v5224 = vpack.c.b16 %v3648, %v3640
        %v5225 = vpack.c.b16 %v3649, %v3641
        %v5226 = vpack.c.b16 %v3650, %v3642
        %v5227 = vpack.c.b16 %v3651, %v3643
        %v5228 = vpack.c.b16 %v3652, %v3644
        %v5229 = vpack.c.b16 %v3653, %v3645
        %v5230 = vpack.c.b16 %v3654, %v3646
        %v5231 = vpack.c.b16 %v3663, %v3655
        %v5232 = vpack.c.b16 %v3664, %v3656
        %v5233 = vpack.c.b16 %v3665, %v3657
        %v5234 = vpack.c.b16 %v3666, %v3658
        %v5235 = vpack.c.b16 %v3667, %v3659
        %v5236 = vpack.c.b16 %v3668, %v3660
        %v5237 = vpack.c.b16 %v3669, %v3661
        %v5238 = vpack.c.b16 %v3670, %v3662
        %v5239 = vpack.c.b16 %v3679, %v3671
        %v5240 = vpack.c.b16 %v3680, %v3672
        %v5241 = vpack.c.b16 %v3681, %v3673
        %v5242 = vpack.c.b16 %v3682, %v3674
        %v5243 = vpack.c.b16 %v3683, %v3675
        %v5244 = vpack.c.b16 %v3684, %v3676
        %v5245 = vpack.c.b16 %v3685, %v3677
        %v5246 = vpack.c.b16 %v3686, %v3678
        %v5247 = vpack.c.b16 %v3695, %v3687
        %v5248 = vpack.c.b16 %v3696, %v3688
        %v5249 = vpack.c.b16 %v3697, %v3689
        %v5250 = vpack.c.b16 %v3698, %v3690
        %v5251 = vpack.c.b16 %v3699, %v3691
        %v5252 = vpack.c.b16 %v3700, %v3692
        %v5253 = vpack.c.b16 %v3701, %v3693
        %v5254 = vpack.c.b16 %v3702, %v3694
        %v5255 = vpack.c.b16 %v3711, %v3703
        %v5256 = vpack.c.b16 %v3712, %v3704
        %v5257 = vpack.c.b16 %v3713, %v3705
        %v5258 = vpack.c.b16 %v3714, %v3706
        %v5259 = vpack.c.b16 %v3715, %v3707
        %v5260 = vpack.c.b16 %v3716, %v3708
        %v5261 = vpack.c.b16 %v3717, %v3709
        %v5262 = vpack.c.b16 %v3718, %v3710
        %v5263 = vpack.c.b16 %v3727, %v3719
        %v5264 = vpack.c.b16 %v3728, %v3720
        %v5265 = vpack.c.b16 %v3729, %v3721
        %v5266 = vpack.c.b16 %v3730, %v3722
        %v5267 = vpack.c.b16 %v3731, %v3723
        %v5268 = vpack.c.b16 %v3732, %v3724
        %v5269 = vpack.c.b16 %v3733, %v3725
        %v5270 = vpack.c.b16 %v3734, %v3726
        %v5271 = vpack.c.b16 %v3743, %v3735
        %v5272 = vpack.c.b16 %v3744, %v3736
        %v5273 = vpack.c.b16 %v3745, %v3737
        %v5274 = vpack.c.b16 %v3746, %v3738
        %v5275 = vpack.c.b16 %v3747, %v3739
        %v5276 = vpack.c.b16 %v3748, %v3740
        %v5277 = vpack.c.b16 %v3749, %v3741
        %v5278 = vpack.c.b16 %v3750, %v3742
        %v5279 = vpack.c.b16 %v3759, %v3751
        %v5280 = vpack.c.b16 %v3760, %v3752
        %v5281 = vpack.c.b16 %v3761, %v3753
        %v5282 = vpack.c.b16 %v3762, %v3754
        %v5283 = vpack.c.b16 %v3763, %v3755
        %v5284 = vpack.c.b16 %v3764, %v3756
        %v5285 = vpack.c.b16 %v3765, %v3757
        %v5286 = vpack.c.b16 %v3766, %v3758
        %v5287 = vpack.c.b16 %v3775, %v3767
        %v5288 = vpack.c.b16 %v3776, %v3768
        %v5289 = vpack.c.b16 %v3777, %v3769
        %v5290 = vpack.c.b16 %v3778, %v3770
        %v5291 = vpack.c.b16 %v3779, %v3771
        %v5292 = vpack.c.b16 %v3780, %v3772
        %v5293 = vpack.c.b16 %v3781, %v3773
        %v5294 = vpack.c.b16 %v3782, %v3774
        %v5295 = vpack.c.b16 %v3791, %v3783
        %v5296 = vpack.c.b16 %v3792, %v3784
        %v5297 = vpack.c.b16 %v3793, %v3785
        %v5298 = vpack.c.b16 %v3794, %v3786
        %v5299 = vpack.c.b16 %v3795, %v3787
        %v5300 = vpack.c.b16 %v3796, %v3788
        %v5301 = vpack.c.b16 %v3797, %v3789
        %v5302 = vpack.c.b16 %v3798, %v3790
        %v5303 = vpack.c.b16 %v3807, %v3799
        %v5304 = vpack.c.b16 %v3808, %v3800
        %v5305 = vpack.c.b16 %v3809, %v3801
        %v5306 = vpack.c.b16 %v3810, %v3802
        %v5307 = vpack.c.b16 %v3811, %v3803
        %v5308 = vpack.c.b16 %v3812, %v3804
        %v5309 = vpack.c.b16 %v3813, %v3805
        %v5310 = vpack.c.b16 %v3814, %v3806
        %v5311 = vpack.c.b16 %v3823, %v3815
        %v5312 = vpack.c.b16 %v3824, %v3816
        %v5313 = vpack.c.b16 %v3825, %v3817
        %v5314 = vpack.c.b16 %v3826, %v3818
        %v5315 = vpack.c.b16 %v3827, %v3819
        %v5316 = vpack.c.b16 %v3828, %v3820
        %v5317 = vpack.c.b16 %v3829, %v3821
        %v5318 = vpack.c.b16 %v3830, %v3822
        %v5319 = vpack.c.b16 %v3839, %v3831
        %v5320 = vpack.c.b16 %v3840, %v3832
        %v5321 = vpack.c.b16 %v3841, %v3833
        %v5322 = vpack.c.b16 %v3842, %v3834
        %v5323 = vpack.c.b16 %v3843, %v3835
        %v5324 = vpack.c.b16 %v3844, %v3836
        %v5325 = vpack.c.b16 %v3845, %v3837
        %v5326 = vpack.c.b16 %v3846, %v3838
        %v5327 = vpack.c.b16 %v3855, %v3847
        %v5328 = vpack.c.b16 %v3856, %v3848
        %v5329 = vpack.c.b16 %v3857, %v3849
        %v5330 = vpack.c.b16 %v3858, %v3850
        %v5331 = vpack.c.b16 %v3859, %v3851
        %v5332 = vpack.c.b16 %v3860, %v3852
        %v5333 = vpack.c.b16 %v3861, %v3853
        %v5334 = vpack.c.b16 %v3862, %v3854
        %v5335 = vpack.c.b16 %v3871, %v3863
        %v5336 = vpack.c.b16 %v3872, %v3864
        %v5337 = vpack.c.b16 %v3873, %v3865
        %v5338 = vpack.c.b16 %v3874, %v3866
        %v5339 = vpack.c.b16 %v3875, %v3867
        %v5340 = vpack.c.b16 %v3876, %v3868
        %v5341 = vpack.c.b16 %v3877, %v3869
        %v5342 = vpack.c.b16 %v3878, %v3870
        %v5343 = vpack.c.b16 %v3887, %v3879
        %v5344 = vpack.c.b16 %v3888, %v3880
        %v5345 = vpack.c.b16 %v3889, %v3881
        %v5346 = vpack.c.b16 %v3890, %v3882
        %v5347 = vpack.c.b16 %v3891, %v3883
        %v5348 = vpack.c.b16 %v3892, %v3884
        %v5349 = vpack.c.b16 %v3893, %v3885
        %v5350 = vpack.c.b16 %v3894, %v3886
        %v5351 = vpack.c.b16 %v3903, %v3895
        %v5352 = vpack.c.b16 %v3904, %v3896
        %v5353 = vpack.c.b16 %v3905, %v3897
        %v5354 = vpack.c.b16 %v3906, %v3898
        %v5355 = vpack.c.b16 %v3907, %v3899
        %v5356 = vpack.c.b16 %v3908, %v3900
        %v5357 = vpack.c.b16 %v3909, %v3901
        %v5358 = vpack.c.b16 %v3910, %v3902
        %v5359 = vpack.c.b16 %v3919, %v3911
        %v5360 = vpack.c.b16 %v3920, %v3912
        %v5361 = vpack.c.b16 %v3921, %v3913
        %v5362 = vpack.c.b16 %v3922, %v3914
        %v5363 = vpack.c.b16 %v3923, %v3915
        %v5364 = vpack.c.b16 %v3924, %v3916
        %v5365 = vpack.c.b16 %v3925, %v3917
        %v5366 = vpack.c.b16 %v3926, %v3918
        %v5367 = vpack.c.b16 %v3935, %v3927
        %v5368 = vpack.c.b16 %v3936, %v3928
        %v5369 = vpack.c.b16 %v3937, %v3929
        %v5370 = vpack.c.b16 %v3938, %v3930
        %v5371 = vpack.c.b16 %v3939, %v3931
        %v5372 = vpack.c.b16 %v3940, %v3932
        %v5373 = vpack.c.b16 %v3941, %v3933
        %v5374 = vpack.c.b16 %v3942, %v3934
        %v5375 = vpack.c.b16 %v3951, %v3943
        %v5376 = vpack.c.b16 %v3952, %v3944
        %v5377 = vpack.c.b16 %v3953, %v3945
        %v5378 = vpack.c.b16 %v3954, %v3946
        %v5379 = vpack.c.b16 %v3955, %v3947
        %v5380 = vpack.c.b16 %v3956, %v3948
        %v5381 = vpack.c.b16 %v3957, %v3949
        %v5382 = vpack.c.b16 %v3958, %v3950
        %v5383 = vpack.c.b16 %v3967, %v3959
        %v5384 = vpack.c.b16 %v3968, %v3960
        %v5385 = vpack.c.b16 %v3969, %v3961
        %v5386 = vpack.c.b16 %v3970, %v3962
        %v5387 = vpack.c.b16 %v3971, %v3963
        %v5388 = vpack.c.b16 %v3972, %v3964
        %v5389 = vpack.c.b16 %v3973, %v3965
        %v5390 = vpack.c.b16 %v3974, %v3966
        %v5391 = vpack.c.b16 %v3983, %v3975
        %v5392 = vpack.c.b16 %v3984, %v3976
        %v5393 = vpack.c.b16 %v3985, %v3977
        %v5394 = vpack.c.b16 %v3986, %v3978
        %v5395 = vpack.c.b16 %v3987, %v3979
        %v5396 = vpack.c.b16 %v3988, %v3980
        %v5397 = vpack.c.b16 %v3989, %v3981
        %v5398 = vpack.c.b16 %v3990, %v3982
        %v5399 = vpack.c.b16 %v3999, %v3991
        %v5400 = vpack.c.b16 %v4000, %v3992
        %v5401 = vpack.c.b16 %v4001, %v3993
        %v5402 = vpack.c.b16 %v4002, %v3994
        %v5403 = vpack.c.b16 %v4003, %v3995
        %v5404 = vpack.c.b16 %v4004, %v3996
        %v5405 = vpack.c.b16 %v4005, %v3997
        %v5406 = vpack.c.b16 %v4006, %v3998
        %v5407 = vpack.c.b16 %v4015, %v4007
        %v5408 = vpack.c.b16 %v4016, %v4008
        %v5409 = vpack.c.b16 %v4017, %v4009
        %v5410 = vpack.c.b16 %v4018, %v4010
        %v5411 = vpack.c.b16 %v4019, %v4011
        %v5412 = vpack.c.b16 %v4020, %v4012
        %v5413 = vpack.c.b16 %v4021, %v4013
        %v5414 = vpack.c.b16 %v4022, %v4014
        %v5415 = vpack.c.b16 %v4031, %v4023
        %v5416 = vpack.c.b16 %v4032, %v4024
        %v5417 = vpack.c.b16 %v4033, %v4025
        %v5418 = vpack.c.b16 %v4034, %v4026
        %v5419 = vpack.c.b16 %v4035, %v4027
        %v5420 = vpack.c.b16 %v4036, %v4028
        %v5421 = vpack.c.b16 %v4037, %v4029
        %v5422 = vpack.c.b16 %v4038, %v4030
        %v5423 = vpack.c.b16 %v4047, %v4039
        %v5424 = vpack.c.b16 %v4048, %v4040
        %v5425 = vpack.c.b16 %v4049, %v4041
        %v5426 = vpack.c.b16 %v4050, %v4042
        %v5427 = vpack.c.b16 %v4051, %v4043
        %v5428 = vpack.c.b16 %v4052, %v4044
        %v5429 = vpack.c.b16 %v4053, %v4045
        %v5430 = vpack.c.b16 %v4054, %v4046
        %v5431 = vpack.c.b16 %v4063, %v4055
        %v5432 = vpack.c.b16 %v4064, %v4056
        %v5433 = vpack.c.b16 %v4065, %v4057
        %v5434 = vpack.c.b16 %v4066, %v4058
        %v5435 = vpack.c.b16 %v4067, %v4059
        %v5436 = vpack.c.b16 %v4068, %v4060
        %v5437 = vpack.c.b16 %v4069, %v4061
        %v5438 = vpack.c.b16 %v4070, %v4062
        %v5439 = vpack.c.b16 %v4079, %v4071
        %v5440 = vpack.c.b16 %v4080, %v4072
        %v5441 = vpack.c.b16 %v4081, %v4073
        %v5442 = vpack.c.b16 %v4082, %v4074
        %v5443 = vpack.c.b16 %v4083, %v4075
        %v5444 = vpack.c.b16 %v4084, %v4076
        %v5445 = vpack.c.b16 %v4085, %v4077
        %v5446 = vpack.c.b16 %v4086, %v4078
        %v5447 = vpack.c.b16 %v4095, %v4087
        %v5448 = vpack.c.b16 %v4096, %v4088
        %v5449 = vpack.c.b16 %v4097, %v4089
        %v5450 = vpack.c.b16 %v4098, %v4090
        %v5451 = vpack.c.b16 %v4099, %v4091
        %v5452 = vpack.c.b16 %v4100, %v4092
        %v5453 = vpack.c.b16 %v4101, %v4093
        %v5454 = vpack.c.b16 %v4102, %v4094
        %v5455 = vpack.c.b16 %v4111, %v4103
        %v5456 = vpack.c.b16 %v4112, %v4104
        %v5457 = vpack.c.b16 %v4113, %v4105
        %v5458 = vpack.c.b16 %v4114, %v4106
        %v5459 = vpack.c.b16 %v4115, %v4107
        %v5460 = vpack.c.b16 %v4116, %v4108
        %v5461 = vpack.c.b16 %v4117, %v4109
        %v5462 = vpack.c.b16 %v4118, %v4110
        %v5463 = vpack.c.b16 %v4127, %v4119
        %v5464 = vpack.c.b16 %v4128, %v4120
        %v5465 = vpack.c.b16 %v4129, %v4121
        %v5466 = vpack.c.b16 %v4130, %v4122
        %v5467 = vpack.c.b16 %v4131, %v4123
        %v5468 = vpack.c.b16 %v4132, %v4124
        %v5469 = vpack.c.b16 %v4133, %v4125
        %v5470 = vpack.c.b16 %v4134, %v4126
        %v5471 = vpack.c.b16 %v4143, %v4135
        %v5472 = vpack.c.b16 %v4144, %v4136
        %v5473 = vpack.c.b16 %v4145, %v4137
        %v5474 = vpack.c.b16 %v4146, %v4138
        %v5475 = vpack.c.b16 %v4147, %v4139
        %v5476 = vpack.c.b16 %v4148, %v4140
        %v5477 = vpack.c.b16 %v4149, %v4141
        %v5478 = vpack.c.b16 %v4150, %v4142
        %v5479 = vpack.c.b16 %v4159, %v4151
        %v5480 = vpack.c.b16 %v4160, %v4152
        %v5481 = vpack.c.b16 %v4161, %v4153
        %v5482 = vpack.c.b16 %v4162, %v4154
        %v5483 = vpack.c.b16 %v4163, %v4155
        %v5484 = vpack.c.b16 %v4164, %v4156
        %v5485 = vpack.c.b16 %v4165, %v4157
        %v5486 = vpack.c.b16 %v4166, %v4158
        %v5487 = vpack.c.b16 %v4175, %v4167
        %v5488 = vpack.c.b16 %v4176, %v4168
        %v5489 = vpack.c.b16 %v4177, %v4169
        %v5490 = vpack.c.b16 %v4178, %v4170
        %v5491 = vpack.c.b16 %v4179, %v4171
        %v5492 = vpack.c.b16 %v4180, %v4172
        %v5493 = vpack.c.b16 %v4181, %v4173
        %v5494 = vpack.c.b16 %v4182, %v4174
        %v5495 = vpack.c.b16 %v4191, %v4183
        %v5496 = vpack.c.b16 %v4192, %v4184
        %v5497 = vpack.c.b16 %v4193, %v4185
        %v5498 = vpack.c.b16 %v4194, %v4186
        %v5499 = vpack.c.b16 %v4195, %v4187
        %v5500 = vpack.c.b16 %v4196, %v4188
        %v5501 = vpack.c.b16 %v4197, %v4189
        %v5502 = vpack.c.b16 %v4198, %v4190
        %v5503 = vpack.c.b16 %v4207, %v4199
        %v5504 = vpack.c.b16 %v4208, %v4200
        %v5505 = vpack.c.b16 %v4209, %v4201
        %v5506 = vpack.c.b16 %v4210, %v4202
        %v5507 = vpack.c.b16 %v4211, %v4203
        %v5508 = vpack.c.b16 %v4212, %v4204
        %v5509 = vpack.c.b16 %v4213, %v4205
        %v5510 = vpack.c.b16 %v4214, %v4206
        %v5511 = vpack.c.b16 %v4223, %v4215
        %v5512 = vpack.c.b16 %v4224, %v4216
        %v5513 = vpack.c.b16 %v4225, %v4217
        %v5514 = vpack.c.b16 %v4226, %v4218
        %v5515 = vpack.c.b16 %v4227, %v4219
        %v5516 = vpack.c.b16 %v4228, %v4220
        %v5517 = vpack.c.b16 %v4229, %v4221
        %v5518 = vpack.c.b16 %v4230, %v4222
        %v5519 = vpack.c.b16 %v4239, %v4231
        %v5520 = vpack.c.b16 %v4240, %v4232
        %v5521 = vpack.c.b16 %v4241, %v4233
        %v5522 = vpack.c.b16 %v4242, %v4234
        %v5523 = vpack.c.b16 %v4243, %v4235
        %v5524 = vpack.c.b16 %v4244, %v4236
        %v5525 = vpack.c.b16 %v4245, %v4237
        %v5526 = vpack.c.b16 %v4246, %v4238
        %v5527 = vpack.c.b16 %v4255, %v4247
        %v5528 = vpack.c.b16 %v4256, %v4248
        %v5529 = vpack.c.b16 %v4257, %v4249
        %v5530 = vpack.c.b16 %v4258, %v4250
        %v5531 = vpack.c.b16 %v4259, %v4251
        %v5532 = vpack.c.b16 %v4260, %v4252
        %v5533 = vpack.c.b16 %v4261, %v4253
        %v5534 = vpack.c.b16 %v4262, %v4254
        %v5535 = vpack.c.b16 %v4271, %v4263
        %v5536 = vpack.c.b16 %v4272, %v4264
        %v5537 = vpack.c.b16 %v4273, %v4265
        %v5538 = vpack.c.b16 %v4274, %v4266
        %v5539 = vpack.c.b16 %v4275, %v4267
        %v5540 = vpack.c.b16 %v4276, %v4268
        %v5541 = vpack.c.b16 %v4277, %v4269
        %v5542 = vpack.c.b16 %v4278, %v4270
        %v5543 = vpack.c.b16 %v4287, %v4279
        %v5544 = vpack.c.b16 %v4288, %v4280
        %v5545 = vpack.c.b16 %v4289, %v4281
        %v5546 = vpack.c.b16 %v4290, %v4282
        %v5547 = vpack.c.b16 %v4291, %v4283
        %v5548 = vpack.c.b16 %v4292, %v4284
        %v5549 = vpack.c.b16 %v4293, %v4285
        %v5550 = vpack.c.b16 %v4294, %v4286
        %v5551 = vpack.c.b16 %v4303, %v4295
        %v5552 = vpack.c.b16 %v4304, %v4296
        %v5553 = vpack.c.b16 %v4305, %v4297
        %v5554 = vpack.c.b16 %v4306, %v4298
        %v5555 = vpack.c.b16 %v4307, %v4299
        %v5556 = vpack.c.b16 %v4308, %v4300
        %v5557 = vpack.c.b16 %v4309, %v4301
        %v5558 = vpack.c.b16 %v4310, %v4302
        %v5559 = vpack.c.b16 %v4319, %v4311
        %v5560 = vpack.c.b16 %v4320, %v4312
        %v5561 = vpack.c.b16 %v4321, %v4313
        %v5562 = vpack.c.b16 %v4322, %v4314
        %v5563 = vpack.c.b16 %v4323, %v4315
        %v5564 = vpack.c.b16 %v4324, %v4316
        %v5565 = vpack.c.b16 %v4325, %v4317
        %v5566 = vpack.c.b16 %v4326, %v4318
        %v5567 = vpack.c.b16 %v4335, %v4327
        %v5568 = vpack.c.b16 %v4336, %v4328
        %v5569 = vpack.c.b16 %v4337, %v4329
        %v5570 = vpack.c.b16 %v4338, %v4330
        %v5571 = vpack.c.b16 %v4339, %v4331
        %v5572 = vpack.c.b16 %v4340, %v4332
        %v5573 = vpack.c.b16 %v4341, %v4333
        %v5574 = vpack.c.b16 %v4342, %v4334
        %v5575 = vpack.c.b16 %v4351, %v4343
        %v5576 = vpack.c.b16 %v4352, %v4344
        %v5577 = vpack.c.b16 %v4353, %v4345
        %v5578 = vpack.c.b16 %v4354, %v4346
        %v5579 = vpack.c.b16 %v4355, %v4347
        %v5580 = vpack.c.b16 %v4356, %v4348
        %v5581 = vpack.c.b16 %v4357, %v4349
        %v5582 = vpack.c.b16 %v4358, %v4350
        %v5583 = vpack.c.b16 %v4367, %v4359
        %v5584 = vpack.c.b16 %v4368, %v4360
        %v5585 = vpack.c.b16 %v4369, %v4361
        %v5586 = vpack.c.b16 %v4370, %v4362
        %v5587 = vpack.c.b16 %v4371, %v4363
        %v5588 = vpack.c.b16 %v4372, %v4364
        %v5589 = vpack.c.b16 %v4373, %v4365
        %v5590 = vpack.c.b16 %v4374, %v4366
        %v5591 = vpack.c.b16 %v4383, %v4375
        %v5592 = vpack.c.b16 %v4384, %v4376
        %v5593 = vpack.c.b16 %v4385, %v4377
        %v5594 = vpack.c.b16 %v4386, %v4378
        %v5595 = vpack.c.b16 %v4387, %v4379
        %v5596 = vpack.c.b16 %v4388, %v4380
        %v5597 = vpack.c.b16 %v4389, %v4381
        %v5598 = vpack.c.b16 %v4390, %v4382
        %v5599 = vpack.c.b16 %v4399, %v4391
        %v5600 = vpack.c.b16 %v4400, %v4392
        %v5601 = vpack.c.b16 %v4401, %v4393
        %v5602 = vpack.c.b16 %v4402, %v4394
        %v5603 = vpack.c.b16 %v4403, %v4395
        %v5604 = vpack.c.b16 %v4404, %v4396
        %v5605 = vpack.c.b16 %v4405, %v4397
        %v5606 = vpack.c.b16 %v4406, %v4398
        %v5607 = vpack.c.b16 %v4415, %v4407
        %v5608 = vpack.c.b16 %v4416, %v4408
        %v5609 = vpack.c.b16 %v4417, %v4409
        %v5610 = vpack.c.b16 %v4418, %v4410
        %v5611 = vpack.c.b16 %v4419, %v4411
        %v5612 = vpack.c.b16 %v4420, %v4412
        %v5613 = vpack.c.b16 %v4421, %v4413
        %v5614 = vpack.c.b16 %v4422, %v4414
        %v5615 = vpack.c.b16 %v4431, %v4423
        %v5616 = vpack.c.b16 %v4432, %v4424
        %v5617 = vpack.c.b16 %v4433, %v4425
        %v5618 = vpack.c.b16 %v4434, %v4426
        %v5619 = vpack.c.b16 %v4435, %v4427
        %v5620 = vpack.c.b16 %v4436, %v4428
        %v5621 = vpack.c.b16 %v4437, %v4429
        %v5622 = vpack.c.b16 %v4438, %v4430
        %v5623 = vpack.c.b16 %v4447, %v4439
        %v5624 = vpack.c.b16 %v4448, %v4440
        %v5625 = vpack.c.b16 %v4449, %v4441
        %v5626 = vpack.c.b16 %v4450, %v4442
        %v5627 = vpack.c.b16 %v4451, %v4443
        %v5628 = vpack.c.b16 %v4452, %v4444
        %v5629 = vpack.c.b16 %v4453, %v4445
        %v5630 = vpack.c.b16 %v4454, %v4446
        %v5631 = vpack.c.b16 %v4463, %v4455
        %v5632 = vpack.c.b16 %v4464, %v4456
        %v5633 = vpack.c.b16 %v4465, %v4457
        %v5634 = vpack.c.b16 %v4466, %v4458
        %v5635 = vpack.c.b16 %v4467, %v4459
        %v5636 = vpack.c.b16 %v4468, %v4460
        %v5637 = vpack.c.b16 %v4469, %v4461
        %v5638 = vpack.c.b16 %v4470, %v4462
        %v5639 = vpack.c.b16 %v4479, %v4471
        %v5640 = vpack.c.b16 %v4480, %v4472
        %v5641 = vpack.c.b16 %v4481, %v4473
        %v5642 = vpack.c.b16 %v4482, %v4474
        %v5643 = vpack.c.b16 %v4483, %v4475
        %v5644 = vpack.c.b16 %v4484, %v4476
        %v5645 = vpack.c.b16 %v4485, %v4477
        %v5646 = vpack.c.b16 %v4486, %v4478
        %v5647 = vpack.c.b16 %v4495, %v4487
        %v5648 = vpack.c.b16 %v4496, %v4488
        %v5649 = vpack.c.b16 %v4497, %v4489
        %v5650 = vpack.c.b16 %v4498, %v4490
        %v5651 = vpack.c.b16 %v4499, %v4491
        %v5652 = vpack.c.b16 %v4500, %v4492
        %v5653 = vpack.c.b16 %v4501, %v4493
        %v5654 = vpack.c.b16 %v4502, %v4494
        %v5655 = vpack.c.b16 %v4511, %v4503
        %v5656 = vpack.c.b16 %v4512, %v4504
        %v5657 = vpack.c.b16 %v4513, %v4505
        %v5658 = vpack.c.b16 %v4514, %v4506
        %v5659 = vpack.c.b16 %v4515, %v4507
        %v5660 = vpack.c.b16 %v4516, %v4508
        %v5661 = vpack.c.b16 %v4517, %v4509
        %v5662 = vpack.c.b16 %v4518, %v4510
        %v5663 = vpack.c.b16 %v4527, %v4519
        %v5664 = vpack.c.b16 %v4528, %v4520
        %v5665 = vpack.c.b16 %v4529, %v4521
        %v5666 = vpack.c.b16 %v4530, %v4522
        %v5667 = vpack.c.b16 %v4531, %v4523
        %v5668 = vpack.c.b16 %v4532, %v4524
        %v5669 = vpack.c.b16 %v4533, %v4525
        %v5670 = vpack.c.b16 %v4534, %v4526
        %v5671 = vpack.c.b16 %v4543, %v4535
        %v5672 = vpack.c.b16 %v4544, %v4536
        %v5673 = vpack.c.b16 %v4545, %v4537
        %v5674 = vpack.c.b16 %v4546, %v4538
        %v5675 = vpack.c.b16 %v4547, %v4539
        %v5676 = vpack.c.b16 %v4548, %v4540
        %v5677 = vpack.c.b16 %v4549, %v4541
        %v5678 = vpack.c.b16 %v4550, %v4542
        %v5679 = vpack.c.b16 %v4559, %v4551
        %v5680 = vpack.c.b16 %v4560, %v4552
        %v5681 = vpack.c.b16 %v4561, %v4553
        %v5682 = vpack.c.b16 %v4562, %v4554
        %v5683 = vpack.c.b16 %v4563, %v4555
        %v5684 = vpack.c.b16 %v4564, %v4556
        %v5685 = vpack.c.b16 %v4565, %v4557
        %v5686 = vpack.c.b16 %v4566, %v4558
        %v5687 = vpack.c.b16 %v4575, %v4567
        %v5688 = vpack.c.b16 %v4576, %v4568
        %v5689 = vpack.c.b16 %v4577, %v4569
        %v5690 = vpack.c.b16 %v4578, %v4570
        %v5691 = vpack.c.b16 %v4579, %v4571
        %v5692 = vpack.c.b16 %v4580, %v4572
        %v5693 = vpack.c.b16 %v4581, %v4573
        %v5694 = vpack.c.b16 %v4582, %v4574
        %v5695 = vpack.c.b16 %v4591, %v4583
        %v5696 = vpack.c.b16 %v4592, %v4584
        %v5697 = vpack.c.b16 %v4593, %v4585
        %v5698 = vpack.c.b16 %v4594, %v4586
        %v5699 = vpack.c.b16 %v4595, %v4587
        %v5700 = vpack.c.b16 %v4596, %v4588
        %v5701 = vpack.c.b16 %v4597, %v4589
        %v5702 = vpack.c.b16 %v4598, %v4590
        %v5703 = vpack.c.b16 %v4607, %v4599
        %v5704 = vpack.c.b16 %v4608, %v4600
        %v5705 = vpack.c.b16 %v4609, %v4601
        %v5706 = vpack.c.b16 %v4610, %v4602
        %v5707 = vpack.c.b16 %v4611, %v4603
        %v5708 = vpack.c.b16 %v4612, %v4604
        %v5709 = vpack.c.b16 %v4613, %v4605
        %v5710 = vpack.c.b16 %v4614, %v4606
        %v5711 = vpack.c.b16 %v4623, %v4615
        %v5712 = vpack.c.b16 %v4624, %v4616
        %v5713 = vpack.c.b16 %v4625, %v4617
        %v5714 = vpack.c.b16 %v4626, %v4618
        %v5715 = vpack.c.b16 %v4627, %v4619
        %v5716 = vpack.c.b16 %v4628, %v4620
        %v5717 = vpack.c.b16 %v4629, %v4621
        %v5718 = vpack.c.b16 %v4630, %v4622
        %v5719 = vpack.c.b16 %v4639, %v4631
        %v5720 = vpack.c.b16 %v4640, %v4632
        %v5721 = vpack.c.b16 %v4641, %v4633
        %v5722 = vpack.c.b16 %v4642, %v4634
        %v5723 = vpack.c.b16 %v4643, %v4635
        %v5724 = vpack.c.b16 %v4644, %v4636
        %v5725 = vpack.c.b16 %v4645, %v4637
        %v5726 = vpack.c.b16 %v4646, %v4638
        %v5727 = vpack.c.b16 %v4655, %v4647
        %v5728 = vpack.c.b16 %v4656, %v4648
        %v5729 = vpack.c.b16 %v4657, %v4649
        %v5730 = vpack.c.b16 %v4658, %v4650
        %v5731 = vpack.c.b16 %v4659, %v4651
        %v5732 = vpack.c.b16 %v4660, %v4652
        %v5733 = vpack.c.b16 %v4661, %v4653
        %v5734 = vpack.c.b16 %v4662, %v4654
        %v5735 = vpack.c.b16 %v4671, %v4663
        %v5736 = vpack.c.b16 %v4672, %v4664
        %v5737 = vpack.c.b16 %v4673, %v4665
        %v5738 = vpack.c.b16 %v4674, %v4666
        %v5739 = vpack.c.b16 %v4675, %v4667
        %v5740 = vpack.c.b16 %v4676, %v4668
        %v5741 = vpack.c.b16 %v4677, %v4669
        %v5742 = vpack.c.b16 %v4678, %v4670
        %v5743 = vpack.c.b16 %v4687, %v4679
        %v5744 = vpack.c.b16 %v4688, %v4680
        %v5745 = vpack.c.b16 %v4689, %v4681
        %v5746 = vpack.c.b16 %v4690, %v4682
        %v5747 = vpack.c.b16 %v4691, %v4683
        %v5748 = vpack.c.b16 %v4692, %v4684
        %v5749 = vpack.c.b16 %v4693, %v4685
        %v5750 = vpack.c.b16 %v4694, %v4686
        %v5751 = vpack.c.b16 %v4703, %v4695
        %v5752 = vpack.c.b16 %v4704, %v4696
        %v5753 = vpack.c.b16 %v4705, %v4697
        %v5754 = vpack.c.b16 %v4706, %v4698
        %v5755 = vpack.c.b16 %v4707, %v4699
        %v5756 = vpack.c.b16 %v4708, %v4700
        %v5757 = vpack.c.b16 %v4709, %v4701
        %v5758 = vpack.c.b16 %v4710, %v4702
        %v5759 = vpack.c.b16 %v4719, %v4711
        %v5760 = vpack.c.b16 %v4720, %v4712
        %v5761 = vpack.c.b16 %v4721, %v4713
        %v5762 = vpack.c.b16 %v4722, %v4714
        %v5763 = vpack.c.b16 %v4723, %v4715
        %v5764 = vpack.c.b16 %v4724, %v4716
        %v5765 = vpack.c.b16 %v4725, %v4717
        %v5766 = vpack.c.b16 %v4726, %v4718
        %v5767 = vpack.c.b16 %v4735, %v4727
        %v5768 = vpack.c.b16 %v4736, %v4728
        %v5769 = vpack.c.b16 %v4737, %v4729
        %v5770 = vpack.c.b16 %v4738, %v4730
        %v5771 = vpack.c.b16 %v4739, %v4731
        %v5772 = vpack.c.b16 %v4740, %v4732
        %v5773 = vpack.c.b16 %v4741, %v4733
        %v5774 = vpack.c.b16 %v4742, %v4734
        %v5775 = vpack.c.b16 %v4751, %v4743
        %v5776 = vpack.c.b16 %v4752, %v4744
        %v5777 = vpack.c.b16 %v4753, %v4745
        %v5778 = vpack.c.b16 %v4754, %v4746
        %v5779 = vpack.c.b16 %v4755, %v4747
        %v5780 = vpack.c.b16 %v4756, %v4748
        %v5781 = vpack.c.b16 %v4757, %v4749
        %v5782 = vpack.c.b16 %v4758, %v4750
        %6807 = vmatpush.bf16.msra.mxu0 %v4815
        %6808 = vmatpush.bf16.msra.mxu0 %v4807
        %6809 = vmatpush.bf16.msra.mxu0 %v4799
        %6810 = vmatpush.bf16.msra.mxu0 %v4791
        %6811 = vmatpush.bf16.msra.mxu0 %v4783
        %6812 = vmatpush.bf16.msra.mxu0 %v4775
        %6813 = vmatpush.bf16.msra.mxu0 %v4767
        %6814 = vmatpush.bf16.msra.mxu0 %v4759
        %6815 = vmatmul.bf16.gmra.mxu0 %v613
        %v6816 = vpop.f32.mrf.mxu0
        %v6817 = vadd.f32 %v1671, %v6816
        %v6818 = vpop.f32.mrf.mxu0
        %v6819 = vadd.f32 %v1671, %v6818
        %6820 = vmatmul.bf16.gmra.mxu0 %v629
        %v6821 = vpop.f32.mrf.mxu0
        %v6822 = vadd.f32 %v1671, %v6821
        %v6823 = vpop.f32.mrf.mxu0
        %v6824 = vadd.f32 %v1671, %v6823
        %6825 = vdwg.mxu0
        %6826 = vmatpush.bf16.msra.mxu0 %v4879
        %6827 = vmatpush.bf16.msra.mxu0 %v4871
        %6828 = vmatpush.bf16.msra.mxu0 %v4863
        %6829 = vmatpush.bf16.msra.mxu0 %v4855
        %6830 = vmatpush.bf16.msra.mxu0 %v4847
        %6831 = vmatpush.bf16.msra.mxu0 %v4839
        %6832 = vmatpush.bf16.msra.mxu0 %v4831
        %6833 = vmatpush.bf16.msra.mxu0 %v4823
        %6834 = vmatmul.bf16.gmra.mxu0 %v614
        %v6835 = vpop.f32.mrf.mxu0
        %v6836 = vadd.f32 %v6817, %v6835
        %v6837 = vpop.f32.mrf.mxu0
        %v6838 = vadd.f32 %v6819, %v6837
        %6839 = vmatmul.bf16.gmra.mxu0 %v630
        %v6840 = vpop.f32.mrf.mxu0
        %v6841 = vadd.f32 %v6822, %v6840
        %v6842 = vpop.f32.mrf.mxu0
        %v6843 = vadd.f32 %v6824, %v6842
        %6844 = vdwg.mxu0
        %6845 = vmatpush.bf16.msra.mxu0 %v4943
        %6846 = vmatpush.bf16.msra.mxu0 %v4935
        %6847 = vmatpush.bf16.msra.mxu0 %v4927
        %6848 = vmatpush.bf16.msra.mxu0 %v4919
        %6849 = vmatpush.bf16.msra.mxu0 %v4911
        %6850 = vmatpush.bf16.msra.mxu0 %v4903
        %6851 = vmatpush.bf16.msra.mxu0 %v4895
        %6852 = vmatpush.bf16.msra.mxu0 %v4887
        %6853 = vmatmul.bf16.gmra.mxu0 %v615
        %v6854 = vpop.f32.mrf.mxu0
        %v6855 = vadd.f32 %v6836, %v6854
        %v6856 = vpop.f32.mrf.mxu0
        %v6857 = vadd.f32 %v6838, %v6856
        %6858 = vmatmul.bf16.gmra.mxu0 %v631
        %v6859 = vpop.f32.mrf.mxu0
        %v6860 = vadd.f32 %v6841, %v6859
        %v6861 = vpop.f32.mrf.mxu0
        %v6862 = vadd.f32 %v6843, %v6861
        %6863 = vdwg.mxu0
        %6864 = vmatpush.bf16.msra.mxu0 %v5007
        %6865 = vmatpush.bf16.msra.mxu0 %v4999
        %6866 = vmatpush.bf16.msra.mxu0 %v4991
        %6867 = vmatpush.bf16.msra.mxu0 %v4983
        %6868 = vmatpush.bf16.msra.mxu0 %v4975
        %6869 = vmatpush.bf16.msra.mxu0 %v4967
        %6870 = vmatpush.bf16.msra.mxu0 %v4959
        %6871 = vmatpush.bf16.msra.mxu0 %v4951
        %6872 = vmatmul.bf16.gmra.mxu0 %v616
        %v6873 = vpop.f32.mrf.mxu0
        %v6874 = vadd.f32 %v6855, %v6873
        %v6875 = vpop.f32.mrf.mxu0
        %v6876 = vadd.f32 %v6857, %v6875
        %6877 = vmatmul.bf16.gmra.mxu0 %v632
        %v6878 = vpop.f32.mrf.mxu0
        %v6879 = vadd.f32 %v6860, %v6878
        %v6880 = vpop.f32.mrf.mxu0
        %v6881 = vadd.f32 %v6862, %v6880
        %6882 = vdwg.mxu0
        %6883 = vmatpush.bf16.msra.mxu0 %v5071
        %6884 = vmatpush.bf16.msra.mxu0 %v5063
        %6885 = vmatpush.bf16.msra.mxu0 %v5055
        %6886 = vmatpush.bf16.msra.mxu0 %v5047
        %6887 = vmatpush.bf16.msra.mxu0 %v5039
        %6888 = vmatpush.bf16.msra.mxu0 %v5031
        %6889 = vmatpush.bf16.msra.mxu0 %v5023
        %6890 = vmatpush.bf16.msra.mxu0 %v5015
        %6891 = vmatmul.bf16.gmra.mxu0 %v617
        %v6892 = vpop.f32.mrf.mxu0
        %v6893 = vadd.f32 %v6874, %v6892
        %v6894 = vpop.f32.mrf.mxu0
        %v6895 = vadd.f32 %v6876, %v6894
        %6896 = vmatmul.bf16.gmra.mxu0 %v633
        %v6897 = vpop.f32.mrf.mxu0
        %v6898 = vadd.f32 %v6879, %v6897
        %v6899 = vpop.f32.mrf.mxu0
        %v6900 = vadd.f32 %v6881, %v6899
        %6901 = vdwg.mxu0
        %6902 = vmatpush.bf16.msra.mxu0 %v5135
        %6903 = vmatpush.bf16.msra.mxu0 %v5127
        %6904 = vmatpush.bf16.msra.mxu0 %v5119
        %6905 = vmatpush.bf16.msra.mxu0 %v5111
        %6906 = vmatpush.bf16.msra.mxu0 %v5103
        %6907 = vmatpush.bf16.msra.mxu0 %v5095
        %6908 = vmatpush.bf16.msra.mxu0 %v5087
        %6909 = vmatpush.bf16.msra.mxu0 %v5079
        %6910 = vmatmul.bf16.gmra.mxu0 %v618
        %v6911 = vpop.f32.mrf.mxu0
        %v6912 = vadd.f32 %v6893, %v6911
        %v6913 = vpop.f32.mrf.mxu0
        %v6914 = vadd.f32 %v6895, %v6913
        %6915 = vmatmul.bf16.gmra.mxu0 %v634
        %v6916 = vpop.f32.mrf.mxu0
        %v6917 = vadd.f32 %v6898, %v6916
        %v6918 = vpop.f32.mrf.mxu0
        %v6919 = vadd.f32 %v6900, %v6918
        %6920 = vdwg.mxu0
        %6921 = vmatpush.bf16.msra.mxu0 %v5199
        %6922 = vmatpush.bf16.msra.mxu0 %v5191
        %6923 = vmatpush.bf16.msra.mxu0 %v5183
        %6924 = vmatpush.bf16.msra.mxu0 %v5175
        %6925 = vmatpush.bf16.msra.mxu0 %v5167
        %6926 = vmatpush.bf16.msra.mxu0 %v5159
        %6927 = vmatpush.bf16.msra.mxu0 %v5151
        %6928 = vmatpush.bf16.msra.mxu0 %v5143
        %6929 = vmatmul.bf16.gmra.mxu0 %v619
        %v6930 = vpop.f32.mrf.mxu0
        %v6931 = vadd.f32 %v6912, %v6930
        %v6932 = vpop.f32.mrf.mxu0
        %v6933 = vadd.f32 %v6914, %v6932
        %6934 = vmatmul.bf16.gmra.mxu0 %v635
        %v6935 = vpop.f32.mrf.mxu0
        %v6936 = vadd.f32 %v6917, %v6935
        %v6937 = vpop.f32.mrf.mxu0
        %v6938 = vadd.f32 %v6919, %v6937
        %6939 = vdwg.mxu0
        %6940 = vmatpush.bf16.msra.mxu0 %v5263
        %6941 = vmatpush.bf16.msra.mxu0 %v5255
        %6942 = vmatpush.bf16.msra.mxu0 %v5247
        %6943 = vmatpush.bf16.msra.mxu0 %v5239
        %6944 = vmatpush.bf16.msra.mxu0 %v5231
        %6945 = vmatpush.bf16.msra.mxu0 %v5223
        %6946 = vmatpush.bf16.msra.mxu0 %v5215
        %6947 = vmatpush.bf16.msra.mxu0 %v5207
        %6948 = vmatmul.bf16.gmra.mxu0 %v620
        %v6949 = vpop.f32.mrf.mxu0
        %v6950 = vadd.f32 %v6931, %v6949
        %v6951 = vpop.f32.mrf.mxu0
        %v6952 = vadd.f32 %v6933, %v6951
        %6953 = vmatmul.bf16.gmra.mxu0 %v636
        %v6954 = vpop.f32.mrf.mxu0
        %v6955 = vadd.f32 %v6936, %v6954
        %v6956 = vpop.f32.mrf.mxu0
        %v6957 = vadd.f32 %v6938, %v6956
        %6958 = vdwg.mxu0
        %6959 = vmatpush.bf16.msra.mxu0 %v5327
        %6960 = vmatpush.bf16.msra.mxu0 %v5319
        %6961 = vmatpush.bf16.msra.mxu0 %v5311
        %6962 = vmatpush.bf16.msra.mxu0 %v5303
        %6963 = vmatpush.bf16.msra.mxu0 %v5295
        %6964 = vmatpush.bf16.msra.mxu0 %v5287
        %6965 = vmatpush.bf16.msra.mxu0 %v5279
        %6966 = vmatpush.bf16.msra.mxu0 %v5271
        %6967 = vmatmul.bf16.gmra.mxu0 %v621
        %v6968 = vpop.f32.mrf.mxu0
        %v6969 = vadd.f32 %v6950, %v6968
        %v6970 = vpop.f32.mrf.mxu0
        %v6971 = vadd.f32 %v6952, %v6970
        %6972 = vmatmul.bf16.gmra.mxu0 %v637
        %v6973 = vpop.f32.mrf.mxu0
        %v6974 = vadd.f32 %v6955, %v6973
        %v6975 = vpop.f32.mrf.mxu0
        %v6976 = vadd.f32 %v6957, %v6975
        %6977 = vdwg.mxu0
        %6978 = vmatpush.bf16.msra.mxu0 %v5391
        %6979 = vmatpush.bf16.msra.mxu0 %v5383
        %6980 = vmatpush.bf16.msra.mxu0 %v5375
        %6981 = vmatpush.bf16.msra.mxu0 %v5367
        %6982 = vmatpush.bf16.msra.mxu0 %v5359
        %6983 = vmatpush.bf16.msra.mxu0 %v5351
        %6984 = vmatpush.bf16.msra.mxu0 %v5343
        %6985 = vmatpush.bf16.msra.mxu0 %v5335
        %6986 = vmatmul.bf16.gmra.mxu0 %v622
        %v6987 = vpop.f32.mrf.mxu0
        %v6988 = vadd.f32 %v6969, %v6987
        %v6989 = vpop.f32.mrf.mxu0
        %v6990 = vadd.f32 %v6971, %v6989
        %6991 = vmatmul.bf16.gmra.mxu0 %v638
        %v6992 = vpop.f32.mrf.mxu0
        %v6993 = vadd.f32 %v6974, %v6992
        %v6994 = vpop.f32.mrf.mxu0
        %v6995 = vadd.f32 %v6976, %v6994
        %6996 = vdwg.mxu0
        %6997 = vmatpush.bf16.msra.mxu0 %v5455
        %6998 = vmatpush.bf16.msra.mxu0 %v5447
        %6999 = vmatpush.bf16.msra.mxu0 %v5439
        %7000 = vmatpush.bf16.msra.mxu0 %v5431
        %7001 = vmatpush.bf16.msra.mxu0 %v5423
        %7002 = vmatpush.bf16.msra.mxu0 %v5415
        %7003 = vmatpush.bf16.msra.mxu0 %v5407
        %7004 = vmatpush.bf16.msra.mxu0 %v5399
        %7005 = vmatmul.bf16.gmra.mxu0 %v623
        %v7006 = vpop.f32.mrf.mxu0
        %v7007 = vadd.f32 %v6988, %v7006
        %v7008 = vpop.f32.mrf.mxu0
        %v7009 = vadd.f32 %v6990, %v7008
        %7010 = vmatmul.bf16.gmra.mxu0 %v639
        %v7011 = vpop.f32.mrf.mxu0
        %v7012 = vadd.f32 %v6993, %v7011
        %v7013 = vpop.f32.mrf.mxu0
        %v7014 = vadd.f32 %v6995, %v7013
        %7015 = vdwg.mxu0
        %7016 = vmatpush.bf16.msra.mxu0 %v5519
        %7017 = vmatpush.bf16.msra.mxu0 %v5511
        %7018 = vmatpush.bf16.msra.mxu0 %v5503
        %7019 = vmatpush.bf16.msra.mxu0 %v5495
        %7020 = vmatpush.bf16.msra.mxu0 %v5487
        %7021 = vmatpush.bf16.msra.mxu0 %v5479
        %7022 = vmatpush.bf16.msra.mxu0 %v5471
        %7023 = vmatpush.bf16.msra.mxu0 %v5463
        %7024 = vmatmul.bf16.gmra.mxu0 %v624
        %v7025 = vpop.f32.mrf.mxu0
        %v7026 = vadd.f32 %v7007, %v7025
        %v7027 = vpop.f32.mrf.mxu0
        %v7028 = vadd.f32 %v7009, %v7027
        %7029 = vmatmul.bf16.gmra.mxu0 %v640
        %v7030 = vpop.f32.mrf.mxu0
        %v7031 = vadd.f32 %v7012, %v7030
        %v7032 = vpop.f32.mrf.mxu0
        %v7033 = vadd.f32 %v7014, %v7032
        %7034 = vdwg.mxu0
        %7035 = vmatpush.bf16.msra.mxu0 %v5583
        %7036 = vmatpush.bf16.msra.mxu0 %v5575
        %7037 = vmatpush.bf16.msra.mxu0 %v5567
        %7038 = vmatpush.bf16.msra.mxu0 %v5559
        %7039 = vmatpush.bf16.msra.mxu0 %v5551
        %7040 = vmatpush.bf16.msra.mxu0 %v5543
        %7041 = vmatpush.bf16.msra.mxu0 %v5535
        %7042 = vmatpush.bf16.msra.mxu0 %v5527
        %7043 = vmatmul.bf16.gmra.mxu0 %v625
        %v7044 = vpop.f32.mrf.mxu0
        %v7045 = vadd.f32 %v7026, %v7044
        %v7046 = vpop.f32.mrf.mxu0
        %v7047 = vadd.f32 %v7028, %v7046
        %7048 = vmatmul.bf16.gmra.mxu0 %v641
        %v7049 = vpop.f32.mrf.mxu0
        %v7050 = vadd.f32 %v7031, %v7049
        %v7051 = vpop.f32.mrf.mxu0
        %v7052 = vadd.f32 %v7033, %v7051
        %7053 = vdwg.mxu0
        %7054 = vmatpush.bf16.msra.mxu0 %v5647
        %7055 = vmatpush.bf16.msra.mxu0 %v5639
        %7056 = vmatpush.bf16.msra.mxu0 %v5631
        %7057 = vmatpush.bf16.msra.mxu0 %v5623
        %7058 = vmatpush.bf16.msra.mxu0 %v5615
        %7059 = vmatpush.bf16.msra.mxu0 %v5607
        %7060 = vmatpush.bf16.msra.mxu0 %v5599
        %7061 = vmatpush.bf16.msra.mxu0 %v5591
        %7062 = vmatmul.bf16.gmra.mxu0 %v626
        %v7063 = vpop.f32.mrf.mxu0
        %v7064 = vadd.f32 %v7045, %v7063
        %v7065 = vpop.f32.mrf.mxu0
        %v7066 = vadd.f32 %v7047, %v7065
        %7067 = vmatmul.bf16.gmra.mxu0 %v642
        %v7068 = vpop.f32.mrf.mxu0
        %v7069 = vadd.f32 %v7050, %v7068
        %v7070 = vpop.f32.mrf.mxu0
        %v7071 = vadd.f32 %v7052, %v7070
        %7072 = vdwg.mxu0
        %7073 = vmatpush.bf16.msra.mxu0 %v5711
        %7074 = vmatpush.bf16.msra.mxu0 %v5703
        %7075 = vmatpush.bf16.msra.mxu0 %v5695
        %7076 = vmatpush.bf16.msra.mxu0 %v5687
        %7077 = vmatpush.bf16.msra.mxu0 %v5679
        %7078 = vmatpush.bf16.msra.mxu0 %v5671
        %7079 = vmatpush.bf16.msra.mxu0 %v5663
        %7080 = vmatpush.bf16.msra.mxu0 %v5655
        %7081 = vmatmul.bf16.gmra.mxu0 %v627
        %v7082 = vpop.f32.mrf.mxu0
        %v7083 = vadd.f32 %v7064, %v7082
        %v7084 = vpop.f32.mrf.mxu0
        %v7085 = vadd.f32 %v7066, %v7084
        %7086 = vmatmul.bf16.gmra.mxu0 %v643
        %v7087 = vpop.f32.mrf.mxu0
        %v7088 = vadd.f32 %v7069, %v7087
        %v7089 = vpop.f32.mrf.mxu0
        %v7090 = vadd.f32 %v7071, %v7089
        %7091 = vdwg.mxu0
        %7092 = vmatpush.bf16.msra.mxu0 %v5775
        %7093 = vmatpush.bf16.msra.mxu0 %v5767
        %7094 = vmatpush.bf16.msra.mxu0 %v5759
        %7095 = vmatpush.bf16.msra.mxu0 %v5751
        %7096 = vmatpush.bf16.msra.mxu0 %v5743
        %7097 = vmatpush.bf16.msra.mxu0 %v5735
        %7098 = vmatpush.bf16.msra.mxu0 %v5727
        %7099 = vmatpush.bf16.msra.mxu0 %v5719
        %7100 = vmatmul.bf16.gmra.mxu0 %v628
        %v7101 = vpop.f32.mrf.mxu0
        %v7102 = vadd.f32 %v7083, %v7101
        %v7103 = vpop.f32.mrf.mxu0
        %v7104 = vadd.f32 %v7085, %v7103
        %7105 = vmatmul.bf16.gmra.mxu0 %v644
        %v7106 = vpop.f32.mrf.mxu0
        %v7107 = vadd.f32 %v7088, %v7106
        %v7108 = vpop.f32.mrf.mxu0
        %v7109 = vadd.f32 %v7090, %v7108
        %7110 = vdwg.mxu0
        %7111 = vmatpush.bf16.msra.mxu0 %v4816
        %7112 = vmatpush.bf16.msra.mxu0 %v4808
        %7113 = vmatpush.bf16.msra.mxu0 %v4800
        %7114 = vmatpush.bf16.msra.mxu0 %v4792
        %7115 = vmatpush.bf16.msra.mxu0 %v4784
        %7116 = vmatpush.bf16.msra.mxu0 %v4776
        %7117 = vmatpush.bf16.msra.mxu0 %v4768
        %7118 = vmatpush.bf16.msra.mxu0 %v4760
        %7119 = vmatmul.bf16.gmra.mxu0 %v613
        %v7120 = vpop.f32.mrf.mxu0
        %v7121 = vadd.f32 %v1672, %v7120
        %v7122 = vpop.f32.mrf.mxu0
        %v7123 = vadd.f32 %v1672, %v7122
        %7124 = vmatmul.bf16.gmra.mxu0 %v629
        %v7125 = vpop.f32.mrf.mxu0
        %v7126 = vadd.f32 %v1672, %v7125
        %v7127 = vpop.f32.mrf.mxu0
        %v7128 = vadd.f32 %v1672, %v7127
        %7129 = vdwg.mxu0
        %7130 = vmatpush.bf16.msra.mxu0 %v4880
        %7131 = vmatpush.bf16.msra.mxu0 %v4872
        %7132 = vmatpush.bf16.msra.mxu0 %v4864
        %7133 = vmatpush.bf16.msra.mxu0 %v4856
        %7134 = vmatpush.bf16.msra.mxu0 %v4848
        %7135 = vmatpush.bf16.msra.mxu0 %v4840
        %7136 = vmatpush.bf16.msra.mxu0 %v4832
        %7137 = vmatpush.bf16.msra.mxu0 %v4824
        %7138 = vmatmul.bf16.gmra.mxu0 %v614
        %v7139 = vpop.f32.mrf.mxu0
        %v7140 = vadd.f32 %v7121, %v7139
        %v7141 = vpop.f32.mrf.mxu0
        %v7142 = vadd.f32 %v7123, %v7141
        %7143 = vmatmul.bf16.gmra.mxu0 %v630
        %v7144 = vpop.f32.mrf.mxu0
        %v7145 = vadd.f32 %v7126, %v7144
        %v7146 = vpop.f32.mrf.mxu0
        %v7147 = vadd.f32 %v7128, %v7146
        %7148 = vdwg.mxu0
        %7149 = vmatpush.bf16.msra.mxu0 %v4944
        %7150 = vmatpush.bf16.msra.mxu0 %v4936
        %7151 = vmatpush.bf16.msra.mxu0 %v4928
        %7152 = vmatpush.bf16.msra.mxu0 %v4920
        %7153 = vmatpush.bf16.msra.mxu0 %v4912
        %7154 = vmatpush.bf16.msra.mxu0 %v4904
        %7155 = vmatpush.bf16.msra.mxu0 %v4896
        %7156 = vmatpush.bf16.msra.mxu0 %v4888
        %7157 = vmatmul.bf16.gmra.mxu0 %v615
        %v7158 = vpop.f32.mrf.mxu0
        %v7159 = vadd.f32 %v7140, %v7158
        %v7160 = vpop.f32.mrf.mxu0
        %v7161 = vadd.f32 %v7142, %v7160
        %7162 = vmatmul.bf16.gmra.mxu0 %v631
        %v7163 = vpop.f32.mrf.mxu0
        %v7164 = vadd.f32 %v7145, %v7163
        %v7165 = vpop.f32.mrf.mxu0
        %v7166 = vadd.f32 %v7147, %v7165
        %7167 = vdwg.mxu0
        %7168 = vmatpush.bf16.msra.mxu0 %v5008
        %7169 = vmatpush.bf16.msra.mxu0 %v5000
        %7170 = vmatpush.bf16.msra.mxu0 %v4992
        %7171 = vmatpush.bf16.msra.mxu0 %v4984
        %7172 = vmatpush.bf16.msra.mxu0 %v4976
        %7173 = vmatpush.bf16.msra.mxu0 %v4968
        %7174 = vmatpush.bf16.msra.mxu0 %v4960
        %7175 = vmatpush.bf16.msra.mxu0 %v4952
        %7176 = vmatmul.bf16.gmra.mxu0 %v616
        %v7177 = vpop.f32.mrf.mxu0
        %v7178 = vadd.f32 %v7159, %v7177
        %v7179 = vpop.f32.mrf.mxu0
        %v7180 = vadd.f32 %v7161, %v7179
        %7181 = vmatmul.bf16.gmra.mxu0 %v632
        %v7182 = vpop.f32.mrf.mxu0
        %v7183 = vadd.f32 %v7164, %v7182
        %v7184 = vpop.f32.mrf.mxu0
        %v7185 = vadd.f32 %v7166, %v7184
        %7186 = vdwg.mxu0
        %7187 = vmatpush.bf16.msra.mxu0 %v5072
        %7188 = vmatpush.bf16.msra.mxu0 %v5064
        %7189 = vmatpush.bf16.msra.mxu0 %v5056
        %7190 = vmatpush.bf16.msra.mxu0 %v5048
        %7191 = vmatpush.bf16.msra.mxu0 %v5040
        %7192 = vmatpush.bf16.msra.mxu0 %v5032
        %7193 = vmatpush.bf16.msra.mxu0 %v5024
        %7194 = vmatpush.bf16.msra.mxu0 %v5016
        %7195 = vmatmul.bf16.gmra.mxu0 %v617
        %v7196 = vpop.f32.mrf.mxu0
        %v7197 = vadd.f32 %v7178, %v7196
        %v7198 = vpop.f32.mrf.mxu0
        %v7199 = vadd.f32 %v7180, %v7198
        %7200 = vmatmul.bf16.gmra.mxu0 %v633
        %v7201 = vpop.f32.mrf.mxu0
        %v7202 = vadd.f32 %v7183, %v7201
        %v7203 = vpop.f32.mrf.mxu0
        %v7204 = vadd.f32 %v7185, %v7203
        %7205 = vdwg.mxu0
        %7206 = vmatpush.bf16.msra.mxu0 %v5136
        %7207 = vmatpush.bf16.msra.mxu0 %v5128
        %7208 = vmatpush.bf16.msra.mxu0 %v5120
        %7209 = vmatpush.bf16.msra.mxu0 %v5112
        %7210 = vmatpush.bf16.msra.mxu0 %v5104
        %7211 = vmatpush.bf16.msra.mxu0 %v5096
        %7212 = vmatpush.bf16.msra.mxu0 %v5088
        %7213 = vmatpush.bf16.msra.mxu0 %v5080
        %7214 = vmatmul.bf16.gmra.mxu0 %v618
        %v7215 = vpop.f32.mrf.mxu0
        %v7216 = vadd.f32 %v7197, %v7215
        %v7217 = vpop.f32.mrf.mxu0
        %v7218 = vadd.f32 %v7199, %v7217
        %7219 = vmatmul.bf16.gmra.mxu0 %v634
        %v7220 = vpop.f32.mrf.mxu0
        %v7221 = vadd.f32 %v7202, %v7220
        %v7222 = vpop.f32.mrf.mxu0
        %v7223 = vadd.f32 %v7204, %v7222
        %7224 = vdwg.mxu0
        %7225 = vmatpush.bf16.msra.mxu0 %v5200
        %7226 = vmatpush.bf16.msra.mxu0 %v5192
        %7227 = vmatpush.bf16.msra.mxu0 %v5184
        %7228 = vmatpush.bf16.msra.mxu0 %v5176
        %7229 = vmatpush.bf16.msra.mxu0 %v5168
        %7230 = vmatpush.bf16.msra.mxu0 %v5160
        %7231 = vmatpush.bf16.msra.mxu0 %v5152
        %7232 = vmatpush.bf16.msra.mxu0 %v5144
        %7233 = vmatmul.bf16.gmra.mxu0 %v619
        %v7234 = vpop.f32.mrf.mxu0
        %v7235 = vadd.f32 %v7216, %v7234
        %v7236 = vpop.f32.mrf.mxu0
        %v7237 = vadd.f32 %v7218, %v7236
        %7238 = vmatmul.bf16.gmra.mxu0 %v635
        %v7239 = vpop.f32.mrf.mxu0
        %v7240 = vadd.f32 %v7221, %v7239
        %v7241 = vpop.f32.mrf.mxu0
        %v7242 = vadd.f32 %v7223, %v7241
        %7243 = vdwg.mxu0
        %7244 = vmatpush.bf16.msra.mxu0 %v5264
        %7245 = vmatpush.bf16.msra.mxu0 %v5256
        %7246 = vmatpush.bf16.msra.mxu0 %v5248
        %7247 = vmatpush.bf16.msra.mxu0 %v5240
        %7248 = vmatpush.bf16.msra.mxu0 %v5232
        %7249 = vmatpush.bf16.msra.mxu0 %v5224
        %7250 = vmatpush.bf16.msra.mxu0 %v5216
        %7251 = vmatpush.bf16.msra.mxu0 %v5208
        %7252 = vmatmul.bf16.gmra.mxu0 %v620
        %v7253 = vpop.f32.mrf.mxu0
        %v7254 = vadd.f32 %v7235, %v7253
        %v7255 = vpop.f32.mrf.mxu0
        %v7256 = vadd.f32 %v7237, %v7255
        %7257 = vmatmul.bf16.gmra.mxu0 %v636
        %v7258 = vpop.f32.mrf.mxu0
        %v7259 = vadd.f32 %v7240, %v7258
        %v7260 = vpop.f32.mrf.mxu0
        %v7261 = vadd.f32 %v7242, %v7260
        %7262 = vdwg.mxu0
        %7263 = vmatpush.bf16.msra.mxu0 %v5328
        %7264 = vmatpush.bf16.msra.mxu0 %v5320
        %7265 = vmatpush.bf16.msra.mxu0 %v5312
        %7266 = vmatpush.bf16.msra.mxu0 %v5304
        %7267 = vmatpush.bf16.msra.mxu0 %v5296
        %7268 = vmatpush.bf16.msra.mxu0 %v5288
        %7269 = vmatpush.bf16.msra.mxu0 %v5280
        %7270 = vmatpush.bf16.msra.mxu0 %v5272
        %7271 = vmatmul.bf16.gmra.mxu0 %v621
        %v7272 = vpop.f32.mrf.mxu0
        %v7273 = vadd.f32 %v7254, %v7272
        %v7274 = vpop.f32.mrf.mxu0
        %v7275 = vadd.f32 %v7256, %v7274
        %7276 = vmatmul.bf16.gmra.mxu0 %v637
        %v7277 = vpop.f32.mrf.mxu0
        %v7278 = vadd.f32 %v7259, %v7277
        %v7279 = vpop.f32.mrf.mxu0
        %v7280 = vadd.f32 %v7261, %v7279
        %7281 = vdwg.mxu0
        %7282 = vmatpush.bf16.msra.mxu0 %v5392
        %7283 = vmatpush.bf16.msra.mxu0 %v5384
        %7284 = vmatpush.bf16.msra.mxu0 %v5376
        %7285 = vmatpush.bf16.msra.mxu0 %v5368
        %7286 = vmatpush.bf16.msra.mxu0 %v5360
        %7287 = vmatpush.bf16.msra.mxu0 %v5352
        %7288 = vmatpush.bf16.msra.mxu0 %v5344
        %7289 = vmatpush.bf16.msra.mxu0 %v5336
        %7290 = vmatmul.bf16.gmra.mxu0 %v622
        %v7291 = vpop.f32.mrf.mxu0
        %v7292 = vadd.f32 %v7273, %v7291
        %v7293 = vpop.f32.mrf.mxu0
        %v7294 = vadd.f32 %v7275, %v7293
        %7295 = vmatmul.bf16.gmra.mxu0 %v638
        %v7296 = vpop.f32.mrf.mxu0
        %v7297 = vadd.f32 %v7278, %v7296
        %v7298 = vpop.f32.mrf.mxu0
        %v7299 = vadd.f32 %v7280, %v7298
        %7300 = vdwg.mxu0
        %7301 = vmatpush.bf16.msra.mxu0 %v5456
        %7302 = vmatpush.bf16.msra.mxu0 %v5448
        %7303 = vmatpush.bf16.msra.mxu0 %v5440
        %7304 = vmatpush.bf16.msra.mxu0 %v5432
        %7305 = vmatpush.bf16.msra.mxu0 %v5424
        %7306 = vmatpush.bf16.msra.mxu0 %v5416
        %7307 = vmatpush.bf16.msra.mxu0 %v5408
        %7308 = vmatpush.bf16.msra.mxu0 %v5400
        %7309 = vmatmul.bf16.gmra.mxu0 %v623
        %v7310 = vpop.f32.mrf.mxu0
        %v7311 = vadd.f32 %v7292, %v7310
        %v7312 = vpop.f32.mrf.mxu0
        %v7313 = vadd.f32 %v7294, %v7312
        %7314 = vmatmul.bf16.gmra.mxu0 %v639
        %v7315 = vpop.f32.mrf.mxu0
        %v7316 = vadd.f32 %v7297, %v7315
        %v7317 = vpop.f32.mrf.mxu0
        %v7318 = vadd.f32 %v7299, %v7317
        %7319 = vdwg.mxu0
        %7320 = vmatpush.bf16.msra.mxu0 %v5520
        %7321 = vmatpush.bf16.msra.mxu0 %v5512
        %7322 = vmatpush.bf16.msra.mxu0 %v5504
        %7323 = vmatpush.bf16.msra.mxu0 %v5496
        %7324 = vmatpush.bf16.msra.mxu0 %v5488
        %7325 = vmatpush.bf16.msra.mxu0 %v5480
        %7326 = vmatpush.bf16.msra.mxu0 %v5472
        %7327 = vmatpush.bf16.msra.mxu0 %v5464
        %7328 = vmatmul.bf16.gmra.mxu0 %v624
        %v7329 = vpop.f32.mrf.mxu0
        %v7330 = vadd.f32 %v7311, %v7329
        %v7331 = vpop.f32.mrf.mxu0
        %v7332 = vadd.f32 %v7313, %v7331
        %7333 = vmatmul.bf16.gmra.mxu0 %v640
        %v7334 = vpop.f32.mrf.mxu0
        %v7335 = vadd.f32 %v7316, %v7334
        %v7336 = vpop.f32.mrf.mxu0
        %v7337 = vadd.f32 %v7318, %v7336
        %7338 = vdwg.mxu0
        %7339 = vmatpush.bf16.msra.mxu0 %v5584
        %7340 = vmatpush.bf16.msra.mxu0 %v5576
        %7341 = vmatpush.bf16.msra.mxu0 %v5568
        %7342 = vmatpush.bf16.msra.mxu0 %v5560
        %7343 = vmatpush.bf16.msra.mxu0 %v5552
        %7344 = vmatpush.bf16.msra.mxu0 %v5544
        %7345 = vmatpush.bf16.msra.mxu0 %v5536
        %7346 = vmatpush.bf16.msra.mxu0 %v5528
        %7347 = vmatmul.bf16.gmra.mxu0 %v625
        %v7348 = vpop.f32.mrf.mxu0
        %v7349 = vadd.f32 %v7330, %v7348
        %v7350 = vpop.f32.mrf.mxu0
        %v7351 = vadd.f32 %v7332, %v7350
        %7352 = vmatmul.bf16.gmra.mxu0 %v641
        %v7353 = vpop.f32.mrf.mxu0
        %v7354 = vadd.f32 %v7335, %v7353
        %v7355 = vpop.f32.mrf.mxu0
        %v7356 = vadd.f32 %v7337, %v7355
        %7357 = vdwg.mxu0
        %7358 = vmatpush.bf16.msra.mxu0 %v5648
        %7359 = vmatpush.bf16.msra.mxu0 %v5640
        %7360 = vmatpush.bf16.msra.mxu0 %v5632
        %7361 = vmatpush.bf16.msra.mxu0 %v5624
        %7362 = vmatpush.bf16.msra.mxu0 %v5616
        %7363 = vmatpush.bf16.msra.mxu0 %v5608
        %7364 = vmatpush.bf16.msra.mxu0 %v5600
        %7365 = vmatpush.bf16.msra.mxu0 %v5592
        %7366 = vmatmul.bf16.gmra.mxu0 %v626
        %v7367 = vpop.f32.mrf.mxu0
        %v7368 = vadd.f32 %v7349, %v7367
        %v7369 = vpop.f32.mrf.mxu0
        %v7370 = vadd.f32 %v7351, %v7369
        %7371 = vmatmul.bf16.gmra.mxu0 %v642
        %v7372 = vpop.f32.mrf.mxu0
        %v7373 = vadd.f32 %v7354, %v7372
        %v7374 = vpop.f32.mrf.mxu0
        %v7375 = vadd.f32 %v7356, %v7374
        %7376 = vdwg.mxu0
        %7377 = vmatpush.bf16.msra.mxu0 %v5712
        %7378 = vmatpush.bf16.msra.mxu0 %v5704
        %7379 = vmatpush.bf16.msra.mxu0 %v5696
        %7380 = vmatpush.bf16.msra.mxu0 %v5688
        %7381 = vmatpush.bf16.msra.mxu0 %v5680
        %7382 = vmatpush.bf16.msra.mxu0 %v5672
        %7383 = vmatpush.bf16.msra.mxu0 %v5664
        %7384 = vmatpush.bf16.msra.mxu0 %v5656
        %7385 = vmatmul.bf16.gmra.mxu0 %v627
        %v7386 = vpop.f32.mrf.mxu0
        %v7387 = vadd.f32 %v7368, %v7386
        %v7388 = vpop.f32.mrf.mxu0
        %v7389 = vadd.f32 %v7370, %v7388
        %7390 = vmatmul.bf16.gmra.mxu0 %v643
        %v7391 = vpop.f32.mrf.mxu0
        %v7392 = vadd.f32 %v7373, %v7391
        %v7393 = vpop.f32.mrf.mxu0
        %v7394 = vadd.f32 %v7375, %v7393
        %7395 = vdwg.mxu0
        %7396 = vmatpush.bf16.msra.mxu0 %v5776
        %7397 = vmatpush.bf16.msra.mxu0 %v5768
        %7398 = vmatpush.bf16.msra.mxu0 %v5760
        %7399 = vmatpush.bf16.msra.mxu0 %v5752
        %7400 = vmatpush.bf16.msra.mxu0 %v5744
        %7401 = vmatpush.bf16.msra.mxu0 %v5736
        %7402 = vmatpush.bf16.msra.mxu0 %v5728
        %7403 = vmatpush.bf16.msra.mxu0 %v5720
        %7404 = vmatmul.bf16.gmra.mxu0 %v628
        %v7405 = vpop.f32.mrf.mxu0
        %v7406 = vadd.f32 %v7387, %v7405
        %v7407 = vpop.f32.mrf.mxu0
        %v7408 = vadd.f32 %v7389, %v7407
        %7409 = vmatmul.bf16.gmra.mxu0 %v644
        %v7410 = vpop.f32.mrf.mxu0
        %v7411 = vadd.f32 %v7392, %v7410
        %v7412 = vpop.f32.mrf.mxu0
        %v7413 = vadd.f32 %v7394, %v7412
        %7414 = vdwg.mxu0
        %7415 = vmatpush.bf16.msra.mxu0 %v4817
        %7416 = vmatpush.bf16.msra.mxu0 %v4809
        %7417 = vmatpush.bf16.msra.mxu0 %v4801
        %7418 = vmatpush.bf16.msra.mxu0 %v4793
        %7419 = vmatpush.bf16.msra.mxu0 %v4785
        %7420 = vmatpush.bf16.msra.mxu0 %v4777
        %7421 = vmatpush.bf16.msra.mxu0 %v4769
        %7422 = vmatpush.bf16.msra.mxu0 %v4761
        %7423 = vmatmul.bf16.gmra.mxu0 %v613
        %v7424 = vpop.f32.mrf.mxu0
        %v7425 = vadd.f32 %v1673, %v7424
        %v7426 = vpop.f32.mrf.mxu0
        %v7427 = vadd.f32 %v1673, %v7426
        %7428 = vmatmul.bf16.gmra.mxu0 %v629
        %v7429 = vpop.f32.mrf.mxu0
        %v7430 = vadd.f32 %v1673, %v7429
        %v7431 = vpop.f32.mrf.mxu0
        %v7432 = vadd.f32 %v1673, %v7431
        %7433 = vdwg.mxu0
        %7434 = vmatpush.bf16.msra.mxu0 %v4881
        %7435 = vmatpush.bf16.msra.mxu0 %v4873
        %7436 = vmatpush.bf16.msra.mxu0 %v4865
        %7437 = vmatpush.bf16.msra.mxu0 %v4857
        %7438 = vmatpush.bf16.msra.mxu0 %v4849
        %7439 = vmatpush.bf16.msra.mxu0 %v4841
        %7440 = vmatpush.bf16.msra.mxu0 %v4833
        %7441 = vmatpush.bf16.msra.mxu0 %v4825
        %7442 = vmatmul.bf16.gmra.mxu0 %v614
        %v7443 = vpop.f32.mrf.mxu0
        %v7444 = vadd.f32 %v7425, %v7443
        %v7445 = vpop.f32.mrf.mxu0
        %v7446 = vadd.f32 %v7427, %v7445
        %7447 = vmatmul.bf16.gmra.mxu0 %v630
        %v7448 = vpop.f32.mrf.mxu0
        %v7449 = vadd.f32 %v7430, %v7448
        %v7450 = vpop.f32.mrf.mxu0
        %v7451 = vadd.f32 %v7432, %v7450
        %7452 = vdwg.mxu0
        %7453 = vmatpush.bf16.msra.mxu0 %v4945
        %7454 = vmatpush.bf16.msra.mxu0 %v4937
        %7455 = vmatpush.bf16.msra.mxu0 %v4929
        %7456 = vmatpush.bf16.msra.mxu0 %v4921
        %7457 = vmatpush.bf16.msra.mxu0 %v4913
        %7458 = vmatpush.bf16.msra.mxu0 %v4905
        %7459 = vmatpush.bf16.msra.mxu0 %v4897
        %7460 = vmatpush.bf16.msra.mxu0 %v4889
        %7461 = vmatmul.bf16.gmra.mxu0 %v615
        %v7462 = vpop.f32.mrf.mxu0
        %v7463 = vadd.f32 %v7444, %v7462
        %v7464 = vpop.f32.mrf.mxu0
        %v7465 = vadd.f32 %v7446, %v7464
        %7466 = vmatmul.bf16.gmra.mxu0 %v631
        %v7467 = vpop.f32.mrf.mxu0
        %v7468 = vadd.f32 %v7449, %v7467
        %v7469 = vpop.f32.mrf.mxu0
        %v7470 = vadd.f32 %v7451, %v7469
        %7471 = vdwg.mxu0
        %7472 = vmatpush.bf16.msra.mxu0 %v5009
        %7473 = vmatpush.bf16.msra.mxu0 %v5001
        %7474 = vmatpush.bf16.msra.mxu0 %v4993
        %7475 = vmatpush.bf16.msra.mxu0 %v4985
        %7476 = vmatpush.bf16.msra.mxu0 %v4977
        %7477 = vmatpush.bf16.msra.mxu0 %v4969
        %7478 = vmatpush.bf16.msra.mxu0 %v4961
        %7479 = vmatpush.bf16.msra.mxu0 %v4953
        %7480 = vmatmul.bf16.gmra.mxu0 %v616
        %v7481 = vpop.f32.mrf.mxu0
        %v7482 = vadd.f32 %v7463, %v7481
        %v7483 = vpop.f32.mrf.mxu0
        %v7484 = vadd.f32 %v7465, %v7483
        %7485 = vmatmul.bf16.gmra.mxu0 %v632
        %v7486 = vpop.f32.mrf.mxu0
        %v7487 = vadd.f32 %v7468, %v7486
        %v7488 = vpop.f32.mrf.mxu0
        %v7489 = vadd.f32 %v7470, %v7488
        %7490 = vdwg.mxu0
        %7491 = vmatpush.bf16.msra.mxu0 %v5073
        %7492 = vmatpush.bf16.msra.mxu0 %v5065
        %7493 = vmatpush.bf16.msra.mxu0 %v5057
        %7494 = vmatpush.bf16.msra.mxu0 %v5049
        %7495 = vmatpush.bf16.msra.mxu0 %v5041
        %7496 = vmatpush.bf16.msra.mxu0 %v5033
        %7497 = vmatpush.bf16.msra.mxu0 %v5025
        %7498 = vmatpush.bf16.msra.mxu0 %v5017
        %7499 = vmatmul.bf16.gmra.mxu0 %v617
        %v7500 = vpop.f32.mrf.mxu0
        %v7501 = vadd.f32 %v7482, %v7500
        %v7502 = vpop.f32.mrf.mxu0
        %v7503 = vadd.f32 %v7484, %v7502
        %7504 = vmatmul.bf16.gmra.mxu0 %v633
        %v7505 = vpop.f32.mrf.mxu0
        %v7506 = vadd.f32 %v7487, %v7505
        %v7507 = vpop.f32.mrf.mxu0
        %v7508 = vadd.f32 %v7489, %v7507
        %7509 = vdwg.mxu0
        %7510 = vmatpush.bf16.msra.mxu0 %v5137
        %7511 = vmatpush.bf16.msra.mxu0 %v5129
        %7512 = vmatpush.bf16.msra.mxu0 %v5121
        %7513 = vmatpush.bf16.msra.mxu0 %v5113
        %7514 = vmatpush.bf16.msra.mxu0 %v5105
        %7515 = vmatpush.bf16.msra.mxu0 %v5097
        %7516 = vmatpush.bf16.msra.mxu0 %v5089
        %7517 = vmatpush.bf16.msra.mxu0 %v5081
        %7518 = vmatmul.bf16.gmra.mxu0 %v618
        %v7519 = vpop.f32.mrf.mxu0
        %v7520 = vadd.f32 %v7501, %v7519
        %v7521 = vpop.f32.mrf.mxu0
        %v7522 = vadd.f32 %v7503, %v7521
        %7523 = vmatmul.bf16.gmra.mxu0 %v634
        %v7524 = vpop.f32.mrf.mxu0
        %v7525 = vadd.f32 %v7506, %v7524
        %v7526 = vpop.f32.mrf.mxu0
        %v7527 = vadd.f32 %v7508, %v7526
        %7528 = vdwg.mxu0
        %7529 = vmatpush.bf16.msra.mxu0 %v5201
        %7530 = vmatpush.bf16.msra.mxu0 %v5193
        %7531 = vmatpush.bf16.msra.mxu0 %v5185
        %7532 = vmatpush.bf16.msra.mxu0 %v5177
        %7533 = vmatpush.bf16.msra.mxu0 %v5169
        %7534 = vmatpush.bf16.msra.mxu0 %v5161
        %7535 = vmatpush.bf16.msra.mxu0 %v5153
        %7536 = vmatpush.bf16.msra.mxu0 %v5145
        %7537 = vmatmul.bf16.gmra.mxu0 %v619
        %v7538 = vpop.f32.mrf.mxu0
        %v7539 = vadd.f32 %v7520, %v7538
        %v7540 = vpop.f32.mrf.mxu0
        %v7541 = vadd.f32 %v7522, %v7540
        %7542 = vmatmul.bf16.gmra.mxu0 %v635
        %v7543 = vpop.f32.mrf.mxu0
        %v7544 = vadd.f32 %v7525, %v7543
        %v7545 = vpop.f32.mrf.mxu0
        %v7546 = vadd.f32 %v7527, %v7545
        %7547 = vdwg.mxu0
        %7548 = vmatpush.bf16.msra.mxu0 %v5265
        %7549 = vmatpush.bf16.msra.mxu0 %v5257
        %7550 = vmatpush.bf16.msra.mxu0 %v5249
        %7551 = vmatpush.bf16.msra.mxu0 %v5241
        %7552 = vmatpush.bf16.msra.mxu0 %v5233
        %7553 = vmatpush.bf16.msra.mxu0 %v5225
        %7554 = vmatpush.bf16.msra.mxu0 %v5217
        %7555 = vmatpush.bf16.msra.mxu0 %v5209
        %7556 = vmatmul.bf16.gmra.mxu0 %v620
        %v7557 = vpop.f32.mrf.mxu0
        %v7558 = vadd.f32 %v7539, %v7557
        %v7559 = vpop.f32.mrf.mxu0
        %v7560 = vadd.f32 %v7541, %v7559
        %7561 = vmatmul.bf16.gmra.mxu0 %v636
        %v7562 = vpop.f32.mrf.mxu0
        %v7563 = vadd.f32 %v7544, %v7562
        %v7564 = vpop.f32.mrf.mxu0
        %v7565 = vadd.f32 %v7546, %v7564
        %7566 = vdwg.mxu0
        %7567 = vmatpush.bf16.msra.mxu0 %v5329
        %7568 = vmatpush.bf16.msra.mxu0 %v5321
        %7569 = vmatpush.bf16.msra.mxu0 %v5313
        %7570 = vmatpush.bf16.msra.mxu0 %v5305
        %7571 = vmatpush.bf16.msra.mxu0 %v5297
        %7572 = vmatpush.bf16.msra.mxu0 %v5289
        %7573 = vmatpush.bf16.msra.mxu0 %v5281
        %7574 = vmatpush.bf16.msra.mxu0 %v5273
        %7575 = vmatmul.bf16.gmra.mxu0 %v621
        %v7576 = vpop.f32.mrf.mxu0
        %v7577 = vadd.f32 %v7558, %v7576
        %v7578 = vpop.f32.mrf.mxu0
        %v7579 = vadd.f32 %v7560, %v7578
        %7580 = vmatmul.bf16.gmra.mxu0 %v637
        %v7581 = vpop.f32.mrf.mxu0
        %v7582 = vadd.f32 %v7563, %v7581
        %v7583 = vpop.f32.mrf.mxu0
        %v7584 = vadd.f32 %v7565, %v7583
        %7585 = vdwg.mxu0
        %7586 = vmatpush.bf16.msra.mxu0 %v5393
        %7587 = vmatpush.bf16.msra.mxu0 %v5385
        %7588 = vmatpush.bf16.msra.mxu0 %v5377
        %7589 = vmatpush.bf16.msra.mxu0 %v5369
        %7590 = vmatpush.bf16.msra.mxu0 %v5361
        %7591 = vmatpush.bf16.msra.mxu0 %v5353
        %7592 = vmatpush.bf16.msra.mxu0 %v5345
        %7593 = vmatpush.bf16.msra.mxu0 %v5337
        %7594 = vmatmul.bf16.gmra.mxu0 %v622
        %v7595 = vpop.f32.mrf.mxu0
        %v7596 = vadd.f32 %v7577, %v7595
        %v7597 = vpop.f32.mrf.mxu0
        %v7598 = vadd.f32 %v7579, %v7597
        %7599 = vmatmul.bf16.gmra.mxu0 %v638
        %v7600 = vpop.f32.mrf.mxu0
        %v7601 = vadd.f32 %v7582, %v7600
        %v7602 = vpop.f32.mrf.mxu0
        %v7603 = vadd.f32 %v7584, %v7602
        %7604 = vdwg.mxu0
        %7605 = vmatpush.bf16.msra.mxu0 %v5457
        %7606 = vmatpush.bf16.msra.mxu0 %v5449
        %7607 = vmatpush.bf16.msra.mxu0 %v5441
        %7608 = vmatpush.bf16.msra.mxu0 %v5433
        %7609 = vmatpush.bf16.msra.mxu0 %v5425
        %7610 = vmatpush.bf16.msra.mxu0 %v5417
        %7611 = vmatpush.bf16.msra.mxu0 %v5409
        %7612 = vmatpush.bf16.msra.mxu0 %v5401
        %7613 = vmatmul.bf16.gmra.mxu0 %v623
        %v7614 = vpop.f32.mrf.mxu0
        %v7615 = vadd.f32 %v7596, %v7614
        %v7616 = vpop.f32.mrf.mxu0
        %v7617 = vadd.f32 %v7598, %v7616
        %7618 = vmatmul.bf16.gmra.mxu0 %v639
        %v7619 = vpop.f32.mrf.mxu0
        %v7620 = vadd.f32 %v7601, %v7619
        %v7621 = vpop.f32.mrf.mxu0
        %v7622 = vadd.f32 %v7603, %v7621
        %7623 = vdwg.mxu0
        %7624 = vmatpush.bf16.msra.mxu0 %v5521
        %7625 = vmatpush.bf16.msra.mxu0 %v5513
        %7626 = vmatpush.bf16.msra.mxu0 %v5505
        %7627 = vmatpush.bf16.msra.mxu0 %v5497
        %7628 = vmatpush.bf16.msra.mxu0 %v5489
        %7629 = vmatpush.bf16.msra.mxu0 %v5481
        %7630 = vmatpush.bf16.msra.mxu0 %v5473
        %7631 = vmatpush.bf16.msra.mxu0 %v5465
        %7632 = vmatmul.bf16.gmra.mxu0 %v624
        %v7633 = vpop.f32.mrf.mxu0
        %v7634 = vadd.f32 %v7615, %v7633
        %v7635 = vpop.f32.mrf.mxu0
        %v7636 = vadd.f32 %v7617, %v7635
        %7637 = vmatmul.bf16.gmra.mxu0 %v640
        %v7638 = vpop.f32.mrf.mxu0
        %v7639 = vadd.f32 %v7620, %v7638
        %v7640 = vpop.f32.mrf.mxu0
        %v7641 = vadd.f32 %v7622, %v7640
        %7642 = vdwg.mxu0
        %7643 = vmatpush.bf16.msra.mxu0 %v5585
        %7644 = vmatpush.bf16.msra.mxu0 %v5577
        %7645 = vmatpush.bf16.msra.mxu0 %v5569
        %7646 = vmatpush.bf16.msra.mxu0 %v5561
        %7647 = vmatpush.bf16.msra.mxu0 %v5553
        %7648 = vmatpush.bf16.msra.mxu0 %v5545
        %7649 = vmatpush.bf16.msra.mxu0 %v5537
        %7650 = vmatpush.bf16.msra.mxu0 %v5529
        %7651 = vmatmul.bf16.gmra.mxu0 %v625
        %v7652 = vpop.f32.mrf.mxu0
        %v7653 = vadd.f32 %v7634, %v7652
        %v7654 = vpop.f32.mrf.mxu0
        %v7655 = vadd.f32 %v7636, %v7654
        %7656 = vmatmul.bf16.gmra.mxu0 %v641
        %v7657 = vpop.f32.mrf.mxu0
        %v7658 = vadd.f32 %v7639, %v7657
        %v7659 = vpop.f32.mrf.mxu0
        %v7660 = vadd.f32 %v7641, %v7659
        %7661 = vdwg.mxu0
        %7662 = vmatpush.bf16.msra.mxu0 %v5649
        %7663 = vmatpush.bf16.msra.mxu0 %v5641
        %7664 = vmatpush.bf16.msra.mxu0 %v5633
        %7665 = vmatpush.bf16.msra.mxu0 %v5625
        %7666 = vmatpush.bf16.msra.mxu0 %v5617
        %7667 = vmatpush.bf16.msra.mxu0 %v5609
        %7668 = vmatpush.bf16.msra.mxu0 %v5601
        %7669 = vmatpush.bf16.msra.mxu0 %v5593
        %7670 = vmatmul.bf16.gmra.mxu0 %v626
        %v7671 = vpop.f32.mrf.mxu0
        %v7672 = vadd.f32 %v7653, %v7671
        %v7673 = vpop.f32.mrf.mxu0
        %v7674 = vadd.f32 %v7655, %v7673
        %7675 = vmatmul.bf16.gmra.mxu0 %v642
        %v7676 = vpop.f32.mrf.mxu0
        %v7677 = vadd.f32 %v7658, %v7676
        %v7678 = vpop.f32.mrf.mxu0
        %v7679 = vadd.f32 %v7660, %v7678
        %7680 = vdwg.mxu0
        %7681 = vmatpush.bf16.msra.mxu0 %v5713
        %7682 = vmatpush.bf16.msra.mxu0 %v5705
        %7683 = vmatpush.bf16.msra.mxu0 %v5697
        %7684 = vmatpush.bf16.msra.mxu0 %v5689
        %7685 = vmatpush.bf16.msra.mxu0 %v5681
        %7686 = vmatpush.bf16.msra.mxu0 %v5673
        %7687 = vmatpush.bf16.msra.mxu0 %v5665
        %7688 = vmatpush.bf16.msra.mxu0 %v5657
        %7689 = vmatmul.bf16.gmra.mxu0 %v627
        %v7690 = vpop.f32.mrf.mxu0
        %v7691 = vadd.f32 %v7672, %v7690
        %v7692 = vpop.f32.mrf.mxu0
        %v7693 = vadd.f32 %v7674, %v7692
        %7694 = vmatmul.bf16.gmra.mxu0 %v643
        %v7695 = vpop.f32.mrf.mxu0
        %v7696 = vadd.f32 %v7677, %v7695
        %v7697 = vpop.f32.mrf.mxu0
        %v7698 = vadd.f32 %v7679, %v7697
        %7699 = vdwg.mxu0
        %7700 = vmatpush.bf16.msra.mxu0 %v5777
        %7701 = vmatpush.bf16.msra.mxu0 %v5769
        %7702 = vmatpush.bf16.msra.mxu0 %v5761
        %7703 = vmatpush.bf16.msra.mxu0 %v5753
        %7704 = vmatpush.bf16.msra.mxu0 %v5745
        %7705 = vmatpush.bf16.msra.mxu0 %v5737
        %7706 = vmatpush.bf16.msra.mxu0 %v5729
        %7707 = vmatpush.bf16.msra.mxu0 %v5721
        %7708 = vmatmul.bf16.gmra.mxu0 %v628
        %v7709 = vpop.f32.mrf.mxu0
        %v7710 = vadd.f32 %v7691, %v7709
        %v7711 = vpop.f32.mrf.mxu0
        %v7712 = vadd.f32 %v7693, %v7711
        %7713 = vmatmul.bf16.gmra.mxu0 %v644
        %v7714 = vpop.f32.mrf.mxu0
        %v7715 = vadd.f32 %v7696, %v7714
        %v7716 = vpop.f32.mrf.mxu0
        %v7717 = vadd.f32 %v7698, %v7716
        %7718 = vdwg.mxu0
        %7719 = vmatpush.bf16.msra.mxu0 %v4818
        %7720 = vmatpush.bf16.msra.mxu0 %v4810
        %7721 = vmatpush.bf16.msra.mxu0 %v4802
        %7722 = vmatpush.bf16.msra.mxu0 %v4794
        %7723 = vmatpush.bf16.msra.mxu0 %v4786
        %7724 = vmatpush.bf16.msra.mxu0 %v4778
        %7725 = vmatpush.bf16.msra.mxu0 %v4770
        %7726 = vmatpush.bf16.msra.mxu0 %v4762
        %7727 = vmatmul.bf16.gmra.mxu0 %v613
        %v7728 = vpop.f32.mrf.mxu0
        %v7729 = vadd.f32 %v1674, %v7728
        %v7730 = vpop.f32.mrf.mxu0
        %v7731 = vadd.f32 %v1674, %v7730
        %7732 = vmatmul.bf16.gmra.mxu0 %v629
        %v7733 = vpop.f32.mrf.mxu0
        %v7734 = vadd.f32 %v1674, %v7733
        %v7735 = vpop.f32.mrf.mxu0
        %v7736 = vadd.f32 %v1674, %v7735
        %7737 = vdwg.mxu0
        %7738 = vmatpush.bf16.msra.mxu0 %v4882
        %7739 = vmatpush.bf16.msra.mxu0 %v4874
        %7740 = vmatpush.bf16.msra.mxu0 %v4866
        %7741 = vmatpush.bf16.msra.mxu0 %v4858
        %7742 = vmatpush.bf16.msra.mxu0 %v4850
        %7743 = vmatpush.bf16.msra.mxu0 %v4842
        %7744 = vmatpush.bf16.msra.mxu0 %v4834
        %7745 = vmatpush.bf16.msra.mxu0 %v4826
        %7746 = vmatmul.bf16.gmra.mxu0 %v614
        %v7747 = vpop.f32.mrf.mxu0
        %v7748 = vadd.f32 %v7729, %v7747
        %v7749 = vpop.f32.mrf.mxu0
        %v7750 = vadd.f32 %v7731, %v7749
        %7751 = vmatmul.bf16.gmra.mxu0 %v630
        %v7752 = vpop.f32.mrf.mxu0
        %v7753 = vadd.f32 %v7734, %v7752
        %v7754 = vpop.f32.mrf.mxu0
        %v7755 = vadd.f32 %v7736, %v7754
        %7756 = vdwg.mxu0
        %7757 = vmatpush.bf16.msra.mxu0 %v4946
        %7758 = vmatpush.bf16.msra.mxu0 %v4938
        %7759 = vmatpush.bf16.msra.mxu0 %v4930
        %7760 = vmatpush.bf16.msra.mxu0 %v4922
        %7761 = vmatpush.bf16.msra.mxu0 %v4914
        %7762 = vmatpush.bf16.msra.mxu0 %v4906
        %7763 = vmatpush.bf16.msra.mxu0 %v4898
        %7764 = vmatpush.bf16.msra.mxu0 %v4890
        %7765 = vmatmul.bf16.gmra.mxu0 %v615
        %v7766 = vpop.f32.mrf.mxu0
        %v7767 = vadd.f32 %v7748, %v7766
        %v7768 = vpop.f32.mrf.mxu0
        %v7769 = vadd.f32 %v7750, %v7768
        %7770 = vmatmul.bf16.gmra.mxu0 %v631
        %v7771 = vpop.f32.mrf.mxu0
        %v7772 = vadd.f32 %v7753, %v7771
        %v7773 = vpop.f32.mrf.mxu0
        %v7774 = vadd.f32 %v7755, %v7773
        %7775 = vdwg.mxu0
        %7776 = vmatpush.bf16.msra.mxu0 %v5010
        %7777 = vmatpush.bf16.msra.mxu0 %v5002
        %7778 = vmatpush.bf16.msra.mxu0 %v4994
        %7779 = vmatpush.bf16.msra.mxu0 %v4986
        %7780 = vmatpush.bf16.msra.mxu0 %v4978
        %7781 = vmatpush.bf16.msra.mxu0 %v4970
        %7782 = vmatpush.bf16.msra.mxu0 %v4962
        %7783 = vmatpush.bf16.msra.mxu0 %v4954
        %7784 = vmatmul.bf16.gmra.mxu0 %v616
        %v7785 = vpop.f32.mrf.mxu0
        %v7786 = vadd.f32 %v7767, %v7785
        %v7787 = vpop.f32.mrf.mxu0
        %v7788 = vadd.f32 %v7769, %v7787
        %7789 = vmatmul.bf16.gmra.mxu0 %v632
        %v7790 = vpop.f32.mrf.mxu0
        %v7791 = vadd.f32 %v7772, %v7790
        %v7792 = vpop.f32.mrf.mxu0
        %v7793 = vadd.f32 %v7774, %v7792
        %7794 = vdwg.mxu0
        %7795 = vmatpush.bf16.msra.mxu0 %v5074
        %7796 = vmatpush.bf16.msra.mxu0 %v5066
        %7797 = vmatpush.bf16.msra.mxu0 %v5058
        %7798 = vmatpush.bf16.msra.mxu0 %v5050
        %7799 = vmatpush.bf16.msra.mxu0 %v5042
        %7800 = vmatpush.bf16.msra.mxu0 %v5034
        %7801 = vmatpush.bf16.msra.mxu0 %v5026
        %7802 = vmatpush.bf16.msra.mxu0 %v5018
        %7803 = vmatmul.bf16.gmra.mxu0 %v617
        %v7804 = vpop.f32.mrf.mxu0
        %v7805 = vadd.f32 %v7786, %v7804
        %v7806 = vpop.f32.mrf.mxu0
        %v7807 = vadd.f32 %v7788, %v7806
        %7808 = vmatmul.bf16.gmra.mxu0 %v633
        %v7809 = vpop.f32.mrf.mxu0
        %v7810 = vadd.f32 %v7791, %v7809
        %v7811 = vpop.f32.mrf.mxu0
        %v7812 = vadd.f32 %v7793, %v7811
        %7813 = vdwg.mxu0
        %7814 = vmatpush.bf16.msra.mxu0 %v5138
        %7815 = vmatpush.bf16.msra.mxu0 %v5130
        %7816 = vmatpush.bf16.msra.mxu0 %v5122
        %7817 = vmatpush.bf16.msra.mxu0 %v5114
        %7818 = vmatpush.bf16.msra.mxu0 %v5106
        %7819 = vmatpush.bf16.msra.mxu0 %v5098
        %7820 = vmatpush.bf16.msra.mxu0 %v5090
        %7821 = vmatpush.bf16.msra.mxu0 %v5082
        %7822 = vmatmul.bf16.gmra.mxu0 %v618
        %v7823 = vpop.f32.mrf.mxu0
        %v7824 = vadd.f32 %v7805, %v7823
        %v7825 = vpop.f32.mrf.mxu0
        %v7826 = vadd.f32 %v7807, %v7825
        %7827 = vmatmul.bf16.gmra.mxu0 %v634
        %v7828 = vpop.f32.mrf.mxu0
        %v7829 = vadd.f32 %v7810, %v7828
        %v7830 = vpop.f32.mrf.mxu0
        %v7831 = vadd.f32 %v7812, %v7830
        %7832 = vdwg.mxu0
        %7833 = vmatpush.bf16.msra.mxu0 %v5202
        %7834 = vmatpush.bf16.msra.mxu0 %v5194
        %7835 = vmatpush.bf16.msra.mxu0 %v5186
        %7836 = vmatpush.bf16.msra.mxu0 %v5178
        %7837 = vmatpush.bf16.msra.mxu0 %v5170
        %7838 = vmatpush.bf16.msra.mxu0 %v5162
        %7839 = vmatpush.bf16.msra.mxu0 %v5154
        %7840 = vmatpush.bf16.msra.mxu0 %v5146
        %7841 = vmatmul.bf16.gmra.mxu0 %v619
        %v7842 = vpop.f32.mrf.mxu0
        %v7843 = vadd.f32 %v7824, %v7842
        %v7844 = vpop.f32.mrf.mxu0
        %v7845 = vadd.f32 %v7826, %v7844
        %7846 = vmatmul.bf16.gmra.mxu0 %v635
        %v7847 = vpop.f32.mrf.mxu0
        %v7848 = vadd.f32 %v7829, %v7847
        %v7849 = vpop.f32.mrf.mxu0
        %v7850 = vadd.f32 %v7831, %v7849
        %7851 = vdwg.mxu0
        %7852 = vmatpush.bf16.msra.mxu0 %v5266
        %7853 = vmatpush.bf16.msra.mxu0 %v5258
        %7854 = vmatpush.bf16.msra.mxu0 %v5250
        %7855 = vmatpush.bf16.msra.mxu0 %v5242
        %7856 = vmatpush.bf16.msra.mxu0 %v5234
        %7857 = vmatpush.bf16.msra.mxu0 %v5226
        %7858 = vmatpush.bf16.msra.mxu0 %v5218
        %7859 = vmatpush.bf16.msra.mxu0 %v5210
        %7860 = vmatmul.bf16.gmra.mxu0 %v620
        %v7861 = vpop.f32.mrf.mxu0
        %v7862 = vadd.f32 %v7843, %v7861
        %v7863 = vpop.f32.mrf.mxu0
        %v7864 = vadd.f32 %v7845, %v7863
        %7865 = vmatmul.bf16.gmra.mxu0 %v636
        %v7866 = vpop.f32.mrf.mxu0
        %v7867 = vadd.f32 %v7848, %v7866
        %v7868 = vpop.f32.mrf.mxu0
        %v7869 = vadd.f32 %v7850, %v7868
        %7870 = vdwg.mxu0
        %7871 = vmatpush.bf16.msra.mxu0 %v5330
        %7872 = vmatpush.bf16.msra.mxu0 %v5322
        %7873 = vmatpush.bf16.msra.mxu0 %v5314
        %7874 = vmatpush.bf16.msra.mxu0 %v5306
        %7875 = vmatpush.bf16.msra.mxu0 %v5298
        %7876 = vmatpush.bf16.msra.mxu0 %v5290
        %7877 = vmatpush.bf16.msra.mxu0 %v5282
        %7878 = vmatpush.bf16.msra.mxu0 %v5274
        %7879 = vmatmul.bf16.gmra.mxu0 %v621
        %v7880 = vpop.f32.mrf.mxu0
        %v7881 = vadd.f32 %v7862, %v7880
        %v7882 = vpop.f32.mrf.mxu0
        %v7883 = vadd.f32 %v7864, %v7882
        %7884 = vmatmul.bf16.gmra.mxu0 %v637
        %v7885 = vpop.f32.mrf.mxu0
        %v7886 = vadd.f32 %v7867, %v7885
        %v7887 = vpop.f32.mrf.mxu0
        %v7888 = vadd.f32 %v7869, %v7887
        %7889 = vdwg.mxu0
        %7890 = vmatpush.bf16.msra.mxu0 %v5394
        %7891 = vmatpush.bf16.msra.mxu0 %v5386
        %7892 = vmatpush.bf16.msra.mxu0 %v5378
        %7893 = vmatpush.bf16.msra.mxu0 %v5370
        %7894 = vmatpush.bf16.msra.mxu0 %v5362
        %7895 = vmatpush.bf16.msra.mxu0 %v5354
        %7896 = vmatpush.bf16.msra.mxu0 %v5346
        %7897 = vmatpush.bf16.msra.mxu0 %v5338
        %7898 = vmatmul.bf16.gmra.mxu0 %v622
        %v7899 = vpop.f32.mrf.mxu0
        %v7900 = vadd.f32 %v7881, %v7899
        %v7901 = vpop.f32.mrf.mxu0
        %v7902 = vadd.f32 %v7883, %v7901
        %7903 = vmatmul.bf16.gmra.mxu0 %v638
        %v7904 = vpop.f32.mrf.mxu0
        %v7905 = vadd.f32 %v7886, %v7904
        %v7906 = vpop.f32.mrf.mxu0
        %v7907 = vadd.f32 %v7888, %v7906
        %7908 = vdwg.mxu0
        %7909 = vmatpush.bf16.msra.mxu0 %v5458
        %7910 = vmatpush.bf16.msra.mxu0 %v5450
        %7911 = vmatpush.bf16.msra.mxu0 %v5442
        %7912 = vmatpush.bf16.msra.mxu0 %v5434
        %7913 = vmatpush.bf16.msra.mxu0 %v5426
        %7914 = vmatpush.bf16.msra.mxu0 %v5418
        %7915 = vmatpush.bf16.msra.mxu0 %v5410
        %7916 = vmatpush.bf16.msra.mxu0 %v5402
        %7917 = vmatmul.bf16.gmra.mxu0 %v623
        %v7918 = vpop.f32.mrf.mxu0
        %v7919 = vadd.f32 %v7900, %v7918
        %v7920 = vpop.f32.mrf.mxu0
        %v7921 = vadd.f32 %v7902, %v7920
        %7922 = vmatmul.bf16.gmra.mxu0 %v639
        %v7923 = vpop.f32.mrf.mxu0
        %v7924 = vadd.f32 %v7905, %v7923
        %v7925 = vpop.f32.mrf.mxu0
        %v7926 = vadd.f32 %v7907, %v7925
        %7927 = vdwg.mxu0
        %7928 = vmatpush.bf16.msra.mxu0 %v5522
        %7929 = vmatpush.bf16.msra.mxu0 %v5514
        %7930 = vmatpush.bf16.msra.mxu0 %v5506
        %7931 = vmatpush.bf16.msra.mxu0 %v5498
        %7932 = vmatpush.bf16.msra.mxu0 %v5490
        %7933 = vmatpush.bf16.msra.mxu0 %v5482
        %7934 = vmatpush.bf16.msra.mxu0 %v5474
        %7935 = vmatpush.bf16.msra.mxu0 %v5466
        %7936 = vmatmul.bf16.gmra.mxu0 %v624
        %v7937 = vpop.f32.mrf.mxu0
        %v7938 = vadd.f32 %v7919, %v7937
        %v7939 = vpop.f32.mrf.mxu0
        %v7940 = vadd.f32 %v7921, %v7939
        %7941 = vmatmul.bf16.gmra.mxu0 %v640
        %v7942 = vpop.f32.mrf.mxu0
        %v7943 = vadd.f32 %v7924, %v7942
        %v7944 = vpop.f32.mrf.mxu0
        %v7945 = vadd.f32 %v7926, %v7944
        %7946 = vdwg.mxu0
        %7947 = vmatpush.bf16.msra.mxu0 %v5586
        %7948 = vmatpush.bf16.msra.mxu0 %v5578
        %7949 = vmatpush.bf16.msra.mxu0 %v5570
        %7950 = vmatpush.bf16.msra.mxu0 %v5562
        %7951 = vmatpush.bf16.msra.mxu0 %v5554
        %7952 = vmatpush.bf16.msra.mxu0 %v5546
        %7953 = vmatpush.bf16.msra.mxu0 %v5538
        %7954 = vmatpush.bf16.msra.mxu0 %v5530
        %7955 = vmatmul.bf16.gmra.mxu0 %v625
        %v7956 = vpop.f32.mrf.mxu0
        %v7957 = vadd.f32 %v7938, %v7956
        %v7958 = vpop.f32.mrf.mxu0
        %v7959 = vadd.f32 %v7940, %v7958
        %7960 = vmatmul.bf16.gmra.mxu0 %v641
        %v7961 = vpop.f32.mrf.mxu0
        %v7962 = vadd.f32 %v7943, %v7961
        %v7963 = vpop.f32.mrf.mxu0
        %v7964 = vadd.f32 %v7945, %v7963
        %7965 = vdwg.mxu0
        %7966 = vmatpush.bf16.msra.mxu0 %v5650
        %7967 = vmatpush.bf16.msra.mxu0 %v5642
        %7968 = vmatpush.bf16.msra.mxu0 %v5634
        %7969 = vmatpush.bf16.msra.mxu0 %v5626
        %7970 = vmatpush.bf16.msra.mxu0 %v5618
        %7971 = vmatpush.bf16.msra.mxu0 %v5610
        %7972 = vmatpush.bf16.msra.mxu0 %v5602
        %7973 = vmatpush.bf16.msra.mxu0 %v5594
        %7974 = vmatmul.bf16.gmra.mxu0 %v626
        %v7975 = vpop.f32.mrf.mxu0
        %v7976 = vadd.f32 %v7957, %v7975
        %v7977 = vpop.f32.mrf.mxu0
        %v7978 = vadd.f32 %v7959, %v7977
        %7979 = vmatmul.bf16.gmra.mxu0 %v642
        %v7980 = vpop.f32.mrf.mxu0
        %v7981 = vadd.f32 %v7962, %v7980
        %v7982 = vpop.f32.mrf.mxu0
        %v7983 = vadd.f32 %v7964, %v7982
        %7984 = vdwg.mxu0
        %7985 = vmatpush.bf16.msra.mxu0 %v5714
        %7986 = vmatpush.bf16.msra.mxu0 %v5706
        %7987 = vmatpush.bf16.msra.mxu0 %v5698
        %7988 = vmatpush.bf16.msra.mxu0 %v5690
        %7989 = vmatpush.bf16.msra.mxu0 %v5682
        %7990 = vmatpush.bf16.msra.mxu0 %v5674
        %7991 = vmatpush.bf16.msra.mxu0 %v5666
        %7992 = vmatpush.bf16.msra.mxu0 %v5658
        %7993 = vmatmul.bf16.gmra.mxu0 %v627
        %v7994 = vpop.f32.mrf.mxu0
        %v7995 = vadd.f32 %v7976, %v7994
        %v7996 = vpop.f32.mrf.mxu0
        %v7997 = vadd.f32 %v7978, %v7996
        %7998 = vmatmul.bf16.gmra.mxu0 %v643
        %v7999 = vpop.f32.mrf.mxu0
        %v8000 = vadd.f32 %v7981, %v7999
        %v8001 = vpop.f32.mrf.mxu0
        %v8002 = vadd.f32 %v7983, %v8001
        %8003 = vdwg.mxu0
        %8004 = vmatpush.bf16.msra.mxu0 %v5778
        %8005 = vmatpush.bf16.msra.mxu0 %v5770
        %8006 = vmatpush.bf16.msra.mxu0 %v5762
        %8007 = vmatpush.bf16.msra.mxu0 %v5754
        %8008 = vmatpush.bf16.msra.mxu0 %v5746
        %8009 = vmatpush.bf16.msra.mxu0 %v5738
        %8010 = vmatpush.bf16.msra.mxu0 %v5730
        %8011 = vmatpush.bf16.msra.mxu0 %v5722
        %8012 = vmatmul.bf16.gmra.mxu0 %v628
        %v8013 = vpop.f32.mrf.mxu0
        %v8014 = vadd.f32 %v7995, %v8013
        %v8015 = vpop.f32.mrf.mxu0
        %v8016 = vadd.f32 %v7997, %v8015
        %8017 = vmatmul.bf16.gmra.mxu0 %v644
        %v8018 = vpop.f32.mrf.mxu0
        %v8019 = vadd.f32 %v8000, %v8018
        %v8020 = vpop.f32.mrf.mxu0
        %v8021 = vadd.f32 %v8002, %v8020
        %8022 = vdwg.mxu0
        %8023 = vmatpush.bf16.msra.mxu0 %v4819
        %8024 = vmatpush.bf16.msra.mxu0 %v4811
        %8025 = vmatpush.bf16.msra.mxu0 %v4803
        %8026 = vmatpush.bf16.msra.mxu0 %v4795
        %8027 = vmatpush.bf16.msra.mxu0 %v4787
        %8028 = vmatpush.bf16.msra.mxu0 %v4779
        %8029 = vmatpush.bf16.msra.mxu0 %v4771
        %8030 = vmatpush.bf16.msra.mxu0 %v4763
        %8031 = vmatmul.bf16.gmra.mxu0 %v613
        %v8032 = vpop.f32.mrf.mxu0
        %v8033 = vadd.f32 %v1675, %v8032
        %v8034 = vpop.f32.mrf.mxu0
        %v8035 = vadd.f32 %v1675, %v8034
        %8036 = vmatmul.bf16.gmra.mxu0 %v629
        %v8037 = vpop.f32.mrf.mxu0
        %v8038 = vadd.f32 %v1675, %v8037
        %v8039 = vpop.f32.mrf.mxu0
        %v8040 = vadd.f32 %v1675, %v8039
        %8041 = vdwg.mxu0
        %8042 = vmatpush.bf16.msra.mxu0 %v4883
        %8043 = vmatpush.bf16.msra.mxu0 %v4875
        %8044 = vmatpush.bf16.msra.mxu0 %v4867
        %8045 = vmatpush.bf16.msra.mxu0 %v4859
        %8046 = vmatpush.bf16.msra.mxu0 %v4851
        %8047 = vmatpush.bf16.msra.mxu0 %v4843
        %8048 = vmatpush.bf16.msra.mxu0 %v4835
        %8049 = vmatpush.bf16.msra.mxu0 %v4827
        %8050 = vmatmul.bf16.gmra.mxu0 %v614
        %v8051 = vpop.f32.mrf.mxu0
        %v8052 = vadd.f32 %v8033, %v8051
        %v8053 = vpop.f32.mrf.mxu0
        %v8054 = vadd.f32 %v8035, %v8053
        %8055 = vmatmul.bf16.gmra.mxu0 %v630
        %v8056 = vpop.f32.mrf.mxu0
        %v8057 = vadd.f32 %v8038, %v8056
        %v8058 = vpop.f32.mrf.mxu0
        %v8059 = vadd.f32 %v8040, %v8058
        %8060 = vdwg.mxu0
        %8061 = vmatpush.bf16.msra.mxu0 %v4947
        %8062 = vmatpush.bf16.msra.mxu0 %v4939
        %8063 = vmatpush.bf16.msra.mxu0 %v4931
        %8064 = vmatpush.bf16.msra.mxu0 %v4923
        %8065 = vmatpush.bf16.msra.mxu0 %v4915
        %8066 = vmatpush.bf16.msra.mxu0 %v4907
        %8067 = vmatpush.bf16.msra.mxu0 %v4899
        %8068 = vmatpush.bf16.msra.mxu0 %v4891
        %8069 = vmatmul.bf16.gmra.mxu0 %v615
        %v8070 = vpop.f32.mrf.mxu0
        %v8071 = vadd.f32 %v8052, %v8070
        %v8072 = vpop.f32.mrf.mxu0
        %v8073 = vadd.f32 %v8054, %v8072
        %8074 = vmatmul.bf16.gmra.mxu0 %v631
        %v8075 = vpop.f32.mrf.mxu0
        %v8076 = vadd.f32 %v8057, %v8075
        %v8077 = vpop.f32.mrf.mxu0
        %v8078 = vadd.f32 %v8059, %v8077
        %8079 = vdwg.mxu0
        %8080 = vmatpush.bf16.msra.mxu0 %v5011
        %8081 = vmatpush.bf16.msra.mxu0 %v5003
        %8082 = vmatpush.bf16.msra.mxu0 %v4995
        %8083 = vmatpush.bf16.msra.mxu0 %v4987
        %8084 = vmatpush.bf16.msra.mxu0 %v4979
        %8085 = vmatpush.bf16.msra.mxu0 %v4971
        %8086 = vmatpush.bf16.msra.mxu0 %v4963
        %8087 = vmatpush.bf16.msra.mxu0 %v4955
        %8088 = vmatmul.bf16.gmra.mxu0 %v616
        %v8089 = vpop.f32.mrf.mxu0
        %v8090 = vadd.f32 %v8071, %v8089
        %v8091 = vpop.f32.mrf.mxu0
        %v8092 = vadd.f32 %v8073, %v8091
        %8093 = vmatmul.bf16.gmra.mxu0 %v632
        %v8094 = vpop.f32.mrf.mxu0
        %v8095 = vadd.f32 %v8076, %v8094
        %v8096 = vpop.f32.mrf.mxu0
        %v8097 = vadd.f32 %v8078, %v8096
        %8098 = vdwg.mxu0
        %8099 = vmatpush.bf16.msra.mxu0 %v5075
        %8100 = vmatpush.bf16.msra.mxu0 %v5067
        %8101 = vmatpush.bf16.msra.mxu0 %v5059
        %8102 = vmatpush.bf16.msra.mxu0 %v5051
        %8103 = vmatpush.bf16.msra.mxu0 %v5043
        %8104 = vmatpush.bf16.msra.mxu0 %v5035
        %8105 = vmatpush.bf16.msra.mxu0 %v5027
        %8106 = vmatpush.bf16.msra.mxu0 %v5019
        %8107 = vmatmul.bf16.gmra.mxu0 %v617
        %v8108 = vpop.f32.mrf.mxu0
        %v8109 = vadd.f32 %v8090, %v8108
        %v8110 = vpop.f32.mrf.mxu0
        %v8111 = vadd.f32 %v8092, %v8110
        %8112 = vmatmul.bf16.gmra.mxu0 %v633
        %v8113 = vpop.f32.mrf.mxu0
        %v8114 = vadd.f32 %v8095, %v8113
        %v8115 = vpop.f32.mrf.mxu0
        %v8116 = vadd.f32 %v8097, %v8115
        %8117 = vdwg.mxu0
        %8118 = vmatpush.bf16.msra.mxu0 %v5139
        %8119 = vmatpush.bf16.msra.mxu0 %v5131
        %8120 = vmatpush.bf16.msra.mxu0 %v5123
        %8121 = vmatpush.bf16.msra.mxu0 %v5115
        %8122 = vmatpush.bf16.msra.mxu0 %v5107
        %8123 = vmatpush.bf16.msra.mxu0 %v5099
        %8124 = vmatpush.bf16.msra.mxu0 %v5091
        %8125 = vmatpush.bf16.msra.mxu0 %v5083
        %8126 = vmatmul.bf16.gmra.mxu0 %v618
        %v8127 = vpop.f32.mrf.mxu0
        %v8128 = vadd.f32 %v8109, %v8127
        %v8129 = vpop.f32.mrf.mxu0
        %v8130 = vadd.f32 %v8111, %v8129
        %8131 = vmatmul.bf16.gmra.mxu0 %v634
        %v8132 = vpop.f32.mrf.mxu0
        %v8133 = vadd.f32 %v8114, %v8132
        %v8134 = vpop.f32.mrf.mxu0
        %v8135 = vadd.f32 %v8116, %v8134
        %8136 = vdwg.mxu0
        %8137 = vmatpush.bf16.msra.mxu0 %v5203
        %8138 = vmatpush.bf16.msra.mxu0 %v5195
        %8139 = vmatpush.bf16.msra.mxu0 %v5187
        %8140 = vmatpush.bf16.msra.mxu0 %v5179
        %8141 = vmatpush.bf16.msra.mxu0 %v5171
        %8142 = vmatpush.bf16.msra.mxu0 %v5163
        %8143 = vmatpush.bf16.msra.mxu0 %v5155
        %8144 = vmatpush.bf16.msra.mxu0 %v5147
        %8145 = vmatmul.bf16.gmra.mxu0 %v619
        %v8146 = vpop.f32.mrf.mxu0
        %v8147 = vadd.f32 %v8128, %v8146
        %v8148 = vpop.f32.mrf.mxu0
        %v8149 = vadd.f32 %v8130, %v8148
        %8150 = vmatmul.bf16.gmra.mxu0 %v635
        %v8151 = vpop.f32.mrf.mxu0
        %v8152 = vadd.f32 %v8133, %v8151
        %v8153 = vpop.f32.mrf.mxu0
        %v8154 = vadd.f32 %v8135, %v8153
        %8155 = vdwg.mxu0
        %8156 = vmatpush.bf16.msra.mxu0 %v5267
        %8157 = vmatpush.bf16.msra.mxu0 %v5259
        %8158 = vmatpush.bf16.msra.mxu0 %v5251
        %8159 = vmatpush.bf16.msra.mxu0 %v5243
        %8160 = vmatpush.bf16.msra.mxu0 %v5235
        %8161 = vmatpush.bf16.msra.mxu0 %v5227
        %8162 = vmatpush.bf16.msra.mxu0 %v5219
        %8163 = vmatpush.bf16.msra.mxu0 %v5211
        %8164 = vmatmul.bf16.gmra.mxu0 %v620
        %v8165 = vpop.f32.mrf.mxu0
        %v8166 = vadd.f32 %v8147, %v8165
        %v8167 = vpop.f32.mrf.mxu0
        %v8168 = vadd.f32 %v8149, %v8167
        %8169 = vmatmul.bf16.gmra.mxu0 %v636
        %v8170 = vpop.f32.mrf.mxu0
        %v8171 = vadd.f32 %v8152, %v8170
        %v8172 = vpop.f32.mrf.mxu0
        %v8173 = vadd.f32 %v8154, %v8172
        %8174 = vdwg.mxu0
        %8175 = vmatpush.bf16.msra.mxu0 %v5331
        %8176 = vmatpush.bf16.msra.mxu0 %v5323
        %8177 = vmatpush.bf16.msra.mxu0 %v5315
        %8178 = vmatpush.bf16.msra.mxu0 %v5307
        %8179 = vmatpush.bf16.msra.mxu0 %v5299
        %8180 = vmatpush.bf16.msra.mxu0 %v5291
        %8181 = vmatpush.bf16.msra.mxu0 %v5283
        %8182 = vmatpush.bf16.msra.mxu0 %v5275
        %8183 = vmatmul.bf16.gmra.mxu0 %v621
        %v8184 = vpop.f32.mrf.mxu0
        %v8185 = vadd.f32 %v8166, %v8184
        %v8186 = vpop.f32.mrf.mxu0
        %v8187 = vadd.f32 %v8168, %v8186
        %8188 = vmatmul.bf16.gmra.mxu0 %v637
        %v8189 = vpop.f32.mrf.mxu0
        %v8190 = vadd.f32 %v8171, %v8189
        %v8191 = vpop.f32.mrf.mxu0
        %v8192 = vadd.f32 %v8173, %v8191
        %8193 = vdwg.mxu0
        %8194 = vmatpush.bf16.msra.mxu0 %v5395
        %8195 = vmatpush.bf16.msra.mxu0 %v5387
        %8196 = vmatpush.bf16.msra.mxu0 %v5379
        %8197 = vmatpush.bf16.msra.mxu0 %v5371
        %8198 = vmatpush.bf16.msra.mxu0 %v5363
        %8199 = vmatpush.bf16.msra.mxu0 %v5355
        %8200 = vmatpush.bf16.msra.mxu0 %v5347
        %8201 = vmatpush.bf16.msra.mxu0 %v5339
        %8202 = vmatmul.bf16.gmra.mxu0 %v622
        %v8203 = vpop.f32.mrf.mxu0
        %v8204 = vadd.f32 %v8185, %v8203
        %v8205 = vpop.f32.mrf.mxu0
        %v8206 = vadd.f32 %v8187, %v8205
        %8207 = vmatmul.bf16.gmra.mxu0 %v638
        %v8208 = vpop.f32.mrf.mxu0
        %v8209 = vadd.f32 %v8190, %v8208
        %v8210 = vpop.f32.mrf.mxu0
        %v8211 = vadd.f32 %v8192, %v8210
        %8212 = vdwg.mxu0
        %8213 = vmatpush.bf16.msra.mxu0 %v5459
        %8214 = vmatpush.bf16.msra.mxu0 %v5451
        %8215 = vmatpush.bf16.msra.mxu0 %v5443
        %8216 = vmatpush.bf16.msra.mxu0 %v5435
        %8217 = vmatpush.bf16.msra.mxu0 %v5427
        %8218 = vmatpush.bf16.msra.mxu0 %v5419
        %8219 = vmatpush.bf16.msra.mxu0 %v5411
        %8220 = vmatpush.bf16.msra.mxu0 %v5403
        %8221 = vmatmul.bf16.gmra.mxu0 %v623
        %v8222 = vpop.f32.mrf.mxu0
        %v8223 = vadd.f32 %v8204, %v8222
        %v8224 = vpop.f32.mrf.mxu0
        %v8225 = vadd.f32 %v8206, %v8224
        %8226 = vmatmul.bf16.gmra.mxu0 %v639
        %v8227 = vpop.f32.mrf.mxu0
        %v8228 = vadd.f32 %v8209, %v8227
        %v8229 = vpop.f32.mrf.mxu0
        %v8230 = vadd.f32 %v8211, %v8229
        %8231 = vdwg.mxu0
        %8232 = vmatpush.bf16.msra.mxu0 %v5523
        %8233 = vmatpush.bf16.msra.mxu0 %v5515
        %8234 = vmatpush.bf16.msra.mxu0 %v5507
        %8235 = vmatpush.bf16.msra.mxu0 %v5499
        %8236 = vmatpush.bf16.msra.mxu0 %v5491
        %8237 = vmatpush.bf16.msra.mxu0 %v5483
        %8238 = vmatpush.bf16.msra.mxu0 %v5475
        %8239 = vmatpush.bf16.msra.mxu0 %v5467
        %8240 = vmatmul.bf16.gmra.mxu0 %v624
        %v8241 = vpop.f32.mrf.mxu0
        %v8242 = vadd.f32 %v8223, %v8241
        %v8243 = vpop.f32.mrf.mxu0
        %v8244 = vadd.f32 %v8225, %v8243
        %8245 = vmatmul.bf16.gmra.mxu0 %v640
        %v8246 = vpop.f32.mrf.mxu0
        %v8247 = vadd.f32 %v8228, %v8246
        %v8248 = vpop.f32.mrf.mxu0
        %v8249 = vadd.f32 %v8230, %v8248
        %8250 = vdwg.mxu0
        %8251 = vmatpush.bf16.msra.mxu0 %v5587
        %8252 = vmatpush.bf16.msra.mxu0 %v5579
        %8253 = vmatpush.bf16.msra.mxu0 %v5571
        %8254 = vmatpush.bf16.msra.mxu0 %v5563
        %8255 = vmatpush.bf16.msra.mxu0 %v5555
        %8256 = vmatpush.bf16.msra.mxu0 %v5547
        %8257 = vmatpush.bf16.msra.mxu0 %v5539
        %8258 = vmatpush.bf16.msra.mxu0 %v5531
        %8259 = vmatmul.bf16.gmra.mxu0 %v625
        %v8260 = vpop.f32.mrf.mxu0
        %v8261 = vadd.f32 %v8242, %v8260
        %v8262 = vpop.f32.mrf.mxu0
        %v8263 = vadd.f32 %v8244, %v8262
        %8264 = vmatmul.bf16.gmra.mxu0 %v641
        %v8265 = vpop.f32.mrf.mxu0
        %v8266 = vadd.f32 %v8247, %v8265
        %v8267 = vpop.f32.mrf.mxu0
        %v8268 = vadd.f32 %v8249, %v8267
        %8269 = vdwg.mxu0
        %8270 = vmatpush.bf16.msra.mxu0 %v5651
        %8271 = vmatpush.bf16.msra.mxu0 %v5643
        %8272 = vmatpush.bf16.msra.mxu0 %v5635
        %8273 = vmatpush.bf16.msra.mxu0 %v5627
        %8274 = vmatpush.bf16.msra.mxu0 %v5619
        %8275 = vmatpush.bf16.msra.mxu0 %v5611
        %8276 = vmatpush.bf16.msra.mxu0 %v5603
        %8277 = vmatpush.bf16.msra.mxu0 %v5595
        %8278 = vmatmul.bf16.gmra.mxu0 %v626
        %v8279 = vpop.f32.mrf.mxu0
        %v8280 = vadd.f32 %v8261, %v8279
        %v8281 = vpop.f32.mrf.mxu0
        %v8282 = vadd.f32 %v8263, %v8281
        %8283 = vmatmul.bf16.gmra.mxu0 %v642
        %v8284 = vpop.f32.mrf.mxu0
        %v8285 = vadd.f32 %v8266, %v8284
        %v8286 = vpop.f32.mrf.mxu0
        %v8287 = vadd.f32 %v8268, %v8286
        %8288 = vdwg.mxu0
        %8289 = vmatpush.bf16.msra.mxu0 %v5715
        %8290 = vmatpush.bf16.msra.mxu0 %v5707
        %8291 = vmatpush.bf16.msra.mxu0 %v5699
        %8292 = vmatpush.bf16.msra.mxu0 %v5691
        %8293 = vmatpush.bf16.msra.mxu0 %v5683
        %8294 = vmatpush.bf16.msra.mxu0 %v5675
        %8295 = vmatpush.bf16.msra.mxu0 %v5667
        %8296 = vmatpush.bf16.msra.mxu0 %v5659
        %8297 = vmatmul.bf16.gmra.mxu0 %v627
        %v8298 = vpop.f32.mrf.mxu0
        %v8299 = vadd.f32 %v8280, %v8298
        %v8300 = vpop.f32.mrf.mxu0
        %v8301 = vadd.f32 %v8282, %v8300
        %8302 = vmatmul.bf16.gmra.mxu0 %v643
        %v8303 = vpop.f32.mrf.mxu0
        %v8304 = vadd.f32 %v8285, %v8303
        %v8305 = vpop.f32.mrf.mxu0
        %v8306 = vadd.f32 %v8287, %v8305
        %8307 = vdwg.mxu0
        %8308 = vmatpush.bf16.msra.mxu0 %v5779
        %8309 = vmatpush.bf16.msra.mxu0 %v5771
        %8310 = vmatpush.bf16.msra.mxu0 %v5763
        %8311 = vmatpush.bf16.msra.mxu0 %v5755
        %8312 = vmatpush.bf16.msra.mxu0 %v5747
        %8313 = vmatpush.bf16.msra.mxu0 %v5739
        %8314 = vmatpush.bf16.msra.mxu0 %v5731
        %8315 = vmatpush.bf16.msra.mxu0 %v5723
        %8316 = vmatmul.bf16.gmra.mxu0 %v628
        %v8317 = vpop.f32.mrf.mxu0
        %v8318 = vadd.f32 %v8299, %v8317
        %v8319 = vpop.f32.mrf.mxu0
        %v8320 = vadd.f32 %v8301, %v8319
        %8321 = vmatmul.bf16.gmra.mxu0 %v644
        %v8322 = vpop.f32.mrf.mxu0
        %v8323 = vadd.f32 %v8304, %v8322
        %v8324 = vpop.f32.mrf.mxu0
        %v8325 = vadd.f32 %v8306, %v8324
        %8326 = vdwg.mxu0
        %8327 = vmatpush.bf16.msra.mxu0 %v4820
        %8328 = vmatpush.bf16.msra.mxu0 %v4812
        %8329 = vmatpush.bf16.msra.mxu0 %v4804
        %8330 = vmatpush.bf16.msra.mxu0 %v4796
        %8331 = vmatpush.bf16.msra.mxu0 %v4788
        %8332 = vmatpush.bf16.msra.mxu0 %v4780
        %8333 = vmatpush.bf16.msra.mxu0 %v4772
        %8334 = vmatpush.bf16.msra.mxu0 %v4764
        %8335 = vmatmul.bf16.gmra.mxu0 %v613
        %v8336 = vpop.f32.mrf.mxu0
        %v8337 = vadd.f32 %v1676, %v8336
        %v8338 = vpop.f32.mrf.mxu0
        %v8339 = vadd.f32 %v1676, %v8338
        %8340 = vmatmul.bf16.gmra.mxu0 %v629
        %v8341 = vpop.f32.mrf.mxu0
        %v8342 = vadd.f32 %v1676, %v8341
        %v8343 = vpop.f32.mrf.mxu0
        %v8344 = vadd.f32 %v1676, %v8343
        %8345 = vdwg.mxu0
        %8346 = vmatpush.bf16.msra.mxu0 %v4884
        %8347 = vmatpush.bf16.msra.mxu0 %v4876
        %8348 = vmatpush.bf16.msra.mxu0 %v4868
        %8349 = vmatpush.bf16.msra.mxu0 %v4860
        %8350 = vmatpush.bf16.msra.mxu0 %v4852
        %8351 = vmatpush.bf16.msra.mxu0 %v4844
        %8352 = vmatpush.bf16.msra.mxu0 %v4836
        %8353 = vmatpush.bf16.msra.mxu0 %v4828
        %8354 = vmatmul.bf16.gmra.mxu0 %v614
        %v8355 = vpop.f32.mrf.mxu0
        %v8356 = vadd.f32 %v8337, %v8355
        %v8357 = vpop.f32.mrf.mxu0
        %v8358 = vadd.f32 %v8339, %v8357
        %8359 = vmatmul.bf16.gmra.mxu0 %v630
        %v8360 = vpop.f32.mrf.mxu0
        %v8361 = vadd.f32 %v8342, %v8360
        %v8362 = vpop.f32.mrf.mxu0
        %v8363 = vadd.f32 %v8344, %v8362
        %8364 = vdwg.mxu0
        %8365 = vmatpush.bf16.msra.mxu0 %v4948
        %8366 = vmatpush.bf16.msra.mxu0 %v4940
        %8367 = vmatpush.bf16.msra.mxu0 %v4932
        %8368 = vmatpush.bf16.msra.mxu0 %v4924
        %8369 = vmatpush.bf16.msra.mxu0 %v4916
        %8370 = vmatpush.bf16.msra.mxu0 %v4908
        %8371 = vmatpush.bf16.msra.mxu0 %v4900
        %8372 = vmatpush.bf16.msra.mxu0 %v4892
        %8373 = vmatmul.bf16.gmra.mxu0 %v615
        %v8374 = vpop.f32.mrf.mxu0
        %v8375 = vadd.f32 %v8356, %v8374
        %v8376 = vpop.f32.mrf.mxu0
        %v8377 = vadd.f32 %v8358, %v8376
        %8378 = vmatmul.bf16.gmra.mxu0 %v631
        %v8379 = vpop.f32.mrf.mxu0
        %v8380 = vadd.f32 %v8361, %v8379
        %v8381 = vpop.f32.mrf.mxu0
        %v8382 = vadd.f32 %v8363, %v8381
        %8383 = vdwg.mxu0
        %8384 = vmatpush.bf16.msra.mxu0 %v5012
        %8385 = vmatpush.bf16.msra.mxu0 %v5004
        %8386 = vmatpush.bf16.msra.mxu0 %v4996
        %8387 = vmatpush.bf16.msra.mxu0 %v4988
        %8388 = vmatpush.bf16.msra.mxu0 %v4980
        %8389 = vmatpush.bf16.msra.mxu0 %v4972
        %8390 = vmatpush.bf16.msra.mxu0 %v4964
        %8391 = vmatpush.bf16.msra.mxu0 %v4956
        %8392 = vmatmul.bf16.gmra.mxu0 %v616
        %v8393 = vpop.f32.mrf.mxu0
        %v8394 = vadd.f32 %v8375, %v8393
        %v8395 = vpop.f32.mrf.mxu0
        %v8396 = vadd.f32 %v8377, %v8395
        %8397 = vmatmul.bf16.gmra.mxu0 %v632
        %v8398 = vpop.f32.mrf.mxu0
        %v8399 = vadd.f32 %v8380, %v8398
        %v8400 = vpop.f32.mrf.mxu0
        %v8401 = vadd.f32 %v8382, %v8400
        %8402 = vdwg.mxu0
        %8403 = vmatpush.bf16.msra.mxu0 %v5076
        %8404 = vmatpush.bf16.msra.mxu0 %v5068
        %8405 = vmatpush.bf16.msra.mxu0 %v5060
        %8406 = vmatpush.bf16.msra.mxu0 %v5052
        %8407 = vmatpush.bf16.msra.mxu0 %v5044
        %8408 = vmatpush.bf16.msra.mxu0 %v5036
        %8409 = vmatpush.bf16.msra.mxu0 %v5028
        %8410 = vmatpush.bf16.msra.mxu0 %v5020
        %8411 = vmatmul.bf16.gmra.mxu0 %v617
        %v8412 = vpop.f32.mrf.mxu0
        %v8413 = vadd.f32 %v8394, %v8412
        %v8414 = vpop.f32.mrf.mxu0
        %v8415 = vadd.f32 %v8396, %v8414
        %8416 = vmatmul.bf16.gmra.mxu0 %v633
        %v8417 = vpop.f32.mrf.mxu0
        %v8418 = vadd.f32 %v8399, %v8417
        %v8419 = vpop.f32.mrf.mxu0
        %v8420 = vadd.f32 %v8401, %v8419
        %8421 = vdwg.mxu0
        %8422 = vmatpush.bf16.msra.mxu0 %v5140
        %8423 = vmatpush.bf16.msra.mxu0 %v5132
        %8424 = vmatpush.bf16.msra.mxu0 %v5124
        %8425 = vmatpush.bf16.msra.mxu0 %v5116
        %8426 = vmatpush.bf16.msra.mxu0 %v5108
        %8427 = vmatpush.bf16.msra.mxu0 %v5100
        %8428 = vmatpush.bf16.msra.mxu0 %v5092
        %8429 = vmatpush.bf16.msra.mxu0 %v5084
        %8430 = vmatmul.bf16.gmra.mxu0 %v618
        %v8431 = vpop.f32.mrf.mxu0
        %v8432 = vadd.f32 %v8413, %v8431
        %v8433 = vpop.f32.mrf.mxu0
        %v8434 = vadd.f32 %v8415, %v8433
        %8435 = vmatmul.bf16.gmra.mxu0 %v634
        %v8436 = vpop.f32.mrf.mxu0
        %v8437 = vadd.f32 %v8418, %v8436
        %v8438 = vpop.f32.mrf.mxu0
        %v8439 = vadd.f32 %v8420, %v8438
        %8440 = vdwg.mxu0
        %8441 = vmatpush.bf16.msra.mxu0 %v5204
        %8442 = vmatpush.bf16.msra.mxu0 %v5196
        %8443 = vmatpush.bf16.msra.mxu0 %v5188
        %8444 = vmatpush.bf16.msra.mxu0 %v5180
        %8445 = vmatpush.bf16.msra.mxu0 %v5172
        %8446 = vmatpush.bf16.msra.mxu0 %v5164
        %8447 = vmatpush.bf16.msra.mxu0 %v5156
        %8448 = vmatpush.bf16.msra.mxu0 %v5148
        %8449 = vmatmul.bf16.gmra.mxu0 %v619
        %v8450 = vpop.f32.mrf.mxu0
        %v8451 = vadd.f32 %v8432, %v8450
        %v8452 = vpop.f32.mrf.mxu0
        %v8453 = vadd.f32 %v8434, %v8452
        %8454 = vmatmul.bf16.gmra.mxu0 %v635
        %v8455 = vpop.f32.mrf.mxu0
        %v8456 = vadd.f32 %v8437, %v8455
        %v8457 = vpop.f32.mrf.mxu0
        %v8458 = vadd.f32 %v8439, %v8457
        %8459 = vdwg.mxu0
        %8460 = vmatpush.bf16.msra.mxu0 %v5268
        %8461 = vmatpush.bf16.msra.mxu0 %v5260
        %8462 = vmatpush.bf16.msra.mxu0 %v5252
        %8463 = vmatpush.bf16.msra.mxu0 %v5244
        %8464 = vmatpush.bf16.msra.mxu0 %v5236
        %8465 = vmatpush.bf16.msra.mxu0 %v5228
        %8466 = vmatpush.bf16.msra.mxu0 %v5220
        %8467 = vmatpush.bf16.msra.mxu0 %v5212
        %8468 = vmatmul.bf16.gmra.mxu0 %v620
        %v8469 = vpop.f32.mrf.mxu0
        %v8470 = vadd.f32 %v8451, %v8469
        %v8471 = vpop.f32.mrf.mxu0
        %v8472 = vadd.f32 %v8453, %v8471
        %8473 = vmatmul.bf16.gmra.mxu0 %v636
        %v8474 = vpop.f32.mrf.mxu0
        %v8475 = vadd.f32 %v8456, %v8474
        %v8476 = vpop.f32.mrf.mxu0
        %v8477 = vadd.f32 %v8458, %v8476
        %8478 = vdwg.mxu0
        %8479 = vmatpush.bf16.msra.mxu0 %v5332
        %8480 = vmatpush.bf16.msra.mxu0 %v5324
        %8481 = vmatpush.bf16.msra.mxu0 %v5316
        %8482 = vmatpush.bf16.msra.mxu0 %v5308
        %8483 = vmatpush.bf16.msra.mxu0 %v5300
        %8484 = vmatpush.bf16.msra.mxu0 %v5292
        %8485 = vmatpush.bf16.msra.mxu0 %v5284
        %8486 = vmatpush.bf16.msra.mxu0 %v5276
        %8487 = vmatmul.bf16.gmra.mxu0 %v621
        %v8488 = vpop.f32.mrf.mxu0
        %v8489 = vadd.f32 %v8470, %v8488
        %v8490 = vpop.f32.mrf.mxu0
        %v8491 = vadd.f32 %v8472, %v8490
        %8492 = vmatmul.bf16.gmra.mxu0 %v637
        %v8493 = vpop.f32.mrf.mxu0
        %v8494 = vadd.f32 %v8475, %v8493
        %v8495 = vpop.f32.mrf.mxu0
        %v8496 = vadd.f32 %v8477, %v8495
        %8497 = vdwg.mxu0
        %8498 = vmatpush.bf16.msra.mxu0 %v5396
        %8499 = vmatpush.bf16.msra.mxu0 %v5388
        %8500 = vmatpush.bf16.msra.mxu0 %v5380
        %8501 = vmatpush.bf16.msra.mxu0 %v5372
        %8502 = vmatpush.bf16.msra.mxu0 %v5364
        %8503 = vmatpush.bf16.msra.mxu0 %v5356
        %8504 = vmatpush.bf16.msra.mxu0 %v5348
        %8505 = vmatpush.bf16.msra.mxu0 %v5340
        %8506 = vmatmul.bf16.gmra.mxu0 %v622
        %v8507 = vpop.f32.mrf.mxu0
        %v8508 = vadd.f32 %v8489, %v8507
        %v8509 = vpop.f32.mrf.mxu0
        %v8510 = vadd.f32 %v8491, %v8509
        %8511 = vmatmul.bf16.gmra.mxu0 %v638
        %v8512 = vpop.f32.mrf.mxu0
        %v8513 = vadd.f32 %v8494, %v8512
        %v8514 = vpop.f32.mrf.mxu0
        %v8515 = vadd.f32 %v8496, %v8514
        %8516 = vdwg.mxu0
        %8517 = vmatpush.bf16.msra.mxu0 %v5460
        %8518 = vmatpush.bf16.msra.mxu0 %v5452
        %8519 = vmatpush.bf16.msra.mxu0 %v5444
        %8520 = vmatpush.bf16.msra.mxu0 %v5436
        %8521 = vmatpush.bf16.msra.mxu0 %v5428
        %8522 = vmatpush.bf16.msra.mxu0 %v5420
        %8523 = vmatpush.bf16.msra.mxu0 %v5412
        %8524 = vmatpush.bf16.msra.mxu0 %v5404
        %8525 = vmatmul.bf16.gmra.mxu0 %v623
        %v8526 = vpop.f32.mrf.mxu0
        %v8527 = vadd.f32 %v8508, %v8526
        %v8528 = vpop.f32.mrf.mxu0
        %v8529 = vadd.f32 %v8510, %v8528
        %8530 = vmatmul.bf16.gmra.mxu0 %v639
        %v8531 = vpop.f32.mrf.mxu0
        %v8532 = vadd.f32 %v8513, %v8531
        %v8533 = vpop.f32.mrf.mxu0
        %v8534 = vadd.f32 %v8515, %v8533
        %8535 = vdwg.mxu0
        %8536 = vmatpush.bf16.msra.mxu0 %v5524
        %8537 = vmatpush.bf16.msra.mxu0 %v5516
        %8538 = vmatpush.bf16.msra.mxu0 %v5508
        %8539 = vmatpush.bf16.msra.mxu0 %v5500
        %8540 = vmatpush.bf16.msra.mxu0 %v5492
        %8541 = vmatpush.bf16.msra.mxu0 %v5484
        %8542 = vmatpush.bf16.msra.mxu0 %v5476
        %8543 = vmatpush.bf16.msra.mxu0 %v5468
        %8544 = vmatmul.bf16.gmra.mxu0 %v624
        %v8545 = vpop.f32.mrf.mxu0
        %v8546 = vadd.f32 %v8527, %v8545
        %v8547 = vpop.f32.mrf.mxu0
        %v8548 = vadd.f32 %v8529, %v8547
        %8549 = vmatmul.bf16.gmra.mxu0 %v640
        %v8550 = vpop.f32.mrf.mxu0
        %v8551 = vadd.f32 %v8532, %v8550
        %v8552 = vpop.f32.mrf.mxu0
        %v8553 = vadd.f32 %v8534, %v8552
        %8554 = vdwg.mxu0
        %8555 = vmatpush.bf16.msra.mxu0 %v5588
        %8556 = vmatpush.bf16.msra.mxu0 %v5580
        %8557 = vmatpush.bf16.msra.mxu0 %v5572
        %8558 = vmatpush.bf16.msra.mxu0 %v5564
        %8559 = vmatpush.bf16.msra.mxu0 %v5556
        %8560 = vmatpush.bf16.msra.mxu0 %v5548
        %8561 = vmatpush.bf16.msra.mxu0 %v5540
        %8562 = vmatpush.bf16.msra.mxu0 %v5532
        %8563 = vmatmul.bf16.gmra.mxu0 %v625
        %v8564 = vpop.f32.mrf.mxu0
        %v8565 = vadd.f32 %v8546, %v8564
        %v8566 = vpop.f32.mrf.mxu0
        %v8567 = vadd.f32 %v8548, %v8566
        %8568 = vmatmul.bf16.gmra.mxu0 %v641
        %v8569 = vpop.f32.mrf.mxu0
        %v8570 = vadd.f32 %v8551, %v8569
        %v8571 = vpop.f32.mrf.mxu0
        %v8572 = vadd.f32 %v8553, %v8571
        %8573 = vdwg.mxu0
        %8574 = vmatpush.bf16.msra.mxu0 %v5652
        %8575 = vmatpush.bf16.msra.mxu0 %v5644
        %8576 = vmatpush.bf16.msra.mxu0 %v5636
        %8577 = vmatpush.bf16.msra.mxu0 %v5628
        %8578 = vmatpush.bf16.msra.mxu0 %v5620
        %8579 = vmatpush.bf16.msra.mxu0 %v5612
        %8580 = vmatpush.bf16.msra.mxu0 %v5604
        %8581 = vmatpush.bf16.msra.mxu0 %v5596
        %8582 = vmatmul.bf16.gmra.mxu0 %v626
        %v8583 = vpop.f32.mrf.mxu0
        %v8584 = vadd.f32 %v8565, %v8583
        %v8585 = vpop.f32.mrf.mxu0
        %v8586 = vadd.f32 %v8567, %v8585
        %8587 = vmatmul.bf16.gmra.mxu0 %v642
        %v8588 = vpop.f32.mrf.mxu0
        %v8589 = vadd.f32 %v8570, %v8588
        %v8590 = vpop.f32.mrf.mxu0
        %v8591 = vadd.f32 %v8572, %v8590
        %8592 = vdwg.mxu0
        %8593 = vmatpush.bf16.msra.mxu0 %v5716
        %8594 = vmatpush.bf16.msra.mxu0 %v5708
        %8595 = vmatpush.bf16.msra.mxu0 %v5700
        %8596 = vmatpush.bf16.msra.mxu0 %v5692
        %8597 = vmatpush.bf16.msra.mxu0 %v5684
        %8598 = vmatpush.bf16.msra.mxu0 %v5676
        %8599 = vmatpush.bf16.msra.mxu0 %v5668
        %8600 = vmatpush.bf16.msra.mxu0 %v5660
        %8601 = vmatmul.bf16.gmra.mxu0 %v627
        %v8602 = vpop.f32.mrf.mxu0
        %v8603 = vadd.f32 %v8584, %v8602
        %v8604 = vpop.f32.mrf.mxu0
        %v8605 = vadd.f32 %v8586, %v8604
        %8606 = vmatmul.bf16.gmra.mxu0 %v643
        %v8607 = vpop.f32.mrf.mxu0
        %v8608 = vadd.f32 %v8589, %v8607
        %v8609 = vpop.f32.mrf.mxu0
        %v8610 = vadd.f32 %v8591, %v8609
        %8611 = vdwg.mxu0
        %8612 = vmatpush.bf16.msra.mxu0 %v5780
        %8613 = vmatpush.bf16.msra.mxu0 %v5772
        %8614 = vmatpush.bf16.msra.mxu0 %v5764
        %8615 = vmatpush.bf16.msra.mxu0 %v5756
        %8616 = vmatpush.bf16.msra.mxu0 %v5748
        %8617 = vmatpush.bf16.msra.mxu0 %v5740
        %8618 = vmatpush.bf16.msra.mxu0 %v5732
        %8619 = vmatpush.bf16.msra.mxu0 %v5724
        %8620 = vmatmul.bf16.gmra.mxu0 %v628
        %v8621 = vpop.f32.mrf.mxu0
        %v8622 = vadd.f32 %v8603, %v8621
        %v8623 = vpop.f32.mrf.mxu0
        %v8624 = vadd.f32 %v8605, %v8623
        %8625 = vmatmul.bf16.gmra.mxu0 %v644
        %v8626 = vpop.f32.mrf.mxu0
        %v8627 = vadd.f32 %v8608, %v8626
        %v8628 = vpop.f32.mrf.mxu0
        %v8629 = vadd.f32 %v8610, %v8628
        %8630 = vdwg.mxu0
        %8631 = vmatpush.bf16.msra.mxu0 %v4821
        %8632 = vmatpush.bf16.msra.mxu0 %v4813
        %8633 = vmatpush.bf16.msra.mxu0 %v4805
        %8634 = vmatpush.bf16.msra.mxu0 %v4797
        %8635 = vmatpush.bf16.msra.mxu0 %v4789
        %8636 = vmatpush.bf16.msra.mxu0 %v4781
        %8637 = vmatpush.bf16.msra.mxu0 %v4773
        %8638 = vmatpush.bf16.msra.mxu0 %v4765
        %8639 = vmatmul.bf16.gmra.mxu0 %v613
        %v8640 = vpop.f32.mrf.mxu0
        %v8641 = vadd.f32 %v1677, %v8640
        %v8642 = vpop.f32.mrf.mxu0
        %v8643 = vadd.f32 %v1677, %v8642
        %8644 = vmatmul.bf16.gmra.mxu0 %v629
        %v8645 = vpop.f32.mrf.mxu0
        %v8646 = vadd.f32 %v1677, %v8645
        %v8647 = vpop.f32.mrf.mxu0
        %v8648 = vadd.f32 %v1677, %v8647
        %8649 = vdwg.mxu0
        %8650 = vmatpush.bf16.msra.mxu0 %v4885
        %8651 = vmatpush.bf16.msra.mxu0 %v4877
        %8652 = vmatpush.bf16.msra.mxu0 %v4869
        %8653 = vmatpush.bf16.msra.mxu0 %v4861
        %8654 = vmatpush.bf16.msra.mxu0 %v4853
        %8655 = vmatpush.bf16.msra.mxu0 %v4845
        %8656 = vmatpush.bf16.msra.mxu0 %v4837
        %8657 = vmatpush.bf16.msra.mxu0 %v4829
        %8658 = vmatmul.bf16.gmra.mxu0 %v614
        %v8659 = vpop.f32.mrf.mxu0
        %v8660 = vadd.f32 %v8641, %v8659
        %v8661 = vpop.f32.mrf.mxu0
        %v8662 = vadd.f32 %v8643, %v8661
        %8663 = vmatmul.bf16.gmra.mxu0 %v630
        %v8664 = vpop.f32.mrf.mxu0
        %v8665 = vadd.f32 %v8646, %v8664
        %v8666 = vpop.f32.mrf.mxu0
        %v8667 = vadd.f32 %v8648, %v8666
        %8668 = vdwg.mxu0
        %8669 = vmatpush.bf16.msra.mxu0 %v4949
        %8670 = vmatpush.bf16.msra.mxu0 %v4941
        %8671 = vmatpush.bf16.msra.mxu0 %v4933
        %8672 = vmatpush.bf16.msra.mxu0 %v4925
        %8673 = vmatpush.bf16.msra.mxu0 %v4917
        %8674 = vmatpush.bf16.msra.mxu0 %v4909
        %8675 = vmatpush.bf16.msra.mxu0 %v4901
        %8676 = vmatpush.bf16.msra.mxu0 %v4893
        %8677 = vmatmul.bf16.gmra.mxu0 %v615
        %v8678 = vpop.f32.mrf.mxu0
        %v8679 = vadd.f32 %v8660, %v8678
        %v8680 = vpop.f32.mrf.mxu0
        %v8681 = vadd.f32 %v8662, %v8680
        %8682 = vmatmul.bf16.gmra.mxu0 %v631
        %v8683 = vpop.f32.mrf.mxu0
        %v8684 = vadd.f32 %v8665, %v8683
        %v8685 = vpop.f32.mrf.mxu0
        %v8686 = vadd.f32 %v8667, %v8685
        %8687 = vdwg.mxu0
        %8688 = vmatpush.bf16.msra.mxu0 %v5013
        %8689 = vmatpush.bf16.msra.mxu0 %v5005
        %8690 = vmatpush.bf16.msra.mxu0 %v4997
        %8691 = vmatpush.bf16.msra.mxu0 %v4989
        %8692 = vmatpush.bf16.msra.mxu0 %v4981
        %8693 = vmatpush.bf16.msra.mxu0 %v4973
        %8694 = vmatpush.bf16.msra.mxu0 %v4965
        %8695 = vmatpush.bf16.msra.mxu0 %v4957
        %8696 = vmatmul.bf16.gmra.mxu0 %v616
        %v8697 = vpop.f32.mrf.mxu0
        %v8698 = vadd.f32 %v8679, %v8697
        %v8699 = vpop.f32.mrf.mxu0
        %v8700 = vadd.f32 %v8681, %v8699
        %8701 = vmatmul.bf16.gmra.mxu0 %v632
        %v8702 = vpop.f32.mrf.mxu0
        %v8703 = vadd.f32 %v8684, %v8702
        %v8704 = vpop.f32.mrf.mxu0
        %v8705 = vadd.f32 %v8686, %v8704
        %8706 = vdwg.mxu0
        %8707 = vmatpush.bf16.msra.mxu0 %v5077
        %8708 = vmatpush.bf16.msra.mxu0 %v5069
        %8709 = vmatpush.bf16.msra.mxu0 %v5061
        %8710 = vmatpush.bf16.msra.mxu0 %v5053
        %8711 = vmatpush.bf16.msra.mxu0 %v5045
        %8712 = vmatpush.bf16.msra.mxu0 %v5037
        %8713 = vmatpush.bf16.msra.mxu0 %v5029
        %8714 = vmatpush.bf16.msra.mxu0 %v5021
        %8715 = vmatmul.bf16.gmra.mxu0 %v617
        %v8716 = vpop.f32.mrf.mxu0
        %v8717 = vadd.f32 %v8698, %v8716
        %v8718 = vpop.f32.mrf.mxu0
        %v8719 = vadd.f32 %v8700, %v8718
        %8720 = vmatmul.bf16.gmra.mxu0 %v633
        %v8721 = vpop.f32.mrf.mxu0
        %v8722 = vadd.f32 %v8703, %v8721
        %v8723 = vpop.f32.mrf.mxu0
        %v8724 = vadd.f32 %v8705, %v8723
        %8725 = vdwg.mxu0
        %8726 = vmatpush.bf16.msra.mxu0 %v5141
        %8727 = vmatpush.bf16.msra.mxu0 %v5133
        %8728 = vmatpush.bf16.msra.mxu0 %v5125
        %8729 = vmatpush.bf16.msra.mxu0 %v5117
        %8730 = vmatpush.bf16.msra.mxu0 %v5109
        %8731 = vmatpush.bf16.msra.mxu0 %v5101
        %8732 = vmatpush.bf16.msra.mxu0 %v5093
        %8733 = vmatpush.bf16.msra.mxu0 %v5085
        %8734 = vmatmul.bf16.gmra.mxu0 %v618
        %v8735 = vpop.f32.mrf.mxu0
        %v8736 = vadd.f32 %v8717, %v8735
        %v8737 = vpop.f32.mrf.mxu0
        %v8738 = vadd.f32 %v8719, %v8737
        %8739 = vmatmul.bf16.gmra.mxu0 %v634
        %v8740 = vpop.f32.mrf.mxu0
        %v8741 = vadd.f32 %v8722, %v8740
        %v8742 = vpop.f32.mrf.mxu0
        %v8743 = vadd.f32 %v8724, %v8742
        %8744 = vdwg.mxu0
        %8745 = vmatpush.bf16.msra.mxu0 %v5205
        %8746 = vmatpush.bf16.msra.mxu0 %v5197
        %8747 = vmatpush.bf16.msra.mxu0 %v5189
        %8748 = vmatpush.bf16.msra.mxu0 %v5181
        %8749 = vmatpush.bf16.msra.mxu0 %v5173
        %8750 = vmatpush.bf16.msra.mxu0 %v5165
        %8751 = vmatpush.bf16.msra.mxu0 %v5157
        %8752 = vmatpush.bf16.msra.mxu0 %v5149
        %8753 = vmatmul.bf16.gmra.mxu0 %v619
        %v8754 = vpop.f32.mrf.mxu0
        %v8755 = vadd.f32 %v8736, %v8754
        %v8756 = vpop.f32.mrf.mxu0
        %v8757 = vadd.f32 %v8738, %v8756
        %8758 = vmatmul.bf16.gmra.mxu0 %v635
        %v8759 = vpop.f32.mrf.mxu0
        %v8760 = vadd.f32 %v8741, %v8759
        %v8761 = vpop.f32.mrf.mxu0
        %v8762 = vadd.f32 %v8743, %v8761
        %8763 = vdwg.mxu0
        %8764 = vmatpush.bf16.msra.mxu0 %v5269
        %8765 = vmatpush.bf16.msra.mxu0 %v5261
        %8766 = vmatpush.bf16.msra.mxu0 %v5253
        %8767 = vmatpush.bf16.msra.mxu0 %v5245
        %8768 = vmatpush.bf16.msra.mxu0 %v5237
        %8769 = vmatpush.bf16.msra.mxu0 %v5229
        %8770 = vmatpush.bf16.msra.mxu0 %v5221
        %8771 = vmatpush.bf16.msra.mxu0 %v5213
        %8772 = vmatmul.bf16.gmra.mxu0 %v620
        %v8773 = vpop.f32.mrf.mxu0
        %v8774 = vadd.f32 %v8755, %v8773
        %v8775 = vpop.f32.mrf.mxu0
        %v8776 = vadd.f32 %v8757, %v8775
        %8777 = vmatmul.bf16.gmra.mxu0 %v636
        %v8778 = vpop.f32.mrf.mxu0
        %v8779 = vadd.f32 %v8760, %v8778
        %v8780 = vpop.f32.mrf.mxu0
        %v8781 = vadd.f32 %v8762, %v8780
        %8782 = vdwg.mxu0
        %8783 = vmatpush.bf16.msra.mxu0 %v5333
        %8784 = vmatpush.bf16.msra.mxu0 %v5325
        %8785 = vmatpush.bf16.msra.mxu0 %v5317
        %8786 = vmatpush.bf16.msra.mxu0 %v5309
        %8787 = vmatpush.bf16.msra.mxu0 %v5301
        %8788 = vmatpush.bf16.msra.mxu0 %v5293
        %8789 = vmatpush.bf16.msra.mxu0 %v5285
        %8790 = vmatpush.bf16.msra.mxu0 %v5277
        %8791 = vmatmul.bf16.gmra.mxu0 %v621
        %v8792 = vpop.f32.mrf.mxu0
        %v8793 = vadd.f32 %v8774, %v8792
        %v8794 = vpop.f32.mrf.mxu0
        %v8795 = vadd.f32 %v8776, %v8794
        %8796 = vmatmul.bf16.gmra.mxu0 %v637
        %v8797 = vpop.f32.mrf.mxu0
        %v8798 = vadd.f32 %v8779, %v8797
        %v8799 = vpop.f32.mrf.mxu0
        %v8800 = vadd.f32 %v8781, %v8799
        %8801 = vdwg.mxu0
        %8802 = vmatpush.bf16.msra.mxu0 %v5397
        %8803 = vmatpush.bf16.msra.mxu0 %v5389
        %8804 = vmatpush.bf16.msra.mxu0 %v5381
        %8805 = vmatpush.bf16.msra.mxu0 %v5373
        %8806 = vmatpush.bf16.msra.mxu0 %v5365
        %8807 = vmatpush.bf16.msra.mxu0 %v5357
        %8808 = vmatpush.bf16.msra.mxu0 %v5349
        %8809 = vmatpush.bf16.msra.mxu0 %v5341
        %8810 = vmatmul.bf16.gmra.mxu0 %v622
        %v8811 = vpop.f32.mrf.mxu0
        %v8812 = vadd.f32 %v8793, %v8811
        %v8813 = vpop.f32.mrf.mxu0
        %v8814 = vadd.f32 %v8795, %v8813
        %8815 = vmatmul.bf16.gmra.mxu0 %v638
        %v8816 = vpop.f32.mrf.mxu0
        %v8817 = vadd.f32 %v8798, %v8816
        %v8818 = vpop.f32.mrf.mxu0
        %v8819 = vadd.f32 %v8800, %v8818
        %8820 = vdwg.mxu0
        %8821 = vmatpush.bf16.msra.mxu0 %v5461
        %8822 = vmatpush.bf16.msra.mxu0 %v5453
        %8823 = vmatpush.bf16.msra.mxu0 %v5445
        %8824 = vmatpush.bf16.msra.mxu0 %v5437
        %8825 = vmatpush.bf16.msra.mxu0 %v5429
        %8826 = vmatpush.bf16.msra.mxu0 %v5421
        %8827 = vmatpush.bf16.msra.mxu0 %v5413
        %8828 = vmatpush.bf16.msra.mxu0 %v5405
        %8829 = vmatmul.bf16.gmra.mxu0 %v623
        %v8830 = vpop.f32.mrf.mxu0
        %v8831 = vadd.f32 %v8812, %v8830
        %v8832 = vpop.f32.mrf.mxu0
        %v8833 = vadd.f32 %v8814, %v8832
        %8834 = vmatmul.bf16.gmra.mxu0 %v639
        %v8835 = vpop.f32.mrf.mxu0
        %v8836 = vadd.f32 %v8817, %v8835
        %v8837 = vpop.f32.mrf.mxu0
        %v8838 = vadd.f32 %v8819, %v8837
        %8839 = vdwg.mxu0
        %8840 = vmatpush.bf16.msra.mxu0 %v5525
        %8841 = vmatpush.bf16.msra.mxu0 %v5517
        %8842 = vmatpush.bf16.msra.mxu0 %v5509
        %8843 = vmatpush.bf16.msra.mxu0 %v5501
        %8844 = vmatpush.bf16.msra.mxu0 %v5493
        %8845 = vmatpush.bf16.msra.mxu0 %v5485
        %8846 = vmatpush.bf16.msra.mxu0 %v5477
        %8847 = vmatpush.bf16.msra.mxu0 %v5469
        %8848 = vmatmul.bf16.gmra.mxu0 %v624
        %v8849 = vpop.f32.mrf.mxu0
        %v8850 = vadd.f32 %v8831, %v8849
        %v8851 = vpop.f32.mrf.mxu0
        %v8852 = vadd.f32 %v8833, %v8851
        %8853 = vmatmul.bf16.gmra.mxu0 %v640
        %v8854 = vpop.f32.mrf.mxu0
        %v8855 = vadd.f32 %v8836, %v8854
        %v8856 = vpop.f32.mrf.mxu0
        %v8857 = vadd.f32 %v8838, %v8856
        %8858 = vdwg.mxu0
        %8859 = vmatpush.bf16.msra.mxu0 %v5589
        %8860 = vmatpush.bf16.msra.mxu0 %v5581
        %8861 = vmatpush.bf16.msra.mxu0 %v5573
        %8862 = vmatpush.bf16.msra.mxu0 %v5565
        %8863 = vmatpush.bf16.msra.mxu0 %v5557
        %8864 = vmatpush.bf16.msra.mxu0 %v5549
        %8865 = vmatpush.bf16.msra.mxu0 %v5541
        %8866 = vmatpush.bf16.msra.mxu0 %v5533
        %8867 = vmatmul.bf16.gmra.mxu0 %v625
        %v8868 = vpop.f32.mrf.mxu0
        %v8869 = vadd.f32 %v8850, %v8868
        %v8870 = vpop.f32.mrf.mxu0
        %v8871 = vadd.f32 %v8852, %v8870
        %8872 = vmatmul.bf16.gmra.mxu0 %v641
        %v8873 = vpop.f32.mrf.mxu0
        %v8874 = vadd.f32 %v8855, %v8873
        %v8875 = vpop.f32.mrf.mxu0
        %v8876 = vadd.f32 %v8857, %v8875
        %8877 = vdwg.mxu0
        %8878 = vmatpush.bf16.msra.mxu0 %v5653
        %8879 = vmatpush.bf16.msra.mxu0 %v5645
        %8880 = vmatpush.bf16.msra.mxu0 %v5637
        %8881 = vmatpush.bf16.msra.mxu0 %v5629
        %8882 = vmatpush.bf16.msra.mxu0 %v5621
        %8883 = vmatpush.bf16.msra.mxu0 %v5613
        %8884 = vmatpush.bf16.msra.mxu0 %v5605
        %8885 = vmatpush.bf16.msra.mxu0 %v5597
        %8886 = vmatmul.bf16.gmra.mxu0 %v626
        %v8887 = vpop.f32.mrf.mxu0
        %v8888 = vadd.f32 %v8869, %v8887
        %v8889 = vpop.f32.mrf.mxu0
        %v8890 = vadd.f32 %v8871, %v8889
        %8891 = vmatmul.bf16.gmra.mxu0 %v642
        %v8892 = vpop.f32.mrf.mxu0
        %v8893 = vadd.f32 %v8874, %v8892
        %v8894 = vpop.f32.mrf.mxu0
        %v8895 = vadd.f32 %v8876, %v8894
        %8896 = vdwg.mxu0
        %8897 = vmatpush.bf16.msra.mxu0 %v5717
        %8898 = vmatpush.bf16.msra.mxu0 %v5709
        %8899 = vmatpush.bf16.msra.mxu0 %v5701
        %8900 = vmatpush.bf16.msra.mxu0 %v5693
        %8901 = vmatpush.bf16.msra.mxu0 %v5685
        %8902 = vmatpush.bf16.msra.mxu0 %v5677
        %8903 = vmatpush.bf16.msra.mxu0 %v5669
        %8904 = vmatpush.bf16.msra.mxu0 %v5661
        %8905 = vmatmul.bf16.gmra.mxu0 %v627
        %v8906 = vpop.f32.mrf.mxu0
        %v8907 = vadd.f32 %v8888, %v8906
        %v8908 = vpop.f32.mrf.mxu0
        %v8909 = vadd.f32 %v8890, %v8908
        %8910 = vmatmul.bf16.gmra.mxu0 %v643
        %v8911 = vpop.f32.mrf.mxu0
        %v8912 = vadd.f32 %v8893, %v8911
        %v8913 = vpop.f32.mrf.mxu0
        %v8914 = vadd.f32 %v8895, %v8913
        %8915 = vdwg.mxu0
        %8916 = vmatpush.bf16.msra.mxu0 %v5781
        %8917 = vmatpush.bf16.msra.mxu0 %v5773
        %8918 = vmatpush.bf16.msra.mxu0 %v5765
        %8919 = vmatpush.bf16.msra.mxu0 %v5757
        %8920 = vmatpush.bf16.msra.mxu0 %v5749
        %8921 = vmatpush.bf16.msra.mxu0 %v5741
        %8922 = vmatpush.bf16.msra.mxu0 %v5733
        %8923 = vmatpush.bf16.msra.mxu0 %v5725
        %8924 = vmatmul.bf16.gmra.mxu0 %v628
        %v8925 = vpop.f32.mrf.mxu0
        %v8926 = vadd.f32 %v8907, %v8925
        %v8927 = vpop.f32.mrf.mxu0
        %v8928 = vadd.f32 %v8909, %v8927
        %8929 = vmatmul.bf16.gmra.mxu0 %v644
        %v8930 = vpop.f32.mrf.mxu0
        %v8931 = vadd.f32 %v8912, %v8930
        %v8932 = vpop.f32.mrf.mxu0
        %v8933 = vadd.f32 %v8914, %v8932
        %8934 = vdwg.mxu0
        %8935 = vmatpush.bf16.msra.mxu0 %v4822
        %8936 = vmatpush.bf16.msra.mxu0 %v4814
        %8937 = vmatpush.bf16.msra.mxu0 %v4806
        %8938 = vmatpush.bf16.msra.mxu0 %v4798
        %8939 = vmatpush.bf16.msra.mxu0 %v4790
        %8940 = vmatpush.bf16.msra.mxu0 %v4782
        %8941 = vmatpush.bf16.msra.mxu0 %v4774
        %8942 = vmatpush.bf16.msra.mxu0 %v4766
        %8943 = vmatmul.bf16.gmra.mxu0 %v613
        %v8944 = vpop.f32.mrf.mxu0
        %v8945 = vadd.f32 %v1678, %v8944
        %v8946 = vpop.f32.mrf.mxu0
        %v8947 = vadd.f32 %v1678, %v8946
        %8948 = vmatmul.bf16.gmra.mxu0 %v629
        %v8949 = vpop.f32.mrf.mxu0
        %v8950 = vadd.f32 %v1678, %v8949
        %v8951 = vpop.f32.mrf.mxu0
        %v8952 = vadd.f32 %v1678, %v8951
        %8953 = vdwg.mxu0
        %8954 = vmatpush.bf16.msra.mxu0 %v4886
        %8955 = vmatpush.bf16.msra.mxu0 %v4878
        %8956 = vmatpush.bf16.msra.mxu0 %v4870
        %8957 = vmatpush.bf16.msra.mxu0 %v4862
        %8958 = vmatpush.bf16.msra.mxu0 %v4854
        %8959 = vmatpush.bf16.msra.mxu0 %v4846
        %8960 = vmatpush.bf16.msra.mxu0 %v4838
        %8961 = vmatpush.bf16.msra.mxu0 %v4830
        %8962 = vmatmul.bf16.gmra.mxu0 %v614
        %v8963 = vpop.f32.mrf.mxu0
        %v8964 = vadd.f32 %v8945, %v8963
        %v8965 = vpop.f32.mrf.mxu0
        %v8966 = vadd.f32 %v8947, %v8965
        %8967 = vmatmul.bf16.gmra.mxu0 %v630
        %v8968 = vpop.f32.mrf.mxu0
        %v8969 = vadd.f32 %v8950, %v8968
        %v8970 = vpop.f32.mrf.mxu0
        %v8971 = vadd.f32 %v8952, %v8970
        %8972 = vdwg.mxu0
        %8973 = vmatpush.bf16.msra.mxu0 %v4950
        %8974 = vmatpush.bf16.msra.mxu0 %v4942
        %8975 = vmatpush.bf16.msra.mxu0 %v4934
        %8976 = vmatpush.bf16.msra.mxu0 %v4926
        %8977 = vmatpush.bf16.msra.mxu0 %v4918
        %8978 = vmatpush.bf16.msra.mxu0 %v4910
        %8979 = vmatpush.bf16.msra.mxu0 %v4902
        %8980 = vmatpush.bf16.msra.mxu0 %v4894
        %8981 = vmatmul.bf16.gmra.mxu0 %v615
        %v8982 = vpop.f32.mrf.mxu0
        %v8983 = vadd.f32 %v8964, %v8982
        %v8984 = vpop.f32.mrf.mxu0
        %v8985 = vadd.f32 %v8966, %v8984
        %8986 = vmatmul.bf16.gmra.mxu0 %v631
        %v8987 = vpop.f32.mrf.mxu0
        %v8988 = vadd.f32 %v8969, %v8987
        %v8989 = vpop.f32.mrf.mxu0
        %v8990 = vadd.f32 %v8971, %v8989
        %8991 = vdwg.mxu0
        %8992 = vmatpush.bf16.msra.mxu0 %v5014
        %8993 = vmatpush.bf16.msra.mxu0 %v5006
        %8994 = vmatpush.bf16.msra.mxu0 %v4998
        %8995 = vmatpush.bf16.msra.mxu0 %v4990
        %8996 = vmatpush.bf16.msra.mxu0 %v4982
        %8997 = vmatpush.bf16.msra.mxu0 %v4974
        %8998 = vmatpush.bf16.msra.mxu0 %v4966
        %8999 = vmatpush.bf16.msra.mxu0 %v4958
        %9000 = vmatmul.bf16.gmra.mxu0 %v616
        %v9001 = vpop.f32.mrf.mxu0
        %v9002 = vadd.f32 %v8983, %v9001
        %v9003 = vpop.f32.mrf.mxu0
        %v9004 = vadd.f32 %v8985, %v9003
        %9005 = vmatmul.bf16.gmra.mxu0 %v632
        %v9006 = vpop.f32.mrf.mxu0
        %v9007 = vadd.f32 %v8988, %v9006
        %v9008 = vpop.f32.mrf.mxu0
        %v9009 = vadd.f32 %v8990, %v9008
        %9010 = vdwg.mxu0
        %9011 = vmatpush.bf16.msra.mxu0 %v5078
        %9012 = vmatpush.bf16.msra.mxu0 %v5070
        %9013 = vmatpush.bf16.msra.mxu0 %v5062
        %9014 = vmatpush.bf16.msra.mxu0 %v5054
        %9015 = vmatpush.bf16.msra.mxu0 %v5046
        %9016 = vmatpush.bf16.msra.mxu0 %v5038
        %9017 = vmatpush.bf16.msra.mxu0 %v5030
        %9018 = vmatpush.bf16.msra.mxu0 %v5022
        %9019 = vmatmul.bf16.gmra.mxu0 %v617
        %v9020 = vpop.f32.mrf.mxu0
        %v9021 = vadd.f32 %v9002, %v9020
        %v9022 = vpop.f32.mrf.mxu0
        %v9023 = vadd.f32 %v9004, %v9022
        %9024 = vmatmul.bf16.gmra.mxu0 %v633
        %v9025 = vpop.f32.mrf.mxu0
        %v9026 = vadd.f32 %v9007, %v9025
        %v9027 = vpop.f32.mrf.mxu0
        %v9028 = vadd.f32 %v9009, %v9027
        %9029 = vdwg.mxu0
        %9030 = vmatpush.bf16.msra.mxu0 %v5142
        %9031 = vmatpush.bf16.msra.mxu0 %v5134
        %9032 = vmatpush.bf16.msra.mxu0 %v5126
        %9033 = vmatpush.bf16.msra.mxu0 %v5118
        %9034 = vmatpush.bf16.msra.mxu0 %v5110
        %9035 = vmatpush.bf16.msra.mxu0 %v5102
        %9036 = vmatpush.bf16.msra.mxu0 %v5094
        %9037 = vmatpush.bf16.msra.mxu0 %v5086
        %9038 = vmatmul.bf16.gmra.mxu0 %v618
        %v9039 = vpop.f32.mrf.mxu0
        %v9040 = vadd.f32 %v9021, %v9039
        %v9041 = vpop.f32.mrf.mxu0
        %v9042 = vadd.f32 %v9023, %v9041
        %9043 = vmatmul.bf16.gmra.mxu0 %v634
        %v9044 = vpop.f32.mrf.mxu0
        %v9045 = vadd.f32 %v9026, %v9044
        %v9046 = vpop.f32.mrf.mxu0
        %v9047 = vadd.f32 %v9028, %v9046
        %9048 = vdwg.mxu0
        %9049 = vmatpush.bf16.msra.mxu0 %v5206
        %9050 = vmatpush.bf16.msra.mxu0 %v5198
        %9051 = vmatpush.bf16.msra.mxu0 %v5190
        %9052 = vmatpush.bf16.msra.mxu0 %v5182
        %9053 = vmatpush.bf16.msra.mxu0 %v5174
        %9054 = vmatpush.bf16.msra.mxu0 %v5166
        %9055 = vmatpush.bf16.msra.mxu0 %v5158
        %9056 = vmatpush.bf16.msra.mxu0 %v5150
        %9057 = vmatmul.bf16.gmra.mxu0 %v619
        %v9058 = vpop.f32.mrf.mxu0
        %v9059 = vadd.f32 %v9040, %v9058
        %v9060 = vpop.f32.mrf.mxu0
        %v9061 = vadd.f32 %v9042, %v9060
        %9062 = vmatmul.bf16.gmra.mxu0 %v635
        %v9063 = vpop.f32.mrf.mxu0
        %v9064 = vadd.f32 %v9045, %v9063
        %v9065 = vpop.f32.mrf.mxu0
        %v9066 = vadd.f32 %v9047, %v9065
        %9067 = vdwg.mxu0
        %9068 = vmatpush.bf16.msra.mxu0 %v5270
        %9069 = vmatpush.bf16.msra.mxu0 %v5262
        %9070 = vmatpush.bf16.msra.mxu0 %v5254
        %9071 = vmatpush.bf16.msra.mxu0 %v5246
        %9072 = vmatpush.bf16.msra.mxu0 %v5238
        %9073 = vmatpush.bf16.msra.mxu0 %v5230
        %9074 = vmatpush.bf16.msra.mxu0 %v5222
        %9075 = vmatpush.bf16.msra.mxu0 %v5214
        %9076 = vmatmul.bf16.gmra.mxu0 %v620
        %v9077 = vpop.f32.mrf.mxu0
        %v9078 = vadd.f32 %v9059, %v9077
        %v9079 = vpop.f32.mrf.mxu0
        %v9080 = vadd.f32 %v9061, %v9079
        %9081 = vmatmul.bf16.gmra.mxu0 %v636
        %v9082 = vpop.f32.mrf.mxu0
        %v9083 = vadd.f32 %v9064, %v9082
        %v9084 = vpop.f32.mrf.mxu0
        %v9085 = vadd.f32 %v9066, %v9084
        %9086 = vdwg.mxu0
        %9087 = vmatpush.bf16.msra.mxu0 %v5334
        %9088 = vmatpush.bf16.msra.mxu0 %v5326
        %9089 = vmatpush.bf16.msra.mxu0 %v5318
        %9090 = vmatpush.bf16.msra.mxu0 %v5310
        %9091 = vmatpush.bf16.msra.mxu0 %v5302
        %9092 = vmatpush.bf16.msra.mxu0 %v5294
        %9093 = vmatpush.bf16.msra.mxu0 %v5286
        %9094 = vmatpush.bf16.msra.mxu0 %v5278
        %9095 = vmatmul.bf16.gmra.mxu0 %v621
        %v9096 = vpop.f32.mrf.mxu0
        %v9097 = vadd.f32 %v9078, %v9096
        %v9098 = vpop.f32.mrf.mxu0
        %v9099 = vadd.f32 %v9080, %v9098
        %9100 = vmatmul.bf16.gmra.mxu0 %v637
        %v9101 = vpop.f32.mrf.mxu0
        %v9102 = vadd.f32 %v9083, %v9101
        %v9103 = vpop.f32.mrf.mxu0
        %v9104 = vadd.f32 %v9085, %v9103
        %9105 = vdwg.mxu0
        %9106 = vmatpush.bf16.msra.mxu0 %v5398
        %9107 = vmatpush.bf16.msra.mxu0 %v5390
        %9108 = vmatpush.bf16.msra.mxu0 %v5382
        %9109 = vmatpush.bf16.msra.mxu0 %v5374
        %9110 = vmatpush.bf16.msra.mxu0 %v5366
        %9111 = vmatpush.bf16.msra.mxu0 %v5358
        %9112 = vmatpush.bf16.msra.mxu0 %v5350
        %9113 = vmatpush.bf16.msra.mxu0 %v5342
        %9114 = vmatmul.bf16.gmra.mxu0 %v622
        %v9115 = vpop.f32.mrf.mxu0
        %v9116 = vadd.f32 %v9097, %v9115
        %v9117 = vpop.f32.mrf.mxu0
        %v9118 = vadd.f32 %v9099, %v9117
        %9119 = vmatmul.bf16.gmra.mxu0 %v638
        %v9120 = vpop.f32.mrf.mxu0
        %v9121 = vadd.f32 %v9102, %v9120
        %v9122 = vpop.f32.mrf.mxu0
        %v9123 = vadd.f32 %v9104, %v9122
        %9124 = vdwg.mxu0
        %9125 = vmatpush.bf16.msra.mxu0 %v5462
        %9126 = vmatpush.bf16.msra.mxu0 %v5454
        %9127 = vmatpush.bf16.msra.mxu0 %v5446
        %9128 = vmatpush.bf16.msra.mxu0 %v5438
        %9129 = vmatpush.bf16.msra.mxu0 %v5430
        %9130 = vmatpush.bf16.msra.mxu0 %v5422
        %9131 = vmatpush.bf16.msra.mxu0 %v5414
        %9132 = vmatpush.bf16.msra.mxu0 %v5406
        %9133 = vmatmul.bf16.gmra.mxu0 %v623
        %v9134 = vpop.f32.mrf.mxu0
        %v9135 = vadd.f32 %v9116, %v9134
        %v9136 = vpop.f32.mrf.mxu0
        %v9137 = vadd.f32 %v9118, %v9136
        %9138 = vmatmul.bf16.gmra.mxu0 %v639
        %v9139 = vpop.f32.mrf.mxu0
        %v9140 = vadd.f32 %v9121, %v9139
        %v9141 = vpop.f32.mrf.mxu0
        %v9142 = vadd.f32 %v9123, %v9141
        %9143 = vdwg.mxu0
        %9144 = vmatpush.bf16.msra.mxu0 %v5526
        %9145 = vmatpush.bf16.msra.mxu0 %v5518
        %9146 = vmatpush.bf16.msra.mxu0 %v5510
        %9147 = vmatpush.bf16.msra.mxu0 %v5502
        %9148 = vmatpush.bf16.msra.mxu0 %v5494
        %9149 = vmatpush.bf16.msra.mxu0 %v5486
        %9150 = vmatpush.bf16.msra.mxu0 %v5478
        %9151 = vmatpush.bf16.msra.mxu0 %v5470
        %9152 = vmatmul.bf16.gmra.mxu0 %v624
        %v9153 = vpop.f32.mrf.mxu0
        %v9154 = vadd.f32 %v9135, %v9153
        %v9155 = vpop.f32.mrf.mxu0
        %v9156 = vadd.f32 %v9137, %v9155
        %9157 = vmatmul.bf16.gmra.mxu0 %v640
        %v9158 = vpop.f32.mrf.mxu0
        %v9159 = vadd.f32 %v9140, %v9158
        %v9160 = vpop.f32.mrf.mxu0
        %v9161 = vadd.f32 %v9142, %v9160
        %9162 = vdwg.mxu0
        %9163 = vmatpush.bf16.msra.mxu0 %v5590
        %9164 = vmatpush.bf16.msra.mxu0 %v5582
        %9165 = vmatpush.bf16.msra.mxu0 %v5574
        %9166 = vmatpush.bf16.msra.mxu0 %v5566
        %9167 = vmatpush.bf16.msra.mxu0 %v5558
        %9168 = vmatpush.bf16.msra.mxu0 %v5550
        %9169 = vmatpush.bf16.msra.mxu0 %v5542
        %9170 = vmatpush.bf16.msra.mxu0 %v5534
        %9171 = vmatmul.bf16.gmra.mxu0 %v625
        %v9172 = vpop.f32.mrf.mxu0
        %v9173 = vadd.f32 %v9154, %v9172
        %v9174 = vpop.f32.mrf.mxu0
        %v9175 = vadd.f32 %v9156, %v9174
        %9176 = vmatmul.bf16.gmra.mxu0 %v641
        %v9177 = vpop.f32.mrf.mxu0
        %v9178 = vadd.f32 %v9159, %v9177
        %v9179 = vpop.f32.mrf.mxu0
        %v9180 = vadd.f32 %v9161, %v9179
        %9181 = vdwg.mxu0
        %9182 = vmatpush.bf16.msra.mxu0 %v5654
        %9183 = vmatpush.bf16.msra.mxu0 %v5646
        %9184 = vmatpush.bf16.msra.mxu0 %v5638
        %9185 = vmatpush.bf16.msra.mxu0 %v5630
        %9186 = vmatpush.bf16.msra.mxu0 %v5622
        %9187 = vmatpush.bf16.msra.mxu0 %v5614
        %9188 = vmatpush.bf16.msra.mxu0 %v5606
        %9189 = vmatpush.bf16.msra.mxu0 %v5598
        %9190 = vmatmul.bf16.gmra.mxu0 %v626
        %v9191 = vpop.f32.mrf.mxu0
        %v9192 = vadd.f32 %v9173, %v9191
        %v9193 = vpop.f32.mrf.mxu0
        %v9194 = vadd.f32 %v9175, %v9193
        %9195 = vmatmul.bf16.gmra.mxu0 %v642
        %v9196 = vpop.f32.mrf.mxu0
        %v9197 = vadd.f32 %v9178, %v9196
        %v9198 = vpop.f32.mrf.mxu0
        %v9199 = vadd.f32 %v9180, %v9198
        %9200 = vdwg.mxu0
        %9201 = vmatpush.bf16.msra.mxu0 %v5718
        %9202 = vmatpush.bf16.msra.mxu0 %v5710
        %9203 = vmatpush.bf16.msra.mxu0 %v5702
        %9204 = vmatpush.bf16.msra.mxu0 %v5694
        %9205 = vmatpush.bf16.msra.mxu0 %v5686
        %9206 = vmatpush.bf16.msra.mxu0 %v5678
        %9207 = vmatpush.bf16.msra.mxu0 %v5670
        %9208 = vmatpush.bf16.msra.mxu0 %v5662
        %9209 = vmatmul.bf16.gmra.mxu0 %v627
        %v9210 = vpop.f32.mrf.mxu0
        %v9211 = vadd.f32 %v9192, %v9210
        %v9212 = vpop.f32.mrf.mxu0
        %v9213 = vadd.f32 %v9194, %v9212
        %9214 = vmatmul.bf16.gmra.mxu0 %v643
        %v9215 = vpop.f32.mrf.mxu0
        %v9216 = vadd.f32 %v9197, %v9215
        %v9217 = vpop.f32.mrf.mxu0
        %v9218 = vadd.f32 %v9199, %v9217
        %9219 = vdwg.mxu0
        %9220 = vmatpush.bf16.msra.mxu0 %v5782
        %9221 = vmatpush.bf16.msra.mxu0 %v5774
        %9222 = vmatpush.bf16.msra.mxu0 %v5766
        %9223 = vmatpush.bf16.msra.mxu0 %v5758
        %9224 = vmatpush.bf16.msra.mxu0 %v5750
        %9225 = vmatpush.bf16.msra.mxu0 %v5742
        %9226 = vmatpush.bf16.msra.mxu0 %v5734
        %9227 = vmatpush.bf16.msra.mxu0 %v5726
        %9228 = vmatmul.bf16.gmra.mxu0 %v628
        %v9229 = vpop.f32.mrf.mxu0
        %v9230 = vadd.f32 %v9211, %v9229
        %v9231 = vpop.f32.mrf.mxu0
        %v9232 = vadd.f32 %v9213, %v9231
        %9233 = vmatmul.bf16.gmra.mxu0 %v644
        %v9234 = vpop.f32.mrf.mxu0
        %v9235 = vadd.f32 %v9216, %v9234
        %v9236 = vpop.f32.mrf.mxu0
        %v9237 = vadd.f32 %v9218, %v9236
        %9238 = vdwg.mxu0
        %v9239 = vld [vmem:[#allocation8] sm:$0xff]
        %v9240 = vld [vmem:[#allocation10] sm:$0xff]
        %vm9241 = vcmp.ge.f32.partialorder %v7102, 0.0
        %vm9242 = vcmp.ge.f32.partialorder %v7406, 0.0
        %vm9243 = vcmp.ge.f32.partialorder %v7710, 0.0
        %vm9244 = vcmp.ge.f32.partialorder %v8014, 0.0
        %vm9245 = vcmp.ge.f32.partialorder %v8318, 0.0
        %vm9246 = vcmp.ge.f32.partialorder %v8622, 0.0
        %vm9247 = vcmp.ge.f32.partialorder %v8926, 0.0
        %vm9248 = vcmp.ge.f32.partialorder %v9230, 0.0
        %vm9249 = vcmp.ge.f32.partialorder %v7104, 0.0
        %vm9250 = vcmp.ge.f32.partialorder %v7408, 0.0
        %vm9251 = vcmp.ge.f32.partialorder %v7712, 0.0
        %vm9252 = vcmp.ge.f32.partialorder %v8016, 0.0
        %vm9253 = vcmp.ge.f32.partialorder %v8320, 0.0
        %vm9254 = vcmp.ge.f32.partialorder %v8624, 0.0
        %vm9255 = vcmp.ge.f32.partialorder %v8928, 0.0
        %vm9256 = vcmp.ge.f32.partialorder %v9232, 0.0
        %vm9257 = vcmp.ge.f32.partialorder %v7107, 0.0
        %vm9258 = vcmp.ge.f32.partialorder %v7411, 0.0
        %vm9259 = vcmp.ge.f32.partialorder %v7715, 0.0
        %vm9260 = vcmp.ge.f32.partialorder %v8019, 0.0
        %vm9261 = vcmp.ge.f32.partialorder %v8323, 0.0
        %vm9262 = vcmp.ge.f32.partialorder %v8627, 0.0
        %vm9263 = vcmp.ge.f32.partialorder %v8931, 0.0
        %vm9264 = vcmp.ge.f32.partialorder %v9235, 0.0
        %vm9265 = vcmp.ge.f32.partialorder %v7109, 0.0
        %vm9266 = vcmp.ge.f32.partialorder %v7413, 0.0
        %vm9267 = vcmp.ge.f32.partialorder %v7717, 0.0
        %vm9268 = vcmp.ge.f32.partialorder %v8021, 0.0
        %vm9269 = vcmp.ge.f32.partialorder %v8325, 0.0
        %vm9270 = vcmp.ge.f32.partialorder %v8629, 0.0
        %vm9271 = vcmp.ge.f32.partialorder %v8933, 0.0
        %vm9272 = vcmp.ge.f32.partialorder %v9237, 0.0
        %v9273 = vmul.f32 %v7102, 0.2
        %v9274 = vmul.f32 %v7406, 0.2
        %v9275 = vmul.f32 %v7710, 0.2
        %v9276 = vmul.f32 %v8014, 0.2
        %v9277 = vmul.f32 %v8318, 0.2
        %v9278 = vmul.f32 %v8622, 0.2
        %v9279 = vmul.f32 %v8926, 0.2
        %v9280 = vmul.f32 %v9230, 0.2
        %v9281 = vmul.f32 %v7104, 0.2
        %v9282 = vmul.f32 %v7408, 0.2
        %v9283 = vmul.f32 %v7712, 0.2
        %v9284 = vmul.f32 %v8016, 0.2
        %v9285 = vmul.f32 %v8320, 0.2
        %v9286 = vmul.f32 %v8624, 0.2
        %v9287 = vmul.f32 %v8928, 0.2
        %v9288 = vmul.f32 %v9232, 0.2
        %v9289 = vmul.f32 %v7107, 0.2
        %v9290 = vmul.f32 %v7411, 0.2
        %v9291 = vmul.f32 %v7715, 0.2
        %v9292 = vmul.f32 %v8019, 0.2
        %v9293 = vmul.f32 %v8323, 0.2
        %v9294 = vmul.f32 %v8627, 0.2
        %v9295 = vmul.f32 %v8931, 0.2
        %v9296 = vmul.f32 %v9235, 0.2
        %v9297 = vmul.f32 %v7109, 0.2
        %v9298 = vmul.f32 %v7413, 0.2
        %v9299 = vmul.f32 %v7717, 0.2
        %v9300 = vmul.f32 %v8021, 0.2
        %v9301 = vmul.f32 %v8325, 0.2
        %v9302 = vmul.f32 %v8629, 0.2
        %v9303 = vmul.f32 %v8933, 0.2
        %v9304 = vmul.f32 %v9237, 0.2
        %v9305 = vsel %vm9241, %v7102, %v9273
        %v9306 = vsel %vm9242, %v7406, %v9274
        %v9307 = vsel %vm9243, %v7710, %v9275
        %v9308 = vsel %vm9244, %v8014, %v9276
        %v9309 = vsel %vm9245, %v8318, %v9277
        %v9310 = vsel %vm9246, %v8622, %v9278
        %v9311 = vsel %vm9247, %v8926, %v9279
        %v9312 = vsel %vm9248, %v9230, %v9280
        %v9313 = vsel %vm9249, %v7104, %v9281
        %v9314 = vsel %vm9250, %v7408, %v9282
        %v9315 = vsel %vm9251, %v7712, %v9283
        %v9316 = vsel %vm9252, %v8016, %v9284
        %v9317 = vsel %vm9253, %v8320, %v9285
        %v9318 = vsel %vm9254, %v8624, %v9286
        %v9319 = vsel %vm9255, %v8928, %v9287
        %v9320 = vsel %vm9256, %v9232, %v9288
        %v9321 = vsel %vm9257, %v7107, %v9289
        %v9322 = vsel %vm9258, %v7411, %v9290
        %v9323 = vsel %vm9259, %v7715, %v9291
        %v9324 = vsel %vm9260, %v8019, %v9292
        %v9325 = vsel %vm9261, %v8323, %v9293
        %v9326 = vsel %vm9262, %v8627, %v9294
        %v9327 = vsel %vm9263, %v8931, %v9295
        %v9328 = vsel %vm9264, %v9235, %v9296
        %v9329 = vsel %vm9265, %v7109, %v9297
        %v9330 = vsel %vm9266, %v7413, %v9298
        %v9331 = vsel %vm9267, %v7717, %v9299
        %v9332 = vsel %vm9268, %v8021, %v9300
        %v9333 = vsel %vm9269, %v8325, %v9301
        %v9334 = vsel %vm9270, %v8629, %v9302
        %v9335 = vsel %vm9271, %v8933, %v9303
        %v9336 = vsel %vm9272, %v9237, %v9304
        %v9337 = vrot.slane %v9305, 4
        %v9338 = vadd.f32 %v9305, %v9337
        %v9339 = vrot.slane %v9338, 2
        %v9340 = vadd.f32 %v9338, %v9339
        %v9341 = vrot.slane %v9340, 1
        %v9342 = vadd.f32 %v9340, %v9341
        %v9343 = vrot.slane %v9306, 4
        %v9344 = vadd.f32 %v9306, %v9343
        %v9345 = vrot.slane %v9344, 2
        %v9346 = vadd.f32 %v9344, %v9345
        %v9347 = vrot.slane %v9346, 1
        %v9348 = vadd.f32 %v9346, %v9347
        %v9349 = vrot.slane %v9307, 4
        %v9350 = vadd.f32 %v9307, %v9349
        %v9351 = vrot.slane %v9350, 2
        %v9352 = vadd.f32 %v9350, %v9351
        %v9353 = vrot.slane %v9352, 1
        %v9354 = vadd.f32 %v9352, %v9353
        %v9355 = vrot.slane %v9308, 4
        %v9356 = vadd.f32 %v9308, %v9355
        %v9357 = vrot.slane %v9356, 2
        %v9358 = vadd.f32 %v9356, %v9357
        %v9359 = vrot.slane %v9358, 1
        %v9360 = vadd.f32 %v9358, %v9359
        %v9361 = vrot.slane %v9309, 4
        %v9362 = vadd.f32 %v9309, %v9361
        %v9363 = vrot.slane %v9362, 2
        %v9364 = vadd.f32 %v9362, %v9363
        %v9365 = vrot.slane %v9364, 1
        %v9366 = vadd.f32 %v9364, %v9365
        %v9367 = vrot.slane %v9310, 4
        %v9368 = vadd.f32 %v9310, %v9367
        %v9369 = vrot.slane %v9368, 2
        %v9370 = vadd.f32 %v9368, %v9369
        %v9371 = vrot.slane %v9370, 1
        %v9372 = vadd.f32 %v9370, %v9371
        %v9373 = vrot.slane %v9311, 4
        %v9374 = vadd.f32 %v9311, %v9373
        %v9375 = vrot.slane %v9374, 2
        %v9376 = vadd.f32 %v9374, %v9375
        %v9377 = vrot.slane %v9376, 1
        %v9378 = vadd.f32 %v9376, %v9377
        %v9379 = vrot.slane %v9312, 4
        %v9380 = vadd.f32 %v9312, %v9379
        %v9381 = vrot.slane %v9380, 2
        %v9382 = vadd.f32 %v9380, %v9381
        %v9383 = vrot.slane %v9382, 1
        %v9384 = vadd.f32 %v9382, %v9383
        %v9385 = vrot.slane %v9313, 4
        %v9386 = vadd.f32 %v9313, %v9385
        %v9387 = vrot.slane %v9386, 2
        %v9388 = vadd.f32 %v9386, %v9387
        %v9389 = vrot.slane %v9388, 1
        %v9390 = vadd.f32 %v9388, %v9389
        %v9391 = vrot.slane %v9314, 4
        %v9392 = vadd.f32 %v9314, %v9391
        %v9393 = vrot.slane %v9392, 2
        %v9394 = vadd.f32 %v9392, %v9393
        %v9395 = vrot.slane %v9394, 1
        %v9396 = vadd.f32 %v9394, %v9395
        %v9397 = vrot.slane %v9315, 4
        %v9398 = vadd.f32 %v9315, %v9397
        %v9399 = vrot.slane %v9398, 2
        %v9400 = vadd.f32 %v9398, %v9399
        %v9401 = vrot.slane %v9400, 1
        %v9402 = vadd.f32 %v9400, %v9401
        %v9403 = vrot.slane %v9316, 4
        %v9404 = vadd.f32 %v9316, %v9403
        %v9405 = vrot.slane %v9404, 2
        %v9406 = vadd.f32 %v9404, %v9405
        %v9407 = vrot.slane %v9406, 1
        %v9408 = vadd.f32 %v9406, %v9407
        %v9409 = vrot.slane %v9317, 4
        %v9410 = vadd.f32 %v9317, %v9409
        %v9411 = vrot.slane %v9410, 2
        %v9412 = vadd.f32 %v9410, %v9411
        %v9413 = vrot.slane %v9412, 1
        %v9414 = vadd.f32 %v9412, %v9413
        %v9415 = vrot.slane %v9318, 4
        %v9416 = vadd.f32 %v9318, %v9415
        %v9417 = vrot.slane %v9416, 2
        %v9418 = vadd.f32 %v9416, %v9417
        %v9419 = vrot.slane %v9418, 1
        %v9420 = vadd.f32 %v9418, %v9419
        %v9421 = vrot.slane %v9319, 4
        %v9422 = vadd.f32 %v9319, %v9421
        %v9423 = vrot.slane %v9422, 2
        %v9424 = vadd.f32 %v9422, %v9423
        %v9425 = vrot.slane %v9424, 1
        %v9426 = vadd.f32 %v9424, %v9425
        %v9427 = vrot.slane %v9320, 4
        %v9428 = vadd.f32 %v9320, %v9427
        %v9429 = vrot.slane %v9428, 2
        %v9430 = vadd.f32 %v9428, %v9429
        %v9431 = vrot.slane %v9430, 1
        %v9432 = vadd.f32 %v9430, %v9431
        %v9433 = vrot.slane %v9321, 4
        %v9434 = vadd.f32 %v9321, %v9433
        %v9435 = vrot.slane %v9434, 2
        %v9436 = vadd.f32 %v9434, %v9435
        %v9437 = vrot.slane %v9436, 1
        %v9438 = vadd.f32 %v9436, %v9437
        %v9439 = vrot.slane %v9322, 4
        %v9440 = vadd.f32 %v9322, %v9439
        %v9441 = vrot.slane %v9440, 2
        %v9442 = vadd.f32 %v9440, %v9441
        %v9443 = vrot.slane %v9442, 1
        %v9444 = vadd.f32 %v9442, %v9443
        %v9445 = vrot.slane %v9323, 4
        %v9446 = vadd.f32 %v9323, %v9445
        %v9447 = vrot.slane %v9446, 2
        %v9448 = vadd.f32 %v9446, %v9447
        %v9449 = vrot.slane %v9448, 1
        %v9450 = vadd.f32 %v9448, %v9449
        %v9451 = vrot.slane %v9324, 4
        %v9452 = vadd.f32 %v9324, %v9451
        %v9453 = vrot.slane %v9452, 2
        %v9454 = vadd.f32 %v9452, %v9453
        %v9455 = vrot.slane %v9454, 1
        %v9456 = vadd.f32 %v9454, %v9455
        %v9457 = vrot.slane %v9325, 4
        %v9458 = vadd.f32 %v9325, %v9457
        %v9459 = vrot.slane %v9458, 2
        %v9460 = vadd.f32 %v9458, %v9459
        %v9461 = vrot.slane %v9460, 1
        %v9462 = vadd.f32 %v9460, %v9461
        %v9463 = vrot.slane %v9326, 4
        %v9464 = vadd.f32 %v9326, %v9463
        %v9465 = vrot.slane %v9464, 2
        %v9466 = vadd.f32 %v9464, %v9465
        %v9467 = vrot.slane %v9466, 1
        %v9468 = vadd.f32 %v9466, %v9467
        %v9469 = vrot.slane %v9327, 4
        %v9470 = vadd.f32 %v9327, %v9469
        %v9471 = vrot.slane %v9470, 2
        %v9472 = vadd.f32 %v9470, %v9471
        %v9473 = vrot.slane %v9472, 1
        %v9474 = vadd.f32 %v9472, %v9473
        %v9475 = vrot.slane %v9328, 4
        %v9476 = vadd.f32 %v9328, %v9475
        %v9477 = vrot.slane %v9476, 2
        %v9478 = vadd.f32 %v9476, %v9477
        %v9479 = vrot.slane %v9478, 1
        %v9480 = vadd.f32 %v9478, %v9479
        %v9481 = vrot.slane %v9329, 4
        %v9482 = vadd.f32 %v9329, %v9481
        %v9483 = vrot.slane %v9482, 2
        %v9484 = vadd.f32 %v9482, %v9483
        %v9485 = vrot.slane %v9484, 1
        %v9486 = vadd.f32 %v9484, %v9485
        %v9487 = vrot.slane %v9330, 4
        %v9488 = vadd.f32 %v9330, %v9487
        %v9489 = vrot.slane %v9488, 2
        %v9490 = vadd.f32 %v9488, %v9489
        %v9491 = vrot.slane %v9490, 1
        %v9492 = vadd.f32 %v9490, %v9491
        %v9493 = vrot.slane %v9331, 4
        %v9494 = vadd.f32 %v9331, %v9493
        %v9495 = vrot.slane %v9494, 2
        %v9496 = vadd.f32 %v9494, %v9495
        %v9497 = vrot.slane %v9496, 1
        %v9498 = vadd.f32 %v9496, %v9497
        %v9499 = vrot.slane %v9332, 4
        %v9500 = vadd.f32 %v9332, %v9499
        %v9501 = vrot.slane %v9500, 2
        %v9502 = vadd.f32 %v9500, %v9501
        %v9503 = vrot.slane %v9502, 1
        %v9504 = vadd.f32 %v9502, %v9503
        %v9505 = vrot.slane %v9333, 4
        %v9506 = vadd.f32 %v9333, %v9505
        %v9507 = vrot.slane %v9506, 2
        %v9508 = vadd.f32 %v9506, %v9507
        %v9509 = vrot.slane %v9508, 1
        %v9510 = vadd.f32 %v9508, %v9509
        %v9511 = vrot.slane %v9334, 4
        %v9512 = vadd.f32 %v9334, %v9511
        %v9513 = vrot.slane %v9512, 2
        %v9514 = vadd.f32 %v9512, %v9513
        %v9515 = vrot.slane %v9514, 1
        %v9516 = vadd.f32 %v9514, %v9515
        %v9517 = vrot.slane %v9335, 4
        %v9518 = vadd.f32 %v9335, %v9517
        %v9519 = vrot.slane %v9518, 2
        %v9520 = vadd.f32 %v9518, %v9519
        %v9521 = vrot.slane %v9520, 1
        %v9522 = vadd.f32 %v9520, %v9521
        %v9523 = vrot.slane %v9336, 4
        %v9524 = vadd.f32 %v9336, %v9523
        %v9525 = vrot.slane %v9524, 2
        %v9526 = vadd.f32 %v9524, %v9525
        %v9527 = vrot.slane %v9526, 1
        %v9528 = vadd.f32 %v9526, %v9527
        %v9529 = vrcp.pop 8.0
        %v9530 = vmul.f32 8.0, %v9529
        %v9531 = vsub.f32 1.0, %v9530
        %v9532 = vmul.f32 %v9529, %v9531
        %v9533 = vadd.f32 %v9529, %v9532
        %vm9534 = vweird.f32 %v9529
        %v9535 = vsel %vm9534, %v9529, %v9533
        %v9536 = vmul.f32 %v9342, %v9535
        %v9537 = vmul.f32 %v9348, %v9535
        %v9538 = vmul.f32 %v9354, %v9535
        %v9539 = vmul.f32 %v9360, %v9535
        %v9540 = vmul.f32 %v9366, %v9535
        %v9541 = vmul.f32 %v9372, %v9535
        %v9542 = vmul.f32 %v9378, %v9535
        %v9543 = vmul.f32 %v9384, %v9535
        %v9544 = vmul.f32 %v9390, %v9535
        %v9545 = vmul.f32 %v9396, %v9535
        %v9546 = vmul.f32 %v9402, %v9535
        %v9547 = vmul.f32 %v9408, %v9535
        %v9548 = vmul.f32 %v9414, %v9535
        %v9549 = vmul.f32 %v9420, %v9535
        %v9550 = vmul.f32 %v9426, %v9535
        %v9551 = vmul.f32 %v9432, %v9535
        %v9552 = vmul.f32 %v9438, %v9535
        %v9553 = vmul.f32 %v9444, %v9535
        %v9554 = vmul.f32 %v9450, %v9535
        %v9555 = vmul.f32 %v9456, %v9535
        %v9556 = vmul.f32 %v9462, %v9535
        %v9557 = vmul.f32 %v9468, %v9535
        %v9558 = vmul.f32 %v9474, %v9535
        %v9559 = vmul.f32 %v9480, %v9535
        %v9560 = vmul.f32 %v9486, %v9535
        %v9561 = vmul.f32 %v9492, %v9535
        %v9562 = vmul.f32 %v9498, %v9535
        %v9563 = vmul.f32 %v9504, %v9535
        %v9564 = vmul.f32 %v9510, %v9535
        %v9565 = vmul.f32 %v9516, %v9535
        %v9566 = vmul.f32 %v9522, %v9535
        %v9567 = vmul.f32 %v9528, %v9535
        %v9568 = vsub.f32 %v9305, %v9536
        %v9569 = vsub.f32 %v9306, %v9537
        %v9570 = vsub.f32 %v9307, %v9538
        %v9571 = vsub.f32 %v9308, %v9539
        %v9572 = vsub.f32 %v9309, %v9540
        %v9573 = vsub.f32 %v9310, %v9541
        %v9574 = vsub.f32 %v9311, %v9542
        %v9575 = vsub.f32 %v9312, %v9543
        %v9576 = vsub.f32 %v9313, %v9544
        %v9577 = vsub.f32 %v9314, %v9545
        %v9578 = vsub.f32 %v9315, %v9546
        %v9579 = vsub.f32 %v9316, %v9547
        %v9580 = vsub.f32 %v9317, %v9548
        %v9581 = vsub.f32 %v9318, %v9549
        %v9582 = vsub.f32 %v9319, %v9550
        %v9583 = vsub.f32 %v9320, %v9551
        %v9584 = vsub.f32 %v9321, %v9552
        %v9585 = vsub.f32 %v9322, %v9553
        %v9586 = vsub.f32 %v9323, %v9554
        %v9587 = vsub.f32 %v9324, %v9555
        %v9588 = vsub.f32 %v9325, %v9556
        %v9589 = vsub.f32 %v9326, %v9557
        %v9590 = vsub.f32 %v9327, %v9558
        %v9591 = vsub.f32 %v9328, %v9559
        %v9592 = vsub.f32 %v9329, %v9560
        %v9593 = vsub.f32 %v9330, %v9561
        %v9594 = vsub.f32 %v9331, %v9562
        %v9595 = vsub.f32 %v9332, %v9563
        %v9596 = vsub.f32 %v9333, %v9564
        %v9597 = vsub.f32 %v9334, %v9565
        %v9598 = vsub.f32 %v9335, %v9566
        %v9599 = vsub.f32 %v9336, %v9567
        %v9600 = vmul.f32 %v9568, %v9568
        %v9601 = vmul.f32 %v9569, %v9569
        %v9602 = vmul.f32 %v9570, %v9570
        %v9603 = vmul.f32 %v9571, %v9571
        %v9604 = vmul.f32 %v9572, %v9572
        %v9605 = vmul.f32 %v9573, %v9573
        %v9606 = vmul.f32 %v9574, %v9574
        %v9607 = vmul.f32 %v9575, %v9575
        %v9608 = vmul.f32 %v9576, %v9576
        %v9609 = vmul.f32 %v9577, %v9577
        %v9610 = vmul.f32 %v9578, %v9578
        %v9611 = vmul.f32 %v9579, %v9579
        %v9612 = vmul.f32 %v9580, %v9580
        %v9613 = vmul.f32 %v9581, %v9581
        %v9614 = vmul.f32 %v9582, %v9582
        %v9615 = vmul.f32 %v9583, %v9583
        %v9616 = vmul.f32 %v9584, %v9584
        %v9617 = vmul.f32 %v9585, %v9585
        %v9618 = vmul.f32 %v9586, %v9586
        %v9619 = vmul.f32 %v9587, %v9587
        %v9620 = vmul.f32 %v9588, %v9588
        %v9621 = vmul.f32 %v9589, %v9589
        %v9622 = vmul.f32 %v9590, %v9590
        %v9623 = vmul.f32 %v9591, %v9591
        %v9624 = vmul.f32 %v9592, %v9592
        %v9625 = vmul.f32 %v9593, %v9593
        %v9626 = vmul.f32 %v9594, %v9594
        %v9627 = vmul.f32 %v9595, %v9595
        %v9628 = vmul.f32 %v9596, %v9596
        %v9629 = vmul.f32 %v9597, %v9597
        %v9630 = vmul.f32 %v9598, %v9598
        %v9631 = vmul.f32 %v9599, %v9599
        %v9632 = vrot.slane %v9600, 4
        %v9633 = vadd.f32 %v9600, %v9632
        %v9634 = vrot.slane %v9633, 2
        %v9635 = vadd.f32 %v9633, %v9634
        %v9636 = vrot.slane %v9635, 1
        %v9637 = vadd.f32 %v9635, %v9636
        %v9638 = vrot.slane %v9601, 4
        %v9639 = vadd.f32 %v9601, %v9638
        %v9640 = vrot.slane %v9639, 2
        %v9641 = vadd.f32 %v9639, %v9640
        %v9642 = vrot.slane %v9641, 1
        %v9643 = vadd.f32 %v9641, %v9642
        %v9644 = vrot.slane %v9602, 4
        %v9645 = vadd.f32 %v9602, %v9644
        %v9646 = vrot.slane %v9645, 2
        %v9647 = vadd.f32 %v9645, %v9646
        %v9648 = vrot.slane %v9647, 1
        %v9649 = vadd.f32 %v9647, %v9648
        %v9650 = vrot.slane %v9603, 4
        %v9651 = vadd.f32 %v9603, %v9650
        %v9652 = vrot.slane %v9651, 2
        %v9653 = vadd.f32 %v9651, %v9652
        %v9654 = vrot.slane %v9653, 1
        %v9655 = vadd.f32 %v9653, %v9654
        %v9656 = vrot.slane %v9604, 4
        %v9657 = vadd.f32 %v9604, %v9656
        %v9658 = vrot.slane %v9657, 2
        %v9659 = vadd.f32 %v9657, %v9658
        %v9660 = vrot.slane %v9659, 1
        %v9661 = vadd.f32 %v9659, %v9660
        %v9662 = vrot.slane %v9605, 4
        %v9663 = vadd.f32 %v9605, %v9662
        %v9664 = vrot.slane %v9663, 2
        %v9665 = vadd.f32 %v9663, %v9664
        %v9666 = vrot.slane %v9665, 1
        %v9667 = vadd.f32 %v9665, %v9666
        %v9668 = vrot.slane %v9606, 4
        %v9669 = vadd.f32 %v9606, %v9668
        %v9670 = vrot.slane %v9669, 2
        %v9671 = vadd.f32 %v9669, %v9670
        %v9672 = vrot.slane %v9671, 1
        %v9673 = vadd.f32 %v9671, %v9672
        %v9674 = vrot.slane %v9607, 4
        %v9675 = vadd.f32 %v9607, %v9674
        %v9676 = vrot.slane %v9675, 2
        %v9677 = vadd.f32 %v9675, %v9676
        %v9678 = vrot.slane %v9677, 1
        %v9679 = vadd.f32 %v9677, %v9678
        %v9680 = vrot.slane %v9608, 4
        %v9681 = vadd.f32 %v9608, %v9680
        %v9682 = vrot.slane %v9681, 2
        %v9683 = vadd.f32 %v9681, %v9682
        %v9684 = vrot.slane %v9683, 1
        %v9685 = vadd.f32 %v9683, %v9684
        %v9686 = vrot.slane %v9609, 4
        %v9687 = vadd.f32 %v9609, %v9686
        %v9688 = vrot.slane %v9687, 2
        %v9689 = vadd.f32 %v9687, %v9688
        %v9690 = vrot.slane %v9689, 1
        %v9691 = vadd.f32 %v9689, %v9690
        %v9692 = vrot.slane %v9610, 4
        %v9693 = vadd.f32 %v9610, %v9692
        %v9694 = vrot.slane %v9693, 2
        %v9695 = vadd.f32 %v9693, %v9694
        %v9696 = vrot.slane %v9695, 1
        %v9697 = vadd.f32 %v9695, %v9696
        %v9698 = vrot.slane %v9611, 4
        %v9699 = vadd.f32 %v9611, %v9698
        %v9700 = vrot.slane %v9699, 2
        %v9701 = vadd.f32 %v9699, %v9700
        %v9702 = vrot.slane %v9701, 1
        %v9703 = vadd.f32 %v9701, %v9702
        %v9704 = vrot.slane %v9612, 4
        %v9705 = vadd.f32 %v9612, %v9704
        %v9706 = vrot.slane %v9705, 2
        %v9707 = vadd.f32 %v9705, %v9706
        %v9708 = vrot.slane %v9707, 1
        %v9709 = vadd.f32 %v9707, %v9708
        %v9710 = vrot.slane %v9613, 4
        %v9711 = vadd.f32 %v9613, %v9710
        %v9712 = vrot.slane %v9711, 2
        %v9713 = vadd.f32 %v9711, %v9712
        %v9714 = vrot.slane %v9713, 1
        %v9715 = vadd.f32 %v9713, %v9714
        %v9716 = vrot.slane %v9614, 4
        %v9717 = vadd.f32 %v9614, %v9716
        %v9718 = vrot.slane %v9717, 2
        %v9719 = vadd.f32 %v9717, %v9718
        %v9720 = vrot.slane %v9719, 1
        %v9721 = vadd.f32 %v9719, %v9720
        %v9722 = vrot.slane %v9615, 4
        %v9723 = vadd.f32 %v9615, %v9722
        %v9724 = vrot.slane %v9723, 2
        %v9725 = vadd.f32 %v9723, %v9724
        %v9726 = vrot.slane %v9725, 1
        %v9727 = vadd.f32 %v9725, %v9726
        %v9728 = vrot.slane %v9616, 4
        %v9729 = vadd.f32 %v9616, %v9728
        %v9730 = vrot.slane %v9729, 2
        %v9731 = vadd.f32 %v9729, %v9730
        %v9732 = vrot.slane %v9731, 1
        %v9733 = vadd.f32 %v9731, %v9732
        %v9734 = vrot.slane %v9617, 4
        %v9735 = vadd.f32 %v9617, %v9734
        %v9736 = vrot.slane %v9735, 2
        %v9737 = vadd.f32 %v9735, %v9736
        %v9738 = vrot.slane %v9737, 1
        %v9739 = vadd.f32 %v9737, %v9738
        %v9740 = vrot.slane %v9618, 4
        %v9741 = vadd.f32 %v9618, %v9740
        %v9742 = vrot.slane %v9741, 2
        %v9743 = vadd.f32 %v9741, %v9742
        %v9744 = vrot.slane %v9743, 1
        %v9745 = vadd.f32 %v9743, %v9744
        %v9746 = vrot.slane %v9619, 4
        %v9747 = vadd.f32 %v9619, %v9746
        %v9748 = vrot.slane %v9747, 2
        %v9749 = vadd.f32 %v9747, %v9748
        %v9750 = vrot.slane %v9749, 1
        %v9751 = vadd.f32 %v9749, %v9750
        %v9752 = vrot.slane %v9620, 4
        %v9753 = vadd.f32 %v9620, %v9752
        %v9754 = vrot.slane %v9753, 2
        %v9755 = vadd.f32 %v9753, %v9754
        %v9756 = vrot.slane %v9755, 1
        %v9757 = vadd.f32 %v9755, %v9756
        %v9758 = vrot.slane %v9621, 4
        %v9759 = vadd.f32 %v9621, %v9758
        %v9760 = vrot.slane %v9759, 2
        %v9761 = vadd.f32 %v9759, %v9760
        %v9762 = vrot.slane %v9761, 1
        %v9763 = vadd.f32 %v9761, %v9762
        %v9764 = vrot.slane %v9622, 4
        %v9765 = vadd.f32 %v9622, %v9764
        %v9766 = vrot.slane %v9765, 2
        %v9767 = vadd.f32 %v9765, %v9766
        %v9768 = vrot.slane %v9767, 1
        %v9769 = vadd.f32 %v9767, %v9768
        %v9770 = vrot.slane %v9623, 4
        %v9771 = vadd.f32 %v9623, %v9770
        %v9772 = vrot.slane %v9771, 2
        %v9773 = vadd.f32 %v9771, %v9772
        %v9774 = vrot.slane %v9773, 1
        %v9775 = vadd.f32 %v9773, %v9774
        %v9776 = vrot.slane %v9624, 4
        %v9777 = vadd.f32 %v9624, %v9776
        %v9778 = vrot.slane %v9777, 2
        %v9779 = vadd.f32 %v9777, %v9778
        %v9780 = vrot.slane %v9779, 1
        %v9781 = vadd.f32 %v9779, %v9780
        %v9782 = vrot.slane %v9625, 4
        %v9783 = vadd.f32 %v9625, %v9782
        %v9784 = vrot.slane %v9783, 2
        %v9785 = vadd.f32 %v9783, %v9784
        %v9786 = vrot.slane %v9785, 1
        %v9787 = vadd.f32 %v9785, %v9786
        %v9788 = vrot.slane %v9626, 4
        %v9789 = vadd.f32 %v9626, %v9788
        %v9790 = vrot.slane %v9789, 2
        %v9791 = vadd.f32 %v9789, %v9790
        %v9792 = vrot.slane %v9791, 1
        %v9793 = vadd.f32 %v9791, %v9792
        %v9794 = vrot.slane %v9627, 4
        %v9795 = vadd.f32 %v9627, %v9794
        %v9796 = vrot.slane %v9795, 2
        %v9797 = vadd.f32 %v9795, %v9796
        %v9798 = vrot.slane %v9797, 1
        %v9799 = vadd.f32 %v9797, %v9798
        %v9800 = vrot.slane %v9628, 4
        %v9801 = vadd.f32 %v9628, %v9800
        %v9802 = vrot.slane %v9801, 2
        %v9803 = vadd.f32 %v9801, %v9802
        %v9804 = vrot.slane %v9803, 1
        %v9805 = vadd.f32 %v9803, %v9804
        %v9806 = vrot.slane %v9629, 4
        %v9807 = vadd.f32 %v9629, %v9806
        %v9808 = vrot.slane %v9807, 2
        %v9809 = vadd.f32 %v9807, %v9808
        %v9810 = vrot.slane %v9809, 1
        %v9811 = vadd.f32 %v9809, %v9810
        %v9812 = vrot.slane %v9630, 4
        %v9813 = vadd.f32 %v9630, %v9812
        %v9814 = vrot.slane %v9813, 2
        %v9815 = vadd.f32 %v9813, %v9814
        %v9816 = vrot.slane %v9815, 1
        %v9817 = vadd.f32 %v9815, %v9816
        %v9818 = vrot.slane %v9631, 4
        %v9819 = vadd.f32 %v9631, %v9818
        %v9820 = vrot.slane %v9819, 2
        %v9821 = vadd.f32 %v9819, %v9820
        %v9822 = vrot.slane %v9821, 1
        %v9823 = vadd.f32 %v9821, %v9822
        %v9824 = vmul.f32 %v9637, %v9535
        %v9825 = vmul.f32 %v9643, %v9535
        %v9826 = vmul.f32 %v9649, %v9535
        %v9827 = vmul.f32 %v9655, %v9535
        %v9828 = vmul.f32 %v9661, %v9535
        %v9829 = vmul.f32 %v9667, %v9535
        %v9830 = vmul.f32 %v9673, %v9535
        %v9831 = vmul.f32 %v9679, %v9535
        %v9832 = vmul.f32 %v9685, %v9535
        %v9833 = vmul.f32 %v9691, %v9535
        %v9834 = vmul.f32 %v9697, %v9535
        %v9835 = vmul.f32 %v9703, %v9535
        %v9836 = vmul.f32 %v9709, %v9535
        %v9837 = vmul.f32 %v9715, %v9535
        %v9838 = vmul.f32 %v9721, %v9535
        %v9839 = vmul.f32 %v9727, %v9535
        %v9840 = vmul.f32 %v9733, %v9535
        %v9841 = vmul.f32 %v9739, %v9535
        %v9842 = vmul.f32 %v9745, %v9535
        %v9843 = vmul.f32 %v9751, %v9535
        %v9844 = vmul.f32 %v9757, %v9535
        %v9845 = vmul.f32 %v9763, %v9535
        %v9846 = vmul.f32 %v9769, %v9535
        %v9847 = vmul.f32 %v9775, %v9535
        %v9848 = vmul.f32 %v9781, %v9535
        %v9849 = vmul.f32 %v9787, %v9535
        %v9850 = vmul.f32 %v9793, %v9535
        %v9851 = vmul.f32 %v9799, %v9535
        %v9852 = vmul.f32 %v9805, %v9535
        %v9853 = vmul.f32 %v9811, %v9535
        %v9854 = vmul.f32 %v9817, %v9535
        %v9855 = vmul.f32 %v9823, %v9535
        %v9856 = vadd.f32 %v9824, 1e-05
        %v9857 = vadd.f32 %v9825, 1e-05
        %v9858 = vadd.f32 %v9826, 1e-05
        %v9859 = vadd.f32 %v9827, 1e-05
        %v9860 = vadd.f32 %v9828, 1e-05
        %v9861 = vadd.f32 %v9829, 1e-05
        %v9862 = vadd.f32 %v9830, 1e-05
        %v9863 = vadd.f32 %v9831, 1e-05
        %v9864 = vadd.f32 %v9832, 1e-05
        %v9865 = vadd.f32 %v9833, 1e-05
        %v9866 = vadd.f32 %v9834, 1e-05
        %v9867 = vadd.f32 %v9835, 1e-05
        %v9868 = vadd.f32 %v9836, 1e-05
        %v9869 = vadd.f32 %v9837, 1e-05
        %v9870 = vadd.f32 %v9838, 1e-05
        %v9871 = vadd.f32 %v9839, 1e-05
        %v9872 = vadd.f32 %v9840, 1e-05
        %v9873 = vadd.f32 %v9841, 1e-05
        %v9874 = vadd.f32 %v9842, 1e-05
        %v9875 = vadd.f32 %v9843, 1e-05
        %v9876 = vadd.f32 %v9844, 1e-05
        %v9877 = vadd.f32 %v9845, 1e-05
        %v9878 = vadd.f32 %v9846, 1e-05
        %v9879 = vadd.f32 %v9847, 1e-05
        %v9880 = vadd.f32 %v9848, 1e-05
        %v9881 = vadd.f32 %v9849, 1e-05
        %v9882 = vadd.f32 %v9850, 1e-05
        %v9883 = vadd.f32 %v9851, 1e-05
        %v9884 = vadd.f32 %v9852, 1e-05
        %v9885 = vadd.f32 %v9853, 1e-05
        %v9886 = vadd.f32 %v9854, 1e-05
        %v9887 = vadd.f32 %v9855, 1e-05
        %v9888 = vrsqrt.pop %v9856
        %v9889 = vmul.f32 %v9888, %v9856
        %v9890 = vmul.f32 %v9889, %v9888
        %v9891 = vmul.f32 0.5, %v9890
        %v9892 = vsub.f32 1.5, %v9891
        %v9893 = vmul.f32 %v9888, %v9892
        %vm9894 = vweird.f32 %v9856
        %vm9895 = vweird.f32 %v9888
        %vm9896 = vmor %vm9894, %vm9895
        %v9897 = vsel %vm9896, %v9888, %v9893
        %v9898 = vrsqrt.pop %v9857
        %v9899 = vmul.f32 %v9898, %v9857
        %v9900 = vmul.f32 %v9899, %v9898
        %v9901 = vmul.f32 0.5, %v9900
        %v9902 = vsub.f32 1.5, %v9901
        %v9903 = vmul.f32 %v9898, %v9902
        %vm9904 = vweird.f32 %v9857
        %vm9905 = vweird.f32 %v9898
        %vm9906 = vmor %vm9904, %vm9905
        %v9907 = vsel %vm9906, %v9898, %v9903
        %v9908 = vrsqrt.pop %v9858
        %v9909 = vmul.f32 %v9908, %v9858
        %v9910 = vmul.f32 %v9909, %v9908
        %v9911 = vmul.f32 0.5, %v9910
        %v9912 = vsub.f32 1.5, %v9911
        %v9913 = vmul.f32 %v9908, %v9912
        %vm9914 = vweird.f32 %v9858
        %vm9915 = vweird.f32 %v9908
        %vm9916 = vmor %vm9914, %vm9915
        %v9917 = vsel %vm9916, %v9908, %v9913
        %v9918 = vrsqrt.pop %v9859
        %v9919 = vmul.f32 %v9918, %v9859
        %v9920 = vmul.f32 %v9919, %v9918
        %v9921 = vmul.f32 0.5, %v9920
        %v9922 = vsub.f32 1.5, %v9921
        %v9923 = vmul.f32 %v9918, %v9922
        %vm9924 = vweird.f32 %v9859
        %vm9925 = vweird.f32 %v9918
        %vm9926 = vmor %vm9924, %vm9925
        %v9927 = vsel %vm9926, %v9918, %v9923
        %v9928 = vrsqrt.pop %v9860
        %v9929 = vmul.f32 %v9928, %v9860
        %v9930 = vmul.f32 %v9929, %v9928
        %v9931 = vmul.f32 0.5, %v9930
        %v9932 = vsub.f32 1.5, %v9931
        %v9933 = vmul.f32 %v9928, %v9932
        %vm9934 = vweird.f32 %v9860
        %vm9935 = vweird.f32 %v9928
        %vm9936 = vmor %vm9934, %vm9935
        %v9937 = vsel %vm9936, %v9928, %v9933
        %v9938 = vrsqrt.pop %v9861
        %v9939 = vmul.f32 %v9938, %v9861
        %v9940 = vmul.f32 %v9939, %v9938
        %v9941 = vmul.f32 0.5, %v9940
        %v9942 = vsub.f32 1.5, %v9941
        %v9943 = vmul.f32 %v9938, %v9942
        %vm9944 = vweird.f32 %v9861
        %vm9945 = vweird.f32 %v9938
        %vm9946 = vmor %vm9944, %vm9945
        %v9947 = vsel %vm9946, %v9938, %v9943
        %v9948 = vrsqrt.pop %v9862
        %v9949 = vmul.f32 %v9948, %v9862
        %v9950 = vmul.f32 %v9949, %v9948
        %v9951 = vmul.f32 0.5, %v9950
        %v9952 = vsub.f32 1.5, %v9951
        %v9953 = vmul.f32 %v9948, %v9952
        %vm9954 = vweird.f32 %v9862
        %vm9955 = vweird.f32 %v9948
        %vm9956 = vmor %vm9954, %vm9955
        %v9957 = vsel %vm9956, %v9948, %v9953
        %v9958 = vrsqrt.pop %v9863
        %v9959 = vmul.f32 %v9958, %v9863
        %v9960 = vmul.f32 %v9959, %v9958
        %v9961 = vmul.f32 0.5, %v9960
        %v9962 = vsub.f32 1.5, %v9961
        %v9963 = vmul.f32 %v9958, %v9962
        %vm9964 = vweird.f32 %v9863
        %vm9965 = vweird.f32 %v9958
        %vm9966 = vmor %vm9964, %vm9965
        %v9967 = vsel %vm9966, %v9958, %v9963
        %v9968 = vrsqrt.pop %v9864
        %v9969 = vmul.f32 %v9968, %v9864
        %v9970 = vmul.f32 %v9969, %v9968
        %v9971 = vmul.f32 0.5, %v9970
        %v9972 = vsub.f32 1.5, %v9971
        %v9973 = vmul.f32 %v9968, %v9972
        %vm9974 = vweird.f32 %v9864
        %vm9975 = vweird.f32 %v9968
        %vm9976 = vmor %vm9974, %vm9975
        %v9977 = vsel %vm9976, %v9968, %v9973
        %v9978 = vrsqrt.pop %v9865
        %v9979 = vmul.f32 %v9978, %v9865
        %v9980 = vmul.f32 %v9979, %v9978
        %v9981 = vmul.f32 0.5, %v9980
        %v9982 = vsub.f32 1.5, %v9981
        %v9983 = vmul.f32 %v9978, %v9982
        %vm9984 = vweird.f32 %v9865
        %vm9985 = vweird.f32 %v9978
        %vm9986 = vmor %vm9984, %vm9985
        %v9987 = vsel %vm9986, %v9978, %v9983
        %v9988 = vrsqrt.pop %v9866
        %v9989 = vmul.f32 %v9988, %v9866
        %v9990 = vmul.f32 %v9989, %v9988
        %v9991 = vmul.f32 0.5, %v9990
        %v9992 = vsub.f32 1.5, %v9991
        %v9993 = vmul.f32 %v9988, %v9992
        %vm9994 = vweird.f32 %v9866
        %vm9995 = vweird.f32 %v9988
        %vm9996 = vmor %vm9994, %vm9995
        %v9997 = vsel %vm9996, %v9988, %v9993
        %v9998 = vrsqrt.pop %v9867
        %v9999 = vmul.f32 %v9998, %v9867
        %v10000 = vmul.f32 %v9999, %v9998
        %v10001 = vmul.f32 0.5, %v10000
        %v10002 = vsub.f32 1.5, %v10001
        %v10003 = vmul.f32 %v9998, %v10002
        %vm10004 = vweird.f32 %v9867
        %vm10005 = vweird.f32 %v9998
        %vm10006 = vmor %vm10004, %vm10005
        %v10007 = vsel %vm10006, %v9998, %v10003
        %v10008 = vrsqrt.pop %v9868
        %v10009 = vmul.f32 %v10008, %v9868
        %v10010 = vmul.f32 %v10009, %v10008
        %v10011 = vmul.f32 0.5, %v10010
        %v10012 = vsub.f32 1.5, %v10011
        %v10013 = vmul.f32 %v10008, %v10012
        %vm10014 = vweird.f32 %v9868
        %vm10015 = vweird.f32 %v10008
        %vm10016 = vmor %vm10014, %vm10015
        %v10017 = vsel %vm10016, %v10008, %v10013
        %v10018 = vrsqrt.pop %v9869
        %v10019 = vmul.f32 %v10018, %v9869
        %v10020 = vmul.f32 %v10019, %v10018
        %v10021 = vmul.f32 0.5, %v10020
        %v10022 = vsub.f32 1.5, %v10021
        %v10023 = vmul.f32 %v10018, %v10022
        %vm10024 = vweird.f32 %v9869
        %vm10025 = vweird.f32 %v10018
        %vm10026 = vmor %vm10024, %vm10025
        %v10027 = vsel %vm10026, %v10018, %v10023
        %v10028 = vrsqrt.pop %v9870
        %v10029 = vmul.f32 %v10028, %v9870
        %v10030 = vmul.f32 %v10029, %v10028
        %v10031 = vmul.f32 0.5, %v10030
        %v10032 = vsub.f32 1.5, %v10031
        %v10033 = vmul.f32 %v10028, %v10032
        %vm10034 = vweird.f32 %v9870
        %vm10035 = vweird.f32 %v10028
        %vm10036 = vmor %vm10034, %vm10035
        %v10037 = vsel %vm10036, %v10028, %v10033
        %v10038 = vrsqrt.pop %v9871
        %v10039 = vmul.f32 %v10038, %v9871
        %v10040 = vmul.f32 %v10039, %v10038
        %v10041 = vmul.f32 0.5, %v10040
        %v10042 = vsub.f32 1.5, %v10041
        %v10043 = vmul.f32 %v10038, %v10042
        %vm10044 = vweird.f32 %v9871
        %vm10045 = vweird.f32 %v10038
        %vm10046 = vmor %vm10044, %vm10045
        %v10047 = vsel %vm10046, %v10038, %v10043
        %v10048 = vrsqrt.pop %v9872
        %v10049 = vmul.f32 %v10048, %v9872
        %v10050 = vmul.f32 %v10049, %v10048
        %v10051 = vmul.f32 0.5, %v10050
        %v10052 = vsub.f32 1.5, %v10051
        %v10053 = vmul.f32 %v10048, %v10052
        %vm10054 = vweird.f32 %v9872
        %vm10055 = vweird.f32 %v10048
        %vm10056 = vmor %vm10054, %vm10055
        %v10057 = vsel %vm10056, %v10048, %v10053
        %v10058 = vrsqrt.pop %v9873
        %v10059 = vmul.f32 %v10058, %v9873
        %v10060 = vmul.f32 %v10059, %v10058
        %v10061 = vmul.f32 0.5, %v10060
        %v10062 = vsub.f32 1.5, %v10061
        %v10063 = vmul.f32 %v10058, %v10062
        %vm10064 = vweird.f32 %v9873
        %vm10065 = vweird.f32 %v10058
        %vm10066 = vmor %vm10064, %vm10065
        %v10067 = vsel %vm10066, %v10058, %v10063
        %v10068 = vrsqrt.pop %v9874
        %v10069 = vmul.f32 %v10068, %v9874
        %v10070 = vmul.f32 %v10069, %v10068
        %v10071 = vmul.f32 0.5, %v10070
        %v10072 = vsub.f32 1.5, %v10071
        %v10073 = vmul.f32 %v10068, %v10072
        %vm10074 = vweird.f32 %v9874
        %vm10075 = vweird.f32 %v10068
        %vm10076 = vmor %vm10074, %vm10075
        %v10077 = vsel %vm10076, %v10068, %v10073
        %v10078 = vrsqrt.pop %v9875
        %v10079 = vmul.f32 %v10078, %v9875
        %v10080 = vmul.f32 %v10079, %v10078
        %v10081 = vmul.f32 0.5, %v10080
        %v10082 = vsub.f32 1.5, %v10081
        %v10083 = vmul.f32 %v10078, %v10082
        %vm10084 = vweird.f32 %v9875
        %vm10085 = vweird.f32 %v10078
        %vm10086 = vmor %vm10084, %vm10085
        %v10087 = vsel %vm10086, %v10078, %v10083
        %v10088 = vrsqrt.pop %v9876
        %v10089 = vmul.f32 %v10088, %v9876
        %v10090 = vmul.f32 %v10089, %v10088
        %v10091 = vmul.f32 0.5, %v10090
        %v10092 = vsub.f32 1.5, %v10091
        %v10093 = vmul.f32 %v10088, %v10092
        %vm10094 = vweird.f32 %v9876
        %vm10095 = vweird.f32 %v10088
        %vm10096 = vmor %vm10094, %vm10095
        %v10097 = vsel %vm10096, %v10088, %v10093
        %v10098 = vrsqrt.pop %v9877
        %v10099 = vmul.f32 %v10098, %v9877
        %v10100 = vmul.f32 %v10099, %v10098
        %v10101 = vmul.f32 0.5, %v10100
        %v10102 = vsub.f32 1.5, %v10101
        %v10103 = vmul.f32 %v10098, %v10102
        %vm10104 = vweird.f32 %v9877
        %vm10105 = vweird.f32 %v10098
        %vm10106 = vmor %vm10104, %vm10105
        %v10107 = vsel %vm10106, %v10098, %v10103
        %v10108 = vrsqrt.pop %v9878
        %v10109 = vmul.f32 %v10108, %v9878
        %v10110 = vmul.f32 %v10109, %v10108
        %v10111 = vmul.f32 0.5, %v10110
        %v10112 = vsub.f32 1.5, %v10111
        %v10113 = vmul.f32 %v10108, %v10112
        %vm10114 = vweird.f32 %v9878
        %vm10115 = vweird.f32 %v10108
        %vm10116 = vmor %vm10114, %vm10115
        %v10117 = vsel %vm10116, %v10108, %v10113
        %v10118 = vrsqrt.pop %v9879
        %v10119 = vmul.f32 %v10118, %v9879
        %v10120 = vmul.f32 %v10119, %v10118
        %v10121 = vmul.f32 0.5, %v10120
        %v10122 = vsub.f32 1.5, %v10121
        %v10123 = vmul.f32 %v10118, %v10122
        %vm10124 = vweird.f32 %v9879
        %vm10125 = vweird.f32 %v10118
        %vm10126 = vmor %vm10124, %vm10125
        %v10127 = vsel %vm10126, %v10118, %v10123
        %v10128 = vrsqrt.pop %v9880
        %v10129 = vmul.f32 %v10128, %v9880
        %v10130 = vmul.f32 %v10129, %v10128
        %v10131 = vmul.f32 0.5, %v10130
        %v10132 = vsub.f32 1.5, %v10131
        %v10133 = vmul.f32 %v10128, %v10132
        %vm10134 = vweird.f32 %v9880
        %vm10135 = vweird.f32 %v10128
        %vm10136 = vmor %vm10134, %vm10135
        %v10137 = vsel %vm10136, %v10128, %v10133
        %v10138 = vrsqrt.pop %v9881
        %v10139 = vmul.f32 %v10138, %v9881
        %v10140 = vmul.f32 %v10139, %v10138
        %v10141 = vmul.f32 0.5, %v10140
        %v10142 = vsub.f32 1.5, %v10141
        %v10143 = vmul.f32 %v10138, %v10142
        %vm10144 = vweird.f32 %v9881
        %vm10145 = vweird.f32 %v10138
        %vm10146 = vmor %vm10144, %vm10145
        %v10147 = vsel %vm10146, %v10138, %v10143
        %v10148 = vrsqrt.pop %v9882
        %v10149 = vmul.f32 %v10148, %v9882
        %v10150 = vmul.f32 %v10149, %v10148
        %v10151 = vmul.f32 0.5, %v10150
        %v10152 = vsub.f32 1.5, %v10151
        %v10153 = vmul.f32 %v10148, %v10152
        %vm10154 = vweird.f32 %v9882
        %vm10155 = vweird.f32 %v10148
        %vm10156 = vmor %vm10154, %vm10155
        %v10157 = vsel %vm10156, %v10148, %v10153
        %v10158 = vrsqrt.pop %v9883
        %v10159 = vmul.f32 %v10158, %v9883
        %v10160 = vmul.f32 %v10159, %v10158
        %v10161 = vmul.f32 0.5, %v10160
        %v10162 = vsub.f32 1.5, %v10161
        %v10163 = vmul.f32 %v10158, %v10162
        %vm10164 = vweird.f32 %v9883
        %vm10165 = vweird.f32 %v10158
        %vm10166 = vmor %vm10164, %vm10165
        %v10167 = vsel %vm10166, %v10158, %v10163
        %v10168 = vrsqrt.pop %v9884
        %v10169 = vmul.f32 %v10168, %v9884
        %v10170 = vmul.f32 %v10169, %v10168
        %v10171 = vmul.f32 0.5, %v10170
        %v10172 = vsub.f32 1.5, %v10171
        %v10173 = vmul.f32 %v10168, %v10172
        %vm10174 = vweird.f32 %v9884
        %vm10175 = vweird.f32 %v10168
        %vm10176 = vmor %vm10174, %vm10175
        %v10177 = vsel %vm10176, %v10168, %v10173
        %v10178 = vrsqrt.pop %v9885
        %v10179 = vmul.f32 %v10178, %v9885
        %v10180 = vmul.f32 %v10179, %v10178
        %v10181 = vmul.f32 0.5, %v10180
        %v10182 = vsub.f32 1.5, %v10181
        %v10183 = vmul.f32 %v10178, %v10182
        %vm10184 = vweird.f32 %v9885
        %vm10185 = vweird.f32 %v10178
        %vm10186 = vmor %vm10184, %vm10185
        %v10187 = vsel %vm10186, %v10178, %v10183
        %v10188 = vrsqrt.pop %v9886
        %v10189 = vmul.f32 %v10188, %v9886
        %v10190 = vmul.f32 %v10189, %v10188
        %v10191 = vmul.f32 0.5, %v10190
        %v10192 = vsub.f32 1.5, %v10191
        %v10193 = vmul.f32 %v10188, %v10192
        %vm10194 = vweird.f32 %v9886
        %vm10195 = vweird.f32 %v10188
        %vm10196 = vmor %vm10194, %vm10195
        %v10197 = vsel %vm10196, %v10188, %v10193
        %v10198 = vrsqrt.pop %v9887
        %v10199 = vmul.f32 %v10198, %v9887
        %v10200 = vmul.f32 %v10199, %v10198
        %v10201 = vmul.f32 0.5, %v10200
        %v10202 = vsub.f32 1.5, %v10201
        %v10203 = vmul.f32 %v10198, %v10202
        %vm10204 = vweird.f32 %v9887
        %vm10205 = vweird.f32 %v10198
        %vm10206 = vmor %vm10204, %vm10205
        %v10207 = vsel %vm10206, %v10198, %v10203
        %v10209 = vperm.slane %v9239, 0
        %v10210 = vperm.slane %v9239, 1
        %v10211 = vperm.slane %v9239, 2
        %v10212 = vperm.slane %v9239, 3
        %v10213 = vperm.slane %v9239, 4
        %v10214 = vperm.slane %v9239, 5
        %v10215 = vperm.slane %v9239, 6
        %v10216 = vperm.slane %v9239, 7
        %v10225 = vmul.f32 %v9897, %v10209
        %v10226 = vmul.f32 %v9907, %v10210
        %v10227 = vmul.f32 %v9917, %v10211
        %v10228 = vmul.f32 %v9927, %v10212
        %v10229 = vmul.f32 %v9937, %v10213
        %v10230 = vmul.f32 %v9947, %v10214
        %v10231 = vmul.f32 %v9957, %v10215
        %v10232 = vmul.f32 %v9967, %v10216
        %v10233 = vmul.f32 %v9977, %v10209
        %v10234 = vmul.f32 %v9987, %v10210
        %v10235 = vmul.f32 %v9997, %v10211
        %v10236 = vmul.f32 %v10007, %v10212
        %v10237 = vmul.f32 %v10017, %v10213
        %v10238 = vmul.f32 %v10027, %v10214
        %v10239 = vmul.f32 %v10037, %v10215
        %v10240 = vmul.f32 %v10047, %v10216
        %v10241 = vmul.f32 %v10057, %v10209
        %v10242 = vmul.f32 %v10067, %v10210
        %v10243 = vmul.f32 %v10077, %v10211
        %v10244 = vmul.f32 %v10087, %v10212
        %v10245 = vmul.f32 %v10097, %v10213
        %v10246 = vmul.f32 %v10107, %v10214
        %v10247 = vmul.f32 %v10117, %v10215
        %v10248 = vmul.f32 %v10127, %v10216
        %v10249 = vmul.f32 %v10137, %v10209
        %v10250 = vmul.f32 %v10147, %v10210
        %v10251 = vmul.f32 %v10157, %v10211
        %v10252 = vmul.f32 %v10167, %v10212
        %v10253 = vmul.f32 %v10177, %v10213
        %v10254 = vmul.f32 %v10187, %v10214
        %v10255 = vmul.f32 %v10197, %v10215
        %v10256 = vmul.f32 %v10207, %v10216
        %v10257 = vperm.slane %v10225, 0
        %v10258 = vperm.slane %v10226, 0
        %v10259 = vperm.slane %v10227, 0
        %v10260 = vperm.slane %v10228, 0
        %v10261 = vperm.slane %v10229, 0
        %v10262 = vperm.slane %v10230, 0
        %v10263 = vperm.slane %v10231, 0
        %v10264 = vperm.slane %v10232, 0
        %v10265 = vperm.slane %v10233, 0
        %v10266 = vperm.slane %v10234, 0
        %v10267 = vperm.slane %v10235, 0
        %v10268 = vperm.slane %v10236, 0
        %v10269 = vperm.slane %v10237, 0
        %v10270 = vperm.slane %v10238, 0
        %v10271 = vperm.slane %v10239, 0
        %v10272 = vperm.slane %v10240, 0
        %v10273 = vperm.slane %v10241, 0
        %v10274 = vperm.slane %v10242, 0
        %v10275 = vperm.slane %v10243, 0
        %v10276 = vperm.slane %v10244, 0
        %v10277 = vperm.slane %v10245, 0
        %v10278 = vperm.slane %v10246, 0
        %v10279 = vperm.slane %v10247, 0
        %v10280 = vperm.slane %v10248, 0
        %v10281 = vperm.slane %v10249, 0
        %v10282 = vperm.slane %v10250, 0
        %v10283 = vperm.slane %v10251, 0
        %v10284 = vperm.slane %v10252, 0
        %v10285 = vperm.slane %v10253, 0
        %v10286 = vperm.slane %v10254, 0
        %v10287 = vperm.slane %v10255, 0
        %v10288 = vperm.slane %v10256, 0
        %v10289 = vmul.f32 %v9568, %v10257
        %v10290 = vmul.f32 %v9569, %v10258
        %v10291 = vmul.f32 %v9570, %v10259
        %v10292 = vmul.f32 %v9571, %v10260
        %v10293 = vmul.f32 %v9572, %v10261
        %v10294 = vmul.f32 %v9573, %v10262
        %v10295 = vmul.f32 %v9574, %v10263
        %v10296 = vmul.f32 %v9575, %v10264
        %v10297 = vmul.f32 %v9576, %v10265
        %v10298 = vmul.f32 %v9577, %v10266
        %v10299 = vmul.f32 %v9578, %v10267
        %v10300 = vmul.f32 %v9579, %v10268
        %v10301 = vmul.f32 %v9580, %v10269
        %v10302 = vmul.f32 %v9581, %v10270
        %v10303 = vmul.f32 %v9582, %v10271
        %v10304 = vmul.f32 %v9583, %v10272
        %v10305 = vmul.f32 %v9584, %v10273
        %v10306 = vmul.f32 %v9585, %v10274
        %v10307 = vmul.f32 %v9586, %v10275
        %v10308 = vmul.f32 %v9587, %v10276
        %v10309 = vmul.f32 %v9588, %v10277
        %v10310 = vmul.f32 %v9589, %v10278
        %v10311 = vmul.f32 %v9590, %v10279
        %v10312 = vmul.f32 %v9591, %v10280
        %v10313 = vmul.f32 %v9592, %v10281
        %v10314 = vmul.f32 %v9593, %v10282
        %v10315 = vmul.f32 %v9594, %v10283
        %v10316 = vmul.f32 %v9595, %v10284
        %v10317 = vmul.f32 %v9596, %v10285
        %v10318 = vmul.f32 %v9597, %v10286
        %v10319 = vmul.f32 %v9598, %v10287
        %v10320 = vmul.f32 %v9599, %v10288
        %v10322 = vperm.slane %v9240, 0
        %v10323 = vperm.slane %v9240, 1
        %v10324 = vperm.slane %v9240, 2
        %v10325 = vperm.slane %v9240, 3
        %v10326 = vperm.slane %v9240, 4
        %v10327 = vperm.slane %v9240, 5
        %v10328 = vperm.slane %v9240, 6
        %v10329 = vperm.slane %v9240, 7
        %v10338 = vadd.f32 %v10289, %v10322
        %v10339 = vadd.f32 %v10290, %v10323
        %v10340 = vadd.f32 %v10291, %v10324
        %v10341 = vadd.f32 %v10292, %v10325
        %v10342 = vadd.f32 %v10293, %v10326
        %v10343 = vadd.f32 %v10294, %v10327
        %v10344 = vadd.f32 %v10295, %v10328
        %v10345 = vadd.f32 %v10296, %v10329
        %v10346 = vadd.f32 %v10297, %v10322
        %v10347 = vadd.f32 %v10298, %v10323
        %v10348 = vadd.f32 %v10299, %v10324
        %v10349 = vadd.f32 %v10300, %v10325
        %v10350 = vadd.f32 %v10301, %v10326
        %v10351 = vadd.f32 %v10302, %v10327
        %v10352 = vadd.f32 %v10303, %v10328
        %v10353 = vadd.f32 %v10304, %v10329
        %v10354 = vadd.f32 %v10305, %v10322
        %v10355 = vadd.f32 %v10306, %v10323
        %v10356 = vadd.f32 %v10307, %v10324
        %v10357 = vadd.f32 %v10308, %v10325
        %v10358 = vadd.f32 %v10309, %v10326
        %v10359 = vadd.f32 %v10310, %v10327
        %v10360 = vadd.f32 %v10311, %v10328
        %v10361 = vadd.f32 %v10312, %v10329
        %v10362 = vadd.f32 %v10313, %v10322
        %v10363 = vadd.f32 %v10314, %v10323
        %v10364 = vadd.f32 %v10315, %v10324
        %v10365 = vadd.f32 %v10316, %v10325
        %v10366 = vadd.f32 %v10317, %v10326
        %v10367 = vadd.f32 %v10318, %v10327
        %v10368 = vadd.f32 %v10319, %v10328
        %v10369 = vadd.f32 %v10320, %v10329
        %v10370 = vpack.c.bf16 %v10346, %v10338
        %v10371 = vpack.c.bf16 %v10347, %v10339
        %v10372 = vpack.c.bf16 %v10348, %v10340
        %v10373 = vpack.c.bf16 %v10349, %v10341
        %v10374 = vpack.c.bf16 %v10350, %v10342
        %v10375 = vpack.c.bf16 %v10351, %v10343
        %v10376 = vpack.c.bf16 %v10352, %v10344
        %v10377 = vpack.c.bf16 %v10353, %v10345
        %v10378 = vpack.c.bf16 %v10362, %v10354
        %v10379 = vpack.c.bf16 %v10363, %v10355
        %v10380 = vpack.c.bf16 %v10364, %v10356
        %v10381 = vpack.c.bf16 %v10365, %v10357
        %v10382 = vpack.c.bf16 %v10366, %v10358
        %v10383 = vpack.c.bf16 %v10367, %v10359
        %v10384 = vpack.c.bf16 %v10368, %v10360
        %v10385 = vpack.c.bf16 %v10369, %v10361
        %v10386 = vld [vmem:[#allocation11] sm:$0xff]
        %v10387 = vld [vmem:[#allocation11 + $0x8] sm:$0xff]
        %v10388 = vld [vmem:[#allocation11 + $0x10] sm:$0xff]
        %v10389 = vld [vmem:[#allocation11 + $0x18] sm:$0xff]
        %v10390 = vld [vmem:[#allocation11 + $0x20] sm:$0xff]
        %v10391 = vld [vmem:[#allocation11 + $0x28] sm:$0xff]
        %v10392 = vld [vmem:[#allocation11 + $0x30] sm:$0xff]
        %v10393 = vld [vmem:[#allocation11 + $0x38] sm:$0xff]
        %v10394 = vld [vmem:[#allocation11 + $0x40] sm:$0xff]
        %v10395 = vld [vmem:[#allocation11 + $0x48] sm:$0xff]
        %v10396 = vld [vmem:[#allocation11 + $0x50] sm:$0xff]
        %v10397 = vld [vmem:[#allocation11 + $0x58] sm:$0xff]
        %v10398 = vld [vmem:[#allocation11 + $0x60] sm:$0xff]
        %v10399 = vld [vmem:[#allocation11 + $0x68] sm:$0xff]
        %v10400 = vld [vmem:[#allocation11 + $0x70] sm:$0xff]
        %v10401 = vld [vmem:[#allocation11 + $0x78] sm:$0xff]
        %v10402 = vld [vmem:[#allocation11 + $0x80] sm:$0xff]
        %v10403 = vld [vmem:[#allocation11 + $0x88] sm:$0xff]
        %v10404 = vld [vmem:[#allocation11 + $0x90] sm:$0xff]
        %v10405 = vld [vmem:[#allocation11 + $0x98] sm:$0xff]
        %v10406 = vld [vmem:[#allocation11 + $0xa0] sm:$0xff]
        %v10407 = vld [vmem:[#allocation11 + $0xa8] sm:$0xff]
        %v10408 = vld [vmem:[#allocation11 + $0xb0] sm:$0xff]
        %v10409 = vld [vmem:[#allocation11 + $0xb8] sm:$0xff]
        %v10410 = vld [vmem:[#allocation11 + $0xc0] sm:$0xff]
        %v10411 = vld [vmem:[#allocation11 + $0xc8] sm:$0xff]
        %v10412 = vld [vmem:[#allocation11 + $0xd0] sm:$0xff]
        %v10413 = vld [vmem:[#allocation11 + $0xd8] sm:$0xff]
        %v10414 = vld [vmem:[#allocation11 + $0xe0] sm:$0xff]
        %v10415 = vld [vmem:[#allocation11 + $0xe8] sm:$0xff]
        %v10416 = vld [vmem:[#allocation11 + $0xf0] sm:$0xff]
        %v10417 = vld [vmem:[#allocation11 + $0xf8] sm:$0xff]
        %v10418 = vld [vmem:[#allocation11 + $0x100] sm:$0xff]
        %v10419 = vld [vmem:[#allocation11 + $0x108] sm:$0xff]
        %v10420 = vld [vmem:[#allocation11 + $0x110] sm:$0xff]
        %v10421 = vld [vmem:[#allocation11 + $0x118] sm:$0xff]
        %v10422 = vld [vmem:[#allocation11 + $0x120] sm:$0xff]
        %v10423 = vld [vmem:[#allocation11 + $0x128] sm:$0xff]
        %v10424 = vld [vmem:[#allocation11 + $0x130] sm:$0xff]
        %v10425 = vld [vmem:[#allocation11 + $0x138] sm:$0xff]
        %v10426 = vld [vmem:[#allocation11 + $0x140] sm:$0xff]
        %v10427 = vld [vmem:[#allocation11 + $0x148] sm:$0xff]
        %v10428 = vld [vmem:[#allocation11 + $0x150] sm:$0xff]
        %v10429 = vld [vmem:[#allocation11 + $0x158] sm:$0xff]
        %v10430 = vld [vmem:[#allocation11 + $0x160] sm:$0xff]
        %v10431 = vld [vmem:[#allocation11 + $0x168] sm:$0xff]
        %v10432 = vld [vmem:[#allocation11 + $0x170] sm:$0xff]
        %v10433 = vld [vmem:[#allocation11 + $0x178] sm:$0xff]
        %v10434 = vld [vmem:[#allocation11 + $0x180] sm:$0xff]
        %v10435 = vld [vmem:[#allocation11 + $0x188] sm:$0xff]
        %v10436 = vld [vmem:[#allocation11 + $0x190] sm:$0xff]
        %v10437 = vld [vmem:[#allocation11 + $0x198] sm:$0xff]
        %v10438 = vld [vmem:[#allocation11 + $0x1a0] sm:$0xff]
        %v10439 = vld [vmem:[#allocation11 + $0x1a8] sm:$0xff]
        %v10440 = vld [vmem:[#allocation11 + $0x1b0] sm:$0xff]
        %v10441 = vld [vmem:[#allocation11 + $0x1b8] sm:$0xff]
        %v10442 = vld [vmem:[#allocation11 + $0x1c0] sm:$0xff]
        %v10443 = vld [vmem:[#allocation11 + $0x1c8] sm:$0xff]
        %v10444 = vld [vmem:[#allocation11 + $0x1d0] sm:$0xff]
        %v10445 = vld [vmem:[#allocation11 + $0x1d8] sm:$0xff]
        %v10446 = vld [vmem:[#allocation11 + $0x1e0] sm:$0xff]
        %v10447 = vld [vmem:[#allocation11 + $0x1e8] sm:$0xff]
        %v10448 = vld [vmem:[#allocation11 + $0x1f0] sm:$0xff]
        %v10449 = vld [vmem:[#allocation11 + $0x1f8] sm:$0xff]
        %v10450 = vld [vmem:[#allocation11 + $0x200] sm:$0xff]
        %v10451 = vld [vmem:[#allocation11 + $0x208] sm:$0xff]
        %v10452 = vld [vmem:[#allocation11 + $0x210] sm:$0xff]
        %v10453 = vld [vmem:[#allocation11 + $0x218] sm:$0xff]
        %v10454 = vld [vmem:[#allocation11 + $0x220] sm:$0xff]
        %v10455 = vld [vmem:[#allocation11 + $0x228] sm:$0xff]
        %v10456 = vld [vmem:[#allocation11 + $0x230] sm:$0xff]
        %v10457 = vld [vmem:[#allocation11 + $0x238] sm:$0xff]
        %v10458 = vld [vmem:[#allocation11 + $0x240] sm:$0xff]
        %v10459 = vld [vmem:[#allocation11 + $0x248] sm:$0xff]
        %v10460 = vld [vmem:[#allocation11 + $0x250] sm:$0xff]
        %v10461 = vld [vmem:[#allocation11 + $0x258] sm:$0xff]
        %v10462 = vld [vmem:[#allocation11 + $0x260] sm:$0xff]
        %v10463 = vld [vmem:[#allocation11 + $0x268] sm:$0xff]
        %v10464 = vld [vmem:[#allocation11 + $0x270] sm:$0xff]
        %v10465 = vld [vmem:[#allocation11 + $0x278] sm:$0xff]
        %v10466 = vld [vmem:[#allocation11 + $0x280] sm:$0xff]
        %v10467 = vld [vmem:[#allocation11 + $0x288] sm:$0xff]
        %v10468 = vld [vmem:[#allocation11 + $0x290] sm:$0xff]
        %v10469 = vld [vmem:[#allocation11 + $0x298] sm:$0xff]
        %v10470 = vld [vmem:[#allocation11 + $0x2a0] sm:$0xff]
        %v10471 = vld [vmem:[#allocation11 + $0x2a8] sm:$0xff]
        %v10472 = vld [vmem:[#allocation11 + $0x2b0] sm:$0xff]
        %v10473 = vld [vmem:[#allocation11 + $0x2b8] sm:$0xff]
        %v10474 = vld [vmem:[#allocation11 + $0x2c0] sm:$0xff]
        %v10475 = vld [vmem:[#allocation11 + $0x2c8] sm:$0xff]
        %v10476 = vld [vmem:[#allocation11 + $0x2d0] sm:$0xff]
        %v10477 = vld [vmem:[#allocation11 + $0x2d8] sm:$0xff]
        %v10478 = vld [vmem:[#allocation11 + $0x2e0] sm:$0xff]
        %v10479 = vld [vmem:[#allocation11 + $0x2e8] sm:$0xff]
        %v10480 = vld [vmem:[#allocation11 + $0x2f0] sm:$0xff]
        %v10481 = vld [vmem:[#allocation11 + $0x2f8] sm:$0xff]
        %v10482 = vld [vmem:[#allocation11 + $0x300] sm:$0xff]
        %v10483 = vld [vmem:[#allocation11 + $0x308] sm:$0xff]
        %v10484 = vld [vmem:[#allocation11 + $0x310] sm:$0xff]
        %v10485 = vld [vmem:[#allocation11 + $0x318] sm:$0xff]
        %v10486 = vld [vmem:[#allocation11 + $0x320] sm:$0xff]
        %v10487 = vld [vmem:[#allocation11 + $0x328] sm:$0xff]
        %v10488 = vld [vmem:[#allocation11 + $0x330] sm:$0xff]
        %v10489 = vld [vmem:[#allocation11 + $0x338] sm:$0xff]
        %v10490 = vld [vmem:[#allocation11 + $0x340] sm:$0xff]
        %v10491 = vld [vmem:[#allocation11 + $0x348] sm:$0xff]
        %v10492 = vld [vmem:[#allocation11 + $0x350] sm:$0xff]
        %v10493 = vld [vmem:[#allocation11 + $0x358] sm:$0xff]
        %v10494 = vld [vmem:[#allocation11 + $0x360] sm:$0xff]
        %v10495 = vld [vmem:[#allocation11 + $0x368] sm:$0xff]
        %v10496 = vld [vmem:[#allocation11 + $0x370] sm:$0xff]
        %v10497 = vld [vmem:[#allocation11 + $0x378] sm:$0xff]
        %v10498 = vld [vmem:[#allocation11 + $0x380] sm:$0xff]
        %v10499 = vld [vmem:[#allocation11 + $0x388] sm:$0xff]
        %v10500 = vld [vmem:[#allocation11 + $0x390] sm:$0xff]
        %v10501 = vld [vmem:[#allocation11 + $0x398] sm:$0xff]
        %v10502 = vld [vmem:[#allocation11 + $0x3a0] sm:$0xff]
        %v10503 = vld [vmem:[#allocation11 + $0x3a8] sm:$0xff]
        %v10504 = vld [vmem:[#allocation11 + $0x3b0] sm:$0xff]
        %v10505 = vld [vmem:[#allocation11 + $0x3b8] sm:$0xff]
        %v10506 = vld [vmem:[#allocation11 + $0x3c0] sm:$0xff]
        %v10507 = vld [vmem:[#allocation11 + $0x3c8] sm:$0xff]
        %v10508 = vld [vmem:[#allocation11 + $0x3d0] sm:$0xff]
        %v10509 = vld [vmem:[#allocation11 + $0x3d8] sm:$0xff]
        %v10510 = vld [vmem:[#allocation11 + $0x3e0] sm:$0xff]
        %v10511 = vld [vmem:[#allocation11 + $0x3e8] sm:$0xff]
        %v10512 = vld [vmem:[#allocation11 + $0x3f0] sm:$0xff]
        %v10513 = vld [vmem:[#allocation11 + $0x3f8] sm:$0xff]
        %v10514 = vld [vmem:[#allocation13] sm:$0x3]
        %v10516 = vperm.slane %v10514, 0
        %v10517 = vperm.slane %v10514, 1
        %v10648 = vunpack.c.l.b16 %v10386
        %v10649 = vunpack.c.h.b16 %v10386
        %v10650 = vunpack.c.l.b16 %v10387
        %v10651 = vunpack.c.h.b16 %v10387
        %v10652 = vunpack.c.l.b16 %v10388
        %v10653 = vunpack.c.h.b16 %v10388
        %v10654 = vunpack.c.l.b16 %v10389
        %v10655 = vunpack.c.h.b16 %v10389
        %v10656 = vunpack.c.l.b16 %v10390
        %v10657 = vunpack.c.h.b16 %v10390
        %v10658 = vunpack.c.l.b16 %v10391
        %v10659 = vunpack.c.h.b16 %v10391
        %v10660 = vunpack.c.l.b16 %v10392
        %v10661 = vunpack.c.h.b16 %v10392
        %v10662 = vunpack.c.l.b16 %v10393
        %v10663 = vunpack.c.h.b16 %v10393
        %v10664 = vunpack.c.l.b16 %v10394
        %v10665 = vunpack.c.h.b16 %v10394
        %v10666 = vunpack.c.l.b16 %v10395
        %v10667 = vunpack.c.h.b16 %v10395
        %v10668 = vunpack.c.l.b16 %v10396
        %v10669 = vunpack.c.h.b16 %v10396
        %v10670 = vunpack.c.l.b16 %v10397
        %v10671 = vunpack.c.h.b16 %v10397
        %v10672 = vunpack.c.l.b16 %v10398
        %v10673 = vunpack.c.h.b16 %v10398
        %v10674 = vunpack.c.l.b16 %v10399
        %v10675 = vunpack.c.h.b16 %v10399
        %v10676 = vunpack.c.l.b16 %v10400
        %v10677 = vunpack.c.h.b16 %v10400
        %v10678 = vunpack.c.l.b16 %v10401
        %v10679 = vunpack.c.h.b16 %v10401
        %v10680 = vunpack.c.l.b16 %v10402
        %v10681 = vunpack.c.h.b16 %v10402
        %v10682 = vunpack.c.l.b16 %v10403
        %v10683 = vunpack.c.h.b16 %v10403
        %v10684 = vunpack.c.l.b16 %v10404
        %v10685 = vunpack.c.h.b16 %v10404
        %v10686 = vunpack.c.l.b16 %v10405
        %v10687 = vunpack.c.h.b16 %v10405
        %v10688 = vunpack.c.l.b16 %v10406
        %v10689 = vunpack.c.h.b16 %v10406
        %v10690 = vunpack.c.l.b16 %v10407
        %v10691 = vunpack.c.h.b16 %v10407
        %v10692 = vunpack.c.l.b16 %v10408
        %v10693 = vunpack.c.h.b16 %v10408
        %v10694 = vunpack.c.l.b16 %v10409
        %v10695 = vunpack.c.h.b16 %v10409
        %v10696 = vunpack.c.l.b16 %v10410
        %v10697 = vunpack.c.h.b16 %v10410
        %v10698 = vunpack.c.l.b16 %v10411
        %v10699 = vunpack.c.h.b16 %v10411
        %v10700 = vunpack.c.l.b16 %v10412
        %v10701 = vunpack.c.h.b16 %v10412
        %v10702 = vunpack.c.l.b16 %v10413
        %v10703 = vunpack.c.h.b16 %v10413
        %v10704 = vunpack.c.l.b16 %v10414
        %v10705 = vunpack.c.h.b16 %v10414
        %v10706 = vunpack.c.l.b16 %v10415
        %v10707 = vunpack.c.h.b16 %v10415
        %v10708 = vunpack.c.l.b16 %v10416
        %v10709 = vunpack.c.h.b16 %v10416
        %v10710 = vunpack.c.l.b16 %v10417
        %v10711 = vunpack.c.h.b16 %v10417
        %v10712 = vunpack.c.l.b16 %v10418
        %v10713 = vunpack.c.h.b16 %v10418
        %v10714 = vunpack.c.l.b16 %v10419
        %v10715 = vunpack.c.h.b16 %v10419
        %v10716 = vunpack.c.l.b16 %v10420
        %v10717 = vunpack.c.h.b16 %v10420
        %v10718 = vunpack.c.l.b16 %v10421
        %v10719 = vunpack.c.h.b16 %v10421
        %v10720 = vunpack.c.l.b16 %v10422
        %v10721 = vunpack.c.h.b16 %v10422
        %v10722 = vunpack.c.l.b16 %v10423
        %v10723 = vunpack.c.h.b16 %v10423
        %v10724 = vunpack.c.l.b16 %v10424
        %v10725 = vunpack.c.h.b16 %v10424
        %v10726 = vunpack.c.l.b16 %v10425
        %v10727 = vunpack.c.h.b16 %v10425
        %v10728 = vunpack.c.l.b16 %v10426
        %v10729 = vunpack.c.h.b16 %v10426
        %v10730 = vunpack.c.l.b16 %v10427
        %v10731 = vunpack.c.h.b16 %v10427
        %v10732 = vunpack.c.l.b16 %v10428
        %v10733 = vunpack.c.h.b16 %v10428
        %v10734 = vunpack.c.l.b16 %v10429
        %v10735 = vunpack.c.h.b16 %v10429
        %v10736 = vunpack.c.l.b16 %v10430
        %v10737 = vunpack.c.h.b16 %v10430
        %v10738 = vunpack.c.l.b16 %v10431
        %v10739 = vunpack.c.h.b16 %v10431
        %v10740 = vunpack.c.l.b16 %v10432
        %v10741 = vunpack.c.h.b16 %v10432
        %v10742 = vunpack.c.l.b16 %v10433
        %v10743 = vunpack.c.h.b16 %v10433
        %v10744 = vunpack.c.l.b16 %v10434
        %v10745 = vunpack.c.h.b16 %v10434
        %v10746 = vunpack.c.l.b16 %v10435
        %v10747 = vunpack.c.h.b16 %v10435
        %v10748 = vunpack.c.l.b16 %v10436
        %v10749 = vunpack.c.h.b16 %v10436
        %v10750 = vunpack.c.l.b16 %v10437
        %v10751 = vunpack.c.h.b16 %v10437
        %v10752 = vunpack.c.l.b16 %v10438
        %v10753 = vunpack.c.h.b16 %v10438
        %v10754 = vunpack.c.l.b16 %v10439
        %v10755 = vunpack.c.h.b16 %v10439
        %v10756 = vunpack.c.l.b16 %v10440
        %v10757 = vunpack.c.h.b16 %v10440
        %v10758 = vunpack.c.l.b16 %v10441
        %v10759 = vunpack.c.h.b16 %v10441
        %v10760 = vunpack.c.l.b16 %v10442
        %v10761 = vunpack.c.h.b16 %v10442
        %v10762 = vunpack.c.l.b16 %v10443
        %v10763 = vunpack.c.h.b16 %v10443
        %v10764 = vunpack.c.l.b16 %v10444
        %v10765 = vunpack.c.h.b16 %v10444
        %v10766 = vunpack.c.l.b16 %v10445
        %v10767 = vunpack.c.h.b16 %v10445
        %v10768 = vunpack.c.l.b16 %v10446
        %v10769 = vunpack.c.h.b16 %v10446
        %v10770 = vunpack.c.l.b16 %v10447
        %v10771 = vunpack.c.h.b16 %v10447
        %v10772 = vunpack.c.l.b16 %v10448
        %v10773 = vunpack.c.h.b16 %v10448
        %v10774 = vunpack.c.l.b16 %v10449
        %v10775 = vunpack.c.h.b16 %v10449
        %v10776 = vunpack.c.l.b16 %v10450
        %v10777 = vunpack.c.h.b16 %v10450
        %v10778 = vunpack.c.l.b16 %v10451
        %v10779 = vunpack.c.h.b16 %v10451
        %v10780 = vunpack.c.l.b16 %v10452
        %v10781 = vunpack.c.h.b16 %v10452
        %v10782 = vunpack.c.l.b16 %v10453
        %v10783 = vunpack.c.h.b16 %v10453
        %v10784 = vunpack.c.l.b16 %v10454
        %v10785 = vunpack.c.h.b16 %v10454
        %v10786 = vunpack.c.l.b16 %v10455
        %v10787 = vunpack.c.h.b16 %v10455
        %v10788 = vunpack.c.l.b16 %v10456
        %v10789 = vunpack.c.h.b16 %v10456
        %v10790 = vunpack.c.l.b16 %v10457
        %v10791 = vunpack.c.h.b16 %v10457
        %v10792 = vunpack.c.l.b16 %v10458
        %v10793 = vunpack.c.h.b16 %v10458
        %v10794 = vunpack.c.l.b16 %v10459
        %v10795 = vunpack.c.h.b16 %v10459
        %v10796 = vunpack.c.l.b16 %v10460
        %v10797 = vunpack.c.h.b16 %v10460
        %v10798 = vunpack.c.l.b16 %v10461
        %v10799 = vunpack.c.h.b16 %v10461
        %v10800 = vunpack.c.l.b16 %v10462
        %v10801 = vunpack.c.h.b16 %v10462
        %v10802 = vunpack.c.l.b16 %v10463
        %v10803 = vunpack.c.h.b16 %v10463
        %v10804 = vunpack.c.l.b16 %v10464
        %v10805 = vunpack.c.h.b16 %v10464
        %v10806 = vunpack.c.l.b16 %v10465
        %v10807 = vunpack.c.h.b16 %v10465
        %v10808 = vunpack.c.l.b16 %v10466
        %v10809 = vunpack.c.h.b16 %v10466
        %v10810 = vunpack.c.l.b16 %v10467
        %v10811 = vunpack.c.h.b16 %v10467
        %v10812 = vunpack.c.l.b16 %v10468
        %v10813 = vunpack.c.h.b16 %v10468
        %v10814 = vunpack.c.l.b16 %v10469
        %v10815 = vunpack.c.h.b16 %v10469
        %v10816 = vunpack.c.l.b16 %v10470
        %v10817 = vunpack.c.h.b16 %v10470
        %v10818 = vunpack.c.l.b16 %v10471
        %v10819 = vunpack.c.h.b16 %v10471
        %v10820 = vunpack.c.l.b16 %v10472
        %v10821 = vunpack.c.h.b16 %v10472
        %v10822 = vunpack.c.l.b16 %v10473
        %v10823 = vunpack.c.h.b16 %v10473
        %v10824 = vunpack.c.l.b16 %v10474
        %v10825 = vunpack.c.h.b16 %v10474
        %v10826 = vunpack.c.l.b16 %v10475
        %v10827 = vunpack.c.h.b16 %v10475
        %v10828 = vunpack.c.l.b16 %v10476
        %v10829 = vunpack.c.h.b16 %v10476
        %v10830 = vunpack.c.l.b16 %v10477
        %v10831 = vunpack.c.h.b16 %v10477
        %v10832 = vunpack.c.l.b16 %v10478
        %v10833 = vunpack.c.h.b16 %v10478
        %v10834 = vunpack.c.l.b16 %v10479
        %v10835 = vunpack.c.h.b16 %v10479
        %v10836 = vunpack.c.l.b16 %v10480
        %v10837 = vunpack.c.h.b16 %v10480
        %v10838 = vunpack.c.l.b16 %v10481
        %v10839 = vunpack.c.h.b16 %v10481
        %v10840 = vunpack.c.l.b16 %v10482
        %v10841 = vunpack.c.h.b16 %v10482
        %v10842 = vunpack.c.l.b16 %v10483
        %v10843 = vunpack.c.h.b16 %v10483
        %v10844 = vunpack.c.l.b16 %v10484
        %v10845 = vunpack.c.h.b16 %v10484
        %v10846 = vunpack.c.l.b16 %v10485
        %v10847 = vunpack.c.h.b16 %v10485
        %v10848 = vunpack.c.l.b16 %v10486
        %v10849 = vunpack.c.h.b16 %v10486
        %v10850 = vunpack.c.l.b16 %v10487
        %v10851 = vunpack.c.h.b16 %v10487
        %v10852 = vunpack.c.l.b16 %v10488
        %v10853 = vunpack.c.h.b16 %v10488
        %v10854 = vunpack.c.l.b16 %v10489
        %v10855 = vunpack.c.h.b16 %v10489
        %v10856 = vunpack.c.l.b16 %v10490
        %v10857 = vunpack.c.h.b16 %v10490
        %v10858 = vunpack.c.l.b16 %v10491
        %v10859 = vunpack.c.h.b16 %v10491
        %v10860 = vunpack.c.l.b16 %v10492
        %v10861 = vunpack.c.h.b16 %v10492
        %v10862 = vunpack.c.l.b16 %v10493
        %v10863 = vunpack.c.h.b16 %v10493
        %v10864 = vunpack.c.l.b16 %v10494
        %v10865 = vunpack.c.h.b16 %v10494
        %v10866 = vunpack.c.l.b16 %v10495
        %v10867 = vunpack.c.h.b16 %v10495
        %v10868 = vunpack.c.l.b16 %v10496
        %v10869 = vunpack.c.h.b16 %v10496
        %v10870 = vunpack.c.l.b16 %v10497
        %v10871 = vunpack.c.h.b16 %v10497
        %v10872 = vunpack.c.l.b16 %v10498
        %v10873 = vunpack.c.h.b16 %v10498
        %v10874 = vunpack.c.l.b16 %v10499
        %v10875 = vunpack.c.h.b16 %v10499
        %v10876 = vunpack.c.l.b16 %v10500
        %v10877 = vunpack.c.h.b16 %v10500
        %v10878 = vunpack.c.l.b16 %v10501
        %v10879 = vunpack.c.h.b16 %v10501
        %v10880 = vunpack.c.l.b16 %v10502
        %v10881 = vunpack.c.h.b16 %v10502
        %v10882 = vunpack.c.l.b16 %v10503
        %v10883 = vunpack.c.h.b16 %v10503
        %v10884 = vunpack.c.l.b16 %v10504
        %v10885 = vunpack.c.h.b16 %v10504
        %v10886 = vunpack.c.l.b16 %v10505
        %v10887 = vunpack.c.h.b16 %v10505
        %v10888 = vunpack.c.l.b16 %v10506
        %v10889 = vunpack.c.h.b16 %v10506
        %v10890 = vunpack.c.l.b16 %v10507
        %v10891 = vunpack.c.h.b16 %v10507
        %v10892 = vunpack.c.l.b16 %v10508
        %v10893 = vunpack.c.h.b16 %v10508
        %v10894 = vunpack.c.l.b16 %v10509
        %v10895 = vunpack.c.h.b16 %v10509
        %v10896 = vunpack.c.l.b16 %v10510
        %v10897 = vunpack.c.h.b16 %v10510
        %v10898 = vunpack.c.l.b16 %v10511
        %v10899 = vunpack.c.h.b16 %v10511
        %v10900 = vunpack.c.l.b16 %v10512
        %v10901 = vunpack.c.h.b16 %v10512
        %v10902 = vunpack.c.l.b16 %v10513
        %v10903 = vunpack.c.h.b16 %v10513
        %v10904 = vpack.c.b16 %v10650, %v10648
        %v10905 = vpack.c.b16 %v10651, %v10649
        %v10906 = vpack.c.b16 %v10654, %v10652
        %v10907 = vpack.c.b16 %v10655, %v10653
        %v10908 = vpack.c.b16 %v10658, %v10656
        %v10909 = vpack.c.b16 %v10659, %v10657
        %v10910 = vpack.c.b16 %v10662, %v10660
        %v10911 = vpack.c.b16 %v10663, %v10661
        %v10912 = vpack.c.b16 %v10666, %v10664
        %v10913 = vpack.c.b16 %v10667, %v10665
        %v10914 = vpack.c.b16 %v10670, %v10668
        %v10915 = vpack.c.b16 %v10671, %v10669
        %v10916 = vpack.c.b16 %v10674, %v10672
        %v10917 = vpack.c.b16 %v10675, %v10673
        %v10918 = vpack.c.b16 %v10678, %v10676
        %v10919 = vpack.c.b16 %v10679, %v10677
        %v10920 = vpack.c.b16 %v10682, %v10680
        %v10921 = vpack.c.b16 %v10683, %v10681
        %v10922 = vpack.c.b16 %v10686, %v10684
        %v10923 = vpack.c.b16 %v10687, %v10685
        %v10924 = vpack.c.b16 %v10690, %v10688
        %v10925 = vpack.c.b16 %v10691, %v10689
        %v10926 = vpack.c.b16 %v10694, %v10692
        %v10927 = vpack.c.b16 %v10695, %v10693
        %v10928 = vpack.c.b16 %v10698, %v10696
        %v10929 = vpack.c.b16 %v10699, %v10697
        %v10930 = vpack.c.b16 %v10702, %v10700
        %v10931 = vpack.c.b16 %v10703, %v10701
        %v10932 = vpack.c.b16 %v10706, %v10704
        %v10933 = vpack.c.b16 %v10707, %v10705
        %v10934 = vpack.c.b16 %v10710, %v10708
        %v10935 = vpack.c.b16 %v10711, %v10709
        %v10936 = vpack.c.b16 %v10714, %v10712
        %v10937 = vpack.c.b16 %v10715, %v10713
        %v10938 = vpack.c.b16 %v10718, %v10716
        %v10939 = vpack.c.b16 %v10719, %v10717
        %v10940 = vpack.c.b16 %v10722, %v10720
        %v10941 = vpack.c.b16 %v10723, %v10721
        %v10942 = vpack.c.b16 %v10726, %v10724
        %v10943 = vpack.c.b16 %v10727, %v10725
        %v10944 = vpack.c.b16 %v10730, %v10728
        %v10945 = vpack.c.b16 %v10731, %v10729
        %v10946 = vpack.c.b16 %v10734, %v10732
        %v10947 = vpack.c.b16 %v10735, %v10733
        %v10948 = vpack.c.b16 %v10738, %v10736
        %v10949 = vpack.c.b16 %v10739, %v10737
        %v10950 = vpack.c.b16 %v10742, %v10740
        %v10951 = vpack.c.b16 %v10743, %v10741
        %v10952 = vpack.c.b16 %v10746, %v10744
        %v10953 = vpack.c.b16 %v10747, %v10745
        %v10954 = vpack.c.b16 %v10750, %v10748
        %v10955 = vpack.c.b16 %v10751, %v10749
        %v10956 = vpack.c.b16 %v10754, %v10752
        %v10957 = vpack.c.b16 %v10755, %v10753
        %v10958 = vpack.c.b16 %v10758, %v10756
        %v10959 = vpack.c.b16 %v10759, %v10757
        %v10960 = vpack.c.b16 %v10762, %v10760
        %v10961 = vpack.c.b16 %v10763, %v10761
        %v10962 = vpack.c.b16 %v10766, %v10764
        %v10963 = vpack.c.b16 %v10767, %v10765
        %v10964 = vpack.c.b16 %v10770, %v10768
        %v10965 = vpack.c.b16 %v10771, %v10769
        %v10966 = vpack.c.b16 %v10774, %v10772
        %v10967 = vpack.c.b16 %v10775, %v10773
        %v10968 = vpack.c.b16 %v10778, %v10776
        %v10969 = vpack.c.b16 %v10779, %v10777
        %v10970 = vpack.c.b16 %v10782, %v10780
        %v10971 = vpack.c.b16 %v10783, %v10781
        %v10972 = vpack.c.b16 %v10786, %v10784
        %v10973 = vpack.c.b16 %v10787, %v10785
        %v10974 = vpack.c.b16 %v10790, %v10788
        %v10975 = vpack.c.b16 %v10791, %v10789
        %v10976 = vpack.c.b16 %v10794, %v10792
        %v10977 = vpack.c.b16 %v10795, %v10793
        %v10978 = vpack.c.b16 %v10798, %v10796
        %v10979 = vpack.c.b16 %v10799, %v10797
        %v10980 = vpack.c.b16 %v10802, %v10800
        %v10981 = vpack.c.b16 %v10803, %v10801
        %v10982 = vpack.c.b16 %v10806, %v10804
        %v10983 = vpack.c.b16 %v10807, %v10805
        %v10984 = vpack.c.b16 %v10810, %v10808
        %v10985 = vpack.c.b16 %v10811, %v10809
        %v10986 = vpack.c.b16 %v10814, %v10812
        %v10987 = vpack.c.b16 %v10815, %v10813
        %v10988 = vpack.c.b16 %v10818, %v10816
        %v10989 = vpack.c.b16 %v10819, %v10817
        %v10990 = vpack.c.b16 %v10822, %v10820
        %v10991 = vpack.c.b16 %v10823, %v10821
        %v10992 = vpack.c.b16 %v10826, %v10824
        %v10993 = vpack.c.b16 %v10827, %v10825
        %v10994 = vpack.c.b16 %v10830, %v10828
        %v10995 = vpack.c.b16 %v10831, %v10829
        %v10996 = vpack.c.b16 %v10834, %v10832
        %v10997 = vpack.c.b16 %v10835, %v10833
        %v10998 = vpack.c.b16 %v10838, %v10836
        %v10999 = vpack.c.b16 %v10839, %v10837
        %v11000 = vpack.c.b16 %v10842, %v10840
        %v11001 = vpack.c.b16 %v10843, %v10841
        %v11002 = vpack.c.b16 %v10846, %v10844
        %v11003 = vpack.c.b16 %v10847, %v10845
        %v11004 = vpack.c.b16 %v10850, %v10848
        %v11005 = vpack.c.b16 %v10851, %v10849
        %v11006 = vpack.c.b16 %v10854, %v10852
        %v11007 = vpack.c.b16 %v10855, %v10853
        %v11008 = vpack.c.b16 %v10858, %v10856
        %v11009 = vpack.c.b16 %v10859, %v10857
        %v11010 = vpack.c.b16 %v10862, %v10860
        %v11011 = vpack.c.b16 %v10863, %v10861
        %v11012 = vpack.c.b16 %v10866, %v10864
        %v11013 = vpack.c.b16 %v10867, %v10865
        %v11014 = vpack.c.b16 %v10870, %v10868
        %v11015 = vpack.c.b16 %v10871, %v10869
        %v11016 = vpack.c.b16 %v10874, %v10872
        %v11017 = vpack.c.b16 %v10875, %v10873
        %v11018 = vpack.c.b16 %v10878, %v10876
        %v11019 = vpack.c.b16 %v10879, %v10877
        %v11020 = vpack.c.b16 %v10882, %v10880
        %v11021 = vpack.c.b16 %v10883, %v10881
        %v11022 = vpack.c.b16 %v10886, %v10884
        %v11023 = vpack.c.b16 %v10887, %v10885
        %v11024 = vpack.c.b16 %v10890, %v10888
        %v11025 = vpack.c.b16 %v10891, %v10889
        %v11026 = vpack.c.b16 %v10894, %v10892
        %v11027 = vpack.c.b16 %v10895, %v10893
        %v11028 = vpack.c.b16 %v10898, %v10896
        %v11029 = vpack.c.b16 %v10899, %v10897
        %v11030 = vpack.c.b16 %v10902, %v10900
        %v11031 = vpack.c.b16 %v10903, %v10901
        %11160 = vmatpush.bf16.msra.mxu0 %v10918
        %11161 = vmatpush.bf16.msra.mxu0 %v10916
        %11162 = vmatpush.bf16.msra.mxu0 %v10914
        %11163 = vmatpush.bf16.msra.mxu0 %v10912
        %11164 = vmatpush.bf16.msra.mxu0 %v10910
        %11165 = vmatpush.bf16.msra.mxu0 %v10908
        %11166 = vmatpush.bf16.msra.mxu0 %v10906
        %11167 = vmatpush.bf16.msra.mxu0 %v10904
        %11168 = vmatmul.bf16.gmra.mxu0 %v10370
        %v11169 = vpop.f32.mrf.mxu0
        %v11170 = vadd.f32 %v10516, %v11169
        %v11171 = vpop.f32.mrf.mxu0
        %v11172 = vadd.f32 %v10516, %v11171
        %11173 = vmatmul.bf16.gmra.mxu0 %v10378
        %v11174 = vpop.f32.mrf.mxu0
        %v11175 = vadd.f32 %v10516, %v11174
        %v11176 = vpop.f32.mrf.mxu0
        %v11177 = vadd.f32 %v10516, %v11176
        %11178 = vdwg.mxu0
        %11179 = vmatpush.bf16.msra.mxu0 %v10934
        %11180 = vmatpush.bf16.msra.mxu0 %v10932
        %11181 = vmatpush.bf16.msra.mxu0 %v10930
        %11182 = vmatpush.bf16.msra.mxu0 %v10928
        %11183 = vmatpush.bf16.msra.mxu0 %v10926
        %11184 = vmatpush.bf16.msra.mxu0 %v10924
        %11185 = vmatpush.bf16.msra.mxu0 %v10922
        %11186 = vmatpush.bf16.msra.mxu0 %v10920
        %11187 = vmatmul.bf16.gmra.mxu0 %v10371
        %v11188 = vpop.f32.mrf.mxu0
        %v11189 = vadd.f32 %v11170, %v11188
        %v11190 = vpop.f32.mrf.mxu0
        %v11191 = vadd.f32 %v11172, %v11190
        %11192 = vmatmul.bf16.gmra.mxu0 %v10379
        %v11193 = vpop.f32.mrf.mxu0
        %v11194 = vadd.f32 %v11175, %v11193
        %v11195 = vpop.f32.mrf.mxu0
        %v11196 = vadd.f32 %v11177, %v11195
        %11197 = vdwg.mxu0
        %11198 = vmatpush.bf16.msra.mxu0 %v10950
        %11199 = vmatpush.bf16.msra.mxu0 %v10948
        %11200 = vmatpush.bf16.msra.mxu0 %v10946
        %11201 = vmatpush.bf16.msra.mxu0 %v10944
        %11202 = vmatpush.bf16.msra.mxu0 %v10942
        %11203 = vmatpush.bf16.msra.mxu0 %v10940
        %11204 = vmatpush.bf16.msra.mxu0 %v10938
        %11205 = vmatpush.bf16.msra.mxu0 %v10936
        %11206 = vmatmul.bf16.gmra.mxu0 %v10372
        %v11207 = vpop.f32.mrf.mxu0
        %v11208 = vadd.f32 %v11189, %v11207
        %v11209 = vpop.f32.mrf.mxu0
        %v11210 = vadd.f32 %v11191, %v11209
        %11211 = vmatmul.bf16.gmra.mxu0 %v10380
        %v11212 = vpop.f32.mrf.mxu0
        %v11213 = vadd.f32 %v11194, %v11212
        %v11214 = vpop.f32.mrf.mxu0
        %v11215 = vadd.f32 %v11196, %v11214
        %11216 = vdwg.mxu0
        %11217 = vmatpush.bf16.msra.mxu0 %v10966
        %11218 = vmatpush.bf16.msra.mxu0 %v10964
        %11219 = vmatpush.bf16.msra.mxu0 %v10962
        %11220 = vmatpush.bf16.msra.mxu0 %v10960
        %11221 = vmatpush.bf16.msra.mxu0 %v10958
        %11222 = vmatpush.bf16.msra.mxu0 %v10956
        %11223 = vmatpush.bf16.msra.mxu0 %v10954
        %11224 = vmatpush.bf16.msra.mxu0 %v10952
        %11225 = vmatmul.bf16.gmra.mxu0 %v10373
        %v11226 = vpop.f32.mrf.mxu0
        %v11227 = vadd.f32 %v11208, %v11226
        %v11228 = vpop.f32.mrf.mxu0
        %v11229 = vadd.f32 %v11210, %v11228
        %11230 = vmatmul.bf16.gmra.mxu0 %v10381
        %v11231 = vpop.f32.mrf.mxu0
        %v11232 = vadd.f32 %v11213, %v11231
        %v11233 = vpop.f32.mrf.mxu0
        %v11234 = vadd.f32 %v11215, %v11233
        %11235 = vdwg.mxu0
        %11236 = vmatpush.bf16.msra.mxu0 %v10982
        %11237 = vmatpush.bf16.msra.mxu0 %v10980
        %11238 = vmatpush.bf16.msra.mxu0 %v10978
        %11239 = vmatpush.bf16.msra.mxu0 %v10976
        %11240 = vmatpush.bf16.msra.mxu0 %v10974
        %11241 = vmatpush.bf16.msra.mxu0 %v10972
        %11242 = vmatpush.bf16.msra.mxu0 %v10970
        %11243 = vmatpush.bf16.msra.mxu0 %v10968
        %11244 = vmatmul.bf16.gmra.mxu0 %v10374
        %v11245 = vpop.f32.mrf.mxu0
        %v11246 = vadd.f32 %v11227, %v11245
        %v11247 = vpop.f32.mrf.mxu0
        %v11248 = vadd.f32 %v11229, %v11247
        %11249 = vmatmul.bf16.gmra.mxu0 %v10382
        %v11250 = vpop.f32.mrf.mxu0
        %v11251 = vadd.f32 %v11232, %v11250
        %v11252 = vpop.f32.mrf.mxu0
        %v11253 = vadd.f32 %v11234, %v11252
        %11254 = vdwg.mxu0
        %11255 = vmatpush.bf16.msra.mxu0 %v10998
        %11256 = vmatpush.bf16.msra.mxu0 %v10996
        %11257 = vmatpush.bf16.msra.mxu0 %v10994
        %11258 = vmatpush.bf16.msra.mxu0 %v10992
        %11259 = vmatpush.bf16.msra.mxu0 %v10990
        %11260 = vmatpush.bf16.msra.mxu0 %v10988
        %11261 = vmatpush.bf16.msra.mxu0 %v10986
        %11262 = vmatpush.bf16.msra.mxu0 %v10984
        %11263 = vmatmul.bf16.gmra.mxu0 %v10375
        %v11264 = vpop.f32.mrf.mxu0
        %v11265 = vadd.f32 %v11246, %v11264
        %v11266 = vpop.f32.mrf.mxu0
        %v11267 = vadd.f32 %v11248, %v11266
        %11268 = vmatmul.bf16.gmra.mxu0 %v10383
        %v11269 = vpop.f32.mrf.mxu0
        %v11270 = vadd.f32 %v11251, %v11269
        %v11271 = vpop.f32.mrf.mxu0
        %v11272 = vadd.f32 %v11253, %v11271
        %11273 = vdwg.mxu0
        %11274 = vmatpush.bf16.msra.mxu0 %v11014
        %11275 = vmatpush.bf16.msra.mxu0 %v11012
        %11276 = vmatpush.bf16.msra.mxu0 %v11010
        %11277 = vmatpush.bf16.msra.mxu0 %v11008
        %11278 = vmatpush.bf16.msra.mxu0 %v11006
        %11279 = vmatpush.bf16.msra.mxu0 %v11004
        %11280 = vmatpush.bf16.msra.mxu0 %v11002
        %11281 = vmatpush.bf16.msra.mxu0 %v11000
        %11282 = vmatmul.bf16.gmra.mxu0 %v10376
        %v11283 = vpop.f32.mrf.mxu0
        %v11284 = vadd.f32 %v11265, %v11283
        %v11285 = vpop.f32.mrf.mxu0
        %v11286 = vadd.f32 %v11267, %v11285
        %11287 = vmatmul.bf16.gmra.mxu0 %v10384
        %v11288 = vpop.f32.mrf.mxu0
        %v11289 = vadd.f32 %v11270, %v11288
        %v11290 = vpop.f32.mrf.mxu0
        %v11291 = vadd.f32 %v11272, %v11290
        %11292 = vdwg.mxu0
        %11293 = vmatpush.bf16.msra.mxu0 %v11030
        %11294 = vmatpush.bf16.msra.mxu0 %v11028
        %11295 = vmatpush.bf16.msra.mxu0 %v11026
        %11296 = vmatpush.bf16.msra.mxu0 %v11024
        %11297 = vmatpush.bf16.msra.mxu0 %v11022
        %11298 = vmatpush.bf16.msra.mxu0 %v11020
        %11299 = vmatpush.bf16.msra.mxu0 %v11018
        %11300 = vmatpush.bf16.msra.mxu0 %v11016
        %11301 = vmatmul.bf16.gmra.mxu0 %v10377
        %v11302 = vpop.f32.mrf.mxu0
        %v11303 = vadd.f32 %v11284, %v11302
        %v11304 = vpop.f32.mrf.mxu0
        %v11305 = vadd.f32 %v11286, %v11304
        %11306 = vmatmul.bf16.gmra.mxu0 %v10385
        %v11307 = vpop.f32.mrf.mxu0
        %v11308 = vadd.f32 %v11289, %v11307
        %v11309 = vpop.f32.mrf.mxu0
        %v11310 = vadd.f32 %v11291, %v11309
        %11311 = vdwg.mxu0
        %11312 = vmatpush.bf16.msra.mxu0 %v10919
        %11313 = vmatpush.bf16.msra.mxu0 %v10917
        %11314 = vmatpush.bf16.msra.mxu0 %v10915
        %11315 = vmatpush.bf16.msra.mxu0 %v10913
        %11316 = vmatpush.bf16.msra.mxu0 %v10911
        %11317 = vmatpush.bf16.msra.mxu0 %v10909
        %11318 = vmatpush.bf16.msra.mxu0 %v10907
        %11319 = vmatpush.bf16.msra.mxu0 %v10905
        %11320 = vmatmul.bf16.gmra.mxu0 %v10370
        %v11321 = vpop.f32.mrf.mxu0
        %v11322 = vadd.f32 %v10517, %v11321
        %v11323 = vpop.f32.mrf.mxu0
        %v11324 = vadd.f32 %v10517, %v11323
        %11325 = vmatmul.bf16.gmra.mxu0 %v10378
        %v11326 = vpop.f32.mrf.mxu0
        %v11327 = vadd.f32 %v10517, %v11326
        %v11328 = vpop.f32.mrf.mxu0
        %v11329 = vadd.f32 %v10517, %v11328
        %11330 = vdwg.mxu0
        %11331 = vmatpush.bf16.msra.mxu0 %v10935
        %11332 = vmatpush.bf16.msra.mxu0 %v10933
        %11333 = vmatpush.bf16.msra.mxu0 %v10931
        %11334 = vmatpush.bf16.msra.mxu0 %v10929
        %11335 = vmatpush.bf16.msra.mxu0 %v10927
        %11336 = vmatpush.bf16.msra.mxu0 %v10925
        %11337 = vmatpush.bf16.msra.mxu0 %v10923
        %11338 = vmatpush.bf16.msra.mxu0 %v10921
        %11339 = vmatmul.bf16.gmra.mxu0 %v10371
        %v11340 = vpop.f32.mrf.mxu0
        %v11341 = vadd.f32 %v11322, %v11340
        %v11342 = vpop.f32.mrf.mxu0
        %v11343 = vadd.f32 %v11324, %v11342
        %11344 = vmatmul.bf16.gmra.mxu0 %v10379
        %v11345 = vpop.f32.mrf.mxu0
        %v11346 = vadd.f32 %v11327, %v11345
        %v11347 = vpop.f32.mrf.mxu0
        %v11348 = vadd.f32 %v11329, %v11347
        %11349 = vdwg.mxu0
        %11350 = vmatpush.bf16.msra.mxu0 %v10951
        %11351 = vmatpush.bf16.msra.mxu0 %v10949
        %11352 = vmatpush.bf16.msra.mxu0 %v10947
        %11353 = vmatpush.bf16.msra.mxu0 %v10945
        %11354 = vmatpush.bf16.msra.mxu0 %v10943
        %11355 = vmatpush.bf16.msra.mxu0 %v10941
        %11356 = vmatpush.bf16.msra.mxu0 %v10939
        %11357 = vmatpush.bf16.msra.mxu0 %v10937
        %11358 = vmatmul.bf16.gmra.mxu0 %v10372
        %v11359 = vpop.f32.mrf.mxu0
        %v11360 = vadd.f32 %v11341, %v11359
        %v11361 = vpop.f32.mrf.mxu0
        %v11362 = vadd.f32 %v11343, %v11361
        %11363 = vmatmul.bf16.gmra.mxu0 %v10380
        %v11364 = vpop.f32.mrf.mxu0
        %v11365 = vadd.f32 %v11346, %v11364
        %v11366 = vpop.f32.mrf.mxu0
        %v11367 = vadd.f32 %v11348, %v11366
        %11368 = vdwg.mxu0
        %11369 = vmatpush.bf16.msra.mxu0 %v10967
        %11370 = vmatpush.bf16.msra.mxu0 %v10965
        %11371 = vmatpush.bf16.msra.mxu0 %v10963
        %11372 = vmatpush.bf16.msra.mxu0 %v10961
        %11373 = vmatpush.bf16.msra.mxu0 %v10959
        %11374 = vmatpush.bf16.msra.mxu0 %v10957
        %11375 = vmatpush.bf16.msra.mxu0 %v10955
        %11376 = vmatpush.bf16.msra.mxu0 %v10953
        %11377 = vmatmul.bf16.gmra.mxu0 %v10373
        %v11378 = vpop.f32.mrf.mxu0
        %v11379 = vadd.f32 %v11360, %v11378
        %v11380 = vpop.f32.mrf.mxu0
        %v11381 = vadd.f32 %v11362, %v11380
        %11382 = vmatmul.bf16.gmra.mxu0 %v10381
        %v11383 = vpop.f32.mrf.mxu0
        %v11384 = vadd.f32 %v11365, %v11383
        %v11385 = vpop.f32.mrf.mxu0
        %v11386 = vadd.f32 %v11367, %v11385
        %11387 = vdwg.mxu0
        %11388 = vmatpush.bf16.msra.mxu0 %v10983
        %11389 = vmatpush.bf16.msra.mxu0 %v10981
        %11390 = vmatpush.bf16.msra.mxu0 %v10979
        %11391 = vmatpush.bf16.msra.mxu0 %v10977
        %11392 = vmatpush.bf16.msra.mxu0 %v10975
        %11393 = vmatpush.bf16.msra.mxu0 %v10973
        %11394 = vmatpush.bf16.msra.mxu0 %v10971
        %11395 = vmatpush.bf16.msra.mxu0 %v10969
        %11396 = vmatmul.bf16.gmra.mxu0 %v10374
        %v11397 = vpop.f32.mrf.mxu0
        %v11398 = vadd.f32 %v11379, %v11397
        %v11399 = vpop.f32.mrf.mxu0
        %v11400 = vadd.f32 %v11381, %v11399
        %11401 = vmatmul.bf16.gmra.mxu0 %v10382
        %v11402 = vpop.f32.mrf.mxu0
        %v11403 = vadd.f32 %v11384, %v11402
        %v11404 = vpop.f32.mrf.mxu0
        %v11405 = vadd.f32 %v11386, %v11404
        %11406 = vdwg.mxu0
        %11407 = vmatpush.bf16.msra.mxu0 %v10999
        %11408 = vmatpush.bf16.msra.mxu0 %v10997
        %11409 = vmatpush.bf16.msra.mxu0 %v10995
        %11410 = vmatpush.bf16.msra.mxu0 %v10993
        %11411 = vmatpush.bf16.msra.mxu0 %v10991
        %11412 = vmatpush.bf16.msra.mxu0 %v10989
        %11413 = vmatpush.bf16.msra.mxu0 %v10987
        %11414 = vmatpush.bf16.msra.mxu0 %v10985
        %11415 = vmatmul.bf16.gmra.mxu0 %v10375
        %v11416 = vpop.f32.mrf.mxu0
        %v11417 = vadd.f32 %v11398, %v11416
        %v11418 = vpop.f32.mrf.mxu0
        %v11419 = vadd.f32 %v11400, %v11418
        %11420 = vmatmul.bf16.gmra.mxu0 %v10383
        %v11421 = vpop.f32.mrf.mxu0
        %v11422 = vadd.f32 %v11403, %v11421
        %v11423 = vpop.f32.mrf.mxu0
        %v11424 = vadd.f32 %v11405, %v11423
        %11425 = vdwg.mxu0
        %11426 = vmatpush.bf16.msra.mxu0 %v11015
        %11427 = vmatpush.bf16.msra.mxu0 %v11013
        %11428 = vmatpush.bf16.msra.mxu0 %v11011
        %11429 = vmatpush.bf16.msra.mxu0 %v11009
        %11430 = vmatpush.bf16.msra.mxu0 %v11007
        %11431 = vmatpush.bf16.msra.mxu0 %v11005
        %11432 = vmatpush.bf16.msra.mxu0 %v11003
        %11433 = vmatpush.bf16.msra.mxu0 %v11001
        %11434 = vmatmul.bf16.gmra.mxu0 %v10376
        %v11435 = vpop.f32.mrf.mxu0
        %v11436 = vadd.f32 %v11417, %v11435
        %v11437 = vpop.f32.mrf.mxu0
        %v11438 = vadd.f32 %v11419, %v11437
        %11439 = vmatmul.bf16.gmra.mxu0 %v10384
        %v11440 = vpop.f32.mrf.mxu0
        %v11441 = vadd.f32 %v11422, %v11440
        %v11442 = vpop.f32.mrf.mxu0
        %v11443 = vadd.f32 %v11424, %v11442
        %11444 = vdwg.mxu0
        %11445 = vmatpush.bf16.msra.mxu0 %v11031
        %11446 = vmatpush.bf16.msra.mxu0 %v11029
        %11447 = vmatpush.bf16.msra.mxu0 %v11027
        %11448 = vmatpush.bf16.msra.mxu0 %v11025
        %11449 = vmatpush.bf16.msra.mxu0 %v11023
        %11450 = vmatpush.bf16.msra.mxu0 %v11021
        %11451 = vmatpush.bf16.msra.mxu0 %v11019
        %11452 = vmatpush.bf16.msra.mxu0 %v11017
        %11453 = vmatmul.bf16.gmra.mxu0 %v10377
        %v11454 = vpop.f32.mrf.mxu0
        %v11455 = vadd.f32 %v11436, %v11454
        %v11456 = vpop.f32.mrf.mxu0
        %v11457 = vadd.f32 %v11438, %v11456
        %11458 = vmatmul.bf16.gmra.mxu0 %v10385
        %v11459 = vpop.f32.mrf.mxu0
        %v11460 = vadd.f32 %v11441, %v11459
        %v11461 = vpop.f32.mrf.mxu0
        %v11462 = vadd.f32 %v11443, %v11461
        %11463 = vdwg.mxu0
        %v11464 = vld [vmem:[#allocation14] sm:$0x3]
        %v11465 = vld [vmem:[#allocation16] sm:$0x3]
        %vm11466 = vcmp.ge.f32.partialorder %v11303, 0.0
        %vm11467 = vcmp.ge.f32.partialorder %v11455, 0.0
        %vm11468 = vcmp.ge.f32.partialorder %v11305, 0.0
        %vm11469 = vcmp.ge.f32.partialorder %v11457, 0.0
        %vm11470 = vcmp.ge.f32.partialorder %v11308, 0.0
        %vm11471 = vcmp.ge.f32.partialorder %v11460, 0.0
        %vm11472 = vcmp.ge.f32.partialorder %v11310, 0.0
        %vm11473 = vcmp.ge.f32.partialorder %v11462, 0.0
        %v11474 = vmul.f32 %v11303, 0.2
        %v11475 = vmul.f32 %v11455, 0.2
        %v11476 = vmul.f32 %v11305, 0.2
        %v11477 = vmul.f32 %v11457, 0.2
        %v11478 = vmul.f32 %v11308, 0.2
        %v11479 = vmul.f32 %v11460, 0.2
        %v11480 = vmul.f32 %v11310, 0.2
        %v11481 = vmul.f32 %v11462, 0.2
        %v11482 = vsel %vm11466, %v11303, %v11474
        %v11483 = vsel %vm11467, %v11455, %v11475
        %v11484 = vsel %vm11468, %v11305, %v11476
        %v11485 = vsel %vm11469, %v11457, %v11477
        %v11486 = vsel %vm11470, %v11308, %v11478
        %v11487 = vsel %vm11471, %v11460, %v11479
        %v11488 = vsel %vm11472, %v11310, %v11480
        %v11489 = vsel %vm11473, %v11462, %v11481
        %v11490 = vrot.slane %v11482, 4
        %v11491 = vadd.f32 %v11482, %v11490
        %v11492 = vrot.slane %v11491, 2
        %v11493 = vadd.f32 %v11491, %v11492
        %v11494 = vrot.slane %v11493, 1
        %v11495 = vadd.f32 %v11493, %v11494
        %v11496 = vrot.slane %v11483, 4
        %v11497 = vadd.f32 %v11483, %v11496
        %v11498 = vrot.slane %v11497, 2
        %v11499 = vadd.f32 %v11497, %v11498
        %v11500 = vrot.slane %v11499, 1
        %v11501 = vadd.f32 %v11499, %v11500
        %v11502 = vrot.slane %v11484, 4
        %v11503 = vadd.f32 %v11484, %v11502
        %v11504 = vrot.slane %v11503, 2
        %v11505 = vadd.f32 %v11503, %v11504
        %v11506 = vrot.slane %v11505, 1
        %v11507 = vadd.f32 %v11505, %v11506
        %v11508 = vrot.slane %v11485, 4
        %v11509 = vadd.f32 %v11485, %v11508
        %v11510 = vrot.slane %v11509, 2
        %v11511 = vadd.f32 %v11509, %v11510
        %v11512 = vrot.slane %v11511, 1
        %v11513 = vadd.f32 %v11511, %v11512
        %v11514 = vrot.slane %v11486, 4
        %v11515 = vadd.f32 %v11486, %v11514
        %v11516 = vrot.slane %v11515, 2
        %v11517 = vadd.f32 %v11515, %v11516
        %v11518 = vrot.slane %v11517, 1
        %v11519 = vadd.f32 %v11517, %v11518
        %v11520 = vrot.slane %v11487, 4
        %v11521 = vadd.f32 %v11487, %v11520
        %v11522 = vrot.slane %v11521, 2
        %v11523 = vadd.f32 %v11521, %v11522
        %v11524 = vrot.slane %v11523, 1
        %v11525 = vadd.f32 %v11523, %v11524
        %v11526 = vrot.slane %v11488, 4
        %v11527 = vadd.f32 %v11488, %v11526
        %v11528 = vrot.slane %v11527, 2
        %v11529 = vadd.f32 %v11527, %v11528
        %v11530 = vrot.slane %v11529, 1
        %v11531 = vadd.f32 %v11529, %v11530
        %v11532 = vrot.slane %v11489, 4
        %v11533 = vadd.f32 %v11489, %v11532
        %v11534 = vrot.slane %v11533, 2
        %v11535 = vadd.f32 %v11533, %v11534
        %v11536 = vrot.slane %v11535, 1
        %v11537 = vadd.f32 %v11535, %v11536
        %v11538 = vmul.f32 %v11495, %v9535
        %v11539 = vmul.f32 %v11501, %v9535
        %v11540 = vmul.f32 %v11507, %v9535
        %v11541 = vmul.f32 %v11513, %v9535
        %v11542 = vmul.f32 %v11519, %v9535
        %v11543 = vmul.f32 %v11525, %v9535
        %v11544 = vmul.f32 %v11531, %v9535
        %v11545 = vmul.f32 %v11537, %v9535
        %v11546 = vsub.f32 %v11482, %v11538
        %v11547 = vsub.f32 %v11483, %v11539
        %v11548 = vsub.f32 %v11484, %v11540
        %v11549 = vsub.f32 %v11485, %v11541
        %v11550 = vsub.f32 %v11486, %v11542
        %v11551 = vsub.f32 %v11487, %v11543
        %v11552 = vsub.f32 %v11488, %v11544
        %v11553 = vsub.f32 %v11489, %v11545
        %v11554 = vmul.f32 %v11546, %v11546
        %v11555 = vmul.f32 %v11547, %v11547
        %v11556 = vmul.f32 %v11548, %v11548
        %v11557 = vmul.f32 %v11549, %v11549
        %v11558 = vmul.f32 %v11550, %v11550
        %v11559 = vmul.f32 %v11551, %v11551
        %v11560 = vmul.f32 %v11552, %v11552
        %v11561 = vmul.f32 %v11553, %v11553
        %v11562 = vrot.slane %v11554, 4
        %v11563 = vadd.f32 %v11554, %v11562
        %v11564 = vrot.slane %v11563, 2
        %v11565 = vadd.f32 %v11563, %v11564
        %v11566 = vrot.slane %v11565, 1
        %v11567 = vadd.f32 %v11565, %v11566
        %v11568 = vrot.slane %v11555, 4
        %v11569 = vadd.f32 %v11555, %v11568
        %v11570 = vrot.slane %v11569, 2
        %v11571 = vadd.f32 %v11569, %v11570
        %v11572 = vrot.slane %v11571, 1
        %v11573 = vadd.f32 %v11571, %v11572
        %v11574 = vrot.slane %v11556, 4
        %v11575 = vadd.f32 %v11556, %v11574
        %v11576 = vrot.slane %v11575, 2
        %v11577 = vadd.f32 %v11575, %v11576
        %v11578 = vrot.slane %v11577, 1
        %v11579 = vadd.f32 %v11577, %v11578
        %v11580 = vrot.slane %v11557, 4
        %v11581 = vadd.f32 %v11557, %v11580
        %v11582 = vrot.slane %v11581, 2
        %v11583 = vadd.f32 %v11581, %v11582
        %v11584 = vrot.slane %v11583, 1
        %v11585 = vadd.f32 %v11583, %v11584
        %v11586 = vrot.slane %v11558, 4
        %v11587 = vadd.f32 %v11558, %v11586
        %v11588 = vrot.slane %v11587, 2
        %v11589 = vadd.f32 %v11587, %v11588
        %v11590 = vrot.slane %v11589, 1
        %v11591 = vadd.f32 %v11589, %v11590
        %v11592 = vrot.slane %v11559, 4
        %v11593 = vadd.f32 %v11559, %v11592
        %v11594 = vrot.slane %v11593, 2
        %v11595 = vadd.f32 %v11593, %v11594
        %v11596 = vrot.slane %v11595, 1
        %v11597 = vadd.f32 %v11595, %v11596
        %v11598 = vrot.slane %v11560, 4
        %v11599 = vadd.f32 %v11560, %v11598
        %v11600 = vrot.slane %v11599, 2
        %v11601 = vadd.f32 %v11599, %v11600
        %v11602 = vrot.slane %v11601, 1
        %v11603 = vadd.f32 %v11601, %v11602
        %v11604 = vrot.slane %v11561, 4
        %v11605 = vadd.f32 %v11561, %v11604
        %v11606 = vrot.slane %v11605, 2
        %v11607 = vadd.f32 %v11605, %v11606
        %v11608 = vrot.slane %v11607, 1
        %v11609 = vadd.f32 %v11607, %v11608
        %v11610 = vmul.f32 %v11567, %v9535
        %v11611 = vmul.f32 %v11573, %v9535
        %v11612 = vmul.f32 %v11579, %v9535
        %v11613 = vmul.f32 %v11585, %v9535
        %v11614 = vmul.f32 %v11591, %v9535
        %v11615 = vmul.f32 %v11597, %v9535
        %v11616 = vmul.f32 %v11603, %v9535
        %v11617 = vmul.f32 %v11609, %v9535
        %v11618 = vadd.f32 %v11610, 1e-05
        %v11619 = vadd.f32 %v11611, 1e-05
        %v11620 = vadd.f32 %v11612, 1e-05
        %v11621 = vadd.f32 %v11613, 1e-05
        %v11622 = vadd.f32 %v11614, 1e-05
        %v11623 = vadd.f32 %v11615, 1e-05
        %v11624 = vadd.f32 %v11616, 1e-05
        %v11625 = vadd.f32 %v11617, 1e-05
        %v11626 = vrsqrt.pop %v11618
        %v11627 = vmul.f32 %v11626, %v11618
        %v11628 = vmul.f32 %v11627, %v11626
        %v11629 = vmul.f32 0.5, %v11628
        %v11630 = vsub.f32 1.5, %v11629
        %v11631 = vmul.f32 %v11626, %v11630
        %vm11632 = vweird.f32 %v11618
        %vm11633 = vweird.f32 %v11626
        %vm11634 = vmor %vm11632, %vm11633
        %v11635 = vsel %vm11634, %v11626, %v11631
        %v11636 = vrsqrt.pop %v11619
        %v11637 = vmul.f32 %v11636, %v11619
        %v11638 = vmul.f32 %v11637, %v11636
        %v11639 = vmul.f32 0.5, %v11638
        %v11640 = vsub.f32 1.5, %v11639
        %v11641 = vmul.f32 %v11636, %v11640
        %vm11642 = vweird.f32 %v11619
        %vm11643 = vweird.f32 %v11636
        %vm11644 = vmor %vm11642, %vm11643
        %v11645 = vsel %vm11644, %v11636, %v11641
        %v11646 = vrsqrt.pop %v11620
        %v11647 = vmul.f32 %v11646, %v11620
        %v11648 = vmul.f32 %v11647, %v11646
        %v11649 = vmul.f32 0.5, %v11648
        %v11650 = vsub.f32 1.5, %v11649
        %v11651 = vmul.f32 %v11646, %v11650
        %vm11652 = vweird.f32 %v11620
        %vm11653 = vweird.f32 %v11646
        %vm11654 = vmor %vm11652, %vm11653
        %v11655 = vsel %vm11654, %v11646, %v11651
        %v11656 = vrsqrt.pop %v11621
        %v11657 = vmul.f32 %v11656, %v11621
        %v11658 = vmul.f32 %v11657, %v11656
        %v11659 = vmul.f32 0.5, %v11658
        %v11660 = vsub.f32 1.5, %v11659
        %v11661 = vmul.f32 %v11656, %v11660
        %vm11662 = vweird.f32 %v11621
        %vm11663 = vweird.f32 %v11656
        %vm11664 = vmor %vm11662, %vm11663
        %v11665 = vsel %vm11664, %v11656, %v11661
        %v11666 = vrsqrt.pop %v11622
        %v11667 = vmul.f32 %v11666, %v11622
        %v11668 = vmul.f32 %v11667, %v11666
        %v11669 = vmul.f32 0.5, %v11668
        %v11670 = vsub.f32 1.5, %v11669
        %v11671 = vmul.f32 %v11666, %v11670
        %vm11672 = vweird.f32 %v11622
        %vm11673 = vweird.f32 %v11666
        %vm11674 = vmor %vm11672, %vm11673
        %v11675 = vsel %vm11674, %v11666, %v11671
        %v11676 = vrsqrt.pop %v11623
        %v11677 = vmul.f32 %v11676, %v11623
        %v11678 = vmul.f32 %v11677, %v11676
        %v11679 = vmul.f32 0.5, %v11678
        %v11680 = vsub.f32 1.5, %v11679
        %v11681 = vmul.f32 %v11676, %v11680
        %vm11682 = vweird.f32 %v11623
        %vm11683 = vweird.f32 %v11676
        %vm11684 = vmor %vm11682, %vm11683
        %v11685 = vsel %vm11684, %v11676, %v11681
        %v11686 = vrsqrt.pop %v11624
        %v11687 = vmul.f32 %v11686, %v11624
        %v11688 = vmul.f32 %v11687, %v11686
        %v11689 = vmul.f32 0.5, %v11688
        %v11690 = vsub.f32 1.5, %v11689
        %v11691 = vmul.f32 %v11686, %v11690
        %vm11692 = vweird.f32 %v11624
        %vm11693 = vweird.f32 %v11686
        %vm11694 = vmor %vm11692, %vm11693
        %v11695 = vsel %vm11694, %v11686, %v11691
        %v11696 = vrsqrt.pop %v11625
        %v11697 = vmul.f32 %v11696, %v11625
        %v11698 = vmul.f32 %v11697, %v11696
        %v11699 = vmul.f32 0.5, %v11698
        %v11700 = vsub.f32 1.5, %v11699
        %v11701 = vmul.f32 %v11696, %v11700
        %vm11702 = vweird.f32 %v11625
        %vm11703 = vweird.f32 %v11696
        %vm11704 = vmor %vm11702, %vm11703
        %v11705 = vsel %vm11704, %v11696, %v11701
        %v11707 = vperm.slane %v11464, 0
        %v11708 = vperm.slane %v11464, 1
        %v11711 = vmul.f32 %v11635, %v11707
        %v11712 = vmul.f32 %v11645, %v11708
        %v11713 = vmul.f32 %v11655, %v11707
        %v11714 = vmul.f32 %v11665, %v11708
        %v11715 = vmul.f32 %v11675, %v11707
        %v11716 = vmul.f32 %v11685, %v11708
        %v11717 = vmul.f32 %v11695, %v11707
        %v11718 = vmul.f32 %v11705, %v11708
        %v11719 = vperm.slane %v11711, 0
        %v11720 = vperm.slane %v11712, 0
        %v11721 = vperm.slane %v11713, 0
        %v11722 = vperm.slane %v11714, 0
        %v11723 = vperm.slane %v11715, 0
        %v11724 = vperm.slane %v11716, 0
        %v11725 = vperm.slane %v11717, 0
        %v11726 = vperm.slane %v11718, 0
        %v11727 = vmul.f32 %v11546, %v11719
        %v11728 = vmul.f32 %v11547, %v11720
        %v11729 = vmul.f32 %v11548, %v11721
        %v11730 = vmul.f32 %v11549, %v11722
        %v11731 = vmul.f32 %v11550, %v11723
        %v11732 = vmul.f32 %v11551, %v11724
        %v11733 = vmul.f32 %v11552, %v11725
        %v11734 = vmul.f32 %v11553, %v11726
        %v11736 = vperm.slane %v11465, 0
        %v11737 = vperm.slane %v11465, 1
        %v11740 = vadd.f32 %v11727, %v11736
        %v11741 = vadd.f32 %v11728, %v11737
        %v11742 = vadd.f32 %v11729, %v11736
        %v11743 = vadd.f32 %v11730, %v11737
        %v11744 = vadd.f32 %v11731, %v11736
        %v11745 = vadd.f32 %v11732, %v11737
        %v11746 = vadd.f32 %v11733, %v11736
        %v11747 = vadd.f32 %v11734, %v11737
        %v11748 = vld [vmem:[#allocation17] sm:$0x3]
        %v11750 = vperm.slane %v11748, 0
        %v11751 = vperm.slane %v11748, 1
        %v11754 = vmul.f32 %v11740, %v11750
        %v11755 = vmul.f32 %v11741, %v11751
        %v11756 = vmul.f32 %v11742, %v11750
        %v11757 = vmul.f32 %v11743, %v11751
        %v11758 = vmul.f32 %v11744, %v11750
        %v11759 = vmul.f32 %v11745, %v11751
        %v11760 = vmul.f32 %v11746, %v11750
        %v11761 = vmul.f32 %v11747, %v11751
        %v11762 = vadd.f32 %v11754, %v11755
        %11763 = vadd.xlane.f32.xlu0 %v11762
        %v11764 = vpop.xlane.xlu0 %11763
        %v11765 = vadd.f32 %v11756, %v11757
        %11766 = vadd.xlane.f32.xlu0 %v11765
        %v11767 = vpop.xlane.xlu0 %11766
        %v11768 = vadd.f32 %v11758, %v11759
        %11769 = vadd.xlane.f32.xlu0 %v11768
        %v11770 = vpop.xlane.xlu0 %11769
        %v11771 = vadd.f32 %v11760, %v11761
        %11772 = vadd.xlane.f32.xlu0 %v11771
        %v11773 = vpop.xlane.xlu0 %11772
        %v11774 = vld [vmem:[#allocation2] sm:$0x1]
        %v11776 = vperm.slane %v11774, 0
        %v11778 = vadd.f32 %v11764, %v11776
        %v11779 = vadd.f32 %v11767, %v11776
        %v11780 = vadd.f32 %v11770, %v11776
        %v11781 = vadd.f32 %v11773, %v11776
        %v11782 = vand.u32 2147483647, %v11778
        %v11783 = vand.u32 2147483647, %v11779
        %v11784 = vand.u32 2147483647, %v11780
        %v11785 = vand.u32 2147483647, %v11781
        %v11786 = vsub.f32 0.0, %v11782
        %v11787 = vsub.f32 0.0, %v11783
        %v11788 = vsub.f32 0.0, %v11784
        %v11789 = vsub.f32 0.0, %v11785
        %v11790 = vmul.f32 %v11786, 1.442695
        %v11791 = vpow.pop %v11790
        %v11792 = vmul.f32 %v11787, 1.442695
        %v11793 = vpow.pop %v11792
        %v11794 = vmul.f32 %v11788, 1.442695
        %v11795 = vpow.pop %v11794
        %v11796 = vmul.f32 %v11789, 1.442695
        %v11797 = vpow.pop %v11796
        %vm11798 = vcmp.ge.f32.partialorder %v11778, 0.0
        %vm11799 = vcmp.ge.f32.partialorder %v11779, 0.0
        %vm11800 = vcmp.ge.f32.partialorder %v11780, 0.0
        %vm11801 = vcmp.ge.f32.partialorder %v11781, 0.0
        %v11802 = vadd.f32 %v11791, 1.0
        %v11803 = vadd.f32 %v11793, 1.0
        %v11804 = vadd.f32 %v11795, 1.0
        %v11805 = vadd.f32 %v11797, 1.0
        %v11806 = vrcp.pop %v11802
        %v11807 = vmul.f32 %v11802, %v11806
        %v11808 = vsub.f32 1.0, %v11807
        %v11809 = vmul.f32 %v11806, %v11808
        %v11810 = vadd.f32 %v11806, %v11809
        %vm11811 = vweird.f32 %v11802
        %vm11812 = vweird.f32 %v11806
        %vm11813 = vmor %vm11811, %vm11812
        %v11814 = vsel %vm11813, %v11806, %v11810
        %v11815 = vand.u32 2147483647, %v11802
        %vm11816 = vcmp.eq.f32.partialorder %v11815, 8.507059e+37
        %v11817 = vand.u32 %v11802, 2147483648
        %v11818 = vor.u32 1.1754944e-38, %v11817
        %v11819 = vsel %vm11816, %v11818, %v11814
        %v11820 = vmul.f32 1.0, %v11819
        %v11821 = vrcp.pop %v11803
        %v11822 = vmul.f32 %v11803, %v11821
        %v11823 = vsub.f32 1.0, %v11822
        %v11824 = vmul.f32 %v11821, %v11823
        %v11825 = vadd.f32 %v11821, %v11824
        %vm11826 = vweird.f32 %v11803
        %vm11827 = vweird.f32 %v11821
        %vm11828 = vmor %vm11826, %vm11827
        %v11829 = vsel %vm11828, %v11821, %v11825
        %v11830 = vand.u32 2147483647, %v11803
        %vm11831 = vcmp.eq.f32.partialorder %v11830, 8.507059e+37
        %v11832 = vand.u32 %v11803, 2147483648
        %v11833 = vor.u32 1.1754944e-38, %v11832
        %v11834 = vsel %vm11831, %v11833, %v11829
        %v11835 = vmul.f32 1.0, %v11834
        %v11836 = vrcp.pop %v11804
        %v11837 = vmul.f32 %v11804, %v11836
        %v11838 = vsub.f32 1.0, %v11837
        %v11839 = vmul.f32 %v11836, %v11838
        %v11840 = vadd.f32 %v11836, %v11839
        %vm11841 = vweird.f32 %v11804
        %vm11842 = vweird.f32 %v11836
        %vm11843 = vmor %vm11841, %vm11842
        %v11844 = vsel %vm11843, %v11836, %v11840
        %v11845 = vand.u32 2147483647, %v11804
        %vm11846 = vcmp.eq.f32.partialorder %v11845, 8.507059e+37
        %v11847 = vand.u32 %v11804, 2147483648
        %v11848 = vor.u32 1.1754944e-38, %v11847
        %v11849 = vsel %vm11846, %v11848, %v11844
        %v11850 = vmul.f32 1.0, %v11849
        %v11851 = vrcp.pop %v11805
        %v11852 = vmul.f32 %v11805, %v11851
        %v11853 = vsub.f32 1.0, %v11852
        %v11854 = vmul.f32 %v11851, %v11853
        %v11855 = vadd.f32 %v11851, %v11854
        %vm11856 = vweird.f32 %v11805
        %vm11857 = vweird.f32 %v11851
        %vm11858 = vmor %vm11856, %vm11857
        %v11859 = vsel %vm11858, %v11851, %v11855
        %v11860 = vand.u32 2147483647, %v11805
        %vm11861 = vcmp.eq.f32.partialorder %v11860, 8.507059e+37
        %v11862 = vand.u32 %v11805, 2147483648
        %v11863 = vor.u32 1.1754944e-38, %v11862
        %v11864 = vsel %vm11861, %v11863, %v11859
        %v11865 = vmul.f32 1.0, %v11864
        %v11866 = vmul.f32 %v11791, %v11819
        %v11867 = vmul.f32 %v11793, %v11834
        %v11868 = vmul.f32 %v11795, %v11849
        %v11869 = vmul.f32 %v11797, %v11864
        %v11870 = vsel %vm11798, %v11820, %v11866
        %v11871 = vsel %vm11799, %v11835, %v11867
        %v11872 = vsel %vm11800, %v11850, %v11868
        %v11873 = vsel %vm11801, %v11865, %v11869
        %vm11874 = vcmask 7168
        %11875 = vst.msk [vmem:[%s547] sm:$0xff] %vm11874, %v11870
        %11876 = vst.msk [vmem:[%s547 + $0x8] sm:$0xff] %vm11874, %v11871
        %11877 = vst.msk [vmem:[%s547 + $0x10] sm:$0xff] %vm11874, %v11872
        %11878 = vst.msk [vmem:[%s547 + $0x18] sm:$0xff] %vm11874, %v11873
        %s11879 = smul.u32 4, %s32
        %p11880 = scmp.lt.s32.totalorder %s11879, 7
        %s11881 = scalar_select %p11880, %s11879, 7
        %s11882 = smul.addr %s11881, 8
        %s11883 = scalar_lea.vmem %s11, %s11882
        // Predicated region
        $region105: #{discriminator_forward_batched.1} parent=63 // pred_check
          %p11884 = pneg %p286
        $region106: #{discriminator_forward_batched.1} parent=63 // pred_check_branch
          %11886 = sbr.rel (%p11884) target = $region108
        $region107: #{discriminator_forward_batched.1} parent=63 // pred_region
          %s11887 = smul.u32 4, %s32
        $region108: #{discriminator_forward_batched.1} parent=63 // pred_fallthru
          _
      $region64: #{discriminator_forward_batched.1} parent=5 // pred_fallthru
        _
      %p11888 = scmp.le.s32.totalorder 2, %s27
      // Predicated region
      $region109: #{discriminator_forward_batched.1} parent=5 // pred_check
        %p11889 = pneg %p11888
      $region110: #{discriminator_forward_batched.1} parent=5 // pred_check_branch
        %11891 = sbr.rel (%p11889) target = $region112
      $region111: #{discriminator_forward_batched.1} parent=5 // pred_region
        %s11892 = ssub.s32 %s27, 2
        // Predicated region
        $region113: #{discriminator_forward_batched.1} parent=111 // pred_check
          %p11893 = pneg %p292
        $region114: #{discriminator_forward_batched.1} parent=111 // pred_check_branch
          %11895 = sbr.rel (%p11893) target = $region116
        $region115: #{discriminator_forward_batched.1} parent=111 // pred_region
          %s11896 = smul.u32 4, %s33
          %p11897 = scmp.lt.s32.totalorder %s11896, 7
          %s11898 = scalar_select %p11897, %s11896, 7
          %s11899 = smul.addr %s11898, 8
          %s11900 = scalar_lea.vmem %s11, %s11899
        $region116: #{discriminator_forward_batched.1} parent=111 // pred_fallthru
          _
      $region112: #{discriminator_forward_batched.1} parent=5 // pred_fallthru
        _
    $region6: #{discriminator_forward_batched.1} parent=1 // loop_footer
      %s31 = sadd.s32 1, %s27
    $region7: #{discriminator_forward_batched.1} parent=1 // loop_footer_branch
      %26 = sbr.rel target = $region3
    $region8: #{discriminator_forward_batched.1} parent=1 // loop_exit
      _
    %11901 = vsyncpa [#allocation4], 1
    %s11902 = scalar_lea.sflag [#allocation4], 1
    %11903 = vsyncpa %s11902, 1
    %11904 = vsyncpa [#allocation6], 1
    %11905 = vsyncpa [#allocation9], 1
    %11906 = vsyncpa [#allocation12], 1
    %11907 = vsyncpa [#allocation15], 1
    %11908 = vsyncpa [#allocation18], 1

</llo_original>
